<compile_context>
chip_gen: v7x
topology: tpu7x:2x2x1
jax: 0.10.0
libtpu: 0.0.40
codegen_flags: <defaults>
</compile_context>

<pallas_src>
import jax
import jax.numpy as jnp
from jax.experimental import pallas as pl
from jax.experimental.pallas import tpu as pltpu

NEG_SLOPE = 0.01      # nn.LeakyReLU() default negative_slope
BN_EPS = 1e-5         # nn.BatchNorm2d default eps


# ---------------------------------------------------------------------------
# Fused kernel: one image (grid step) = full SPP
# ---------------------------------------------------------------------------
def _spp_fused_kernel(x_ref, w1_ref, b1_ref, w2_ref, b2_ref, w3_ref, b3_ref,
                      o_ref, pconv_ref, ppool_ref):
    """conv1x1 -> conv3x3 -> conv1x1 -> cascaded max5 pools, one image.

    x_ref    : (1, M, C)  bf16     flattened NHWC activation (M = H*W)
    w1/w3    : (C, Ch)    bf16     BN-folded 1x1 weights
    w2       : (3, 3*Ch, C) bf16   BN-folded 3x3 weights, row-major (kh, kw*Ch+cin)
    b1/b2/b3 : (1, Cout)  f32      BN-folded biases
    o_ref    : (4, H, W, Ch) bf16  branch-major output [y, pool5, pool9, pool13]
    pconv_ref: (H+2, W+2, Ch) bf16 zero-padded conv3x3 input scratch
    ppool_ref: (H+4, W+4, Ch) bf16 -inf-padded pooling scratch
    """
    _, M, C = x_ref.shape
    _, H, W, Ch = o_ref.shape

    def lrelu(v):
        return jnp.where(v >= 0, v, NEG_SLOPE * v)

    # ---- border init (thin strips only; interiors are overwritten below) ---
    # Done every grid step (not pl.when(pid==0)) so it stays correct if the
    # "parallel" batch axis is split across TensorCores.
    zrow = jnp.zeros((1, W + 2, Ch), jnp.bfloat16)
    zcol = jnp.zeros((H + 2, 1, Ch), jnp.bfloat16)
    pconv_ref[0:1, :, :] = zrow
    pconv_ref[H + 1:H + 2, :, :] = zrow
    pconv_ref[:, 0:1, :] = zcol
    pconv_ref[:, W + 1:W + 2, :] = zcol

    nrow = jnp.full((2, W + 4, Ch), -jnp.inf, jnp.bfloat16)
    ncol = jnp.full((H + 4, 2, Ch), -jnp.inf, jnp.bfloat16)
    ppool_ref[0:2, :, :] = nrow
    ppool_ref[H + 2:H + 4, :, :] = nrow
    ppool_ref[:, 0:2, :] = ncol
    ppool_ref[:, W + 2:W + 4, :] = ncol

    # ---- stage 1: 1x1 conv (C -> Ch) + BN + LeakyReLU ----------------------
    x2d = x_ref[0]                                              # (M, C) bf16
    y1 = jnp.dot(x2d, w1_ref[...], preferred_element_type=jnp.float32)
    y1 = lrelu(y1 + b1_ref[...]).astype(jnp.bfloat16)           # (M, Ch) bf16

    # ---- stage 2: 3x3 conv (Ch -> C) ----------------------------------------
    # zero-padded interior write, then 3 kw-shifted planes built ONCE and
    # concatenated on the lane axis; per-kh contraction with K = 3*Ch.
    pconv_ref[1:H + 1, 1:W + 1, :] = y1.reshape(H, W, Ch)
    p_cat = jnp.concatenate(
        [pconv_ref[:, kw:kw + W, :] for kw in range(3)], axis=-1)  # (H+2, W, 3Ch)

    y2 = None
    for kh in range(3):                                  # 3 acc updates, not 9
        pk = p_cat[kh:kh + H].reshape(M, 3 * Ch)         # cheap leading slice
        d = jnp.dot(pk, w2_ref[kh], preferred_element_type=jnp.float32)
        y2 = d if y2 is None else y2 + d
    y2 = lrelu(y2 + b2_ref[...])                         # (M, C) f32

    # ---- stage 3: 1x1 conv (C -> Ch) + BN + LeakyReLU ----------------------
    y3 = jnp.dot(y2.astype(jnp.bfloat16), w3_ref[...],
                 preferred_element_type=jnp.float32)
    y3 = lrelu(y3 + b3_ref[...]).astype(jnp.bfloat16)    # (M, Ch) bf16
    y3_hwc = y3.reshape(H, W, Ch)
    o_ref[0] = y3_hwc

    # ---- cascaded SPPF-style max pools: 5 -> 9 -> 13 ------------------------
    # For stride-1, -inf padded pooling: max9 = max5(max5), max13 = max5^3.
    # H-direction first (cheap leading-dim ref slices over the -inf border),
    # then W-direction on the value (4 small bf16 shifted slices per branch).
    cur = y3_hwc
    for branch in range(1, 4):
        ppool_ref[2:H + 2, 2:W + 2, :] = cur
        th = ppool_ref[0:H, :, :]                        # (H, W+4, Ch) bf16
        for kh in range(1, 5):
            th = jnp.maximum(th, ppool_ref[kh:kh + H, :, :])
        m = th[:, 0:W, :]
        for kw in range(1, 5):
            m = jnp.maximum(m, th[:, kw:kw + W, :])
        o_ref[branch] = m
        cur = m


# ---------------------------------------------------------------------------
# BN folding + pallas_call wrapper
# ---------------------------------------------------------------------------
def _fold_bn(w, bn):
    """Fold eval-mode BatchNorm into conv weight (bf16) and a per-channel bias."""
    gamma, beta, mean, var = bn
    s = gamma / jnp.sqrt(var + BN_EPS)                 # (Cout,)
    b = beta - mean * s                                # (Cout,)
    w_folded = (w * s).astype(jnp.bfloat16)            # broadcasts over Cout (last dim)
    return w_folded, b.reshape(1, -1).astype(jnp.float32)


def _spp_pallas(x_nhwc, params):
    """Runs the fused kernel; returns branch-major (N, 4, H, W, C//2) bf16."""
    N, H, W, C = x_nhwc.shape
    Ch = C // 2
    M = H * W

    w1, b1 = _fold_bn(params["w1"], params["bn1"])     # (C, Ch),    (1, Ch)
    w2, b2 = _fold_bn(params["w2"], params["bn2"])     # (3,3,Ch,C), (1, C)
    w3, b3 = _fold_bn(params["w3"], params["bn3"])     # (C, Ch),    (1, Ch)
    w2 = w2.reshape(3, 3 * Ch, C)                      # row-major (kh, kw*Ch+cin)

    # Input stays bf16 on the wire (half the DMA); (N,H,W,C)->(N,M,C) is a free
    # HBM reshape and avoids an in-kernel relayout for the stage-1 matmul.
    x2d = x_nhwc.reshape(N, M, C).astype(jnp.bfloat16)

    out = pl.pallas_call(
        _spp_fused_kernel,
        grid=(N,),
        in_specs=[
            pl.BlockSpec((1, M, C), lambda n: (n, 0, 0)),
            pl.BlockSpec((C, Ch), lambda n: (0, 0)),
            pl.BlockSpec((1, Ch), lambda n: (0, 0)),
            pl.BlockSpec((3, 3 * Ch, C), lambda n: (0, 0, 0)),
            pl.BlockSpec((1, C), lambda n: (0, 0)),
            pl.BlockSpec((C, Ch), lambda n: (0, 0)),
            pl.BlockSpec((1, Ch), lambda n: (0, 0)),
        ],
        # Branch-major output: block n covers rows [4n, 4n+4) = image n's
        # 4 branches -> lane-dense, fully covered stores inside the kernel.
        out_specs=pl.BlockSpec((4, H, W, Ch), lambda n: (n, 0, 0, 0)),
        out_shape=jax.ShapeDtypeStruct((N * 4, H, W, Ch), jnp.bfloat16),
        scratch_shapes=[
            pltpu.VMEM((H + 2, W + 2, Ch), jnp.bfloat16),   # conv3x3 zero pad
            pltpu.VMEM((H + 4, W + 4, Ch), jnp.bfloat16),   # max5 -inf pad
        ],
        compiler_params=pltpu.CompilerParams(
            dimension_semantics=("parallel",),              # megacore across batch
            vmem_limit_bytes=56 * 1024 * 1024),             # ~35 MB needed at 19x19x1024
    )(x2d, w1, b1, w2, b2, w3, b3)

    return out.reshape(N, 4, H, W, Ch)


def spp_forward(x_nchw, params):
    """NCHW in / NCHW out (bf16), matching SpatialPyramidPooling.forward."""
    N, C, H, W = x_nchw.shape
    Ch = C // 2
    x = jnp.transpose(x_nchw, (0, 2, 3, 1))            # channels -> lane dim
    out = _spp_pallas(x, params)                       # (N, 4, H, W, Ch)
    # Channel concat realized by merging (branch, Ch) inside the transpose
    # that the NCHW output layout needs anyway.
    out = jnp.transpose(out, (0, 1, 4, 2, 3))          # (N, 4, Ch, H, W)
    return out.reshape(N, 4 * Ch, H, W)


# ---------------------------------------------------------------------------
# Parameter init (mirrors SpatialPyramidPooling.__initialize_weights)
# ---------------------------------------------------------------------------
def init_params(key, C):
    Ch = C // 2
    k1, k2, k3, k4, k5 = jax.random.split(key, 5)
    # PyTorch conv weight layout: (Cout, Cin, kh, kw); normal(0, 0.01), no bias.
    w1 = jax.random.normal(k1, (Ch, C, 1, 1), jnp.float32) * 0.01
    w2 = jax.random.normal(k2, (C, Ch, 3, 3), jnp.float32) * 0.01
    w3 = jax.random.normal(k3, (Ch, C, 1, 1), jnp.float32) * 0.01

    def bn(cout, kk):  # gamma=1, beta=0 (module init); non-trivial running stats
        km, kv = jax.random.split(kk)
        return (jnp.ones((cout,), jnp.float32),
                jnp.zeros((cout,), jnp.float32),
                0.1 * jax.random.normal(km, (cout,), jnp.float32),
                jax.random.uniform(kv, (cout,), jnp.float32, 0.5, 1.5))

    kb1, kb2, kb3 = jax.random.split(k4, 3)
    del k5
    return dict(
        w1=jnp.transpose(w1[:, :, 0, 0], (1, 0)),      # (C,  Ch)
        w2=jnp.transpose(w2, (2, 3, 1, 0)),            # (3, 3, Ch, C)
        w3=jnp.transpose(w3[:, :, 0, 0], (1, 0)),      # (C,  Ch)
        bn1=bn(Ch, kb1), bn2=bn(C, kb2), bn3=bn(Ch, kb3),
    )


# ---------------------------------------------------------------------------
# Pure-JAX (non-Pallas) reference, mirroring the kernel's bf16 casts
# ---------------------------------------------------------------------------
def _spp_reference(x_nchw, params, pool_sizes=(5, 9, 13)):
    f32 = jnp.float32

    def rt(v):  # bf16 round trip (mirrors the kernel's bf16 memory path)
        return v.astype(jnp.bfloat16).astype(f32)

    x = rt(jnp.transpose(x_nchw, (0, 2, 3, 1)))
    N, H, W, C = x.shape

    def conv_bn_lrelu(v, w, bn, k):
        gamma, beta, mean, var = bn
        s = gamma / jnp.sqrt(var + BN_EPS)
        wf = rt(w * s)
        bias = beta - mean * s
        if k == 1:
            y = jnp.einsum("nhwc,co->nhwo", v, wf)
        else:
            p = k // 2
            vp = jnp.pad(v, ((0, 0), (p, p), (p, p), (0, 0)))
            y = 0.0
            for kh in range(k):
                for kw in range(k):
                    y = y + jnp.einsum("nhwc,co->nhwo",
                                       vp[:, kh:kh + H, kw:kw + W, :], wf[kh, kw])
        y = y + bias
        y = jnp.where(y >= 0, y, NEG_SLOPE * y)
        return rt(y)

    y = conv_bn_lrelu(x, params["w1"], params["bn1"], 1)
    y = conv_bn_lrelu(y, params["w2"], params["bn2"], 3)
    y = conv_bn_lrelu(y, params["w3"], params["bn3"], 1)

    feats = [y]
    for k in pool_sizes:
        p = k // 2
        yp = jnp.pad(y, ((0, 0), (p, p), (p, p), (0, 0)),
                     constant_values=-jnp.inf)
        m = jnp.full_like(y, -jnp.inf)
        for kh in range(k):
            for kw in range(k):
                m = jnp.maximum(m, yp[:, kh:kh + H, kw:kw + W, :])
        feats.append(m)
    out = jnp.concatenate(feats, axis=-1)
    return jnp.transpose(out, (0, 3, 1, 2))


if __name__ == "__main__":
    key = jax.random.PRNGKey(0)
    kx, kp = jax.random.split(key)

    # features[-1] of YoloV4Neck: B x feature_channels[-1] x N x N (NCHW).
    # Small but lane-dense test (Ch = 128) so vregs are not >90% masked.
    N, C, H, W = 2, 256, 16, 16
    x = jax.random.normal(kx, (N, C, H, W), jnp.float32)
    params = init_params(kp, C)

    out = jax.jit(spp_forward)(x, params)
    out = jax.block_until_ready(out)

    expected_shape = (N, 4 * (C // 2), H, W)
    assert out.shape == expected_shape, (out.shape, expected_shape)
    out32 = out.astype(jnp.float32)
    assert bool(jnp.all(jnp.isfinite(out32)))

    # Reference mirrors the kernel's bf16 casts -> tight tolerance.
    ref = _spp_reference(x, params)
    rel_err = float(jnp.max(jnp.abs(out32 - ref)) /
                    (jnp.max(jnp.abs(ref)) + 1e-12))
    assert rel_err < 2e-2, rel_err

    print("KERNEL_OK")
</pallas_src>

<mosaic_0001>
module attributes {stable_mosaic.version = 11 : i64} {
  func.func @_spp_fused_kernel(%arg0: i32, %arg1: memref<1x256x256xbf16, #tpu.memory_space<vmem>>, %arg2: memref<256x128xbf16, #tpu.memory_space<vmem>>, %arg3: memref<1x128xf32, #tpu.memory_space<vmem>>, %arg4: memref<3x384x256xbf16, #tpu.memory_space<vmem>>, %arg5: memref<1x256xf32, #tpu.memory_space<vmem>>, %arg6: memref<256x128xbf16, #tpu.memory_space<vmem>>, %arg7: memref<1x128xf32, #tpu.memory_space<vmem>>, %arg8: memref<4x16x16x128xbf16, #tpu.memory_space<vmem>>, %arg9: memref<18x18x128xbf16, #tpu.memory_space<vmem>>, %arg10: memref<20x20x128xbf16, #tpu.memory_space<vmem>>) attributes {dimension_semantics = [#tpu.dimension_semantics<parallel>], iteration_bounds = array<i64: 2>, scalar_prefetch = 0 : i64, scratch_operands = 2 : i64, tpu.core_type = #tpu.core_type<tc>, window_params = [{transform_indices = @transform_0, window_bounds = array<i64: 1, 256, 256>}, {pipeline_mode = #tpu.pipeline_mode<synchronous>, transform_indices = @transform_1, window_bounds = array<i64: 256, 128>}, {pipeline_mode = #tpu.pipeline_mode<synchronous>, transform_indices = @transform_2, window_bounds = array<i64: 1, 128>}, {pipeline_mode = #tpu.pipeline_mode<synchronous>, transform_indices = @transform_3, window_bounds = array<i64: 3, 384, 256>}, {pipeline_mode = #tpu.pipeline_mode<synchronous>, transform_indices = @transform_4, window_bounds = array<i64: 1, 256>}, {pipeline_mode = #tpu.pipeline_mode<synchronous>, transform_indices = @transform_5, window_bounds = array<i64: 256, 128>}, {pipeline_mode = #tpu.pipeline_mode<synchronous>, transform_indices = @transform_6, window_bounds = array<i64: 1, 128>}, {transform_indices = @transform_7, window_bounds = array<i64: 4, 16, 16, 128>}]} {
    %cst = arith.constant 0.000000e+00 : bf16
    %0 = vector.broadcast %cst : bf16 to vector<1x18x128xbf16>
    %cst_0 = arith.constant 0.000000e+00 : bf16
    %1 = vector.broadcast %cst_0 : bf16 to vector<18x1x128xbf16>
    %c0 = arith.constant 0 : index
    %c0_1 = arith.constant 0 : index
    %c0_2 = arith.constant 0 : index
    %2 = vector.load %arg9[%c0, %c0_1, %c0_2] : memref<18x18x128xbf16, #tpu.memory_space<vmem>>, vector<1x18x128xbf16>
    tpu.vector_store %arg9[%c0, %c0_1, %c0_2], %0 {strides = array<i32>} : memref<18x18x128xbf16, #tpu.memory_space<vmem>>, vector<1x18x128xbf16>,
    %c17 = arith.constant 17 : index
    %c0_3 = arith.constant 0 : index
    %c0_4 = arith.constant 0 : index
    %3 = vector.load %arg9[%c17, %c0_3, %c0_4] : memref<18x18x128xbf16, #tpu.memory_space<vmem>>, vector<1x18x128xbf16>
    tpu.vector_store %arg9[%c17, %c0_3, %c0_4], %0 {strides = array<i32>} : memref<18x18x128xbf16, #tpu.memory_space<vmem>>, vector<1x18x128xbf16>,
    %c0_5 = arith.constant 0 : index
    %c0_6 = arith.constant 0 : index
    %c0_7 = arith.constant 0 : index
    %4 = vector.load %arg9[%c0_5, %c0_6, %c0_7] : memref<18x18x128xbf16, #tpu.memory_space<vmem>>, vector<18x1x128xbf16>
    tpu.vector_store %arg9[%c0_5, %c0_6, %c0_7], %1 {strides = array<i32>} : memref<18x18x128xbf16, #tpu.memory_space<vmem>>, vector<18x1x128xbf16>,
    %c0_8 = arith.constant 0 : index
    %c17_9 = arith.constant 17 : index
    %c0_10 = arith.constant 0 : index
    %5 = vector.load %arg9[%c0_8, %c17_9, %c0_10] : memref<18x18x128xbf16, #tpu.memory_space<vmem>>, vector<18x1x128xbf16>
    tpu.vector_store %arg9[%c0_8, %c17_9, %c0_10], %1 {strides = array<i32>} : memref<18x18x128xbf16, #tpu.memory_space<vmem>>, vector<18x1x128xbf16>,
    %cst_11 = arith.constant 0xFF80 : bf16
    %6 = vector.broadcast %cst_11 : bf16 to vector<2x20x128xbf16>
    %cst_12 = arith.constant 0xFF80 : bf16
    %7 = vector.broadcast %cst_12 : bf16 to vector<20x2x128xbf16>
    %c0_13 = arith.constant 0 : index
    %c0_14 = arith.constant 0 : index
    %c0_15 = arith.constant 0 : index
    %8 = vector.load %arg10[%c0_13, %c0_14, %c0_15] : memref<20x20x128xbf16, #tpu.memory_space<vmem>>, vector<2x20x128xbf16>
    tpu.vector_store %arg10[%c0_13, %c0_14, %c0_15], %6 {strides = array<i32>} : memref<20x20x128xbf16, #tpu.memory_space<vmem>>, vector<2x20x128xbf16>,
    %c18 = arith.constant 18 : index
    %c0_16 = arith.constant 0 : index
    %c0_17 = arith.constant 0 : index
    %9 = vector.load %arg10[%c18, %c0_16, %c0_17] : memref<20x20x128xbf16, #tpu.memory_space<vmem>>, vector<2x20x128xbf16>
    tpu.vector_store %arg10[%c18, %c0_16, %c0_17], %6 {strides = array<i32>} : memref<20x20x128xbf16, #tpu.memory_space<vmem>>, vector<2x20x128xbf16>,
    %c0_18 = arith.constant 0 : index
    %c0_19 = arith.constant 0 : index
    %c0_20 = arith.constant 0 : index
    %10 = vector.load %arg10[%c0_18, %c0_19, %c0_20] : memref<20x20x128xbf16, #tpu.memory_space<vmem>>, vector<20x2x128xbf16>
    tpu.vector_store %arg10[%c0_18, %c0_19, %c0_20], %7 {strides = array<i32>} : memref<20x20x128xbf16, #tpu.memory_space<vmem>>, vector<20x2x128xbf16>,
    %c0_21 = arith.constant 0 : index
    %c18_22 = arith.constant 18 : index
    %c0_23 = arith.constant 0 : index
    %11 = vector.load %arg10[%c0_21, %c18_22, %c0_23] : memref<20x20x128xbf16, #tpu.memory_space<vmem>>, vector<20x2x128xbf16>
    tpu.vector_store %arg10[%c0_21, %c18_22, %c0_23], %7 {strides = array<i32>} : memref<20x20x128xbf16, #tpu.memory_space<vmem>>, vector<20x2x128xbf16>,
    %c0_24 = arith.constant 0 : index
    %c0_25 = arith.constant 0 : index
    %c0_26 = arith.constant 0 : index
    %12 = vector.load %arg1[%c0_24, %c0_25, %c0_26] : memref<1x256x256xbf16, #tpu.memory_space<vmem>>, vector<1x256x256xbf16>
    %13 = vector.shape_cast %12 : vector<1x256x256xbf16> to vector<256x256xbf16>
    %c0_27 = arith.constant 0 : index
    %c0_28 = arith.constant 0 : index
    %14 = vector.load %arg2[%c0_27, %c0_28] : memref<256x128xbf16, #tpu.memory_space<vmem>>, vector<256x128xbf16>
    %cst_29 = arith.constant dense<0.000000e+00> : vector<256x128xf32>
    %15 = tpu.matmul %13, %14, %cst_29 {dimension_numbers = #tpu.dot_dimension_numbers<[1], [0], [0], [1], [0, 0, 1, 1], [], []>} : vector<256x256xbf16>, vector<256x128xbf16>, vector<256x128xf32> -> vector<256x128xf32>
    %c0_30 = arith.constant 0 : index
    %c0_31 = arith.constant 0 : index
    %16 = vector.load %arg3[%c0_30, %c0_31] : memref<1x128xf32, #tpu.memory_space<vmem>>, vector<1x128xf32>
    %17 = vector.broadcast %16 : vector<1x128xf32> to vector<256x128xf32>
    %18 = arith.addf %15, %17 : vector<256x128xf32>
    %cst_32 = arith.constant 0.000000e+00 : f32
    %19 = vector.broadcast %cst_32 : f32 to vector<256x128xf32>
    %20 = arith.cmpf oge, %18, %19 : vector<256x128xf32>
    %cst_33 = arith.constant 0.00999999977 : f32
    %21 = vector.broadcast %cst_33 : f32 to vector<256x128xf32>
    %22 = arith.mulf %21, %18 : vector<256x128xf32>
    %23 = arith.select %20, %18, %22 : vector<256x128xi1>, vector<256x128xf32>
    %24 = arith.truncf %23 : vector<256x128xf32> to vector<256x128xbf16>
    %25 = vector.shape_cast %24 : vector<256x128xbf16> to vector<16x16x128xbf16>
    %c1 = arith.constant 1 : index
    %c1_34 = arith.constant 1 : index
    %c0_35 = arith.constant 0 : index
    %26 = vector.load %arg9[%c1, %c1_34, %c0_35] : memref<18x18x128xbf16, #tpu.memory_space<vmem>>, vector<16x16x128xbf16>
    tpu.vector_store %arg9[%c1, %c1_34, %c0_35], %25 {strides = array<i32>} : memref<18x18x128xbf16, #tpu.memory_space<vmem>>, vector<16x16x128xbf16>,
    %c0_36 = arith.constant 0 : index
    %c0_37 = arith.constant 0 : index
    %c0_38 = arith.constant 0 : index
    %27 = vector.load %arg9[%c0_36, %c0_37, %c0_38] : memref<18x18x128xbf16, #tpu.memory_space<vmem>>, vector<18x16x128xbf16>
    %c0_39 = arith.constant 0 : index
    %c1_40 = arith.constant 1 : index
    %c0_41 = arith.constant 0 : index
    %28 = vector.load %arg9[%c0_39, %c1_40, %c0_41] : memref<18x18x128xbf16, #tpu.memory_space<vmem>>, vector<18x16x128xbf16>
    %c0_42 = arith.constant 0 : index
    %c2 = arith.constant 2 : index
    %c0_43 = arith.constant 0 : index
    %29 = vector.load %arg9[%c0_42, %c2, %c0_43] : memref<18x18x128xbf16, #tpu.memory_space<vmem>>, vector<18x16x128xbf16>
    %30 = tpu.concatenate %27, %28, %29 in 2 : vector<18x16x128xbf16>, vector<18x16x128xbf16>, vector<18x16x128xbf16> -> vector<18x16x384xbf16>
    %31 = vector.extract_strided_slice %30 {offsets = [0, 0, 0], sizes = [16, 16, 384], strides = [1, 1, 1]} : vector<18x16x384xbf16> to vector<16x16x384xbf16>
    %32 = vector.shape_cast %31 : vector<16x16x384xbf16> to vector<256x384xbf16>
    %c0_44 = arith.constant 0 : index
    %c0_45 = arith.constant 0 : index
    %c0_46 = arith.constant 0 : index
    %33 = vector.load %arg4[%c0_44, %c0_45, %c0_46] : memref<3x384x256xbf16, #tpu.memory_space<vmem>>, vector<1x384x256xbf16>
    %34 = vector.shape_cast %33 : vector<1x384x256xbf16> to vector<384x256xbf16>
    %cst_47 = arith.constant dense<0.000000e+00> : vector<256x256xf32>
    %35 = tpu.matmul %32, %34, %cst_47 {dimension_numbers = #tpu.dot_dimension_numbers<[1], [0], [0], [1], [0, 0, 1, 1], [], []>} : vector<256x384xbf16>, vector<384x256xbf16>, vector<256x256xf32> -> vector<256x256xf32>
    %36 = vector.extract_strided_slice %30 {offsets = [1, 0, 0], sizes = [16, 16, 384], strides = [1, 1, 1]} : vector<18x16x384xbf16> to vector<16x16x384xbf16>
    %37 = vector.shape_cast %36 : vector<16x16x384xbf16> to vector<256x384xbf16>
    %c1_48 = arith.constant 1 : index
    %c0_49 = arith.constant 0 : index
    %c0_50 = arith.constant 0 : index
    %38 = vector.load %arg4[%c1_48, %c0_49, %c0_50] : memref<3x384x256xbf16, #tpu.memory_space<vmem>>, vector<1x384x256xbf16>
    %39 = vector.shape_cast %38 : vector<1x384x256xbf16> to vector<384x256xbf16>
    %cst_51 = arith.constant dense<0.000000e+00> : vector<256x256xf32>
    %40 = tpu.matmul %37, %39, %cst_51 {dimension_numbers = #tpu.dot_dimension_numbers<[1], [0], [0], [1], [0, 0, 1, 1], [], []>} : vector<256x384xbf16>, vector<384x256xbf16>, vector<256x256xf32> -> vector<256x256xf32>
    %41 = arith.addf %35, %40 : vector<256x256xf32>
    %42 = vector.extract_strided_slice %30 {offsets = [2, 0, 0], sizes = [16, 16, 384], strides = [1, 1, 1]} : vector<18x16x384xbf16> to vector<16x16x384xbf16>
    %43 = vector.shape_cast %42 : vector<16x16x384xbf16> to vector<256x384xbf16>
    %c2_52 = arith.constant 2 : index
    %c0_53 = arith.constant 0 : index
    %c0_54 = arith.constant 0 : index
    %44 = vector.load %arg4[%c2_52, %c0_53, %c0_54] : memref<3x384x256xbf16, #tpu.memory_space<vmem>>, vector<1x384x256xbf16>
    %45 = vector.shape_cast %44 : vector<1x384x256xbf16> to vector<384x256xbf16>
    %cst_55 = arith.constant dense<0.000000e+00> : vector<256x256xf32>
    %46 = tpu.matmul %43, %45, %cst_55 {dimension_numbers = #tpu.dot_dimension_numbers<[1], [0], [0], [1], [0, 0, 1, 1], [], []>} : vector<256x384xbf16>, vector<384x256xbf16>, vector<256x256xf32> -> vector<256x256xf32>
    %47 = arith.addf %41, %46 : vector<256x256xf32>
    %c0_56 = arith.constant 0 : index
    %c0_57 = arith.constant 0 : index
    %48 = vector.load %arg5[%c0_56, %c0_57] : memref<1x256xf32, #tpu.memory_space<vmem>>, vector<1x256xf32>
    %49 = vector.broadcast %48 : vector<1x256xf32> to vector<256x256xf32>
    %50 = arith.addf %47, %49 : vector<256x256xf32>
    %cst_58 = arith.constant 0.000000e+00 : f32
    %51 = vector.broadcast %cst_58 : f32 to vector<256x256xf32>
    %52 = arith.cmpf oge, %50, %51 : vector<256x256xf32>
    %cst_59 = arith.constant 0.00999999977 : f32
    %53 = vector.broadcast %cst_59 : f32 to vector<256x256xf32>
    %54 = arith.mulf %53, %50 : vector<256x256xf32>
    %55 = arith.select %52, %50, %54 : vector<256x256xi1>, vector<256x256xf32>
    %56 = arith.truncf %55 : vector<256x256xf32> to vector<256x256xbf16>
    %c0_60 = arith.constant 0 : index
    %c0_61 = arith.constant 0 : index
    %57 = vector.load %arg6[%c0_60, %c0_61] : memref<256x128xbf16, #tpu.memory_space<vmem>>, vector<256x128xbf16>
    %cst_62 = arith.constant dense<0.000000e+00> : vector<256x128xf32>
    %58 = tpu.matmul %56, %57, %cst_62 {dimension_numbers = #tpu.dot_dimension_numbers<[1], [0], [0], [1], [0, 0, 1, 1], [], []>} : vector<256x256xbf16>, vector<256x128xbf16>, vector<256x128xf32> -> vector<256x128xf32>
    %c0_63 = arith.constant 0 : index
    %c0_64 = arith.constant 0 : index
    %59 = vector.load %arg7[%c0_63, %c0_64] : memref<1x128xf32, #tpu.memory_space<vmem>>, vector<1x128xf32>
    %60 = vector.broadcast %59 : vector<1x128xf32> to vector<256x128xf32>
    %61 = arith.addf %58, %60 : vector<256x128xf32>
    %cst_65 = arith.constant 0.000000e+00 : f32
    %62 = vector.broadcast %cst_65 : f32 to vector<256x128xf32>
    %63 = arith.cmpf oge, %61, %62 : vector<256x128xf32>
    %cst_66 = arith.constant 0.00999999977 : f32
    %64 = vector.broadcast %cst_66 : f32 to vector<256x128xf32>
    %65 = arith.mulf %64, %61 : vector<256x128xf32>
    %66 = arith.select %63, %61, %65 : vector<256x128xi1>, vector<256x128xf32>
    %67 = arith.truncf %66 : vector<256x128xf32> to vector<256x128xbf16>
    %68 = vector.shape_cast %67 : vector<256x128xbf16> to vector<16x16x128xbf16>
    %c0_67 = arith.constant 0 : index
    %c0_68 = arith.constant 0 : index
    %c0_69 = arith.constant 0 : index
    %c0_70 = arith.constant 0 : index
    %69 = vector.load %arg8[%c0_67, %c0_68, %c0_69, %c0_70] : memref<4x16x16x128xbf16, #tpu.memory_space<vmem>>, vector<1x16x16x128xbf16>
    %70 = vector.shape_cast %69 : vector<1x16x16x128xbf16> to vector<16x16x128xbf16>
    %71 = vector.shape_cast %68 : vector<16x16x128xbf16> to vector<1x16x16x128xbf16>
    tpu.vector_store %arg8[%c0_67, %c0_68, %c0_69, %c0_70], %71 {strides = array<i32>} : memref<4x16x16x128xbf16, #tpu.memory_space<vmem>>, vector<1x16x16x128xbf16>,
    %c2_71 = arith.constant 2 : index
    %c2_72 = arith.constant 2 : index
    %c0_73 = arith.constant 0 : index
    %72 = vector.load %arg10[%c2_71, %c2_72, %c0_73] : memref<20x20x128xbf16, #tpu.memory_space<vmem>>, vector<16x16x128xbf16>
    tpu.vector_store %arg10[%c2_71, %c2_72, %c0_73], %68 {strides = array<i32>} : memref<20x20x128xbf16, #tpu.memory_space<vmem>>, vector<16x16x128xbf16>,
    %c0_74 = arith.constant 0 : index
    %c0_75 = arith.constant 0 : index
    %c0_76 = arith.constant 0 : index
    %73 = vector.load %arg10[%c0_74, %c0_75, %c0_76] : memref<20x20x128xbf16, #tpu.memory_space<vmem>>, vector<16x20x128xbf16>
    %c1_77 = arith.constant 1 : index
    %c0_78 = arith.constant 0 : index
    %c0_79 = arith.constant 0 : index
    %74 = vector.load %arg10[%c1_77, %c0_78, %c0_79] : memref<20x20x128xbf16, #tpu.memory_space<vmem>>, vector<16x20x128xbf16>
    %75 = arith.maximumf %73, %74 : vector<16x20x128xbf16>
    %c2_80 = arith.constant 2 : index
    %c0_81 = arith.constant 0 : index
    %c0_82 = arith.constant 0 : index
    %76 = vector.load %arg10[%c2_80, %c0_81, %c0_82] : memref<20x20x128xbf16, #tpu.memory_space<vmem>>, vector<16x20x128xbf16>
    %77 = arith.maximumf %75, %76 : vector<16x20x128xbf16>
    %c3 = arith.constant 3 : index
    %c0_83 = arith.constant 0 : index
    %c0_84 = arith.constant 0 : index
    %78 = vector.load %arg10[%c3, %c0_83, %c0_84] : memref<20x20x128xbf16, #tpu.memory_space<vmem>>, vector<16x20x128xbf16>
    %79 = arith.maximumf %77, %78 : vector<16x20x128xbf16>
    %c4 = arith.constant 4 : index
    %c0_85 = arith.constant 0 : index
    %c0_86 = arith.constant 0 : index
    %80 = vector.load %arg10[%c4, %c0_85, %c0_86] : memref<20x20x128xbf16, #tpu.memory_space<vmem>>, vector<16x20x128xbf16>
    %81 = arith.maximumf %79, %80 : vector<16x20x128xbf16>
    %82 = vector.extract_strided_slice %81 {offsets = [0, 0, 0], sizes = [16, 16, 128], strides = [1, 1, 1]} : vector<16x20x128xbf16> to vector<16x16x128xbf16>
    %83 = vector.extract_strided_slice %81 {offsets = [0, 1, 0], sizes = [16, 16, 128], strides = [1, 1, 1]} : vector<16x20x128xbf16> to vector<16x16x128xbf16>
    %84 = arith.maximumf %82, %83 : vector<16x16x128xbf16>
    %85 = vector.extract_strided_slice %81 {offsets = [0, 2, 0], sizes = [16, 16, 128], strides = [1, 1, 1]} : vector<16x20x128xbf16> to vector<16x16x128xbf16>
    %86 = arith.maximumf %84, %85 : vector<16x16x128xbf16>
    %87 = vector.extract_strided_slice %81 {offsets = [0, 3, 0], sizes = [16, 16, 128], strides = [1, 1, 1]} : vector<16x20x128xbf16> to vector<16x16x128xbf16>
    %88 = arith.maximumf %86, %87 : vector<16x16x128xbf16>
    %89 = vector.extract_strided_slice %81 {offsets = [0, 4, 0], sizes = [16, 16, 128], strides = [1, 1, 1]} : vector<16x20x128xbf16> to vector<16x16x128xbf16>
    %90 = arith.maximumf %88, %89 : vector<16x16x128xbf16>
    %c1_87 = arith.constant 1 : index
    %c0_88 = arith.constant 0 : index
    %c0_89 = arith.constant 0 : index
    %c0_90 = arith.constant 0 : index
    %91 = vector.load %arg8[%c1_87, %c0_88, %c0_89, %c0_90] : memref<4x16x16x128xbf16, #tpu.memory_space<vmem>>, vector<1x16x16x128xbf16>
    %92 = vector.shape_cast %91 : vector<1x16x16x128xbf16> to vector<16x16x128xbf16>
    %93 = vector.shape_cast %90 : vector<16x16x128xbf16> to vector<1x16x16x128xbf16>
    tpu.vector_store %arg8[%c1_87, %c0_88, %c0_89, %c0_90], %93 {strides = array<i32>} : memref<4x16x16x128xbf16, #tpu.memory_space<vmem>>, vector<1x16x16x128xbf16>,
    %c2_91 = arith.constant 2 : index
    %c2_92 = arith.constant 2 : index
    %c0_93 = arith.constant 0 : index
    %94 = vector.load %arg10[%c2_91, %c2_92, %c0_93] : memref<20x20x128xbf16, #tpu.memory_space<vmem>>, vector<16x16x128xbf16>
    tpu.vector_store %arg10[%c2_91, %c2_92, %c0_93], %90 {strides = array<i32>} : memref<20x20x128xbf16, #tpu.memory_space<vmem>>, vector<16x16x128xbf16>,
    %c0_94 = arith.constant 0 : index
    %c0_95 = arith.constant 0 : index
    %c0_96 = arith.constant 0 : index
    %95 = vector.load %arg10[%c0_94, %c0_95, %c0_96] : memref<20x20x128xbf16, #tpu.memory_space<vmem>>, vector<16x20x128xbf16>
    %c1_97 = arith.constant 1 : index
    %c0_98 = arith.constant 0 : index
    %c0_99 = arith.constant 0 : index
    %96 = vector.load %arg10[%c1_97, %c0_98, %c0_99] : memref<20x20x128xbf16, #tpu.memory_space<vmem>>, vector<16x20x128xbf16>
    %97 = arith.maximumf %95, %96 : vector<16x20x128xbf16>
    %c2_100 = arith.constant 2 : index
    %c0_101 = arith.constant 0 : index
    %c0_102 = arith.constant 0 : index
    %98 = vector.load %arg10[%c2_100, %c0_101, %c0_102] : memref<20x20x128xbf16, #tpu.memory_space<vmem>>, vector<16x20x128xbf16>
    %99 = arith.maximumf %97, %98 : vector<16x20x128xbf16>
    %c3_103 = arith.constant 3 : index
    %c0_104 = arith.constant 0 : index
    %c0_105 = arith.constant 0 : index
    %100 = vector.load %arg10[%c3_103, %c0_104, %c0_105] : memref<20x20x128xbf16, #tpu.memory_space<vmem>>, vector<16x20x128xbf16>
    %101 = arith.maximumf %99, %100 : vector<16x20x128xbf16>
    %c4_106 = arith.constant 4 : index
    %c0_107 = arith.constant 0 : index
    %c0_108 = arith.constant 0 : index
    %102 = vector.load %arg10[%c4_106, %c0_107, %c0_108] : memref<20x20x128xbf16, #tpu.memory_space<vmem>>, vector<16x20x128xbf16>
    %103 = arith.maximumf %101, %102 : vector<16x20x128xbf16>
    %104 = vector.extract_strided_slice %103 {offsets = [0, 0, 0], sizes = [16, 16, 128], strides = [1, 1, 1]} : vector<16x20x128xbf16> to vector<16x16x128xbf16>
    %105 = vector.extract_strided_slice %103 {offsets = [0, 1, 0], sizes = [16, 16, 128], strides = [1, 1, 1]} : vector<16x20x128xbf16> to vector<16x16x128xbf16>
    %106 = arith.maximumf %104, %105 : vector<16x16x128xbf16>
    %107 = vector.extract_strided_slice %103 {offsets = [0, 2, 0], sizes = [16, 16, 128], strides = [1, 1, 1]} : vector<16x20x128xbf16> to vector<16x16x128xbf16>
    %108 = arith.maximumf %106, %107 : vector<16x16x128xbf16>
    %109 = vector.extract_strided_slice %103 {offsets = [0, 3, 0], sizes = [16, 16, 128], strides = [1, 1, 1]} : vector<16x20x128xbf16> to vector<16x16x128xbf16>
    %110 = arith.maximumf %108, %109 : vector<16x16x128xbf16>
    %111 = vector.extract_strided_slice %103 {offsets = [0, 4, 0], sizes = [16, 16, 128], strides = [1, 1, 1]} : vector<16x20x128xbf16> to vector<16x16x128xbf16>
    %112 = arith.maximumf %110, %111 : vector<16x16x128xbf16>
    %c2_109 = arith.constant 2 : index
    %c0_110 = arith.constant 0 : index
    %c0_111 = arith.constant 0 : index
    %c0_112 = arith.constant 0 : index
    %113 = vector.load %arg8[%c2_109, %c0_110, %c0_111, %c0_112] : memref<4x16x16x128xbf16, #tpu.memory_space<vmem>>, vector<1x16x16x128xbf16>
    %114 = vector.shape_cast %113 : vector<1x16x16x128xbf16> to vector<16x16x128xbf16>
    %115 = vector.shape_cast %112 : vector<16x16x128xbf16> to vector<1x16x16x128xbf16>
    tpu.vector_store %arg8[%c2_109, %c0_110, %c0_111, %c0_112], %115 {strides = array<i32>} : memref<4x16x16x128xbf16, #tpu.memory_space<vmem>>, vector<1x16x16x128xbf16>,
    %c2_113 = arith.constant 2 : index
    %c2_114 = arith.constant 2 : index
    %c0_115 = arith.constant 0 : index
    %116 = vector.load %arg10[%c2_113, %c2_114, %c0_115] : memref<20x20x128xbf16, #tpu.memory_space<vmem>>, vector<16x16x128xbf16>
    tpu.vector_store %arg10[%c2_113, %c2_114, %c0_115], %112 {strides = array<i32>} : memref<20x20x128xbf16, #tpu.memory_space<vmem>>, vector<16x16x128xbf16>,
    %c0_116 = arith.constant 0 : index
    %c0_117 = arith.constant 0 : index
    %c0_118 = arith.constant 0 : index
    %117 = vector.load %arg10[%c0_116, %c0_117, %c0_118] : memref<20x20x128xbf16, #tpu.memory_space<vmem>>, vector<16x20x128xbf16>
    %c1_119 = arith.constant 1 : index
    %c0_120 = arith.constant 0 : index
    %c0_121 = arith.constant 0 : index
    %118 = vector.load %arg10[%c1_119, %c0_120, %c0_121] : memref<20x20x128xbf16, #tpu.memory_space<vmem>>, vector<16x20x128xbf16>
    %119 = arith.maximumf %117, %118 : vector<16x20x128xbf16>
    %c2_122 = arith.constant 2 : index
    %c0_123 = arith.constant 0 : index
    %c0_124 = arith.constant 0 : index
    %120 = vector.load %arg10[%c2_122, %c0_123, %c0_124] : memref<20x20x128xbf16, #tpu.memory_space<vmem>>, vector<16x20x128xbf16>
    %121 = arith.maximumf %119, %120 : vector<16x20x128xbf16>
    %c3_125 = arith.constant 3 : index
    %c0_126 = arith.constant 0 : index
    %c0_127 = arith.constant 0 : index
    %122 = vector.load %arg10[%c3_125, %c0_126, %c0_127] : memref<20x20x128xbf16, #tpu.memory_space<vmem>>, vector<16x20x128xbf16>
    %123 = arith.maximumf %121, %122 : vector<16x20x128xbf16>
    %c4_128 = arith.constant 4 : index
    %c0_129 = arith.constant 0 : index
    %c0_130 = arith.constant 0 : index
    %124 = vector.load %arg10[%c4_128, %c0_129, %c0_130] : memref<20x20x128xbf16, #tpu.memory_space<vmem>>, vector<16x20x128xbf16>
    %125 = arith.maximumf %123, %124 : vector<16x20x128xbf16>
    %126 = vector.extract_strided_slice %125 {offsets = [0, 0, 0], sizes = [16, 16, 128], strides = [1, 1, 1]} : vector<16x20x128xbf16> to vector<16x16x128xbf16>
    %127 = vector.extract_strided_slice %125 {offsets = [0, 1, 0], sizes = [16, 16, 128], strides = [1, 1, 1]} : vector<16x20x128xbf16> to vector<16x16x128xbf16>
    %128 = arith.maximumf %126, %127 : vector<16x16x128xbf16>
    %129 = vector.extract_strided_slice %125 {offsets = [0, 2, 0], sizes = [16, 16, 128], strides = [1, 1, 1]} : vector<16x20x128xbf16> to vector<16x16x128xbf16>
    %130 = arith.maximumf %128, %129 : vector<16x16x128xbf16>
    %131 = vector.extract_strided_slice %125 {offsets = [0, 3, 0], sizes = [16, 16, 128], strides = [1, 1, 1]} : vector<16x20x128xbf16> to vector<16x16x128xbf16>
    %132 = arith.maximumf %130, %131 : vector<16x16x128xbf16>
    %133 = vector.extract_strided_slice %125 {offsets = [0, 4, 0], sizes = [16, 16, 128], strides = [1, 1, 1]} : vector<16x20x128xbf16> to vector<16x16x128xbf16>
    %134 = arith.maximumf %132, %133 : vector<16x16x128xbf16>
    %c3_131 = arith.constant 3 : index
    %c0_132 = arith.constant 0 : index
    %c0_133 = arith.constant 0 : index
    %c0_134 = arith.constant 0 : index
    %135 = vector.load %arg8[%c3_131, %c0_132, %c0_133, %c0_134] : memref<4x16x16x128xbf16, #tpu.memory_space<vmem>>, vector<1x16x16x128xbf16>
    %136 = vector.shape_cast %135 : vector<1x16x16x128xbf16> to vector<16x16x128xbf16>
    %137 = vector.shape_cast %134 : vector<16x16x128xbf16> to vector<1x16x16x128xbf16>
    tpu.vector_store %arg8[%c3_131, %c0_132, %c0_133, %c0_134], %137 {strides = array<i32>} : memref<4x16x16x128xbf16, #tpu.memory_space<vmem>>, vector<1x16x16x128xbf16>,
    return
  }
  func.func @transform_0(%arg0: i32) -> (i32, i32, i32) {
    %c0_i32 = arith.constant 0 : i32
    %c0_i32_0 = arith.constant 0 : i32
    %c0_i32_1 = arith.constant 0 : i32
    return %arg0, %c0_i32, %c0_i32_0 : i32, i32, i32
  }
  func.func @transform_1(%arg0: i32) -> (i32, i32) {
    %c0_i32 = arith.constant 0 : i32
    %c0_i32_0 = arith.constant 0 : i32
    %c0_i32_1 = arith.constant 0 : i32
    return %c0_i32, %c0_i32_0 : i32, i32
  }
  func.func @transform_2(%arg0: i32) -> (i32, i32) {
    %c0_i32 = arith.constant 0 : i32
    %c0_i32_0 = arith.constant 0 : i32
    %c0_i32_1 = arith.constant 0 : i32
    return %c0_i32, %c0_i32_0 : i32, i32
  }
  func.func @transform_3(%arg0: i32) -> (i32, i32, i32) {
    %c0_i32 = arith.constant 0 : i32
    %c0_i32_0 = arith.constant 0 : i32
    %c0_i32_1 = arith.constant 0 : i32
    %c0_i32_2 = arith.constant 0 : i32
    return %c0_i32, %c0_i32_0, %c0_i32_1 : i32, i32, i32
  }
  func.func @transform_4(%arg0: i32) -> (i32, i32) {
    %c0_i32 = arith.constant 0 : i32
    %c0_i32_0 = arith.constant 0 : i32
    %c0_i32_1 = arith.constant 0 : i32
    return %c0_i32, %c0_i32_0 : i32, i32
  }
  func.func @transform_5(%arg0: i32) -> (i32, i32) {
    %c0_i32 = arith.constant 0 : i32
    %c0_i32_0 = arith.constant 0 : i32
    %c0_i32_1 = arith.constant 0 : i32
    return %c0_i32, %c0_i32_0 : i32, i32
  }
  func.func @transform_6(%arg0: i32) -> (i32, i32) {
    %c0_i32 = arith.constant 0 : i32
    %c0_i32_0 = arith.constant 0 : i32
    %c0_i32_1 = arith.constant 0 : i32
    return %c0_i32, %c0_i32_0 : i32, i32
  }
  func.func @transform_7(%arg0: i32) -> (i32, i32, i32, i32) {
    %c0_i32 = arith.constant 0 : i32
    %c0_i32_0 = arith.constant 0 : i32
    %c0_i32_1 = arith.constant 0 : i32
    %c0_i32_2 = arith.constant 0 : i32
    return %arg0, %c0_i32, %c0_i32_0, %c0_i32_1 : i32, i32, i32, i32
  }
}

</mosaic_0001>

<llo_original>
// kernel: spp_forward.1
$region0: #{spp_forward.1}
  #allocation0 [shape = 'u32[]', space=smem, size = 0x4, offset = 0x4, fixed_abs, tag = 'smem constant byte address 0x4 - core index']
  #allocation1 [shape = 'u32[144,128]{1,0:T(1,128)}', space=vmem, size = 0x12000, scoped, tag = 'internal scratch']
  #allocation2 [shape = 'bf16[18,18,128]{2,1,0:T(8,128)(2,1)}', space=vmem, size = 0x1b000, scoped, tag = 'scratch operand']
  #allocation3 [shape = 'bf16[20,20,128]{2,1,0:T(8,128)(2,1)}', space=vmem, size = 0x1e000, scoped, tag = 'scratch operand']
  %s0 = inlined_call_operand.vmem [shape: bf16[2,256,256], index: 0, kind: input, shape index: {}]
  %s1 = inlined_call_operand.vmem [shape: bf16[256,128], index: 1, kind: input, shape index: {}]
  %s2 = inlined_call_operand.vmem [shape: f32[1,128], index: 2, kind: input, shape index: {}]
  %s3 = inlined_call_operand.vmem [shape: bf16[3,384,256], index: 3, kind: input, shape index: {}]
  %s4 = inlined_call_operand.vmem [shape: f32[1,256], index: 4, kind: input, shape index: {}]
  %s5 = inlined_call_operand.vmem [shape: bf16[256,128], index: 5, kind: input, shape index: {}]
  %s6 = inlined_call_operand.vmem [shape: f32[1,128], index: 6, kind: input, shape index: {}]
  %s7 = inlined_call_operand.vmem [shape: bf16[8,16,16,128], index: 7, kind: output, shape index: {}]
  %s8 = sld [smem:[#allocation0]]
  $region61: #{spp_forward.1} parent=0
    _
  %s10 = ssub.s32 1, %s8
  %s11 = scalar_select 0, %s10, %s8
  loop: start=0, step=1, limit=4
  $region2: #{spp_forward.1} parent=0 // loop_pre_header
    _
  $region3: #{spp_forward.1} parent=0 // loop_header
    %s13 = sphi 0, %s17
    %p14 = scmp.ge.s32.totalorder %s13, 4
    %s23 = sphi 0, %s25
    %s26 = sphi 0, %s23
    %s27 = sphi 0, %s26
    %s43 = sphi 0, %s27
    %s47 = sphi 0, %s47
    %s49 = sphi 0, %s47
    %s50 = sphi 0, %s49
    %s64 = sphi 0, %s50
    %s68 = sphi 0, %s68
    %s70 = sphi 0, %s68
    %s71 = sphi 0, %s70
    %s85 = sphi 0, %s71
    %s89 = sphi 0, %s89
    %s91 = sphi 0, %s89
    %s92 = sphi 0, %s91
    %s106 = sphi 0, %s92
    %s110 = sphi 0, %s110
    %s112 = sphi 0, %s110
    %s113 = sphi 0, %s112
    %s127 = sphi 0, %s113
    %s131 = sphi 0, %s131
    %s133 = sphi 0, %s131
    %s134 = sphi 0, %s133
    %s148 = sphi 0, %s134
    %s152 = sphi 0, %s152
    %s154 = sphi 0, %s152
    %s155 = sphi 0, %s154
    %s169 = sphi 0, %s155
    %s175 = sphi 0, %s177
    %s178 = sphi 0, %s175
    %s179 = sphi 0, %s178
    %s195 = sphi 0, %s179
  $region4: #{spp_forward.1} parent=0 // loop_header_branch
    %16 = sbr.rel (%p14) target = $region8
  $region5: #{spp_forward.1} parent=0 // loop_body
    %s18 = ssub.s32 %s13, 1
    %s19 = ssub.s32 %s13, 2
    %s20 = sadd.s32 %s13, 1
    %s21 = ssub.s32 %s13, %s20
    %p22 = scmp.eq.s32.totalorder %s21, 0
    %s24 = sadd.s32 %s23, 1
    %s25 = scalar_select %p22, %s23, %s24
    %p28 = pneg %p22
    %p29 = scmp.eq.s32.totalorder %s13, 1
    %p30 = por %p28, %p29
    %p31 = scmp.ne.s32.totalorder %s23, %s26
    %p32 = scmp.eq.s32.totalorder %s13, 0
    %p33 = por %p31, %p32
    %p34 = scmp.ne.s32.totalorder %s23, %s26
    %p35 = scmp.eq.s32.totalorder %s18, 1
    %p36 = por %p34, %p35
    %p37 = scmp.ne.s32.totalorder %s26, %s27
    %p38 = scmp.eq.s32.totalorder %s18, 0
    %p39 = por %p37, %p38
    %p40 = scmp.ne.s32.totalorder %s26, %s27
    %p41 = scmp.eq.s32.totalorder %s19, 1
    %p42 = por %p40, %p41
    %p44 = scmp.ne.s32.totalorder %s27, %s43
    %p45 = scmp.eq.s32.totalorder %s19, 0
    %p46 = por %p44, %p45
    %s48 = sadd.s32 %s47, 1
    %p51 = scmp.eq.s32.totalorder %s13, 1
    %p52 = scmp.ne.s32.totalorder %s47, %s49
    %p53 = scmp.eq.s32.totalorder %s13, 0
    %p54 = por %p52, %p53
    %p55 = scmp.ne.s32.totalorder %s47, %s49
    %p56 = scmp.eq.s32.totalorder %s18, 1
    %p57 = por %p55, %p56
    %p58 = scmp.ne.s32.totalorder %s49, %s50
    %p59 = scmp.eq.s32.totalorder %s18, 0
    %p60 = por %p58, %p59
    %p61 = scmp.ne.s32.totalorder %s49, %s50
    %p62 = scmp.eq.s32.totalorder %s19, 1
    %p63 = por %p61, %p62
    %p65 = scmp.ne.s32.totalorder %s50, %s64
    %p66 = scmp.eq.s32.totalorder %s19, 0
    %p67 = por %p65, %p66
    %s69 = sadd.s32 %s68, 1
    %p72 = scmp.eq.s32.totalorder %s13, 1
    %p73 = scmp.ne.s32.totalorder %s68, %s70
    %p74 = scmp.eq.s32.totalorder %s13, 0
    %p75 = por %p73, %p74
    %p76 = scmp.ne.s32.totalorder %s68, %s70
    %p77 = scmp.eq.s32.totalorder %s18, 1
    %p78 = por %p76, %p77
    %p79 = scmp.ne.s32.totalorder %s70, %s71
    %p80 = scmp.eq.s32.totalorder %s18, 0
    %p81 = por %p79, %p80
    %p82 = scmp.ne.s32.totalorder %s70, %s71
    %p83 = scmp.eq.s32.totalorder %s19, 1
    %p84 = por %p82, %p83
    %p86 = scmp.ne.s32.totalorder %s71, %s85
    %p87 = scmp.eq.s32.totalorder %s19, 0
    %p88 = por %p86, %p87
    %s90 = sadd.s32 %s89, 1
    %p93 = scmp.eq.s32.totalorder %s13, 1
    %p94 = scmp.ne.s32.totalorder %s89, %s91
    %p95 = scmp.eq.s32.totalorder %s13, 0
    %p96 = por %p94, %p95
    %p97 = scmp.ne.s32.totalorder %s89, %s91
    %p98 = scmp.eq.s32.totalorder %s18, 1
    %p99 = por %p97, %p98
    %p100 = scmp.ne.s32.totalorder %s91, %s92
    %p101 = scmp.eq.s32.totalorder %s18, 0
    %p102 = por %p100, %p101
    %p103 = scmp.ne.s32.totalorder %s91, %s92
    %p104 = scmp.eq.s32.totalorder %s19, 1
    %p105 = por %p103, %p104
    %p107 = scmp.ne.s32.totalorder %s92, %s106
    %p108 = scmp.eq.s32.totalorder %s19, 0
    %p109 = por %p107, %p108
    %s111 = sadd.s32 %s110, 1
    %p114 = scmp.eq.s32.totalorder %s13, 1
    %p115 = scmp.ne.s32.totalorder %s110, %s112
    %p116 = scmp.eq.s32.totalorder %s13, 0
    %p117 = por %p115, %p116
    %p118 = scmp.ne.s32.totalorder %s110, %s112
    %p119 = scmp.eq.s32.totalorder %s18, 1
    %p120 = por %p118, %p119
    %p121 = scmp.ne.s32.totalorder %s112, %s113
    %p122 = scmp.eq.s32.totalorder %s18, 0
    %p123 = por %p121, %p122
    %p124 = scmp.ne.s32.totalorder %s112, %s113
    %p125 = scmp.eq.s32.totalorder %s19, 1
    %p126 = por %p124, %p125
    %p128 = scmp.ne.s32.totalorder %s113, %s127
    %p129 = scmp.eq.s32.totalorder %s19, 0
    %p130 = por %p128, %p129
    %s132 = sadd.s32 %s131, 1
    %p135 = scmp.eq.s32.totalorder %s13, 1
    %p136 = scmp.ne.s32.totalorder %s131, %s133
    %p137 = scmp.eq.s32.totalorder %s13, 0
    %p138 = por %p136, %p137
    %p139 = scmp.ne.s32.totalorder %s131, %s133
    %p140 = scmp.eq.s32.totalorder %s18, 1
    %p141 = por %p139, %p140
    %p142 = scmp.ne.s32.totalorder %s133, %s134
    %p143 = scmp.eq.s32.totalorder %s18, 0
    %p144 = por %p142, %p143
    %p145 = scmp.ne.s32.totalorder %s133, %s134
    %p146 = scmp.eq.s32.totalorder %s19, 1
    %p147 = por %p145, %p146
    %p149 = scmp.ne.s32.totalorder %s134, %s148
    %p150 = scmp.eq.s32.totalorder %s19, 0
    %p151 = por %p149, %p150
    %s153 = sadd.s32 %s152, 1
    %p156 = scmp.eq.s32.totalorder %s13, 1
    %p157 = scmp.ne.s32.totalorder %s152, %s154
    %p158 = scmp.eq.s32.totalorder %s13, 0
    %p159 = por %p157, %p158
    %p160 = scmp.ne.s32.totalorder %s152, %s154
    %p161 = scmp.eq.s32.totalorder %s18, 1
    %p162 = por %p160, %p161
    %p163 = scmp.ne.s32.totalorder %s154, %s155
    %p164 = scmp.eq.s32.totalorder %s18, 0
    %p165 = por %p163, %p164
    %p166 = scmp.ne.s32.totalorder %s154, %s155
    %p167 = scmp.eq.s32.totalorder %s19, 1
    %p168 = por %p166, %p167
    %p170 = scmp.ne.s32.totalorder %s155, %s169
    %p171 = scmp.eq.s32.totalorder %s19, 0
    %p172 = por %p170, %p171
    %s173 = ssub.s32 %s13, %s20
    %p174 = scmp.eq.s32.totalorder %s173, 0
    %s176 = sadd.s32 %s175, 1
    %s177 = scalar_select %p174, %s175, %s176
    %p180 = pneg %p174
    %p181 = scmp.eq.s32.totalorder %s13, 1
    %p182 = por %p180, %p181
    %p183 = scmp.ne.s32.totalorder %s175, %s178
    %p184 = scmp.eq.s32.totalorder %s13, 0
    %p185 = por %p183, %p184
    %p186 = scmp.ne.s32.totalorder %s175, %s178
    %p187 = scmp.eq.s32.totalorder %s18, 1
    %p188 = por %p186, %p187
    %p189 = scmp.ne.s32.totalorder %s178, %s179
    %p190 = scmp.eq.s32.totalorder %s18, 0
    %p191 = por %p189, %p190
    %p192 = scmp.ne.s32.totalorder %s178, %s179
    %p193 = scmp.eq.s32.totalorder %s19, 1
    %p194 = por %p192, %p193
    %p196 = scmp.ne.s32.totalorder %s179, %s195
    %p197 = scmp.eq.s32.totalorder %s19, 0
    %p198 = por %p196, %p197
    %p199 = scmp.le.s32.totalorder 1, %s13
    %p200 = scmp.lt.s32.totalorder %s13, 3
    %p201 = pnand %p199, %p200
    %p202 = pneg %p201
    // Predicated region
    $region9: #{spp_forward.1} parent=5 // pred_check
      _
    $region10: #{spp_forward.1} parent=5 // pred_check_branch
      %204 = sbr.rel (%p201) target = $region12
    $region11: #{spp_forward.1} parent=5 // pred_region
      %s205 = ssub.s32 %s13, 1
      // Predicated region
      $region13: #{spp_forward.1} parent=11 // pred_check
        %p206 = pneg %p60
      $region14: #{spp_forward.1} parent=11 // pred_check_branch
        %208 = sbr.rel (%p206) target = $region16
      $region15: #{spp_forward.1} parent=11 // pred_region
        _
      $region16: #{spp_forward.1} parent=11 // pred_fallthru
        _
      // Predicated region
      $region17: #{spp_forward.1} parent=11 // pred_check
        %p209 = pneg %p81
      $region18: #{spp_forward.1} parent=11 // pred_check_branch
        %211 = sbr.rel (%p209) target = $region20
      $region19: #{spp_forward.1} parent=11 // pred_region
        _
      $region20: #{spp_forward.1} parent=11 // pred_fallthru
        _
      // Predicated region
      $region21: #{spp_forward.1} parent=11 // pred_check
        %p212 = pneg %p102
      $region22: #{spp_forward.1} parent=11 // pred_check_branch
        %214 = sbr.rel (%p212) target = $region24
      $region23: #{spp_forward.1} parent=11 // pred_region
        _
      $region24: #{spp_forward.1} parent=11 // pred_fallthru
        _
      // Predicated region
      $region25: #{spp_forward.1} parent=11 // pred_check
        %p215 = pneg %p123
      $region26: #{spp_forward.1} parent=11 // pred_check_branch
        %217 = sbr.rel (%p215) target = $region28
      $region27: #{spp_forward.1} parent=11 // pred_region
        _
      $region28: #{spp_forward.1} parent=11 // pred_fallthru
        _
      // Predicated region
      $region29: #{spp_forward.1} parent=11 // pred_check
        %p218 = pneg %p144
      $region30: #{spp_forward.1} parent=11 // pred_check_branch
        %220 = sbr.rel (%p218) target = $region32
      $region31: #{spp_forward.1} parent=11 // pred_region
        _
      $region32: #{spp_forward.1} parent=11 // pred_fallthru
        _
      // Predicated region
      $region33: #{spp_forward.1} parent=11 // pred_check
        %p221 = pneg %p165
      $region34: #{spp_forward.1} parent=11 // pred_check_branch
        %223 = sbr.rel (%p221) target = $region36
      $region35: #{spp_forward.1} parent=11 // pred_region
        _
      $region36: #{spp_forward.1} parent=11 // pred_fallthru
        _
    $region12: #{spp_forward.1} parent=5 // pred_fallthru
      _
    %p224 = scmp.lt.s32.totalorder %s13, 2
    // Predicated region
    $region37: #{spp_forward.1} parent=5 // pred_check
      %p225 = pneg %p224
    $region38: #{spp_forward.1} parent=5 // pred_check_branch
      %227 = sbr.rel (%p225) target = $region40
    $region39: #{spp_forward.1} parent=5 // pred_region
      // Predicated region
      $region41: #{spp_forward.1} parent=39 // pred_check
        %p228 = pneg %p33
      $region42: #{spp_forward.1} parent=39 // pred_check_branch
        %230 = sbr.rel (%p228) target = $region44
      $region43: #{spp_forward.1} parent=39 // pred_region
        %p231 = scmp.lt.s32.totalorder %s13, 1
        %s232 = scalar_select %p231, %s13, 1
        %s233 = smul.addr %s232, 64
        %s234 = smul.addr %s233, 4
        %s235 = scalar_lea.vmem %s0, %s234
      $region44: #{spp_forward.1} parent=39 // pred_fallthru
        _
    $region40: #{spp_forward.1} parent=5 // pred_fallthru
      _
    %p236 = scmp.le.s32.totalorder 1, %s13
    %p237 = scmp.lt.s32.totalorder %s13, 3
    %p238 = pnand %p236, %p237
    %p239 = pneg %p238
    // Predicated region
    $region45: #{spp_forward.1} parent=5 // pred_check
      _
    $region46: #{spp_forward.1} parent=5 // pred_check_branch
      %241 = sbr.rel (%p238) target = $region48
    $region47: #{spp_forward.1} parent=5 // pred_region
      %s242 = ssub.s32 %s13, 1
      %p243 = scmp.lt.s32.totalorder %s18, 1
      %s244 = scalar_select %p243, %s18, 1
      %s245 = smul.addr %s244, 64
      %s246 = smul.addr %s245, 4
      %s247 = scalar_lea.vmem %s0, %s246
      %p248 = pneg %p39
      %p249 = pneg %p36
      %p250 = pneg %p60
      %p251 = pneg %p57
      %p252 = pneg %p81
      %p253 = pneg %p78
      %p254 = pneg %p102
      %p255 = pneg %p99
      %p256 = pneg %p123
      %p257 = pneg %p120
      %p258 = pneg %p144
      %p259 = pneg %p141
      %p260 = pneg %p165
      %p261 = pneg %p162
      %p262 = pneg %p191
      %p263 = pneg %p188
      %s264 = smul.u32 4, %s18
      %p265 = scmp.lt.s32.totalorder %s264, 7
      %s266 = scalar_select %p265, %s264, 7
      %s267 = smul.addr %s266, 32
      %s268 = smul.addr %s267, 4
      %s269 = scalar_lea.vmem %s7, %s268
      %p270 = scmp.lt.s32.totalorder %s18, 1
      %s271 = scalar_select %p270, %s18, 1
      %s272 = smul.addr %s271, 64
      %s273 = smul.addr %s272, 4
      %s274 = scalar_lea.vmem %s0, %s273
      %s275 = smul.u32 4, %s18
      %p276 = scmp.lt.s32.totalorder %s275, 7
      %s277 = scalar_select %p276, %s275, 7
      %s278 = smul.addr %s277, 32
      %s279 = smul.addr %s278, 4
      %s280 = scalar_lea.vmem %s7, %s279
      %s281 = smul.u32 4, %s18
      %284 = vst [vmem:[#allocation2] sm:$0xf] 0
      %285 = vst [vmem:[#allocation2 + $0x4] sm:$0xf] 0
      %286 = vst [vmem:[#allocation2 + $0x8] sm:$0x1] 0
      %s287 = scalar_lea.vmem [#allocation2], 204
      %288 = vst [vmem:[%s287] sm:$0xf] 0
      %289 = vst [vmem:[%s287 + $0x4] sm:$0xf] 0
      %290 = vst [vmem:[%s287 + $0x8] sm:$0x1] 0
      %vm291 = vcmask 1040384
      %vm292 = vsmask.f32 256
      %vm293 = vmand %vm291, %vm292
      %v294 = vld [vmem:[#allocation2] sm:$0x1]
      %v295 = vsel %vm293, 0, %v294
      %296 = vst [vmem:[#allocation2] sm:$0x1] %v295
      %v297 = vld [vmem:[#allocation2 + $0xc] sm:$0x1]
      %v298 = vsel %vm293, 0, %v297
      %299 = vst [vmem:[#allocation2 + $0xc] sm:$0x1] %v298
      %v300 = vld [vmem:[#allocation2 + $0x18] sm:$0x1]
      %v301 = vsel %vm293, 0, %v300
      %302 = vst [vmem:[#allocation2 + $0x18] sm:$0x1] %v301
      %v303 = vld [vmem:[#allocation2 + $0x24] sm:$0x1]
      %v304 = vsel %vm293, 0, %v303
      %305 = vst [vmem:[#allocation2 + $0x24] sm:$0x1] %v304
      %v306 = vld [vmem:[#allocation2 + $0x30] sm:$0x1]
      %v307 = vsel %vm293, 0, %v306
      %308 = vst [vmem:[#allocation2 + $0x30] sm:$0x1] %v307
      %v309 = vld [vmem:[#allocation2 + $0x3c] sm:$0x1]
      %v310 = vsel %vm293, 0, %v309
      %311 = vst [vmem:[#allocation2 + $0x3c] sm:$0x1] %v310
      %v312 = vld [vmem:[#allocation2 + $0x48] sm:$0x1]
      %v313 = vsel %vm293, 0, %v312
      %314 = vst [vmem:[#allocation2 + $0x48] sm:$0x1] %v313
      %v315 = vld [vmem:[#allocation2 + $0x54] sm:$0x1]
      %v316 = vsel %vm293, 0, %v315
      %317 = vst [vmem:[#allocation2 + $0x54] sm:$0x1] %v316
      %v318 = vld [vmem:[#allocation2 + $0x60] sm:$0x1]
      %v319 = vsel %vm293, 0, %v318
      %320 = vst [vmem:[#allocation2 + $0x60] sm:$0x1] %v319
      %v321 = vld [vmem:[#allocation2 + $0x6c] sm:$0x1]
      %v322 = vsel %vm293, 0, %v321
      %323 = vst [vmem:[#allocation2 + $0x6c] sm:$0x1] %v322
      %v324 = vld [vmem:[#allocation2 + $0x78] sm:$0x1]
      %v325 = vsel %vm293, 0, %v324
      %326 = vst [vmem:[#allocation2 + $0x78] sm:$0x1] %v325
      %v327 = vld [vmem:[#allocation2 + $0x84] sm:$0x1]
      %v328 = vsel %vm293, 0, %v327
      %329 = vst [vmem:[#allocation2 + $0x84] sm:$0x1] %v328
      %v330 = vld [vmem:[#allocation2 + $0x90] sm:$0x1]
      %v331 = vsel %vm293, 0, %v330
      %332 = vst [vmem:[#allocation2 + $0x90] sm:$0x1] %v331
      %v333 = vld [vmem:[#allocation2 + $0x9c] sm:$0x1]
      %v334 = vsel %vm293, 0, %v333
      %335 = vst [vmem:[#allocation2 + $0x9c] sm:$0x1] %v334
      %v336 = vld [vmem:[#allocation2 + $0xa8] sm:$0x1]
      %v337 = vsel %vm293, 0, %v336
      %338 = vst [vmem:[#allocation2 + $0xa8] sm:$0x1] %v337
      %v339 = vld [vmem:[#allocation2 + $0xb4] sm:$0x1]
      %v340 = vsel %vm293, 0, %v339
      %341 = vst [vmem:[#allocation2 + $0xb4] sm:$0x1] %v340
      %v342 = vld [vmem:[#allocation2 + $0xc0] sm:$0x1]
      %v343 = vsel %vm293, 0, %v342
      %344 = vst [vmem:[#allocation2 + $0xc0] sm:$0x1] %v343
      %v345 = vld [vmem:[#allocation2 + $0xcc] sm:$0x1]
      %v346 = vsel %vm293, 0, %v345
      %347 = vst [vmem:[#allocation2 + $0xcc] sm:$0x1] %v346
      %vm348 = vsmask.f32 7938
      %vm349 = vmand %vm291, %vm348
      %v350 = vld [vmem:[#allocation2 + $0x8] sm:$0x1]
      %v351 = vsel %vm349, 0, %v350
      %352 = vst [vmem:[#allocation2 + $0x8] sm:$0x1] %v351
      %v353 = vld [vmem:[#allocation2 + $0x14] sm:$0x1]
      %v354 = vsel %vm349, 0, %v353
      %355 = vst [vmem:[#allocation2 + $0x14] sm:$0x1] %v354
      %v356 = vld [vmem:[#allocation2 + $0x20] sm:$0x1]
      %v357 = vsel %vm349, 0, %v356
      %358 = vst [vmem:[#allocation2 + $0x20] sm:$0x1] %v357
      %v359 = vld [vmem:[#allocation2 + $0x2c] sm:$0x1]
      %v360 = vsel %vm349, 0, %v359
      %361 = vst [vmem:[#allocation2 + $0x2c] sm:$0x1] %v360
      %v362 = vld [vmem:[#allocation2 + $0x38] sm:$0x1]
      %v363 = vsel %vm349, 0, %v362
      %364 = vst [vmem:[#allocation2 + $0x38] sm:$0x1] %v363
      %v365 = vld [vmem:[#allocation2 + $0x44] sm:$0x1]
      %v366 = vsel %vm349, 0, %v365
      %367 = vst [vmem:[#allocation2 + $0x44] sm:$0x1] %v366
      %v368 = vld [vmem:[#allocation2 + $0x50] sm:$0x1]
      %v369 = vsel %vm349, 0, %v368
      %370 = vst [vmem:[#allocation2 + $0x50] sm:$0x1] %v369
      %v371 = vld [vmem:[#allocation2 + $0x5c] sm:$0x1]
      %v372 = vsel %vm349, 0, %v371
      %373 = vst [vmem:[#allocation2 + $0x5c] sm:$0x1] %v372
      %v374 = vld [vmem:[#allocation2 + $0x68] sm:$0x1]
      %v375 = vsel %vm349, 0, %v374
      %376 = vst [vmem:[#allocation2 + $0x68] sm:$0x1] %v375
      %v377 = vld [vmem:[#allocation2 + $0x74] sm:$0x1]
      %v378 = vsel %vm349, 0, %v377
      %379 = vst [vmem:[#allocation2 + $0x74] sm:$0x1] %v378
      %v380 = vld [vmem:[#allocation2 + $0x80] sm:$0x1]
      %v381 = vsel %vm349, 0, %v380
      %382 = vst [vmem:[#allocation2 + $0x80] sm:$0x1] %v381
      %v383 = vld [vmem:[#allocation2 + $0x8c] sm:$0x1]
      %v384 = vsel %vm349, 0, %v383
      %385 = vst [vmem:[#allocation2 + $0x8c] sm:$0x1] %v384
      %v386 = vld [vmem:[#allocation2 + $0x98] sm:$0x1]
      %v387 = vsel %vm349, 0, %v386
      %388 = vst [vmem:[#allocation2 + $0x98] sm:$0x1] %v387
      %v389 = vld [vmem:[#allocation2 + $0xa4] sm:$0x1]
      %v390 = vsel %vm349, 0, %v389
      %391 = vst [vmem:[#allocation2 + $0xa4] sm:$0x1] %v390
      %v392 = vld [vmem:[#allocation2 + $0xb0] sm:$0x1]
      %v393 = vsel %vm349, 0, %v392
      %394 = vst [vmem:[#allocation2 + $0xb0] sm:$0x1] %v393
      %v395 = vld [vmem:[#allocation2 + $0xbc] sm:$0x1]
      %v396 = vsel %vm349, 0, %v395
      %397 = vst [vmem:[#allocation2 + $0xbc] sm:$0x1] %v396
      %v398 = vld [vmem:[#allocation2 + $0xc8] sm:$0x1]
      %v399 = vsel %vm349, 0, %v398
      %400 = vst [vmem:[#allocation2 + $0xc8] sm:$0x1] %v399
      %v401 = vld [vmem:[#allocation2 + $0xd4] sm:$0x1]
      %v402 = vsel %vm349, 0, %v401
      %403 = vst [vmem:[#allocation2 + $0xd4] sm:$0x1] %v402
      %404 = vst [vmem:[#allocation3] sm:$0xf] 4286644096
      %405 = vst [vmem:[#allocation3 + $0x4] sm:$0xf] 4286644096
      %406 = vst [vmem:[#allocation3 + $0x8] sm:$0x3] 4286644096
      %407 = vst [vmem:[#allocation3 + $0xc] sm:$0xf] 4286644096
      %408 = vst [vmem:[#allocation3 + $0x10] sm:$0xf] 4286644096
      %409 = vst [vmem:[#allocation3 + $0x14] sm:$0x3] 4286644096
      %s410 = scalar_lea.vmem [#allocation3], 216
      %411 = vst [vmem:[%s410] sm:$0xf] 4286644096
      %412 = vst [vmem:[%s410 + $0x4] sm:$0xf] 4286644096
      %413 = vst [vmem:[%s410 + $0x8] sm:$0x3] 4286644096
      %414 = vst [vmem:[%s410 + $0xc] sm:$0xf] 4286644096
      %415 = vst [vmem:[%s410 + $0x10] sm:$0xf] 4286644096
      %416 = vst [vmem:[%s410 + $0x14] sm:$0x3] 4286644096
      %417 = vst [vmem:[#allocation3] sm:$0x1] 4286644096
      %418 = vst [vmem:[#allocation3 + $0xc] sm:$0x1] 4286644096
      %419 = vst [vmem:[#allocation3 + $0x18] sm:$0x1] 4286644096
      %420 = vst [vmem:[#allocation3 + $0x24] sm:$0x1] 4286644096
      %421 = vst [vmem:[#allocation3 + $0x30] sm:$0x1] 4286644096
      %422 = vst [vmem:[#allocation3 + $0x3c] sm:$0x1] 4286644096
      %423 = vst [vmem:[#allocation3 + $0x48] sm:$0x1] 4286644096
      %424 = vst [vmem:[#allocation3 + $0x54] sm:$0x1] 4286644096
      %425 = vst [vmem:[#allocation3 + $0x60] sm:$0x1] 4286644096
      %426 = vst [vmem:[#allocation3 + $0x6c] sm:$0x1] 4286644096
      %427 = vst [vmem:[#allocation3 + $0x78] sm:$0x1] 4286644096
      %428 = vst [vmem:[#allocation3 + $0x84] sm:$0x1] 4286644096
      %429 = vst [vmem:[#allocation3 + $0x90] sm:$0x1] 4286644096
      %430 = vst [vmem:[#allocation3 + $0x9c] sm:$0x1] 4286644096
      %431 = vst [vmem:[#allocation3 + $0xa8] sm:$0x1] 4286644096
      %432 = vst [vmem:[#allocation3 + $0xb4] sm:$0x1] 4286644096
      %433 = vst [vmem:[#allocation3 + $0xc0] sm:$0x1] 4286644096
      %434 = vst [vmem:[#allocation3 + $0xcc] sm:$0x1] 4286644096
      %435 = vst [vmem:[#allocation3 + $0xd8] sm:$0x1] 4286644096
      %436 = vst [vmem:[#allocation3 + $0xe4] sm:$0x1] 4286644096
      %437 = vst [vmem:[#allocation3 + $0x8] sm:$0x2] 4286644096
      %438 = vst [vmem:[#allocation3 + $0x14] sm:$0x2] 4286644096
      %439 = vst [vmem:[#allocation3 + $0x20] sm:$0x2] 4286644096
      %440 = vst [vmem:[#allocation3 + $0x2c] sm:$0x2] 4286644096
      %441 = vst [vmem:[#allocation3 + $0x38] sm:$0x2] 4286644096
      %442 = vst [vmem:[#allocation3 + $0x44] sm:$0x2] 4286644096
      %443 = vst [vmem:[#allocation3 + $0x50] sm:$0x2] 4286644096
      %444 = vst [vmem:[#allocation3 + $0x5c] sm:$0x2] 4286644096
      %445 = vst [vmem:[#allocation3 + $0x68] sm:$0x2] 4286644096
      %446 = vst [vmem:[#allocation3 + $0x74] sm:$0x2] 4286644096
      %447 = vst [vmem:[#allocation3 + $0x80] sm:$0x2] 4286644096
      %448 = vst [vmem:[#allocation3 + $0x8c] sm:$0x2] 4286644096
      %449 = vst [vmem:[#allocation3 + $0x98] sm:$0x2] 4286644096
      %450 = vst [vmem:[#allocation3 + $0xa4] sm:$0x2] 4286644096
      %451 = vst [vmem:[#allocation3 + $0xb0] sm:$0x2] 4286644096
      %452 = vst [vmem:[#allocation3 + $0xbc] sm:$0x2] 4286644096
      %453 = vst [vmem:[#allocation3 + $0xc8] sm:$0x2] 4286644096
      %454 = vst [vmem:[#allocation3 + $0xd4] sm:$0x2] 4286644096
      %455 = vst [vmem:[#allocation3 + $0xe0] sm:$0x2] 4286644096
      %456 = vst [vmem:[#allocation3 + $0xec] sm:$0x2] 4286644096
      %v457 = vld [vmem:[%s274] sm:$0xff]
      %v458 = vld [vmem:[%s274 + $0x8] sm:$0xff]
      %v459 = vld [vmem:[%s274 + $0x10] sm:$0xff]
      %v460 = vld [vmem:[%s274 + $0x18] sm:$0xff]
      %v461 = vld [vmem:[%s274 + $0x20] sm:$0xff]
      %v462 = vld [vmem:[%s274 + $0x28] sm:$0xff]
      %v463 = vld [vmem:[%s274 + $0x30] sm:$0xff]
      %v464 = vld [vmem:[%s274 + $0x38] sm:$0xff]
      %v465 = vld [vmem:[%s274 + $0x40] sm:$0xff]
      %v466 = vld [vmem:[%s274 + $0x48] sm:$0xff]
      %v467 = vld [vmem:[%s274 + $0x50] sm:$0xff]
      %v468 = vld [vmem:[%s274 + $0x58] sm:$0xff]
      %v469 = vld [vmem:[%s274 + $0x60] sm:$0xff]
      %v470 = vld [vmem:[%s274 + $0x68] sm:$0xff]
      %v471 = vld [vmem:[%s274 + $0x70] sm:$0xff]
      %v472 = vld [vmem:[%s274 + $0x78] sm:$0xff]
      %v473 = vld [vmem:[%s274 + $0x80] sm:$0xff]
      %v474 = vld [vmem:[%s274 + $0x88] sm:$0xff]
      %v475 = vld [vmem:[%s274 + $0x90] sm:$0xff]
      %v476 = vld [vmem:[%s274 + $0x98] sm:$0xff]
      %v477 = vld [vmem:[%s274 + $0xa0] sm:$0xff]
      %v478 = vld [vmem:[%s274 + $0xa8] sm:$0xff]
      %v479 = vld [vmem:[%s274 + $0xb0] sm:$0xff]
      %v480 = vld [vmem:[%s274 + $0xb8] sm:$0xff]
      %v481 = vld [vmem:[%s274 + $0xc0] sm:$0xff]
      %v482 = vld [vmem:[%s274 + $0xc8] sm:$0xff]
      %v483 = vld [vmem:[%s274 + $0xd0] sm:$0xff]
      %v484 = vld [vmem:[%s274 + $0xd8] sm:$0xff]
      %v485 = vld [vmem:[%s274 + $0xe0] sm:$0xff]
      %v486 = vld [vmem:[%s274 + $0xe8] sm:$0xff]
      %v487 = vld [vmem:[%s274 + $0xf0] sm:$0xff]
      %v488 = vld [vmem:[%s274 + $0xf8] sm:$0xff]
      %v489 = vld [vmem:[%s1] sm:$0xf]
      %v490 = vld [vmem:[%s1 + $0x4] sm:$0xf]
      %v491 = vld [vmem:[%s1 + $0x8] sm:$0xf]
      %v492 = vld [vmem:[%s1 + $0xc] sm:$0xf]
      %v493 = vld [vmem:[%s1 + $0x10] sm:$0xf]
      %v494 = vld [vmem:[%s1 + $0x14] sm:$0xf]
      %v495 = vld [vmem:[%s1 + $0x18] sm:$0xf]
      %v496 = vld [vmem:[%s1 + $0x1c] sm:$0xf]
      %v497 = vld [vmem:[%s1 + $0x20] sm:$0xf]
      %v498 = vld [vmem:[%s1 + $0x24] sm:$0xf]
      %v499 = vld [vmem:[%s1 + $0x28] sm:$0xf]
      %v500 = vld [vmem:[%s1 + $0x2c] sm:$0xf]
      %v501 = vld [vmem:[%s1 + $0x30] sm:$0xf]
      %v502 = vld [vmem:[%s1 + $0x34] sm:$0xf]
      %v503 = vld [vmem:[%s1 + $0x38] sm:$0xf]
      %v504 = vld [vmem:[%s1 + $0x3c] sm:$0xf]
      %v505 = vld [vmem:[%s1 + $0x40] sm:$0xf]
      %v506 = vld [vmem:[%s1 + $0x44] sm:$0xf]
      %v507 = vld [vmem:[%s1 + $0x48] sm:$0xf]
      %v508 = vld [vmem:[%s1 + $0x4c] sm:$0xf]
      %v509 = vld [vmem:[%s1 + $0x50] sm:$0xf]
      %v510 = vld [vmem:[%s1 + $0x54] sm:$0xf]
      %v511 = vld [vmem:[%s1 + $0x58] sm:$0xf]
      %v512 = vld [vmem:[%s1 + $0x5c] sm:$0xf]
      %v513 = vld [vmem:[%s1 + $0x60] sm:$0xf]
      %v514 = vld [vmem:[%s1 + $0x64] sm:$0xf]
      %v515 = vld [vmem:[%s1 + $0x68] sm:$0xf]
      %v516 = vld [vmem:[%s1 + $0x6c] sm:$0xf]
      %v517 = vld [vmem:[%s1 + $0x70] sm:$0xf]
      %v518 = vld [vmem:[%s1 + $0x74] sm:$0xf]
      %v519 = vld [vmem:[%s1 + $0x78] sm:$0xf]
      %v520 = vld [vmem:[%s1 + $0x7c] sm:$0xf]
      %v521 = vld [vmem:[%s2] sm:$0x1]
      %v523 = vlaneseq
      %v524 = vshrl.u32 %v523, 7
      %v525 = vsub.s32 0, %v524
      %v526 = vrot.slane %v521, %v525
      %v560 = vunpack.c.l.b16 %v457
      %v561 = vunpack.c.h.b16 %v457
      %v562 = vunpack.c.l.b16 %v458
      %v563 = vunpack.c.h.b16 %v458
      %v564 = vunpack.c.l.b16 %v459
      %v565 = vunpack.c.h.b16 %v459
      %v566 = vunpack.c.l.b16 %v460
      %v567 = vunpack.c.h.b16 %v460
      %v568 = vunpack.c.l.b16 %v461
      %v569 = vunpack.c.h.b16 %v461
      %v570 = vunpack.c.l.b16 %v462
      %v571 = vunpack.c.h.b16 %v462
      %v572 = vunpack.c.l.b16 %v463
      %v573 = vunpack.c.h.b16 %v463
      %v574 = vunpack.c.l.b16 %v464
      %v575 = vunpack.c.h.b16 %v464
      %v576 = vunpack.c.l.b16 %v465
      %v577 = vunpack.c.h.b16 %v465
      %v578 = vunpack.c.l.b16 %v466
      %v579 = vunpack.c.h.b16 %v466
      %v580 = vunpack.c.l.b16 %v467
      %v581 = vunpack.c.h.b16 %v467
      %v582 = vunpack.c.l.b16 %v468
      %v583 = vunpack.c.h.b16 %v468
      %v584 = vunpack.c.l.b16 %v469
      %v585 = vunpack.c.h.b16 %v469
      %v586 = vunpack.c.l.b16 %v470
      %v587 = vunpack.c.h.b16 %v470
      %v588 = vunpack.c.l.b16 %v471
      %v589 = vunpack.c.h.b16 %v471
      %v590 = vunpack.c.l.b16 %v472
      %v591 = vunpack.c.h.b16 %v472
      %v592 = vunpack.c.l.b16 %v473
      %v593 = vunpack.c.h.b16 %v473
      %v594 = vunpack.c.l.b16 %v474
      %v595 = vunpack.c.h.b16 %v474
      %v596 = vunpack.c.l.b16 %v475
      %v597 = vunpack.c.h.b16 %v475
      %v598 = vunpack.c.l.b16 %v476
      %v599 = vunpack.c.h.b16 %v476
      %v600 = vunpack.c.l.b16 %v477
      %v601 = vunpack.c.h.b16 %v477
      %v602 = vunpack.c.l.b16 %v478
      %v603 = vunpack.c.h.b16 %v478
      %v604 = vunpack.c.l.b16 %v479
      %v605 = vunpack.c.h.b16 %v479
      %v606 = vunpack.c.l.b16 %v480
      %v607 = vunpack.c.h.b16 %v480
      %v608 = vunpack.c.l.b16 %v481
      %v609 = vunpack.c.h.b16 %v481
      %v610 = vunpack.c.l.b16 %v482
      %v611 = vunpack.c.h.b16 %v482
      %v612 = vunpack.c.l.b16 %v483
      %v613 = vunpack.c.h.b16 %v483
      %v614 = vunpack.c.l.b16 %v484
      %v615 = vunpack.c.h.b16 %v484
      %v616 = vunpack.c.l.b16 %v485
      %v617 = vunpack.c.h.b16 %v485
      %v618 = vunpack.c.l.b16 %v486
      %v619 = vunpack.c.h.b16 %v486
      %v620 = vunpack.c.l.b16 %v487
      %v621 = vunpack.c.h.b16 %v487
      %v622 = vunpack.c.l.b16 %v488
      %v623 = vunpack.c.h.b16 %v488
      %v624 = vpack.c.b16 %v562, %v560
      %v625 = vpack.c.b16 %v563, %v561
      %v626 = vpack.c.b16 %v566, %v564
      %v627 = vpack.c.b16 %v567, %v565
      %v628 = vpack.c.b16 %v570, %v568
      %v629 = vpack.c.b16 %v571, %v569
      %v630 = vpack.c.b16 %v574, %v572
      %v631 = vpack.c.b16 %v575, %v573
      %v632 = vpack.c.b16 %v578, %v576
      %v633 = vpack.c.b16 %v579, %v577
      %v634 = vpack.c.b16 %v582, %v580
      %v635 = vpack.c.b16 %v583, %v581
      %v636 = vpack.c.b16 %v586, %v584
      %v637 = vpack.c.b16 %v587, %v585
      %v638 = vpack.c.b16 %v590, %v588
      %v639 = vpack.c.b16 %v591, %v589
      %v640 = vpack.c.b16 %v594, %v592
      %v641 = vpack.c.b16 %v595, %v593
      %v642 = vpack.c.b16 %v598, %v596
      %v643 = vpack.c.b16 %v599, %v597
      %v644 = vpack.c.b16 %v602, %v600
      %v645 = vpack.c.b16 %v603, %v601
      %v646 = vpack.c.b16 %v606, %v604
      %v647 = vpack.c.b16 %v607, %v605
      %v648 = vpack.c.b16 %v610, %v608
      %v649 = vpack.c.b16 %v611, %v609
      %v650 = vpack.c.b16 %v614, %v612
      %v651 = vpack.c.b16 %v615, %v613
      %v652 = vpack.c.b16 %v618, %v616
      %v653 = vpack.c.b16 %v619, %v617
      %v654 = vpack.c.b16 %v622, %v620
      %v655 = vpack.c.b16 %v623, %v621
      %v720 = vunpack.c.l.b16 %v489
      %v721 = vunpack.c.l.b16 %v490
      %v722 = vunpack.c.l.b16 %v491
      %v723 = vunpack.c.l.b16 %v492
      %v724 = vunpack.c.l.b16 %v493
      %v725 = vunpack.c.l.b16 %v494
      %v726 = vunpack.c.l.b16 %v495
      %v727 = vunpack.c.l.b16 %v496
      %v728 = vunpack.c.l.b16 %v497
      %v729 = vunpack.c.l.b16 %v498
      %v730 = vunpack.c.l.b16 %v499
      %v731 = vunpack.c.l.b16 %v500
      %v732 = vunpack.c.l.b16 %v501
      %v733 = vunpack.c.l.b16 %v502
      %v734 = vunpack.c.l.b16 %v503
      %v735 = vunpack.c.l.b16 %v504
      %v736 = vunpack.c.l.b16 %v505
      %v737 = vunpack.c.l.b16 %v506
      %v738 = vunpack.c.l.b16 %v507
      %v739 = vunpack.c.l.b16 %v508
      %v740 = vunpack.c.l.b16 %v509
      %v741 = vunpack.c.l.b16 %v510
      %v742 = vunpack.c.l.b16 %v511
      %v743 = vunpack.c.l.b16 %v512
      %v744 = vunpack.c.l.b16 %v513
      %v745 = vunpack.c.l.b16 %v514
      %v746 = vunpack.c.l.b16 %v515
      %v747 = vunpack.c.l.b16 %v516
      %v748 = vunpack.c.l.b16 %v517
      %v749 = vunpack.c.l.b16 %v518
      %v750 = vunpack.c.l.b16 %v519
      %v751 = vunpack.c.l.b16 %v520
      %v752 = vpack.c.b16 %v721, %v720
      %v753 = vpack.c.b16 %v723, %v722
      %v754 = vpack.c.b16 %v725, %v724
      %v755 = vpack.c.b16 %v727, %v726
      %v756 = vpack.c.b16 %v729, %v728
      %v757 = vpack.c.b16 %v731, %v730
      %v758 = vpack.c.b16 %v733, %v732
      %v759 = vpack.c.b16 %v735, %v734
      %v760 = vpack.c.b16 %v737, %v736
      %v761 = vpack.c.b16 %v739, %v738
      %v762 = vpack.c.b16 %v741, %v740
      %v763 = vpack.c.b16 %v743, %v742
      %v764 = vpack.c.b16 %v745, %v744
      %v765 = vpack.c.b16 %v747, %v746
      %v766 = vpack.c.b16 %v749, %v748
      %v767 = vpack.c.b16 %v751, %v750
      %784 = vmatprep.subr.bf16.mxu0 0
      %785 = vmatpush1.bf16.msra.mxu0 %v752
      %786 = vmatprep.subr.bf16.mxu0 0
      %787 = vmatpush1.bf16.msra.mxu0 %v753
      %788 = vmatprep.subr.bf16.mxu0 0
      %789 = vmatpush1.bf16.msra.mxu0 %v754
      %790 = vmatprep.subr.bf16.mxu0 0
      %791 = vmatpush1.bf16.msra.mxu0 %v755
      %792 = vmatprep.subr.bf16.mxu0 0
      %793 = vmatpush1.bf16.msra.mxu0 %v756
      %794 = vmatprep.subr.bf16.mxu0 0
      %795 = vmatpush1.bf16.msra.mxu0 %v757
      %796 = vmatprep.subr.bf16.mxu0 0
      %797 = vmatpush1.bf16.msra.mxu0 %v758
      %798 = vmatprep.subr.bf16.mxu0 0
      %799 = vmatpush1.bf16.msra.mxu0 %v759
      %800 = vmatprep.subr.bf16.mxu0 0
      %801 = vmatpush1.bf16.msra.mxu0 %v760
      %802 = vmatprep.subr.bf16.mxu0 0
      %803 = vmatpush1.bf16.msra.mxu0 %v761
      %804 = vmatprep.subr.bf16.mxu0 0
      %805 = vmatpush1.bf16.msra.mxu0 %v762
      %806 = vmatprep.subr.bf16.mxu0 0
      %807 = vmatpush1.bf16.msra.mxu0 %v763
      %808 = vmatprep.subr.bf16.mxu0 0
      %809 = vmatpush1.bf16.msra.mxu0 %v764
      %810 = vmatprep.subr.bf16.mxu0 0
      %811 = vmatpush1.bf16.msra.mxu0 %v765
      %812 = vmatprep.subr.bf16.mxu0 0
      %813 = vmatpush1.bf16.msra.mxu0 %v766
      %814 = vmatprep.subr.bf16.mxu0 0
      %815 = vmatpush1.bf16.msra.mxu0 %v767
      %816 = vmatprep.mubr.bf16.mxu0 %v625
      %817 = vmatmul.mubr.bf16.gmra.mrb[0].mxu0 %v624
      %v818 = vpop.f32.mrb[0].mxu0
      %v819 = vadd.f32 %v526, %v818
      %v820 = vpop.f32.mrb[0].mxu0
      %v821 = vpop.f32.mrb[0].mxu0
      %v822 = vadd.f32 %v526, %v821
      %v823 = vpop.f32.mrb[0].mxu0
      %824 = vmatprep.mubr.bf16.mxu0 %v627
      %825 = vmatmul.mubr.bf16.gmra.mrb[0].mxu0 %v626
      %v826 = vpop.f32.mrb[0].mxu0
      %v827 = vadd.f32 %v526, %v826
      %v828 = vpop.f32.mrb[0].mxu0
      %v829 = vpop.f32.mrb[0].mxu0
      %v830 = vadd.f32 %v526, %v829
      %v831 = vpop.f32.mrb[0].mxu0
      %832 = vmatprep.mubr.bf16.mxu0 %v629
      %833 = vmatmul.mubr.bf16.gmra.mrb[0].mxu0 %v628
      %v834 = vpop.f32.mrb[0].mxu0
      %v835 = vadd.f32 %v526, %v834
      %v836 = vpop.f32.mrb[0].mxu0
      %v837 = vpop.f32.mrb[0].mxu0
      %v838 = vadd.f32 %v526, %v837
      %v839 = vpop.f32.mrb[0].mxu0
      %840 = vmatprep.mubr.bf16.mxu0 %v631
      %841 = vmatmul.mubr.bf16.gmra.mrb[0].mxu0 %v630
      %v842 = vpop.f32.mrb[0].mxu0
      %v843 = vadd.f32 %v526, %v842
      %v844 = vpop.f32.mrb[0].mxu0
      %v845 = vpop.f32.mrb[0].mxu0
      %v846 = vadd.f32 %v526, %v845
      %v847 = vpop.f32.mrb[0].mxu0
      %848 = vmatprep.mubr.bf16.mxu0 %v633
      %849 = vmatmul.mubr.bf16.gmra.mrb[0].mxu0 %v632
      %v850 = vpop.f32.mrb[0].mxu0
      %v851 = vadd.f32 %v526, %v850
      %v852 = vpop.f32.mrb[0].mxu0
      %v853 = vpop.f32.mrb[0].mxu0
      %v854 = vadd.f32 %v526, %v853
      %v855 = vpop.f32.mrb[0].mxu0
      %856 = vmatprep.mubr.bf16.mxu0 %v635
      %857 = vmatmul.mubr.bf16.gmra.mrb[0].mxu0 %v634
      %v858 = vpop.f32.mrb[0].mxu0
      %v859 = vadd.f32 %v526, %v858
      %v860 = vpop.f32.mrb[0].mxu0
      %v861 = vpop.f32.mrb[0].mxu0
      %v862 = vadd.f32 %v526, %v861
      %v863 = vpop.f32.mrb[0].mxu0
      %864 = vmatprep.mubr.bf16.mxu0 %v637
      %865 = vmatmul.mubr.bf16.gmra.mrb[0].mxu0 %v636
      %v866 = vpop.f32.mrb[0].mxu0
      %v867 = vadd.f32 %v526, %v866
      %v868 = vpop.f32.mrb[0].mxu0
      %v869 = vpop.f32.mrb[0].mxu0
      %v870 = vadd.f32 %v526, %v869
      %v871 = vpop.f32.mrb[0].mxu0
      %872 = vmatprep.mubr.bf16.mxu0 %v639
      %873 = vmatmul.mubr.bf16.gmra.mrb[0].mxu0 %v638
      %v874 = vpop.f32.mrb[0].mxu0
      %v875 = vadd.f32 %v526, %v874
      %v876 = vpop.f32.mrb[0].mxu0
      %v877 = vpop.f32.mrb[0].mxu0
      %v878 = vadd.f32 %v526, %v877
      %v879 = vpop.f32.mrb[0].mxu0
      %880 = vmatprep.mubr.bf16.mxu0 %v641
      %881 = vmatmul.mubr.bf16.gmra.mrb[0].mxu0 %v640
      %v882 = vpop.f32.mrb[0].mxu0
      %v883 = vadd.f32 %v526, %v882
      %v884 = vpop.f32.mrb[0].mxu0
      %v885 = vpop.f32.mrb[0].mxu0
      %v886 = vadd.f32 %v526, %v885
      %v887 = vpop.f32.mrb[0].mxu0
      %888 = vmatprep.mubr.bf16.mxu0 %v643
      %889 = vmatmul.mubr.bf16.gmra.mrb[0].mxu0 %v642
      %v890 = vpop.f32.mrb[0].mxu0
      %v891 = vadd.f32 %v526, %v890
      %v892 = vpop.f32.mrb[0].mxu0
      %v893 = vpop.f32.mrb[0].mxu0
      %v894 = vadd.f32 %v526, %v893
      %v895 = vpop.f32.mrb[0].mxu0
      %896 = vmatprep.mubr.bf16.mxu0 %v645
      %897 = vmatmul.mubr.bf16.gmra.mrb[0].mxu0 %v644
      %v898 = vpop.f32.mrb[0].mxu0
      %v899 = vadd.f32 %v526, %v898
      %v900 = vpop.f32.mrb[0].mxu0
      %v901 = vpop.f32.mrb[0].mxu0
      %v902 = vadd.f32 %v526, %v901
      %v903 = vpop.f32.mrb[0].mxu0
      %904 = vmatprep.mubr.bf16.mxu0 %v647
      %905 = vmatmul.mubr.bf16.gmra.mrb[0].mxu0 %v646
      %v906 = vpop.f32.mrb[0].mxu0
      %v907 = vadd.f32 %v526, %v906
      %v908 = vpop.f32.mrb[0].mxu0
      %v909 = vpop.f32.mrb[0].mxu0
      %v910 = vadd.f32 %v526, %v909
      %v911 = vpop.f32.mrb[0].mxu0
      %912 = vmatprep.mubr.bf16.mxu0 %v649
      %913 = vmatmul.mubr.bf16.gmra.mrb[0].mxu0 %v648
      %v914 = vpop.f32.mrb[0].mxu0
      %v915 = vadd.f32 %v526, %v914
      %v916 = vpop.f32.mrb[0].mxu0
      %v917 = vpop.f32.mrb[0].mxu0
      %v918 = vadd.f32 %v526, %v917
      %v919 = vpop.f32.mrb[0].mxu0
      %920 = vmatprep.mubr.bf16.mxu0 %v651
      %921 = vmatmul.mubr.bf16.gmra.mrb[0].mxu0 %v650
      %v922 = vpop.f32.mrb[0].mxu0
      %v923 = vadd.f32 %v526, %v922
      %v924 = vpop.f32.mrb[0].mxu0
      %v925 = vpop.f32.mrb[0].mxu0
      %v926 = vadd.f32 %v526, %v925
      %v927 = vpop.f32.mrb[0].mxu0
      %928 = vmatprep.mubr.bf16.mxu0 %v653
      %929 = vmatmul.mubr.bf16.gmra.mrb[0].mxu0 %v652
      %v930 = vpop.f32.mrb[0].mxu0
      %v931 = vadd.f32 %v526, %v930
      %v932 = vpop.f32.mrb[0].mxu0
      %v933 = vpop.f32.mrb[0].mxu0
      %v934 = vadd.f32 %v526, %v933
      %v935 = vpop.f32.mrb[0].mxu0
      %936 = vmatprep.mubr.bf16.mxu0 %v655
      %937 = vmatmul.mubr.bf16.gmra.mrb[0].mxu0 %v654
      %v938 = vpop.f32.mrb[0].mxu0
      %v939 = vadd.f32 %v526, %v938
      %v940 = vpop.f32.mrb[0].mxu0
      %v941 = vpop.f32.mrb[0].mxu0
      %v942 = vadd.f32 %v526, %v941
      %v943 = vpop.f32.mrb[0].mxu0
      %944 = vdwg.mxu0
      %vm945 = vcmp.ge.f32.partialorder %v819, 0.0
      %vm946 = vcmp.ge.f32.partialorder %v822, 0.0
      %vm947 = vcmp.ge.f32.partialorder %v827, 0.0
      %vm948 = vcmp.ge.f32.partialorder %v830, 0.0
      %vm949 = vcmp.ge.f32.partialorder %v835, 0.0
      %vm950 = vcmp.ge.f32.partialorder %v838, 0.0
      %vm951 = vcmp.ge.f32.partialorder %v843, 0.0
      %vm952 = vcmp.ge.f32.partialorder %v846, 0.0
      %vm953 = vcmp.ge.f32.partialorder %v851, 0.0
      %vm954 = vcmp.ge.f32.partialorder %v854, 0.0
      %vm955 = vcmp.ge.f32.partialorder %v859, 0.0
      %vm956 = vcmp.ge.f32.partialorder %v862, 0.0
      %vm957 = vcmp.ge.f32.partialorder %v867, 0.0
      %vm958 = vcmp.ge.f32.partialorder %v870, 0.0
      %vm959 = vcmp.ge.f32.partialorder %v875, 0.0
      %vm960 = vcmp.ge.f32.partialorder %v878, 0.0
      %vm961 = vcmp.ge.f32.partialorder %v883, 0.0
      %vm962 = vcmp.ge.f32.partialorder %v886, 0.0
      %vm963 = vcmp.ge.f32.partialorder %v891, 0.0
      %vm964 = vcmp.ge.f32.partialorder %v894, 0.0
      %vm965 = vcmp.ge.f32.partialorder %v899, 0.0
      %vm966 = vcmp.ge.f32.partialorder %v902, 0.0
      %vm967 = vcmp.ge.f32.partialorder %v907, 0.0
      %vm968 = vcmp.ge.f32.partialorder %v910, 0.0
      %vm969 = vcmp.ge.f32.partialorder %v915, 0.0
      %vm970 = vcmp.ge.f32.partialorder %v918, 0.0
      %vm971 = vcmp.ge.f32.partialorder %v923, 0.0
      %vm972 = vcmp.ge.f32.partialorder %v926, 0.0
      %vm973 = vcmp.ge.f32.partialorder %v931, 0.0
      %vm974 = vcmp.ge.f32.partialorder %v934, 0.0
      %vm975 = vcmp.ge.f32.partialorder %v939, 0.0
      %vm976 = vcmp.ge.f32.partialorder %v942, 0.0
      %v977 = vmul.f32 %v819, 0.01
      %v978 = vmul.f32 %v822, 0.01
      %v979 = vmul.f32 %v827, 0.01
      %v980 = vmul.f32 %v830, 0.01
      %v981 = vmul.f32 %v835, 0.01
      %v982 = vmul.f32 %v838, 0.01
      %v983 = vmul.f32 %v843, 0.01
      %v984 = vmul.f32 %v846, 0.01
      %v985 = vmul.f32 %v851, 0.01
      %v986 = vmul.f32 %v854, 0.01
      %v987 = vmul.f32 %v859, 0.01
      %v988 = vmul.f32 %v862, 0.01
      %v989 = vmul.f32 %v867, 0.01
      %v990 = vmul.f32 %v870, 0.01
      %v991 = vmul.f32 %v875, 0.01
      %v992 = vmul.f32 %v878, 0.01
      %v993 = vmul.f32 %v883, 0.01
      %v994 = vmul.f32 %v886, 0.01
      %v995 = vmul.f32 %v891, 0.01
      %v996 = vmul.f32 %v894, 0.01
      %v997 = vmul.f32 %v899, 0.01
      %v998 = vmul.f32 %v902, 0.01
      %v999 = vmul.f32 %v907, 0.01
      %v1000 = vmul.f32 %v910, 0.01
      %v1001 = vmul.f32 %v915, 0.01
      %v1002 = vmul.f32 %v918, 0.01
      %v1003 = vmul.f32 %v923, 0.01
      %v1004 = vmul.f32 %v926, 0.01
      %v1005 = vmul.f32 %v931, 0.01
      %v1006 = vmul.f32 %v934, 0.01
      %v1007 = vmul.f32 %v939, 0.01
      %v1008 = vmul.f32 %v942, 0.01
      %v1009 = vsel %vm945, %v819, %v977
      %v1010 = vsel %vm946, %v822, %v978
      %v1011 = vsel %vm947, %v827, %v979
      %v1012 = vsel %vm948, %v830, %v980
      %v1013 = vsel %vm949, %v835, %v981
      %v1014 = vsel %vm950, %v838, %v982
      %v1015 = vsel %vm951, %v843, %v983
      %v1016 = vsel %vm952, %v846, %v984
      %v1017 = vsel %vm953, %v851, %v985
      %v1018 = vsel %vm954, %v854, %v986
      %v1019 = vsel %vm955, %v859, %v987
      %v1020 = vsel %vm956, %v862, %v988
      %v1021 = vsel %vm957, %v867, %v989
      %v1022 = vsel %vm958, %v870, %v990
      %v1023 = vsel %vm959, %v875, %v991
      %v1024 = vsel %vm960, %v878, %v992
      %v1025 = vsel %vm961, %v883, %v993
      %v1026 = vsel %vm962, %v886, %v994
      %v1027 = vsel %vm963, %v891, %v995
      %v1028 = vsel %vm964, %v894, %v996
      %v1029 = vsel %vm965, %v899, %v997
      %v1030 = vsel %vm966, %v902, %v998
      %v1031 = vsel %vm967, %v907, %v999
      %v1032 = vsel %vm968, %v910, %v1000
      %v1033 = vsel %vm969, %v915, %v1001
      %v1034 = vsel %vm970, %v918, %v1002
      %v1035 = vsel %vm971, %v923, %v1003
      %v1036 = vsel %vm972, %v926, %v1004
      %v1037 = vsel %vm973, %v931, %v1005
      %v1038 = vsel %vm974, %v934, %v1006
      %v1039 = vsel %vm975, %v939, %v1007
      %v1040 = vsel %vm976, %v942, %v1008
      %v1041 = vpack.c.bf16 %v1010, %v1009
      %v1042 = vpack.c.bf16 %v1012, %v1011
      %v1043 = vpack.c.bf16 %v1014, %v1013
      %v1044 = vpack.c.bf16 %v1016, %v1015
      %v1045 = vpack.c.bf16 %v1018, %v1017
      %v1046 = vpack.c.bf16 %v1020, %v1019
      %v1047 = vpack.c.bf16 %v1022, %v1021
      %v1048 = vpack.c.bf16 %v1024, %v1023
      %v1049 = vpack.c.bf16 %v1026, %v1025
      %v1050 = vpack.c.bf16 %v1028, %v1027
      %v1051 = vpack.c.bf16 %v1030, %v1029
      %v1052 = vpack.c.bf16 %v1032, %v1031
      %v1053 = vpack.c.bf16 %v1034, %v1033
      %v1054 = vpack.c.bf16 %v1036, %v1035
      %v1055 = vpack.c.bf16 %v1038, %v1037
      %v1056 = vpack.c.bf16 %v1040, %v1039
      %v1073 = vunpack.c.l.b16 %v1041
      %v1074 = vunpack.c.h.b16 %v1041
      %v1075 = vunpack.c.l.b16 %v1042
      %v1076 = vunpack.c.h.b16 %v1042
      %v1077 = vunpack.c.l.b16 %v1043
      %v1078 = vunpack.c.h.b16 %v1043
      %v1079 = vunpack.c.l.b16 %v1044
      %v1080 = vunpack.c.h.b16 %v1044
      %v1081 = vunpack.c.l.b16 %v1045
      %v1082 = vunpack.c.h.b16 %v1045
      %v1083 = vunpack.c.l.b16 %v1046
      %v1084 = vunpack.c.h.b16 %v1046
      %v1085 = vunpack.c.l.b16 %v1047
      %v1086 = vunpack.c.h.b16 %v1047
      %v1087 = vunpack.c.l.b16 %v1048
      %v1088 = vunpack.c.h.b16 %v1048
      %v1089 = vunpack.c.l.b16 %v1049
      %v1090 = vunpack.c.h.b16 %v1049
      %v1091 = vunpack.c.l.b16 %v1050
      %v1092 = vunpack.c.h.b16 %v1050
      %v1093 = vunpack.c.l.b16 %v1051
      %v1094 = vunpack.c.h.b16 %v1051
      %v1095 = vunpack.c.l.b16 %v1052
      %v1096 = vunpack.c.h.b16 %v1052
      %v1097 = vunpack.c.l.b16 %v1053
      %v1098 = vunpack.c.h.b16 %v1053
      %v1099 = vunpack.c.l.b16 %v1054
      %v1100 = vunpack.c.h.b16 %v1054
      %v1101 = vunpack.c.l.b16 %v1055
      %v1102 = vunpack.c.h.b16 %v1055
      %v1103 = vunpack.c.l.b16 %v1056
      %v1104 = vunpack.c.h.b16 %v1056
      %v1105 = vpack.c.b16 %v1073, %v1073
      %v1106 = vpack.c.b16 %v1074, %v1074
      %v1107 = vpack.c.b16 %v1075, %v1075
      %v1108 = vpack.c.b16 %v1076, %v1076
      %v1109 = vpack.c.b16 %v1077, %v1077
      %v1110 = vpack.c.b16 %v1078, %v1078
      %v1111 = vpack.c.b16 %v1079, %v1079
      %v1112 = vpack.c.b16 %v1080, %v1080
      %v1113 = vpack.c.b16 %v1081, %v1081
      %v1114 = vpack.c.b16 %v1082, %v1082
      %v1115 = vpack.c.b16 %v1083, %v1083
      %v1116 = vpack.c.b16 %v1084, %v1084
      %v1117 = vpack.c.b16 %v1085, %v1085
      %v1118 = vpack.c.b16 %v1086, %v1086
      %v1119 = vpack.c.b16 %v1087, %v1087
      %v1120 = vpack.c.b16 %v1088, %v1088
      %v1121 = vpack.c.b16 %v1089, %v1089
      %v1122 = vpack.c.b16 %v1090, %v1090
      %v1123 = vpack.c.b16 %v1091, %v1091
      %v1124 = vpack.c.b16 %v1092, %v1092
      %v1125 = vpack.c.b16 %v1093, %v1093
      %v1126 = vpack.c.b16 %v1094, %v1094
      %v1127 = vpack.c.b16 %v1095, %v1095
      %v1128 = vpack.c.b16 %v1096, %v1096
      %v1129 = vpack.c.b16 %v1097, %v1097
      %v1130 = vpack.c.b16 %v1098, %v1098
      %v1131 = vpack.c.b16 %v1099, %v1099
      %v1132 = vpack.c.b16 %v1100, %v1100
      %v1133 = vpack.c.b16 %v1101, %v1101
      %v1134 = vpack.c.b16 %v1102, %v1102
      %v1135 = vpack.c.b16 %v1103, %v1103
      %v1136 = vpack.c.b16 %v1104, %v1104
      %vm1137 = vsmask.f32 4368
      %vm1138 = vmor %vm292, %vm1137
      %v1140 = vshrl.u32 %v1105, 16
      %v1142 = vrot.slane %v1140, 7
      %v1143 = vshll.u32 %v1105, 16
      %v1145 = vor.u32 %v1142, %v1143
      %v1146 = vrot.slane %v1142, 4
      %v1148 = vshrl.u32 %v1106, 16
      %v1150 = vrot.slane %v1148, 7
      %v1151 = vshll.u32 %v1106, 16
      %v1153 = vor.u32 %v1150, %v1151
      %v1154 = vsel %vm1138, %v1146, %v1153
      %v1155 = vrot.slane %v1150, 4
      %v1157 = vshrl.u32 %v1107, 16
      %v1159 = vrot.slane %v1157, 7
      %v1160 = vshll.u32 %v1107, 16
      %v1162 = vor.u32 %v1159, %v1160
      %v1163 = vrot.slane %v1159, 4
      %v1165 = vshrl.u32 %v1108, 16
      %v1167 = vrot.slane %v1165, 7
      %v1168 = vshll.u32 %v1108, 16
      %v1170 = vor.u32 %v1167, %v1168
      %v1171 = vsel %vm1138, %v1163, %v1170
      %v1172 = vrot.slane %v1167, 4
      %v1174 = vshrl.u32 %v1109, 16
      %v1176 = vrot.slane %v1174, 7
      %v1177 = vshll.u32 %v1109, 16
      %v1179 = vor.u32 %v1176, %v1177
      %v1180 = vrot.slane %v1176, 4
      %v1182 = vshrl.u32 %v1110, 16
      %v1184 = vrot.slane %v1182, 7
      %v1185 = vshll.u32 %v1110, 16
      %v1187 = vor.u32 %v1184, %v1185
      %v1188 = vsel %vm1138, %v1180, %v1187
      %v1189 = vrot.slane %v1184, 4
      %v1191 = vshrl.u32 %v1111, 16
      %v1193 = vrot.slane %v1191, 7
      %v1194 = vshll.u32 %v1111, 16
      %v1196 = vor.u32 %v1193, %v1194
      %v1197 = vrot.slane %v1193, 4
      %v1199 = vshrl.u32 %v1112, 16
      %v1201 = vrot.slane %v1199, 7
      %v1202 = vshll.u32 %v1112, 16
      %v1204 = vor.u32 %v1201, %v1202
      %v1205 = vsel %vm1138, %v1197, %v1204
      %v1206 = vrot.slane %v1201, 4
      %v1208 = vshrl.u32 %v1113, 16
      %v1210 = vrot.slane %v1208, 7
      %v1211 = vshll.u32 %v1113, 16
      %v1213 = vor.u32 %v1210, %v1211
      %v1214 = vrot.slane %v1210, 4
      %v1216 = vshrl.u32 %v1114, 16
      %v1218 = vrot.slane %v1216, 7
      %v1219 = vshll.u32 %v1114, 16
      %v1221 = vor.u32 %v1218, %v1219
      %v1222 = vsel %vm1138, %v1214, %v1221
      %v1223 = vrot.slane %v1218, 4
      %v1225 = vshrl.u32 %v1115, 16
      %v1227 = vrot.slane %v1225, 7
      %v1228 = vshll.u32 %v1115, 16
      %v1230 = vor.u32 %v1227, %v1228
      %v1231 = vrot.slane %v1227, 4
      %v1233 = vshrl.u32 %v1116, 16
      %v1235 = vrot.slane %v1233, 7
      %v1236 = vshll.u32 %v1116, 16
      %v1238 = vor.u32 %v1235, %v1236
      %v1239 = vsel %vm1138, %v1231, %v1238
      %v1240 = vrot.slane %v1235, 4
      %v1242 = vshrl.u32 %v1117, 16
      %v1244 = vrot.slane %v1242, 7
      %v1245 = vshll.u32 %v1117, 16
      %v1247 = vor.u32 %v1244, %v1245
      %v1248 = vrot.slane %v1244, 4
      %v1250 = vshrl.u32 %v1118, 16
      %v1252 = vrot.slane %v1250, 7
      %v1253 = vshll.u32 %v1118, 16
      %v1255 = vor.u32 %v1252, %v1253
      %v1256 = vsel %vm1138, %v1248, %v1255
      %v1257 = vrot.slane %v1252, 4
      %v1259 = vshrl.u32 %v1119, 16
      %v1261 = vrot.slane %v1259, 7
      %v1262 = vshll.u32 %v1119, 16
      %v1264 = vor.u32 %v1261, %v1262
      %v1265 = vrot.slane %v1261, 4
      %v1267 = vshrl.u32 %v1120, 16
      %v1269 = vrot.slane %v1267, 7
      %v1270 = vshll.u32 %v1120, 16
      %v1272 = vor.u32 %v1269, %v1270
      %v1273 = vsel %vm1138, %v1265, %v1272
      %v1274 = vrot.slane %v1269, 4
      %v1276 = vshrl.u32 %v1121, 16
      %v1278 = vrot.slane %v1276, 7
      %v1279 = vshll.u32 %v1121, 16
      %v1281 = vor.u32 %v1278, %v1279
      %v1282 = vrot.slane %v1278, 4
      %v1284 = vshrl.u32 %v1122, 16
      %v1286 = vrot.slane %v1284, 7
      %v1287 = vshll.u32 %v1122, 16
      %v1289 = vor.u32 %v1286, %v1287
      %v1290 = vsel %vm1138, %v1282, %v1289
      %v1291 = vrot.slane %v1286, 4
      %v1293 = vshrl.u32 %v1123, 16
      %v1295 = vrot.slane %v1293, 7
      %v1296 = vshll.u32 %v1123, 16
      %v1298 = vor.u32 %v1295, %v1296
      %v1299 = vrot.slane %v1295, 4
      %v1301 = vshrl.u32 %v1124, 16
      %v1303 = vrot.slane %v1301, 7
      %v1304 = vshll.u32 %v1124, 16
      %v1306 = vor.u32 %v1303, %v1304
      %v1307 = vsel %vm1138, %v1299, %v1306
      %v1308 = vrot.slane %v1303, 4
      %v1310 = vshrl.u32 %v1125, 16
      %v1312 = vrot.slane %v1310, 7
      %v1313 = vshll.u32 %v1125, 16
      %v1315 = vor.u32 %v1312, %v1313
      %v1316 = vrot.slane %v1312, 4
      %v1318 = vshrl.u32 %v1126, 16
      %v1320 = vrot.slane %v1318, 7
      %v1321 = vshll.u32 %v1126, 16
      %v1323 = vor.u32 %v1320, %v1321
      %v1324 = vsel %vm1138, %v1316, %v1323
      %v1325 = vrot.slane %v1320, 4
      %v1327 = vshrl.u32 %v1127, 16
      %v1329 = vrot.slane %v1327, 7
      %v1330 = vshll.u32 %v1127, 16
      %v1332 = vor.u32 %v1329, %v1330
      %v1333 = vrot.slane %v1329, 4
      %v1335 = vshrl.u32 %v1128, 16
      %v1337 = vrot.slane %v1335, 7
      %v1338 = vshll.u32 %v1128, 16
      %v1340 = vor.u32 %v1337, %v1338
      %v1341 = vsel %vm1138, %v1333, %v1340
      %v1342 = vrot.slane %v1337, 4
      %v1344 = vshrl.u32 %v1129, 16
      %v1346 = vrot.slane %v1344, 7
      %v1347 = vshll.u32 %v1129, 16
      %v1349 = vor.u32 %v1346, %v1347
      %v1350 = vrot.slane %v1346, 4
      %v1352 = vshrl.u32 %v1130, 16
      %v1354 = vrot.slane %v1352, 7
      %v1355 = vshll.u32 %v1130, 16
      %v1357 = vor.u32 %v1354, %v1355
      %v1358 = vsel %vm1138, %v1350, %v1357
      %v1359 = vrot.slane %v1354, 4
      %v1361 = vshrl.u32 %v1131, 16
      %v1363 = vrot.slane %v1361, 7
      %v1364 = vshll.u32 %v1131, 16
      %v1366 = vor.u32 %v1363, %v1364
      %v1367 = vrot.slane %v1363, 4
      %v1369 = vshrl.u32 %v1132, 16
      %v1371 = vrot.slane %v1369, 7
      %v1372 = vshll.u32 %v1132, 16
      %v1374 = vor.u32 %v1371, %v1372
      %v1375 = vsel %vm1138, %v1367, %v1374
      %v1376 = vrot.slane %v1371, 4
      %v1378 = vshrl.u32 %v1133, 16
      %v1380 = vrot.slane %v1378, 7
      %v1381 = vshll.u32 %v1133, 16
      %v1383 = vor.u32 %v1380, %v1381
      %v1384 = vrot.slane %v1380, 4
      %v1386 = vshrl.u32 %v1134, 16
      %v1388 = vrot.slane %v1386, 7
      %v1389 = vshll.u32 %v1134, 16
      %v1391 = vor.u32 %v1388, %v1389
      %v1392 = vsel %vm1138, %v1384, %v1391
      %v1393 = vrot.slane %v1388, 4
      %v1395 = vshrl.u32 %v1135, 16
      %v1397 = vrot.slane %v1395, 7
      %v1398 = vshll.u32 %v1135, 16
      %v1400 = vor.u32 %v1397, %v1398
      %v1401 = vrot.slane %v1397, 4
      %v1403 = vshrl.u32 %v1136, 16
      %v1405 = vrot.slane %v1403, 7
      %v1406 = vshll.u32 %v1136, 16
      %v1408 = vor.u32 %v1405, %v1406
      %v1409 = vsel %vm1138, %v1401, %v1408
      %v1410 = vrot.slane %v1405, 4
      %s1459 = scalar_lea.vmem [#allocation2], 12
      %vm1460 = vcmask 1043456
      %vm1461 = vmand %vm1460, %vm348
      %v1462 = vld [vmem:[%s1459] sm:$0xf]
      %v1463 = vsel %vm1461, %v1145, %v1462
      %1464 = vst [vmem:[%s1459] sm:$0xf] %v1463
      %1465 = vst [vmem:[%s1459 + $0x4] sm:$0xf] %v1154
      %v1466 = vld [vmem:[%s1459 + $0x8] sm:$0x1]
      %v1467 = vsel %vm293, %v1155, %v1466
      %1468 = vst [vmem:[%s1459 + $0x8] sm:$0x1] %v1467
      %v1469 = vld [vmem:[%s1459 + $0xc] sm:$0xf]
      %v1470 = vsel %vm1461, %v1162, %v1469
      %1471 = vst [vmem:[%s1459 + $0xc] sm:$0xf] %v1470
      %1472 = vst [vmem:[%s1459 + $0x10] sm:$0xf] %v1171
      %v1473 = vld [vmem:[%s1459 + $0x14] sm:$0x1]
      %v1474 = vsel %vm293, %v1172, %v1473
      %1475 = vst [vmem:[%s1459 + $0x14] sm:$0x1] %v1474
      %v1476 = vld [vmem:[%s1459 + $0x18] sm:$0xf]
      %v1477 = vsel %vm1461, %v1179, %v1476
      %1478 = vst [vmem:[%s1459 + $0x18] sm:$0xf] %v1477
      %1479 = vst [vmem:[%s1459 + $0x1c] sm:$0xf] %v1188
      %v1480 = vld [vmem:[%s1459 + $0x20] sm:$0x1]
      %v1481 = vsel %vm293, %v1189, %v1480
      %1482 = vst [vmem:[%s1459 + $0x20] sm:$0x1] %v1481
      %v1483 = vld [vmem:[%s1459 + $0x24] sm:$0xf]
      %v1484 = vsel %vm1461, %v1196, %v1483
      %1485 = vst [vmem:[%s1459 + $0x24] sm:$0xf] %v1484
      %1486 = vst [vmem:[%s1459 + $0x28] sm:$0xf] %v1205
      %v1487 = vld [vmem:[%s1459 + $0x2c] sm:$0x1]
      %v1488 = vsel %vm293, %v1206, %v1487
      %1489 = vst [vmem:[%s1459 + $0x2c] sm:$0x1] %v1488
      %v1490 = vld [vmem:[%s1459 + $0x30] sm:$0xf]
      %v1491 = vsel %vm1461, %v1213, %v1490
      %1492 = vst [vmem:[%s1459 + $0x30] sm:$0xf] %v1491
      %1493 = vst [vmem:[%s1459 + $0x34] sm:$0xf] %v1222
      %v1494 = vld [vmem:[%s1459 + $0x38] sm:$0x1]
      %v1495 = vsel %vm293, %v1223, %v1494
      %1496 = vst [vmem:[%s1459 + $0x38] sm:$0x1] %v1495
      %v1497 = vld [vmem:[%s1459 + $0x3c] sm:$0xf]
      %v1498 = vsel %vm1461, %v1230, %v1497
      %1499 = vst [vmem:[%s1459 + $0x3c] sm:$0xf] %v1498
      %1500 = vst [vmem:[%s1459 + $0x40] sm:$0xf] %v1239
      %v1501 = vld [vmem:[%s1459 + $0x44] sm:$0x1]
      %v1502 = vsel %vm293, %v1240, %v1501
      %1503 = vst [vmem:[%s1459 + $0x44] sm:$0x1] %v1502
      %v1504 = vld [vmem:[%s1459 + $0x48] sm:$0xf]
      %v1505 = vsel %vm1461, %v1247, %v1504
      %1506 = vst [vmem:[%s1459 + $0x48] sm:$0xf] %v1505
      %1507 = vst [vmem:[%s1459 + $0x4c] sm:$0xf] %v1256
      %v1508 = vld [vmem:[%s1459 + $0x50] sm:$0x1]
      %v1509 = vsel %vm293, %v1257, %v1508
      %1510 = vst [vmem:[%s1459 + $0x50] sm:$0x1] %v1509
      %v1511 = vld [vmem:[%s1459 + $0x54] sm:$0xf]
      %v1512 = vsel %vm1461, %v1264, %v1511
      %1513 = vst [vmem:[%s1459 + $0x54] sm:$0xf] %v1512
      %1514 = vst [vmem:[%s1459 + $0x58] sm:$0xf] %v1273
      %v1515 = vld [vmem:[%s1459 + $0x5c] sm:$0x1]
      %v1516 = vsel %vm293, %v1274, %v1515
      %1517 = vst [vmem:[%s1459 + $0x5c] sm:$0x1] %v1516
      %v1518 = vld [vmem:[%s1459 + $0x60] sm:$0xf]
      %v1519 = vsel %vm1461, %v1281, %v1518
      %1520 = vst [vmem:[%s1459 + $0x60] sm:$0xf] %v1519
      %1521 = vst [vmem:[%s1459 + $0x64] sm:$0xf] %v1290
      %v1522 = vld [vmem:[%s1459 + $0x68] sm:$0x1]
      %v1523 = vsel %vm293, %v1291, %v1522
      %1524 = vst [vmem:[%s1459 + $0x68] sm:$0x1] %v1523
      %v1525 = vld [vmem:[%s1459 + $0x6c] sm:$0xf]
      %v1526 = vsel %vm1461, %v1298, %v1525
      %1527 = vst [vmem:[%s1459 + $0x6c] sm:$0xf] %v1526
      %1528 = vst [vmem:[%s1459 + $0x70] sm:$0xf] %v1307
      %v1529 = vld [vmem:[%s1459 + $0x74] sm:$0x1]
      %v1530 = vsel %vm293, %v1308, %v1529
      %1531 = vst [vmem:[%s1459 + $0x74] sm:$0x1] %v1530
      %v1532 = vld [vmem:[%s1459 + $0x78] sm:$0xf]
      %v1533 = vsel %vm1461, %v1315, %v1532
      %1534 = vst [vmem:[%s1459 + $0x78] sm:$0xf] %v1533
      %1535 = vst [vmem:[%s1459 + $0x7c] sm:$0xf] %v1324
      %v1536 = vld [vmem:[%s1459 + $0x80] sm:$0x1]
      %v1537 = vsel %vm293, %v1325, %v1536
      %1538 = vst [vmem:[%s1459 + $0x80] sm:$0x1] %v1537
      %v1539 = vld [vmem:[%s1459 + $0x84] sm:$0xf]
      %v1540 = vsel %vm1461, %v1332, %v1539
      %1541 = vst [vmem:[%s1459 + $0x84] sm:$0xf] %v1540
      %1542 = vst [vmem:[%s1459 + $0x88] sm:$0xf] %v1341
      %v1543 = vld [vmem:[%s1459 + $0x8c] sm:$0x1]
      %v1544 = vsel %vm293, %v1342, %v1543
      %1545 = vst [vmem:[%s1459 + $0x8c] sm:$0x1] %v1544
      %v1546 = vld [vmem:[%s1459 + $0x90] sm:$0xf]
      %v1547 = vsel %vm1461, %v1349, %v1546
      %1548 = vst [vmem:[%s1459 + $0x90] sm:$0xf] %v1547
      %1549 = vst [vmem:[%s1459 + $0x94] sm:$0xf] %v1358
      %v1550 = vld [vmem:[%s1459 + $0x98] sm:$0x1]
      %v1551 = vsel %vm293, %v1359, %v1550
      %1552 = vst [vmem:[%s1459 + $0x98] sm:$0x1] %v1551
      %v1553 = vld [vmem:[%s1459 + $0x9c] sm:$0xf]
      %v1554 = vsel %vm1461, %v1366, %v1553
      %1555 = vst [vmem:[%s1459 + $0x9c] sm:$0xf] %v1554
      %1556 = vst [vmem:[%s1459 + $0xa0] sm:$0xf] %v1375
      %v1557 = vld [vmem:[%s1459 + $0xa4] sm:$0x1]
      %v1558 = vsel %vm293, %v1376, %v1557
      %1559 = vst [vmem:[%s1459 + $0xa4] sm:$0x1] %v1558
      %v1560 = vld [vmem:[%s1459 + $0xa8] sm:$0xf]
      %v1561 = vsel %vm1461, %v1383, %v1560
      %1562 = vst [vmem:[%s1459 + $0xa8] sm:$0xf] %v1561
      %1563 = vst [vmem:[%s1459 + $0xac] sm:$0xf] %v1392
      %v1564 = vld [vmem:[%s1459 + $0xb0] sm:$0x1]
      %v1565 = vsel %vm293, %v1393, %v1564
      %1566 = vst [vmem:[%s1459 + $0xb0] sm:$0x1] %v1565
      %v1567 = vld [vmem:[%s1459 + $0xb4] sm:$0xf]
      %v1568 = vsel %vm1461, %v1400, %v1567
      %1569 = vst [vmem:[%s1459 + $0xb4] sm:$0xf] %v1568
      %1570 = vst [vmem:[%s1459 + $0xb8] sm:$0xf] %v1409
      %v1571 = vld [vmem:[%s1459 + $0xbc] sm:$0x1]
      %v1572 = vsel %vm293, %v1410, %v1571
      %1573 = vst [vmem:[%s1459 + $0xbc] sm:$0x1] %v1572
      %v1574 = vld [vmem:[#allocation2] sm:$0xf]
      %v1575 = vld [vmem:[#allocation2 + $0x4] sm:$0xf]
      %v1576 = vld [vmem:[#allocation2 + $0xc] sm:$0xf]
      %v1577 = vld [vmem:[#allocation2 + $0x10] sm:$0xf]
      %v1578 = vld [vmem:[#allocation2 + $0x18] sm:$0xf]
      %v1579 = vld [vmem:[#allocation2 + $0x1c] sm:$0xf]
      %v1580 = vld [vmem:[#allocation2 + $0x24] sm:$0xf]
      %v1581 = vld [vmem:[#allocation2 + $0x28] sm:$0xf]
      %v1582 = vld [vmem:[#allocation2 + $0x30] sm:$0xf]
      %v1583 = vld [vmem:[#allocation2 + $0x34] sm:$0xf]
      %v1584 = vld [vmem:[#allocation2 + $0x3c] sm:$0xf]
      %v1585 = vld [vmem:[#allocation2 + $0x40] sm:$0xf]
      %v1586 = vld [vmem:[#allocation2 + $0x48] sm:$0xf]
      %v1587 = vld [vmem:[#allocation2 + $0x4c] sm:$0xf]
      %v1588 = vld [vmem:[#allocation2 + $0x54] sm:$0xf]
      %v1589 = vld [vmem:[#allocation2 + $0x58] sm:$0xf]
      %v1590 = vld [vmem:[#allocation2 + $0x60] sm:$0xf]
      %v1591 = vld [vmem:[#allocation2 + $0x64] sm:$0xf]
      %v1592 = vld [vmem:[#allocation2 + $0x6c] sm:$0xf]
      %v1593 = vld [vmem:[#allocation2 + $0x70] sm:$0xf]
      %v1594 = vld [vmem:[#allocation2 + $0x78] sm:$0xf]
      %v1595 = vld [vmem:[#allocation2 + $0x7c] sm:$0xf]
      %v1596 = vld [vmem:[#allocation2 + $0x84] sm:$0xf]
      %v1597 = vld [vmem:[#allocation2 + $0x88] sm:$0xf]
      %v1598 = vld [vmem:[#allocation2 + $0x90] sm:$0xf]
      %v1599 = vld [vmem:[#allocation2 + $0x94] sm:$0xf]
      %v1600 = vld [vmem:[#allocation2 + $0x9c] sm:$0xf]
      %v1601 = vld [vmem:[#allocation2 + $0xa0] sm:$0xf]
      %v1602 = vld [vmem:[#allocation2 + $0xa8] sm:$0xf]
      %v1603 = vld [vmem:[#allocation2 + $0xac] sm:$0xf]
      %v1604 = vld [vmem:[#allocation2 + $0xb4] sm:$0xf]
      %v1605 = vld [vmem:[#allocation2 + $0xb8] sm:$0xf]
      %v1606 = vld [vmem:[#allocation2 + $0xc0] sm:$0xf]
      %v1607 = vld [vmem:[#allocation2 + $0xc4] sm:$0xf]
      %v1608 = vld [vmem:[#allocation2 + $0xcc] sm:$0xf]
      %v1609 = vld [vmem:[#allocation2 + $0xd0] sm:$0xf]
      %v1610 = vld [vmem:[#allocation2 + $0x8] sm:$0x1]
      %v1611 = vld [vmem:[#allocation2 + $0x14] sm:$0x1]
      %v1612 = vld [vmem:[#allocation2 + $0x20] sm:$0x1]
      %v1613 = vld [vmem:[#allocation2 + $0x2c] sm:$0x1]
      %v1614 = vld [vmem:[#allocation2 + $0x38] sm:$0x1]
      %v1615 = vld [vmem:[#allocation2 + $0x44] sm:$0x1]
      %v1616 = vld [vmem:[#allocation2 + $0x50] sm:$0x1]
      %v1617 = vld [vmem:[#allocation2 + $0x5c] sm:$0x1]
      %v1618 = vld [vmem:[#allocation2 + $0x68] sm:$0x1]
      %v1619 = vld [vmem:[#allocation2 + $0x74] sm:$0x1]
      %v1620 = vld [vmem:[#allocation2 + $0x80] sm:$0x1]
      %v1621 = vld [vmem:[#allocation2 + $0x8c] sm:$0x1]
      %v1622 = vld [vmem:[#allocation2 + $0x98] sm:$0x1]
      %v1623 = vld [vmem:[#allocation2 + $0xa4] sm:$0x1]
      %v1624 = vld [vmem:[#allocation2 + $0xb0] sm:$0x1]
      %v1625 = vld [vmem:[#allocation2 + $0xbc] sm:$0x1]
      %v1626 = vld [vmem:[#allocation2 + $0xc8] sm:$0x1]
      %v1627 = vld [vmem:[#allocation2 + $0xd4] sm:$0x1]
      %v1628 = vld [vmem:[#allocation2] sm:$0xe]
      %v1629 = vld [vmem:[#allocation2 + $0xc] sm:$0xe]
      %v1630 = vld [vmem:[#allocation2 + $0x18] sm:$0xe]
      %v1631 = vld [vmem:[#allocation2 + $0x24] sm:$0xe]
      %v1632 = vld [vmem:[#allocation2 + $0x30] sm:$0xe]
      %v1633 = vld [vmem:[#allocation2 + $0x3c] sm:$0xe]
      %v1634 = vld [vmem:[#allocation2 + $0x48] sm:$0xe]
      %v1635 = vld [vmem:[#allocation2 + $0x54] sm:$0xe]
      %v1636 = vld [vmem:[#allocation2 + $0x60] sm:$0xe]
      %v1637 = vld [vmem:[#allocation2 + $0x6c] sm:$0xe]
      %v1638 = vld [vmem:[#allocation2 + $0x78] sm:$0xe]
      %v1639 = vld [vmem:[#allocation2 + $0x84] sm:$0xe]
      %v1640 = vld [vmem:[#allocation2 + $0x90] sm:$0xe]
      %v1641 = vld [vmem:[#allocation2 + $0x9c] sm:$0xe]
      %v1642 = vld [vmem:[#allocation2 + $0xa8] sm:$0xe]
      %v1643 = vld [vmem:[#allocation2 + $0xb4] sm:$0xe]
      %v1644 = vld [vmem:[#allocation2 + $0xc0] sm:$0xe]
      %v1645 = vld [vmem:[#allocation2 + $0xcc] sm:$0xe]
      %v1682 = vunpack.c.l.b16 %v1574
      %v1683 = vunpack.c.l.b16 %v1575
      %v1684 = vunpack.c.l.b16 %v1576
      %v1685 = vunpack.c.l.b16 %v1577
      %v1686 = vunpack.c.l.b16 %v1578
      %v1687 = vunpack.c.l.b16 %v1579
      %v1688 = vunpack.c.l.b16 %v1580
      %v1689 = vunpack.c.l.b16 %v1581
      %v1690 = vunpack.c.l.b16 %v1582
      %v1691 = vunpack.c.l.b16 %v1583
      %v1692 = vunpack.c.l.b16 %v1584
      %v1693 = vunpack.c.l.b16 %v1585
      %v1694 = vunpack.c.l.b16 %v1586
      %v1695 = vunpack.c.l.b16 %v1587
      %v1696 = vunpack.c.l.b16 %v1588
      %v1697 = vunpack.c.l.b16 %v1589
      %v1698 = vunpack.c.l.b16 %v1590
      %v1699 = vunpack.c.l.b16 %v1591
      %v1700 = vunpack.c.l.b16 %v1592
      %v1701 = vunpack.c.l.b16 %v1593
      %v1702 = vunpack.c.l.b16 %v1594
      %v1703 = vunpack.c.l.b16 %v1595
      %v1704 = vunpack.c.l.b16 %v1596
      %v1705 = vunpack.c.l.b16 %v1597
      %v1706 = vunpack.c.l.b16 %v1598
      %v1707 = vunpack.c.l.b16 %v1599
      %v1708 = vunpack.c.l.b16 %v1600
      %v1709 = vunpack.c.l.b16 %v1601
      %v1710 = vunpack.c.l.b16 %v1602
      %v1711 = vunpack.c.l.b16 %v1603
      %v1712 = vunpack.c.l.b16 %v1604
      %v1713 = vunpack.c.l.b16 %v1605
      %v1714 = vunpack.c.l.b16 %v1606
      %v1715 = vunpack.c.l.b16 %v1607
      %v1716 = vunpack.c.l.b16 %v1608
      %v1717 = vunpack.c.l.b16 %v1609
      %v1718 = vpack.c.b16 %v1683, %v1682
      %v1719 = vpack.c.b16 %v1685, %v1684
      %v1720 = vpack.c.b16 %v1687, %v1686
      %v1721 = vpack.c.b16 %v1689, %v1688
      %v1722 = vpack.c.b16 %v1691, %v1690
      %v1723 = vpack.c.b16 %v1693, %v1692
      %v1724 = vpack.c.b16 %v1695, %v1694
      %v1725 = vpack.c.b16 %v1697, %v1696
      %v1726 = vpack.c.b16 %v1699, %v1698
      %v1727 = vpack.c.b16 %v1701, %v1700
      %v1728 = vpack.c.b16 %v1703, %v1702
      %v1729 = vpack.c.b16 %v1705, %v1704
      %v1730 = vpack.c.b16 %v1707, %v1706
      %v1731 = vpack.c.b16 %v1709, %v1708
      %v1732 = vpack.c.b16 %v1711, %v1710
      %v1733 = vpack.c.b16 %v1713, %v1712
      %v1734 = vpack.c.b16 %v1715, %v1714
      %v1735 = vpack.c.b16 %v1717, %v1716
      %v1772 = vunpack.c.l.b16 %v1610
      %v1773 = vunpack.c.l.b16 %v1611
      %v1774 = vunpack.c.l.b16 %v1612
      %v1775 = vunpack.c.l.b16 %v1613
      %v1776 = vunpack.c.l.b16 %v1614
      %v1777 = vunpack.c.l.b16 %v1615
      %v1778 = vunpack.c.l.b16 %v1616
      %v1779 = vunpack.c.l.b16 %v1617
      %v1780 = vunpack.c.l.b16 %v1618
      %v1781 = vunpack.c.l.b16 %v1619
      %v1782 = vunpack.c.l.b16 %v1620
      %v1783 = vunpack.c.l.b16 %v1621
      %v1784 = vunpack.c.l.b16 %v1622
      %v1785 = vunpack.c.l.b16 %v1623
      %v1786 = vunpack.c.l.b16 %v1624
      %v1787 = vunpack.c.l.b16 %v1625
      %v1788 = vunpack.c.l.b16 %v1626
      %v1789 = vunpack.c.l.b16 %v1627
      %v1790 = vpack.c.b16 %v1772, %v1772
      %v1791 = vpack.c.b16 %v1773, %v1773
      %v1792 = vpack.c.b16 %v1774, %v1774
      %v1793 = vpack.c.b16 %v1775, %v1775
      %v1794 = vpack.c.b16 %v1776, %v1776
      %v1795 = vpack.c.b16 %v1777, %v1777
      %v1796 = vpack.c.b16 %v1778, %v1778
      %v1797 = vpack.c.b16 %v1779, %v1779
      %v1798 = vpack.c.b16 %v1780, %v1780
      %v1799 = vpack.c.b16 %v1781, %v1781
      %v1800 = vpack.c.b16 %v1782, %v1782
      %v1801 = vpack.c.b16 %v1783, %v1783
      %v1802 = vpack.c.b16 %v1784, %v1784
      %v1803 = vpack.c.b16 %v1785, %v1785
      %v1804 = vpack.c.b16 %v1786, %v1786
      %v1805 = vpack.c.b16 %v1787, %v1787
      %v1806 = vpack.c.b16 %v1788, %v1788
      %v1807 = vpack.c.b16 %v1789, %v1789
      %vm1808 = vsmask.f32 7424
      %v1810 = vshrl.u32 %v1718, 16
      %v1812 = vshll.u32 %v1718, 16
      %v1814 = vrot.slane %v1812, 1
      %v1815 = vor.u32 %v1810, %v1814
      %v1817 = vshll.u32 %v1790, 16
      %v1819 = vrot.slane %v1817, 1
      %v1820 = vsel %vm1808, %v1815, %v1819
      %v1822 = vshrl.u32 %v1719, 16
      %v1824 = vshll.u32 %v1719, 16
      %v1826 = vrot.slane %v1824, 1
      %v1827 = vor.u32 %v1822, %v1826
      %v1829 = vshll.u32 %v1791, 16
      %v1831 = vrot.slane %v1829, 1
      %v1832 = vsel %vm1808, %v1827, %v1831
      %v1834 = vshrl.u32 %v1720, 16
      %v1836 = vshll.u32 %v1720, 16
      %v1838 = vrot.slane %v1836, 1
      %v1839 = vor.u32 %v1834, %v1838
      %v1841 = vshll.u32 %v1792, 16
      %v1843 = vrot.slane %v1841, 1
      %v1844 = vsel %vm1808, %v1839, %v1843
      %v1846 = vshrl.u32 %v1721, 16
      %v1848 = vshll.u32 %v1721, 16
      %v1850 = vrot.slane %v1848, 1
      %v1851 = vor.u32 %v1846, %v1850
      %v1853 = vshll.u32 %v1793, 16
      %v1855 = vrot.slane %v1853, 1
      %v1856 = vsel %vm1808, %v1851, %v1855
      %v1858 = vshrl.u32 %v1722, 16
      %v1860 = vshll.u32 %v1722, 16
      %v1862 = vrot.slane %v1860, 1
      %v1863 = vor.u32 %v1858, %v1862
      %v1865 = vshll.u32 %v1794, 16
      %v1867 = vrot.slane %v1865, 1
      %v1868 = vsel %vm1808, %v1863, %v1867
      %v1870 = vshrl.u32 %v1723, 16
      %v1872 = vshll.u32 %v1723, 16
      %v1874 = vrot.slane %v1872, 1
      %v1875 = vor.u32 %v1870, %v1874
      %v1877 = vshll.u32 %v1795, 16
      %v1879 = vrot.slane %v1877, 1
      %v1880 = vsel %vm1808, %v1875, %v1879
      %v1882 = vshrl.u32 %v1724, 16
      %v1884 = vshll.u32 %v1724, 16
      %v1886 = vrot.slane %v1884, 1
      %v1887 = vor.u32 %v1882, %v1886
      %v1889 = vshll.u32 %v1796, 16
      %v1891 = vrot.slane %v1889, 1
      %v1892 = vsel %vm1808, %v1887, %v1891
      %v1894 = vshrl.u32 %v1725, 16
      %v1896 = vshll.u32 %v1725, 16
      %v1898 = vrot.slane %v1896, 1
      %v1899 = vor.u32 %v1894, %v1898
      %v1901 = vshll.u32 %v1797, 16
      %v1903 = vrot.slane %v1901, 1
      %v1904 = vsel %vm1808, %v1899, %v1903
      %v1906 = vshrl.u32 %v1726, 16
      %v1908 = vshll.u32 %v1726, 16
      %v1910 = vrot.slane %v1908, 1
      %v1911 = vor.u32 %v1906, %v1910
      %v1913 = vshll.u32 %v1798, 16
      %v1915 = vrot.slane %v1913, 1
      %v1916 = vsel %vm1808, %v1911, %v1915
      %v1918 = vshrl.u32 %v1727, 16
      %v1920 = vshll.u32 %v1727, 16
      %v1922 = vrot.slane %v1920, 1
      %v1923 = vor.u32 %v1918, %v1922
      %v1925 = vshll.u32 %v1799, 16
      %v1927 = vrot.slane %v1925, 1
      %v1928 = vsel %vm1808, %v1923, %v1927
      %v1930 = vshrl.u32 %v1728, 16
      %v1932 = vshll.u32 %v1728, 16
      %v1934 = vrot.slane %v1932, 1
      %v1935 = vor.u32 %v1930, %v1934
      %v1937 = vshll.u32 %v1800, 16
      %v1939 = vrot.slane %v1937, 1
      %v1940 = vsel %vm1808, %v1935, %v1939
      %v1942 = vshrl.u32 %v1729, 16
      %v1944 = vshll.u32 %v1729, 16
      %v1946 = vrot.slane %v1944, 1
      %v1947 = vor.u32 %v1942, %v1946
      %v1949 = vshll.u32 %v1801, 16
      %v1951 = vrot.slane %v1949, 1
      %v1952 = vsel %vm1808, %v1947, %v1951
      %v1954 = vshrl.u32 %v1730, 16
      %v1956 = vshll.u32 %v1730, 16
      %v1958 = vrot.slane %v1956, 1
      %v1959 = vor.u32 %v1954, %v1958
      %v1961 = vshll.u32 %v1802, 16
      %v1963 = vrot.slane %v1961, 1
      %v1964 = vsel %vm1808, %v1959, %v1963
      %v1966 = vshrl.u32 %v1731, 16
      %v1968 = vshll.u32 %v1731, 16
      %v1970 = vrot.slane %v1968, 1
      %v1971 = vor.u32 %v1966, %v1970
      %v1973 = vshll.u32 %v1803, 16
      %v1975 = vrot.slane %v1973, 1
      %v1976 = vsel %vm1808, %v1971, %v1975
      %v1978 = vshrl.u32 %v1732, 16
      %v1980 = vshll.u32 %v1732, 16
      %v1982 = vrot.slane %v1980, 1
      %v1983 = vor.u32 %v1978, %v1982
      %v1985 = vshll.u32 %v1804, 16
      %v1987 = vrot.slane %v1985, 1
      %v1988 = vsel %vm1808, %v1983, %v1987
      %v1990 = vshrl.u32 %v1733, 16
      %v1992 = vshll.u32 %v1733, 16
      %v1994 = vrot.slane %v1992, 1
      %v1995 = vor.u32 %v1990, %v1994
      %v1997 = vshll.u32 %v1805, 16
      %v1999 = vrot.slane %v1997, 1
      %v2000 = vsel %vm1808, %v1995, %v1999
      %v2002 = vshrl.u32 %v1734, 16
      %v2004 = vshll.u32 %v1734, 16
      %v2006 = vrot.slane %v2004, 1
      %v2007 = vor.u32 %v2002, %v2006
      %v2009 = vshll.u32 %v1806, 16
      %v2011 = vrot.slane %v2009, 1
      %v2012 = vsel %vm1808, %v2007, %v2011
      %v2014 = vshrl.u32 %v1735, 16
      %v2016 = vshll.u32 %v1735, 16
      %v2018 = vrot.slane %v2016, 1
      %v2019 = vor.u32 %v2014, %v2018
      %v2021 = vshll.u32 %v1807, 16
      %v2023 = vrot.slane %v2021, 1
      %v2024 = vsel %vm1808, %v2019, %v2023
      %v2061 = vunpack.c.l.b16 %v1628
      %v2062 = vunpack.c.l.b16 %v1629
      %v2063 = vunpack.c.l.b16 %v1630
      %v2064 = vunpack.c.l.b16 %v1631
      %v2065 = vunpack.c.l.b16 %v1632
      %v2066 = vunpack.c.l.b16 %v1633
      %v2067 = vunpack.c.l.b16 %v1634
      %v2068 = vunpack.c.l.b16 %v1635
      %v2069 = vunpack.c.l.b16 %v1636
      %v2070 = vunpack.c.l.b16 %v1637
      %v2071 = vunpack.c.l.b16 %v1638
      %v2072 = vunpack.c.l.b16 %v1639
      %v2073 = vunpack.c.l.b16 %v1640
      %v2074 = vunpack.c.l.b16 %v1641
      %v2075 = vunpack.c.l.b16 %v1642
      %v2076 = vunpack.c.l.b16 %v1643
      %v2077 = vunpack.c.l.b16 %v1644
      %v2078 = vunpack.c.l.b16 %v1645
      %v2079 = vpack.c.b16 %v1683, %v2061
      %v2080 = vpack.c.b16 %v1685, %v2062
      %v2081 = vpack.c.b16 %v1687, %v2063
      %v2082 = vpack.c.b16 %v1689, %v2064
      %v2083 = vpack.c.b16 %v1691, %v2065
      %v2084 = vpack.c.b16 %v1693, %v2066
      %v2085 = vpack.c.b16 %v1695, %v2067
      %v2086 = vpack.c.b16 %v1697, %v2068
      %v2087 = vpack.c.b16 %v1699, %v2069
      %v2088 = vpack.c.b16 %v1701, %v2070
      %v2089 = vpack.c.b16 %v1703, %v2071
      %v2090 = vpack.c.b16 %v1705, %v2072
      %v2091 = vpack.c.b16 %v1707, %v2073
      %v2092 = vpack.c.b16 %v1709, %v2074
      %v2093 = vpack.c.b16 %v1711, %v2075
      %v2094 = vpack.c.b16 %v1713, %v2076
      %v2095 = vpack.c.b16 %v1715, %v2077
      %v2096 = vpack.c.b16 %v1717, %v2078
      %vm2097 = vcmask 1046528
      %v2098 = vrot.slane %v2079, 1
      %v2099 = vrot.slane %v1790, 1
      %v2100 = vsel %vm2097, %v2098, %v2099
      %v2101 = vrot.slane %v2080, 1
      %v2102 = vrot.slane %v1791, 1
      %v2103 = vsel %vm2097, %v2101, %v2102
      %v2104 = vrot.slane %v2081, 1
      %v2105 = vrot.slane %v1792, 1
      %v2106 = vsel %vm2097, %v2104, %v2105
      %v2107 = vrot.slane %v2082, 1
      %v2108 = vrot.slane %v1793, 1
      %v2109 = vsel %vm2097, %v2107, %v2108
      %v2110 = vrot.slane %v2083, 1
      %v2111 = vrot.slane %v1794, 1
      %v2112 = vsel %vm2097, %v2110, %v2111
      %v2113 = vrot.slane %v2084, 1
      %v2114 = vrot.slane %v1795, 1
      %v2115 = vsel %vm2097, %v2113, %v2114
      %v2116 = vrot.slane %v2085, 1
      %v2117 = vrot.slane %v1796, 1
      %v2118 = vsel %vm2097, %v2116, %v2117
      %v2119 = vrot.slane %v2086, 1
      %v2120 = vrot.slane %v1797, 1
      %v2121 = vsel %vm2097, %v2119, %v2120
      %v2122 = vrot.slane %v2087, 1
      %v2123 = vrot.slane %v1798, 1
      %v2124 = vsel %vm2097, %v2122, %v2123
      %v2125 = vrot.slane %v2088, 1
      %v2126 = vrot.slane %v1799, 1
      %v2127 = vsel %vm2097, %v2125, %v2126
      %v2128 = vrot.slane %v2089, 1
      %v2129 = vrot.slane %v1800, 1
      %v2130 = vsel %vm2097, %v2128, %v2129
      %v2131 = vrot.slane %v2090, 1
      %v2132 = vrot.slane %v1801, 1
      %v2133 = vsel %vm2097, %v2131, %v2132
      %v2134 = vrot.slane %v2091, 1
      %v2135 = vrot.slane %v1802, 1
      %v2136 = vsel %vm2097, %v2134, %v2135
      %v2137 = vrot.slane %v2092, 1
      %v2138 = vrot.slane %v1803, 1
      %v2139 = vsel %vm2097, %v2137, %v2138
      %v2140 = vrot.slane %v2093, 1
      %v2141 = vrot.slane %v1804, 1
      %v2142 = vsel %vm2097, %v2140, %v2141
      %v2143 = vrot.slane %v2094, 1
      %v2144 = vrot.slane %v1805, 1
      %v2145 = vsel %vm2097, %v2143, %v2144
      %v2146 = vrot.slane %v2095, 1
      %v2147 = vrot.slane %v1806, 1
      %v2148 = vsel %vm2097, %v2146, %v2147
      %v2149 = vrot.slane %v2096, 1
      %v2150 = vrot.slane %v1807, 1
      %v2151 = vsel %vm2097, %v2149, %v2150
      %v2170 = vld [vmem:[%s3] sm:$0xff]
      %v2171 = vld [vmem:[%s3 + $0x8] sm:$0xff]
      %v2172 = vld [vmem:[%s3 + $0x10] sm:$0xff]
      %v2173 = vld [vmem:[%s3 + $0x18] sm:$0xff]
      %v2174 = vld [vmem:[%s3 + $0x20] sm:$0xff]
      %v2175 = vld [vmem:[%s3 + $0x28] sm:$0xff]
      %v2176 = vld [vmem:[%s3 + $0x30] sm:$0xff]
      %v2177 = vld [vmem:[%s3 + $0x38] sm:$0xff]
      %v2178 = vld [vmem:[%s3 + $0x40] sm:$0xff]
      %v2179 = vld [vmem:[%s3 + $0x48] sm:$0xff]
      %v2180 = vld [vmem:[%s3 + $0x50] sm:$0xff]
      %v2181 = vld [vmem:[%s3 + $0x58] sm:$0xff]
      %v2182 = vld [vmem:[%s3 + $0x60] sm:$0xff]
      %v2183 = vld [vmem:[%s3 + $0x68] sm:$0xff]
      %v2184 = vld [vmem:[%s3 + $0x70] sm:$0xff]
      %v2185 = vld [vmem:[%s3 + $0x78] sm:$0xff]
      %v2186 = vld [vmem:[%s3 + $0x80] sm:$0xff]
      %v2187 = vld [vmem:[%s3 + $0x88] sm:$0xff]
      %v2188 = vld [vmem:[%s3 + $0x90] sm:$0xff]
      %v2189 = vld [vmem:[%s3 + $0x98] sm:$0xff]
      %v2190 = vld [vmem:[%s3 + $0xa0] sm:$0xff]
      %v2191 = vld [vmem:[%s3 + $0xa8] sm:$0xff]
      %v2192 = vld [vmem:[%s3 + $0xb0] sm:$0xff]
      %v2193 = vld [vmem:[%s3 + $0xb8] sm:$0xff]
      %v2194 = vld [vmem:[%s3 + $0xc0] sm:$0xff]
      %v2195 = vld [vmem:[%s3 + $0xc8] sm:$0xff]
      %v2196 = vld [vmem:[%s3 + $0xd0] sm:$0xff]
      %v2197 = vld [vmem:[%s3 + $0xd8] sm:$0xff]
      %v2198 = vld [vmem:[%s3 + $0xe0] sm:$0xff]
      %v2199 = vld [vmem:[%s3 + $0xe8] sm:$0xff]
      %v2200 = vld [vmem:[%s3 + $0xf0] sm:$0xff]
      %v2201 = vld [vmem:[%s3 + $0xf8] sm:$0xff]
      %v2202 = vld [vmem:[%s3 + $0x100] sm:$0xff]
      %v2203 = vld [vmem:[%s3 + $0x108] sm:$0xff]
      %v2204 = vld [vmem:[%s3 + $0x110] sm:$0xff]
      %v2205 = vld [vmem:[%s3 + $0x118] sm:$0xff]
      %v2206 = vld [vmem:[%s3 + $0x120] sm:$0xff]
      %v2207 = vld [vmem:[%s3 + $0x128] sm:$0xff]
      %v2208 = vld [vmem:[%s3 + $0x130] sm:$0xff]
      %v2209 = vld [vmem:[%s3 + $0x138] sm:$0xff]
      %v2210 = vld [vmem:[%s3 + $0x140] sm:$0xff]
      %v2211 = vld [vmem:[%s3 + $0x148] sm:$0xff]
      %v2212 = vld [vmem:[%s3 + $0x150] sm:$0xff]
      %v2213 = vld [vmem:[%s3 + $0x158] sm:$0xff]
      %v2214 = vld [vmem:[%s3 + $0x160] sm:$0xff]
      %v2215 = vld [vmem:[%s3 + $0x168] sm:$0xff]
      %v2216 = vld [vmem:[%s3 + $0x170] sm:$0xff]
      %v2217 = vld [vmem:[%s3 + $0x178] sm:$0xff]
      %s2218 = scalar_lea.vmem %s3, 384
      %v2219 = vld [vmem:[%s2218] sm:$0xff]
      %v2220 = vld [vmem:[%s2218 + $0x8] sm:$0xff]
      %v2221 = vld [vmem:[%s2218 + $0x10] sm:$0xff]
      %v2222 = vld [vmem:[%s2218 + $0x18] sm:$0xff]
      %v2223 = vld [vmem:[%s2218 + $0x20] sm:$0xff]
      %v2224 = vld [vmem:[%s2218 + $0x28] sm:$0xff]
      %v2225 = vld [vmem:[%s2218 + $0x30] sm:$0xff]
      %v2226 = vld [vmem:[%s2218 + $0x38] sm:$0xff]
      %v2227 = vld [vmem:[%s2218 + $0x40] sm:$0xff]
      %v2228 = vld [vmem:[%s2218 + $0x48] sm:$0xff]
      %v2229 = vld [vmem:[%s2218 + $0x50] sm:$0xff]
      %v2230 = vld [vmem:[%s2218 + $0x58] sm:$0xff]
      %v2231 = vld [vmem:[%s2218 + $0x60] sm:$0xff]
      %v2232 = vld [vmem:[%s2218 + $0x68] sm:$0xff]
      %v2233 = vld [vmem:[%s2218 + $0x70] sm:$0xff]
      %v2234 = vld [vmem:[%s2218 + $0x78] sm:$0xff]
      %v2235 = vld [vmem:[%s2218 + $0x80] sm:$0xff]
      %v2236 = vld [vmem:[%s2218 + $0x88] sm:$0xff]
      %v2237 = vld [vmem:[%s2218 + $0x90] sm:$0xff]
      %v2238 = vld [vmem:[%s2218 + $0x98] sm:$0xff]
      %v2239 = vld [vmem:[%s2218 + $0xa0] sm:$0xff]
      %v2240 = vld [vmem:[%s2218 + $0xa8] sm:$0xff]
      %v2241 = vld [vmem:[%s2218 + $0xb0] sm:$0xff]
      %v2242 = vld [vmem:[%s2218 + $0xb8] sm:$0xff]
      %v2243 = vld [vmem:[%s2218 + $0xc0] sm:$0xff]
      %v2244 = vld [vmem:[%s2218 + $0xc8] sm:$0xff]
      %v2245 = vld [vmem:[%s2218 + $0xd0] sm:$0xff]
      %v2246 = vld [vmem:[%s2218 + $0xd8] sm:$0xff]
      %v2247 = vld [vmem:[%s2218 + $0xe0] sm:$0xff]
      %v2248 = vld [vmem:[%s2218 + $0xe8] sm:$0xff]
      %v2249 = vld [vmem:[%s2218 + $0xf0] sm:$0xff]
      %v2250 = vld [vmem:[%s2218 + $0xf8] sm:$0xff]
      %v2251 = vld [vmem:[%s2218 + $0x100] sm:$0xff]
      %v2252 = vld [vmem:[%s2218 + $0x108] sm:$0xff]
      %v2253 = vld [vmem:[%s2218 + $0x110] sm:$0xff]
      %v2254 = vld [vmem:[%s2218 + $0x118] sm:$0xff]
      %v2255 = vld [vmem:[%s2218 + $0x120] sm:$0xff]
      %v2256 = vld [vmem:[%s2218 + $0x128] sm:$0xff]
      %v2257 = vld [vmem:[%s2218 + $0x130] sm:$0xff]
      %v2258 = vld [vmem:[%s2218 + $0x138] sm:$0xff]
      %v2259 = vld [vmem:[%s2218 + $0x140] sm:$0xff]
      %v2260 = vld [vmem:[%s2218 + $0x148] sm:$0xff]
      %v2261 = vld [vmem:[%s2218 + $0x150] sm:$0xff]
      %v2262 = vld [vmem:[%s2218 + $0x158] sm:$0xff]
      %v2263 = vld [vmem:[%s2218 + $0x160] sm:$0xff]
      %v2264 = vld [vmem:[%s2218 + $0x168] sm:$0xff]
      %v2265 = vld [vmem:[%s2218 + $0x170] sm:$0xff]
      %v2266 = vld [vmem:[%s2218 + $0x178] sm:$0xff]
      %v2315 = vunpack.c.l.b16 %v2219
      %v2316 = vunpack.c.h.b16 %v2219
      %v2317 = vunpack.c.l.b16 %v2220
      %v2318 = vunpack.c.h.b16 %v2220
      %v2319 = vunpack.c.l.b16 %v2221
      %v2320 = vunpack.c.h.b16 %v2221
      %v2321 = vunpack.c.l.b16 %v2222
      %v2322 = vunpack.c.h.b16 %v2222
      %v2323 = vunpack.c.l.b16 %v2223
      %v2324 = vunpack.c.h.b16 %v2223
      %v2325 = vunpack.c.l.b16 %v2224
      %v2326 = vunpack.c.h.b16 %v2224
      %v2327 = vunpack.c.l.b16 %v2225
      %v2328 = vunpack.c.h.b16 %v2225
      %v2329 = vunpack.c.l.b16 %v2226
      %v2330 = vunpack.c.h.b16 %v2226
      %v2331 = vunpack.c.l.b16 %v2227
      %v2332 = vunpack.c.h.b16 %v2227
      %v2333 = vunpack.c.l.b16 %v2228
      %v2334 = vunpack.c.h.b16 %v2228
      %v2335 = vunpack.c.l.b16 %v2229
      %v2336 = vunpack.c.h.b16 %v2229
      %v2337 = vunpack.c.l.b16 %v2230
      %v2338 = vunpack.c.h.b16 %v2230
      %v2339 = vunpack.c.l.b16 %v2231
      %v2340 = vunpack.c.h.b16 %v2231
      %v2341 = vunpack.c.l.b16 %v2232
      %v2342 = vunpack.c.h.b16 %v2232
      %v2343 = vunpack.c.l.b16 %v2233
      %v2344 = vunpack.c.h.b16 %v2233
      %v2345 = vunpack.c.l.b16 %v2234
      %v2346 = vunpack.c.h.b16 %v2234
      %v2347 = vunpack.c.l.b16 %v2235
      %v2348 = vunpack.c.h.b16 %v2235
      %v2349 = vunpack.c.l.b16 %v2236
      %v2350 = vunpack.c.h.b16 %v2236
      %v2351 = vunpack.c.l.b16 %v2237
      %v2352 = vunpack.c.h.b16 %v2237
      %v2353 = vunpack.c.l.b16 %v2238
      %v2354 = vunpack.c.h.b16 %v2238
      %v2355 = vunpack.c.l.b16 %v2239
      %v2356 = vunpack.c.h.b16 %v2239
      %v2357 = vunpack.c.l.b16 %v2240
      %v2358 = vunpack.c.h.b16 %v2240
      %v2359 = vunpack.c.l.b16 %v2241
      %v2360 = vunpack.c.h.b16 %v2241
      %v2361 = vunpack.c.l.b16 %v2242
      %v2362 = vunpack.c.h.b16 %v2242
      %v2363 = vunpack.c.l.b16 %v2243
      %v2364 = vunpack.c.h.b16 %v2243
      %v2365 = vunpack.c.l.b16 %v2244
      %v2366 = vunpack.c.h.b16 %v2244
      %v2367 = vunpack.c.l.b16 %v2245
      %v2368 = vunpack.c.h.b16 %v2245
      %v2369 = vunpack.c.l.b16 %v2246
      %v2370 = vunpack.c.h.b16 %v2246
      %v2371 = vunpack.c.l.b16 %v2247
      %v2372 = vunpack.c.h.b16 %v2247
      %v2373 = vunpack.c.l.b16 %v2248
      %v2374 = vunpack.c.h.b16 %v2248
      %v2375 = vunpack.c.l.b16 %v2249
      %v2376 = vunpack.c.h.b16 %v2249
      %v2377 = vunpack.c.l.b16 %v2250
      %v2378 = vunpack.c.h.b16 %v2250
      %v2379 = vunpack.c.l.b16 %v2251
      %v2380 = vunpack.c.h.b16 %v2251
      %v2381 = vunpack.c.l.b16 %v2252
      %v2382 = vunpack.c.h.b16 %v2252
      %v2383 = vunpack.c.l.b16 %v2253
      %v2384 = vunpack.c.h.b16 %v2253
      %v2385 = vunpack.c.l.b16 %v2254
      %v2386 = vunpack.c.h.b16 %v2254
      %v2387 = vunpack.c.l.b16 %v2255
      %v2388 = vunpack.c.h.b16 %v2255
      %v2389 = vunpack.c.l.b16 %v2256
      %v2390 = vunpack.c.h.b16 %v2256
      %v2391 = vunpack.c.l.b16 %v2257
      %v2392 = vunpack.c.h.b16 %v2257
      %v2393 = vunpack.c.l.b16 %v2258
      %v2394 = vunpack.c.h.b16 %v2258
      %v2395 = vunpack.c.l.b16 %v2259
      %v2396 = vunpack.c.h.b16 %v2259
      %v2397 = vunpack.c.l.b16 %v2260
      %v2398 = vunpack.c.h.b16 %v2260
      %v2399 = vunpack.c.l.b16 %v2261
      %v2400 = vunpack.c.h.b16 %v2261
      %v2401 = vunpack.c.l.b16 %v2262
      %v2402 = vunpack.c.h.b16 %v2262
      %v2403 = vunpack.c.l.b16 %v2263
      %v2404 = vunpack.c.h.b16 %v2263
      %v2405 = vunpack.c.l.b16 %v2264
      %v2406 = vunpack.c.h.b16 %v2264
      %v2407 = vunpack.c.l.b16 %v2265
      %v2408 = vunpack.c.h.b16 %v2265
      %v2409 = vunpack.c.l.b16 %v2266
      %v2410 = vunpack.c.h.b16 %v2266
      %v2411 = vpack.c.b16 %v2317, %v2315
      %v2412 = vpack.c.b16 %v2318, %v2316
      %v2413 = vpack.c.b16 %v2321, %v2319
      %v2414 = vpack.c.b16 %v2322, %v2320
      %v2415 = vpack.c.b16 %v2325, %v2323
      %v2416 = vpack.c.b16 %v2326, %v2324
      %v2417 = vpack.c.b16 %v2329, %v2327
      %v2418 = vpack.c.b16 %v2330, %v2328
      %v2419 = vpack.c.b16 %v2333, %v2331
      %v2420 = vpack.c.b16 %v2334, %v2332
      %v2421 = vpack.c.b16 %v2337, %v2335
      %v2422 = vpack.c.b16 %v2338, %v2336
      %v2423 = vpack.c.b16 %v2341, %v2339
      %v2424 = vpack.c.b16 %v2342, %v2340
      %v2425 = vpack.c.b16 %v2345, %v2343
      %v2426 = vpack.c.b16 %v2346, %v2344
      %v2427 = vpack.c.b16 %v2349, %v2347
      %v2428 = vpack.c.b16 %v2350, %v2348
      %v2429 = vpack.c.b16 %v2353, %v2351
      %v2430 = vpack.c.b16 %v2354, %v2352
      %v2431 = vpack.c.b16 %v2357, %v2355
      %v2432 = vpack.c.b16 %v2358, %v2356
      %v2433 = vpack.c.b16 %v2361, %v2359
      %v2434 = vpack.c.b16 %v2362, %v2360
      %v2435 = vpack.c.b16 %v2365, %v2363
      %v2436 = vpack.c.b16 %v2366, %v2364
      %v2437 = vpack.c.b16 %v2369, %v2367
      %v2438 = vpack.c.b16 %v2370, %v2368
      %v2439 = vpack.c.b16 %v2373, %v2371
      %v2440 = vpack.c.b16 %v2374, %v2372
      %v2441 = vpack.c.b16 %v2377, %v2375
      %v2442 = vpack.c.b16 %v2378, %v2376
      %v2443 = vpack.c.b16 %v2381, %v2379
      %v2444 = vpack.c.b16 %v2382, %v2380
      %v2445 = vpack.c.b16 %v2385, %v2383
      %v2446 = vpack.c.b16 %v2386, %v2384
      %v2447 = vpack.c.b16 %v2389, %v2387
      %v2448 = vpack.c.b16 %v2390, %v2388
      %v2449 = vpack.c.b16 %v2393, %v2391
      %v2450 = vpack.c.b16 %v2394, %v2392
      %v2451 = vpack.c.b16 %v2397, %v2395
      %v2452 = vpack.c.b16 %v2398, %v2396
      %v2453 = vpack.c.b16 %v2401, %v2399
      %v2454 = vpack.c.b16 %v2402, %v2400
      %v2455 = vpack.c.b16 %v2405, %v2403
      %v2456 = vpack.c.b16 %v2406, %v2404
      %v2457 = vpack.c.b16 %v2409, %v2407
      %v2458 = vpack.c.b16 %v2410, %v2408
      %2507 = vmatprep.subr.bf16.mxu0 %v2412
      %2508 = vmatpush1.bf16.msra.mxu0 %v2411
      %2509 = vmatprep.subr.bf16.mxu0 %v2414
      %2510 = vmatpush1.bf16.msra.mxu0 %v2413
      %2511 = vmatprep.subr.bf16.mxu0 %v2416
      %2512 = vmatpush1.bf16.msra.mxu0 %v2415
      %2513 = vmatprep.subr.bf16.mxu0 %v2418
      %2514 = vmatpush1.bf16.msra.mxu0 %v2417
      %2515 = vmatprep.subr.bf16.mxu0 %v2420
      %2516 = vmatpush1.bf16.msra.mxu0 %v2419
      %2517 = vmatprep.subr.bf16.mxu0 %v2422
      %2518 = vmatpush1.bf16.msra.mxu0 %v2421
      %2519 = vmatprep.subr.bf16.mxu0 %v2424
      %2520 = vmatpush1.bf16.msra.mxu0 %v2423
      %2521 = vmatprep.subr.bf16.mxu0 %v2426
      %2522 = vmatpush1.bf16.msra.mxu0 %v2425
      %2523 = vmatprep.subr.bf16.mxu0 %v2428
      %2524 = vmatpush1.bf16.msra.mxu0 %v2427
      %2525 = vmatprep.subr.bf16.mxu0 %v2430
      %2526 = vmatpush1.bf16.msra.mxu0 %v2429
      %2527 = vmatprep.subr.bf16.mxu0 %v2432
      %2528 = vmatpush1.bf16.msra.mxu0 %v2431
      %2529 = vmatprep.subr.bf16.mxu0 %v2434
      %2530 = vmatpush1.bf16.msra.mxu0 %v2433
      %2531 = vmatprep.subr.bf16.mxu0 %v2436
      %2532 = vmatpush1.bf16.msra.mxu0 %v2435
      %2533 = vmatprep.subr.bf16.mxu0 %v2438
      %2534 = vmatpush1.bf16.msra.mxu0 %v2437
      %2535 = vmatprep.subr.bf16.mxu0 %v2440
      %2536 = vmatpush1.bf16.msra.mxu0 %v2439
      %2537 = vmatprep.subr.bf16.mxu0 %v2442
      %2538 = vmatpush1.bf16.msra.mxu0 %v2441
      %2539 = vmatprep.mubr.bf16.mxu0 %v1832
      %2540 = vmatmul.mubr.bf16.gmra.mrb[0].mxu0 %v1719
      %v2541 = vpop.f32.mrb[0].mxu0
      %v2542 = vadd.f32 0.0, %v2541
      %v2543 = vpop.f32.mrb[0].mxu0
      %v2544 = vadd.f32 0.0, %v2543
      %v2545 = vpop.f32.mrb[0].mxu0
      %v2546 = vadd.f32 0.0, %v2545
      %v2547 = vpop.f32.mrb[0].mxu0
      %v2548 = vadd.f32 0.0, %v2547
      %2549 = vmatprep.mubr.bf16.mxu0 %v1844
      %2550 = vmatmul.mubr.bf16.gmra.mrb[0].mxu0 %v1720
      %v2551 = vpop.f32.mrb[0].mxu0
      %v2552 = vadd.f32 0.0, %v2551
      %v2553 = vpop.f32.mrb[0].mxu0
      %v2554 = vadd.f32 0.0, %v2553
      %v2555 = vpop.f32.mrb[0].mxu0
      %v2556 = vadd.f32 0.0, %v2555
      %v2557 = vpop.f32.mrb[0].mxu0
      %v2558 = vadd.f32 0.0, %v2557
      %2559 = vmatprep.mubr.bf16.mxu0 %v1856
      %2560 = vmatmul.mubr.bf16.gmra.mrb[0].mxu0 %v1721
      %v2561 = vpop.f32.mrb[0].mxu0
      %v2562 = vadd.f32 0.0, %v2561
      %v2563 = vpop.f32.mrb[0].mxu0
      %v2564 = vadd.f32 0.0, %v2563
      %v2565 = vpop.f32.mrb[0].mxu0
      %v2566 = vadd.f32 0.0, %v2565
      %v2567 = vpop.f32.mrb[0].mxu0
      %v2568 = vadd.f32 0.0, %v2567
      %2569 = vmatprep.mubr.bf16.mxu0 %v1868
      %2570 = vmatmul.mubr.bf16.gmra.mrb[0].mxu0 %v1722
      %v2571 = vpop.f32.mrb[0].mxu0
      %v2572 = vadd.f32 0.0, %v2571
      %v2573 = vpop.f32.mrb[0].mxu0
      %v2574 = vadd.f32 0.0, %v2573
      %v2575 = vpop.f32.mrb[0].mxu0
      %v2576 = vadd.f32 0.0, %v2575
      %v2577 = vpop.f32.mrb[0].mxu0
      %v2578 = vadd.f32 0.0, %v2577
      %2579 = vmatprep.mubr.bf16.mxu0 %v1880
      %2580 = vmatmul.mubr.bf16.gmra.mrb[0].mxu0 %v1723
      %v2581 = vpop.f32.mrb[0].mxu0
      %v2582 = vadd.f32 0.0, %v2581
      %v2583 = vpop.f32.mrb[0].mxu0
      %v2584 = vadd.f32 0.0, %v2583
      %v2585 = vpop.f32.mrb[0].mxu0
      %v2586 = vadd.f32 0.0, %v2585
      %v2587 = vpop.f32.mrb[0].mxu0
      %v2588 = vadd.f32 0.0, %v2587
      %2589 = vmatprep.mubr.bf16.mxu0 %v1892
      %2590 = vmatmul.mubr.bf16.gmra.mrb[0].mxu0 %v1724
      %v2591 = vpop.f32.mrb[0].mxu0
      %v2592 = vadd.f32 0.0, %v2591
      %v2593 = vpop.f32.mrb[0].mxu0
      %v2594 = vadd.f32 0.0, %v2593
      %v2595 = vpop.f32.mrb[0].mxu0
      %v2596 = vadd.f32 0.0, %v2595
      %v2597 = vpop.f32.mrb[0].mxu0
      %v2598 = vadd.f32 0.0, %v2597
      %2599 = vmatprep.mubr.bf16.mxu0 %v1904
      %2600 = vmatmul.mubr.bf16.gmra.mrb[0].mxu0 %v1725
      %v2601 = vpop.f32.mrb[0].mxu0
      %v2602 = vadd.f32 0.0, %v2601
      %v2603 = vpop.f32.mrb[0].mxu0
      %v2604 = vadd.f32 0.0, %v2603
      %v2605 = vpop.f32.mrb[0].mxu0
      %v2606 = vadd.f32 0.0, %v2605
      %v2607 = vpop.f32.mrb[0].mxu0
      %v2608 = vadd.f32 0.0, %v2607
      %2609 = vmatprep.mubr.bf16.mxu0 %v1916
      %2610 = vmatmul.mubr.bf16.gmra.mrb[0].mxu0 %v1726
      %v2611 = vpop.f32.mrb[0].mxu0
      %v2612 = vadd.f32 0.0, %v2611
      %v2613 = vpop.f32.mrb[0].mxu0
      %v2614 = vadd.f32 0.0, %v2613
      %v2615 = vpop.f32.mrb[0].mxu0
      %v2616 = vadd.f32 0.0, %v2615
      %v2617 = vpop.f32.mrb[0].mxu0
      %v2618 = vadd.f32 0.0, %v2617
      %2619 = vmatprep.mubr.bf16.mxu0 %v1928
      %2620 = vmatmul.mubr.bf16.gmra.mrb[0].mxu0 %v1727
      %v2621 = vpop.f32.mrb[0].mxu0
      %v2622 = vadd.f32 0.0, %v2621
      %v2623 = vpop.f32.mrb[0].mxu0
      %v2624 = vadd.f32 0.0, %v2623
      %v2625 = vpop.f32.mrb[0].mxu0
      %v2626 = vadd.f32 0.0, %v2625
      %v2627 = vpop.f32.mrb[0].mxu0
      %v2628 = vadd.f32 0.0, %v2627
      %2629 = vmatprep.mubr.bf16.mxu0 %v1940
      %2630 = vmatmul.mubr.bf16.gmra.mrb[0].mxu0 %v1728
      %v2631 = vpop.f32.mrb[0].mxu0
      %v2632 = vadd.f32 0.0, %v2631
      %v2633 = vpop.f32.mrb[0].mxu0
      %v2634 = vadd.f32 0.0, %v2633
      %v2635 = vpop.f32.mrb[0].mxu0
      %v2636 = vadd.f32 0.0, %v2635
      %v2637 = vpop.f32.mrb[0].mxu0
      %v2638 = vadd.f32 0.0, %v2637
      %2639 = vmatprep.mubr.bf16.mxu0 %v1952
      %2640 = vmatmul.mubr.bf16.gmra.mrb[0].mxu0 %v1729
      %v2641 = vpop.f32.mrb[0].mxu0
      %v2642 = vadd.f32 0.0, %v2641
      %v2643 = vpop.f32.mrb[0].mxu0
      %v2644 = vadd.f32 0.0, %v2643
      %v2645 = vpop.f32.mrb[0].mxu0
      %v2646 = vadd.f32 0.0, %v2645
      %v2647 = vpop.f32.mrb[0].mxu0
      %v2648 = vadd.f32 0.0, %v2647
      %2649 = vmatprep.mubr.bf16.mxu0 %v1964
      %2650 = vmatmul.mubr.bf16.gmra.mrb[0].mxu0 %v1730
      %v2651 = vpop.f32.mrb[0].mxu0
      %v2652 = vadd.f32 0.0, %v2651
      %v2653 = vpop.f32.mrb[0].mxu0
      %v2654 = vadd.f32 0.0, %v2653
      %v2655 = vpop.f32.mrb[0].mxu0
      %v2656 = vadd.f32 0.0, %v2655
      %v2657 = vpop.f32.mrb[0].mxu0
      %v2658 = vadd.f32 0.0, %v2657
      %2659 = vmatprep.mubr.bf16.mxu0 %v1976
      %2660 = vmatmul.mubr.bf16.gmra.mrb[0].mxu0 %v1731
      %v2661 = vpop.f32.mrb[0].mxu0
      %v2662 = vadd.f32 0.0, %v2661
      %v2663 = vpop.f32.mrb[0].mxu0
      %v2664 = vadd.f32 0.0, %v2663
      %v2665 = vpop.f32.mrb[0].mxu0
      %v2666 = vadd.f32 0.0, %v2665
      %v2667 = vpop.f32.mrb[0].mxu0
      %v2668 = vadd.f32 0.0, %v2667
      %2669 = vmatprep.mubr.bf16.mxu0 %v1988
      %2670 = vmatmul.mubr.bf16.gmra.mrb[0].mxu0 %v1732
      %v2671 = vpop.f32.mrb[0].mxu0
      %v2672 = vadd.f32 0.0, %v2671
      %v2673 = vpop.f32.mrb[0].mxu0
      %v2674 = vadd.f32 0.0, %v2673
      %v2675 = vpop.f32.mrb[0].mxu0
      %v2676 = vadd.f32 0.0, %v2675
      %v2677 = vpop.f32.mrb[0].mxu0
      %v2678 = vadd.f32 0.0, %v2677
      %2679 = vmatprep.mubr.bf16.mxu0 %v2000
      %2680 = vmatmul.mubr.bf16.gmra.mrb[0].mxu0 %v1733
      %v2681 = vpop.f32.mrb[0].mxu0
      %v2682 = vadd.f32 0.0, %v2681
      %v2683 = vpop.f32.mrb[0].mxu0
      %v2684 = vadd.f32 0.0, %v2683
      %v2685 = vpop.f32.mrb[0].mxu0
      %v2686 = vadd.f32 0.0, %v2685
      %v2687 = vpop.f32.mrb[0].mxu0
      %v2688 = vadd.f32 0.0, %v2687
      %2689 = vmatprep.mubr.bf16.mxu0 %v2012
      %2690 = vmatmul.mubr.bf16.gmra.mrb[0].mxu0 %v1734
      %v2691 = vpop.f32.mrb[0].mxu0
      %v2692 = vadd.f32 0.0, %v2691
      %v2693 = vpop.f32.mrb[0].mxu0
      %v2694 = vadd.f32 0.0, %v2693
      %v2695 = vpop.f32.mrb[0].mxu0
      %v2696 = vadd.f32 0.0, %v2695
      %v2697 = vpop.f32.mrb[0].mxu0
      %v2698 = vadd.f32 0.0, %v2697
      %2699 = vdwg.mxu0
      %2700 = vmatprep.subr.bf16.mxu0 %v2444
      %2701 = vmatpush1.bf16.msra.mxu0 %v2443
      %2702 = vmatprep.subr.bf16.mxu0 %v2446
      %2703 = vmatpush1.bf16.msra.mxu0 %v2445
      %2704 = vmatprep.subr.bf16.mxu0 %v2448
      %2705 = vmatpush1.bf16.msra.mxu0 %v2447
      %2706 = vmatprep.subr.bf16.mxu0 %v2450
      %2707 = vmatpush1.bf16.msra.mxu0 %v2449
      %2708 = vmatprep.subr.bf16.mxu0 %v2452
      %2709 = vmatpush1.bf16.msra.mxu0 %v2451
      %2710 = vmatprep.subr.bf16.mxu0 %v2454
      %2711 = vmatpush1.bf16.msra.mxu0 %v2453
      %2712 = vmatprep.subr.bf16.mxu0 %v2456
      %2713 = vmatpush1.bf16.msra.mxu0 %v2455
      %2714 = vmatprep.subr.bf16.mxu0 %v2458
      %2715 = vmatpush1.bf16.msra.mxu0 %v2457
      %2716 = vmatprep.subr.bf16.mxu0 0
      %2717 = vmatpush1.bf16.msra.mxu0 0
      %2718 = vmatprep.subr.bf16.mxu0 0
      %2719 = vmatpush1.bf16.msra.mxu0 0
      %2720 = vmatprep.subr.bf16.mxu0 0
      %2721 = vmatpush1.bf16.msra.mxu0 0
      %2722 = vmatprep.subr.bf16.mxu0 0
      %2723 = vmatpush1.bf16.msra.mxu0 0
      %2724 = vmatprep.subr.bf16.mxu0 0
      %2725 = vmatpush1.bf16.msra.mxu0 0
      %2726 = vmatprep.subr.bf16.mxu0 0
      %2727 = vmatpush1.bf16.msra.mxu0 0
      %2728 = vmatprep.subr.bf16.mxu0 0
      %2729 = vmatpush1.bf16.msra.mxu0 0
      %2730 = vmatprep.subr.bf16.mxu0 0
      %2731 = vmatpush1.bf16.msra.mxu0 0
      %2732 = vmatprep.mubr.bf16.mxu0 0
      %2733 = vmatmul.mubr.bf16.gmra.mrb[0].mxu0 %v2103
      %v2734 = vpop.f32.mrb[0].mxu0
      %v2735 = vadd.f32 %v2542, %v2734
      %v2736 = vpop.f32.mrb[0].mxu0
      %v2737 = vadd.f32 %v2544, %v2736
      %v2738 = vpop.f32.mrb[0].mxu0
      %v2739 = vadd.f32 %v2546, %v2738
      %v2740 = vpop.f32.mrb[0].mxu0
      %v2741 = vadd.f32 %v2548, %v2740
      %2742 = vmatprep.mubr.bf16.mxu0 0
      %2743 = vmatmul.mubr.bf16.gmra.mrb[0].mxu0 %v2106
      %v2744 = vpop.f32.mrb[0].mxu0
      %v2745 = vadd.f32 %v2552, %v2744
      %v2746 = vpop.f32.mrb[0].mxu0
      %v2747 = vadd.f32 %v2554, %v2746
      %v2748 = vpop.f32.mrb[0].mxu0
      %v2749 = vadd.f32 %v2556, %v2748
      %v2750 = vpop.f32.mrb[0].mxu0
      %v2751 = vadd.f32 %v2558, %v2750
      %2752 = vmatprep.mubr.bf16.mxu0 0
      %2753 = vmatmul.mubr.bf16.gmra.mrb[0].mxu0 %v2109
      %v2754 = vpop.f32.mrb[0].mxu0
      %v2755 = vadd.f32 %v2562, %v2754
      %v2756 = vpop.f32.mrb[0].mxu0
      %v2757 = vadd.f32 %v2564, %v2756
      %v2758 = vpop.f32.mrb[0].mxu0
      %v2759 = vadd.f32 %v2566, %v2758
      %v2760 = vpop.f32.mrb[0].mxu0
      %v2761 = vadd.f32 %v2568, %v2760
      %2762 = vmatprep.mubr.bf16.mxu0 0
      %2763 = vmatmul.mubr.bf16.gmra.mrb[0].mxu0 %v2112
      %v2764 = vpop.f32.mrb[0].mxu0
      %v2765 = vadd.f32 %v2572, %v2764
      %v2766 = vpop.f32.mrb[0].mxu0
      %v2767 = vadd.f32 %v2574, %v2766
      %v2768 = vpop.f32.mrb[0].mxu0
      %v2769 = vadd.f32 %v2576, %v2768
      %v2770 = vpop.f32.mrb[0].mxu0
      %v2771 = vadd.f32 %v2578, %v2770
      %2772 = vmatprep.mubr.bf16.mxu0 0
      %2773 = vmatmul.mubr.bf16.gmra.mrb[0].mxu0 %v2115
      %v2774 = vpop.f32.mrb[0].mxu0
      %v2775 = vadd.f32 %v2582, %v2774
      %v2776 = vpop.f32.mrb[0].mxu0
      %v2777 = vadd.f32 %v2584, %v2776
      %v2778 = vpop.f32.mrb[0].mxu0
      %v2779 = vadd.f32 %v2586, %v2778
      %v2780 = vpop.f32.mrb[0].mxu0
      %v2781 = vadd.f32 %v2588, %v2780
      %2782 = vmatprep.mubr.bf16.mxu0 0
      %2783 = vmatmul.mubr.bf16.gmra.mrb[0].mxu0 %v2118
      %v2784 = vpop.f32.mrb[0].mxu0
      %v2785 = vadd.f32 %v2592, %v2784
      %v2786 = vpop.f32.mrb[0].mxu0
      %v2787 = vadd.f32 %v2594, %v2786
      %v2788 = vpop.f32.mrb[0].mxu0
      %v2789 = vadd.f32 %v2596, %v2788
      %v2790 = vpop.f32.mrb[0].mxu0
      %v2791 = vadd.f32 %v2598, %v2790
      %2792 = vmatprep.mubr.bf16.mxu0 0
      %2793 = vmatmul.mubr.bf16.gmra.mrb[0].mxu0 %v2121
      %v2794 = vpop.f32.mrb[0].mxu0
      %v2795 = vadd.f32 %v2602, %v2794
      %v2796 = vpop.f32.mrb[0].mxu0
      %v2797 = vadd.f32 %v2604, %v2796
      %v2798 = vpop.f32.mrb[0].mxu0
      %v2799 = vadd.f32 %v2606, %v2798
      %v2800 = vpop.f32.mrb[0].mxu0
      %v2801 = vadd.f32 %v2608, %v2800
      %2802 = vmatprep.mubr.bf16.mxu0 0
      %2803 = vmatmul.mubr.bf16.gmra.mrb[0].mxu0 %v2124
      %v2804 = vpop.f32.mrb[0].mxu0
      %v2805 = vadd.f32 %v2612, %v2804
      %v2806 = vpop.f32.mrb[0].mxu0
      %v2807 = vadd.f32 %v2614, %v2806
      %v2808 = vpop.f32.mrb[0].mxu0
      %v2809 = vadd.f32 %v2616, %v2808
      %v2810 = vpop.f32.mrb[0].mxu0
      %v2811 = vadd.f32 %v2618, %v2810
      %2812 = vmatprep.mubr.bf16.mxu0 0
      %2813 = vmatmul.mubr.bf16.gmra.mrb[0].mxu0 %v2127
      %v2814 = vpop.f32.mrb[0].mxu0
      %v2815 = vadd.f32 %v2622, %v2814
      %v2816 = vpop.f32.mrb[0].mxu0
      %v2817 = vadd.f32 %v2624, %v2816
      %v2818 = vpop.f32.mrb[0].mxu0
      %v2819 = vadd.f32 %v2626, %v2818
      %v2820 = vpop.f32.mrb[0].mxu0
      %v2821 = vadd.f32 %v2628, %v2820
      %2822 = vmatprep.mubr.bf16.mxu0 0
      %2823 = vmatmul.mubr.bf16.gmra.mrb[0].mxu0 %v2130
      %v2824 = vpop.f32.mrb[0].mxu0
      %v2825 = vadd.f32 %v2632, %v2824
      %v2826 = vpop.f32.mrb[0].mxu0
      %v2827 = vadd.f32 %v2634, %v2826
      %v2828 = vpop.f32.mrb[0].mxu0
      %v2829 = vadd.f32 %v2636, %v2828
      %v2830 = vpop.f32.mrb[0].mxu0
      %v2831 = vadd.f32 %v2638, %v2830
      %2832 = vmatprep.mubr.bf16.mxu0 0
      %2833 = vmatmul.mubr.bf16.gmra.mrb[0].mxu0 %v2133
      %v2834 = vpop.f32.mrb[0].mxu0
      %v2835 = vadd.f32 %v2642, %v2834
      %v2836 = vpop.f32.mrb[0].mxu0
      %v2837 = vadd.f32 %v2644, %v2836
      %v2838 = vpop.f32.mrb[0].mxu0
      %v2839 = vadd.f32 %v2646, %v2838
      %v2840 = vpop.f32.mrb[0].mxu0
      %v2841 = vadd.f32 %v2648, %v2840
      %2842 = vmatprep.mubr.bf16.mxu0 0
      %2843 = vmatmul.mubr.bf16.gmra.mrb[0].mxu0 %v2136
      %v2844 = vpop.f32.mrb[0].mxu0
      %v2845 = vadd.f32 %v2652, %v2844
      %v2846 = vpop.f32.mrb[0].mxu0
      %v2847 = vadd.f32 %v2654, %v2846
      %v2848 = vpop.f32.mrb[0].mxu0
      %v2849 = vadd.f32 %v2656, %v2848
      %v2850 = vpop.f32.mrb[0].mxu0
      %v2851 = vadd.f32 %v2658, %v2850
      %2852 = vmatprep.mubr.bf16.mxu0 0
      %2853 = vmatmul.mubr.bf16.gmra.mrb[0].mxu0 %v2139
      %v2854 = vpop.f32.mrb[0].mxu0
      %v2855 = vadd.f32 %v2662, %v2854
      %v2856 = vpop.f32.mrb[0].mxu0
      %v2857 = vadd.f32 %v2664, %v2856
      %v2858 = vpop.f32.mrb[0].mxu0
      %v2859 = vadd.f32 %v2666, %v2858
      %v2860 = vpop.f32.mrb[0].mxu0
      %v2861 = vadd.f32 %v2668, %v2860
      %2862 = vmatprep.mubr.bf16.mxu0 0
      %2863 = vmatmul.mubr.bf16.gmra.mrb[0].mxu0 %v2142
      %v2864 = vpop.f32.mrb[0].mxu0
      %v2865 = vadd.f32 %v2672, %v2864
      %v2866 = vpop.f32.mrb[0].mxu0
      %v2867 = vadd.f32 %v2674, %v2866
      %v2868 = vpop.f32.mrb[0].mxu0
      %v2869 = vadd.f32 %v2676, %v2868
      %v2870 = vpop.f32.mrb[0].mxu0
      %v2871 = vadd.f32 %v2678, %v2870
      %2872 = vmatprep.mubr.bf16.mxu0 0
      %2873 = vmatmul.mubr.bf16.gmra.mrb[0].mxu0 %v2145
      %v2874 = vpop.f32.mrb[0].mxu0
      %v2875 = vadd.f32 %v2682, %v2874
      %v2876 = vpop.f32.mrb[0].mxu0
      %v2877 = vadd.f32 %v2684, %v2876
      %v2878 = vpop.f32.mrb[0].mxu0
      %v2879 = vadd.f32 %v2686, %v2878
      %v2880 = vpop.f32.mrb[0].mxu0
      %v2881 = vadd.f32 %v2688, %v2880
      %2882 = vmatprep.mubr.bf16.mxu0 0
      %2883 = vmatmul.mubr.bf16.gmra.mrb[0].mxu0 %v2148
      %v2884 = vpop.f32.mrb[0].mxu0
      %v2885 = vadd.f32 %v2692, %v2884
      %v2886 = vpop.f32.mrb[0].mxu0
      %v2887 = vadd.f32 %v2694, %v2886
      %v2888 = vpop.f32.mrb[0].mxu0
      %v2889 = vadd.f32 %v2696, %v2888
      %v2890 = vpop.f32.mrb[0].mxu0
      %v2891 = vadd.f32 %v2698, %v2890
      %2892 = vdwg.mxu0
      %v2941 = vunpack.c.l.b16 %v2170
      %v2942 = vunpack.c.h.b16 %v2170
      %v2943 = vunpack.c.l.b16 %v2171
      %v2944 = vunpack.c.h.b16 %v2171
      %v2945 = vunpack.c.l.b16 %v2172
      %v2946 = vunpack.c.h.b16 %v2172
      %v2947 = vunpack.c.l.b16 %v2173
      %v2948 = vunpack.c.h.b16 %v2173
      %v2949 = vunpack.c.l.b16 %v2174
      %v2950 = vunpack.c.h.b16 %v2174
      %v2951 = vunpack.c.l.b16 %v2175
      %v2952 = vunpack.c.h.b16 %v2175
      %v2953 = vunpack.c.l.b16 %v2176
      %v2954 = vunpack.c.h.b16 %v2176
      %v2955 = vunpack.c.l.b16 %v2177
      %v2956 = vunpack.c.h.b16 %v2177
      %v2957 = vunpack.c.l.b16 %v2178
      %v2958 = vunpack.c.h.b16 %v2178
      %v2959 = vunpack.c.l.b16 %v2179
      %v2960 = vunpack.c.h.b16 %v2179
      %v2961 = vunpack.c.l.b16 %v2180
      %v2962 = vunpack.c.h.b16 %v2180
      %v2963 = vunpack.c.l.b16 %v2181
      %v2964 = vunpack.c.h.b16 %v2181
      %v2965 = vunpack.c.l.b16 %v2182
      %v2966 = vunpack.c.h.b16 %v2182
      %v2967 = vunpack.c.l.b16 %v2183
      %v2968 = vunpack.c.h.b16 %v2183
      %v2969 = vunpack.c.l.b16 %v2184
      %v2970 = vunpack.c.h.b16 %v2184
      %v2971 = vunpack.c.l.b16 %v2185
      %v2972 = vunpack.c.h.b16 %v2185
      %v2973 = vunpack.c.l.b16 %v2186
      %v2974 = vunpack.c.h.b16 %v2186
      %v2975 = vunpack.c.l.b16 %v2187
      %v2976 = vunpack.c.h.b16 %v2187
      %v2977 = vunpack.c.l.b16 %v2188
      %v2978 = vunpack.c.h.b16 %v2188
      %v2979 = vunpack.c.l.b16 %v2189
      %v2980 = vunpack.c.h.b16 %v2189
      %v2981 = vunpack.c.l.b16 %v2190
      %v2982 = vunpack.c.h.b16 %v2190
      %v2983 = vunpack.c.l.b16 %v2191
      %v2984 = vunpack.c.h.b16 %v2191
      %v2985 = vunpack.c.l.b16 %v2192
      %v2986 = vunpack.c.h.b16 %v2192
      %v2987 = vunpack.c.l.b16 %v2193
      %v2988 = vunpack.c.h.b16 %v2193
      %v2989 = vunpack.c.l.b16 %v2194
      %v2990 = vunpack.c.h.b16 %v2194
      %v2991 = vunpack.c.l.b16 %v2195
      %v2992 = vunpack.c.h.b16 %v2195
      %v2993 = vunpack.c.l.b16 %v2196
      %v2994 = vunpack.c.h.b16 %v2196
      %v2995 = vunpack.c.l.b16 %v2197
      %v2996 = vunpack.c.h.b16 %v2197
      %v2997 = vunpack.c.l.b16 %v2198
      %v2998 = vunpack.c.h.b16 %v2198
      %v2999 = vunpack.c.l.b16 %v2199
      %v3000 = vunpack.c.h.b16 %v2199
      %v3001 = vunpack.c.l.b16 %v2200
      %v3002 = vunpack.c.h.b16 %v2200
      %v3003 = vunpack.c.l.b16 %v2201
      %v3004 = vunpack.c.h.b16 %v2201
      %v3005 = vunpack.c.l.b16 %v2202
      %v3006 = vunpack.c.h.b16 %v2202
      %v3007 = vunpack.c.l.b16 %v2203
      %v3008 = vunpack.c.h.b16 %v2203
      %v3009 = vunpack.c.l.b16 %v2204
      %v3010 = vunpack.c.h.b16 %v2204
      %v3011 = vunpack.c.l.b16 %v2205
      %v3012 = vunpack.c.h.b16 %v2205
      %v3013 = vunpack.c.l.b16 %v2206
      %v3014 = vunpack.c.h.b16 %v2206
      %v3015 = vunpack.c.l.b16 %v2207
      %v3016 = vunpack.c.h.b16 %v2207
      %v3017 = vunpack.c.l.b16 %v2208
      %v3018 = vunpack.c.h.b16 %v2208
      %v3019 = vunpack.c.l.b16 %v2209
      %v3020 = vunpack.c.h.b16 %v2209
      %v3021 = vunpack.c.l.b16 %v2210
      %v3022 = vunpack.c.h.b16 %v2210
      %v3023 = vunpack.c.l.b16 %v2211
      %v3024 = vunpack.c.h.b16 %v2211
      %v3025 = vunpack.c.l.b16 %v2212
      %v3026 = vunpack.c.h.b16 %v2212
      %v3027 = vunpack.c.l.b16 %v2213
      %v3028 = vunpack.c.h.b16 %v2213
      %v3029 = vunpack.c.l.b16 %v2214
      %v3030 = vunpack.c.h.b16 %v2214
      %v3031 = vunpack.c.l.b16 %v2215
      %v3032 = vunpack.c.h.b16 %v2215
      %v3033 = vunpack.c.l.b16 %v2216
      %v3034 = vunpack.c.h.b16 %v2216
      %v3035 = vunpack.c.l.b16 %v2217
      %v3036 = vunpack.c.h.b16 %v2217
      %v3037 = vpack.c.b16 %v2943, %v2941
      %v3038 = vpack.c.b16 %v2944, %v2942
      %v3039 = vpack.c.b16 %v2947, %v2945
      %v3040 = vpack.c.b16 %v2948, %v2946
      %v3041 = vpack.c.b16 %v2951, %v2949
      %v3042 = vpack.c.b16 %v2952, %v2950
      %v3043 = vpack.c.b16 %v2955, %v2953
      %v3044 = vpack.c.b16 %v2956, %v2954
      %v3045 = vpack.c.b16 %v2959, %v2957
      %v3046 = vpack.c.b16 %v2960, %v2958
      %v3047 = vpack.c.b16 %v2963, %v2961
      %v3048 = vpack.c.b16 %v2964, %v2962
      %v3049 = vpack.c.b16 %v2967, %v2965
      %v3050 = vpack.c.b16 %v2968, %v2966
      %v3051 = vpack.c.b16 %v2971, %v2969
      %v3052 = vpack.c.b16 %v2972, %v2970
      %v3053 = vpack.c.b16 %v2975, %v2973
      %v3054 = vpack.c.b16 %v2976, %v2974
      %v3055 = vpack.c.b16 %v2979, %v2977
      %v3056 = vpack.c.b16 %v2980, %v2978
      %v3057 = vpack.c.b16 %v2983, %v2981
      %v3058 = vpack.c.b16 %v2984, %v2982
      %v3059 = vpack.c.b16 %v2987, %v2985
      %v3060 = vpack.c.b16 %v2988, %v2986
      %v3061 = vpack.c.b16 %v2991, %v2989
      %v3062 = vpack.c.b16 %v2992, %v2990
      %v3063 = vpack.c.b16 %v2995, %v2993
      %v3064 = vpack.c.b16 %v2996, %v2994
      %v3065 = vpack.c.b16 %v2999, %v2997
      %v3066 = vpack.c.b16 %v3000, %v2998
      %v3067 = vpack.c.b16 %v3003, %v3001
      %v3068 = vpack.c.b16 %v3004, %v3002
      %v3069 = vpack.c.b16 %v3007, %v3005
      %v3070 = vpack.c.b16 %v3008, %v3006
      %v3071 = vpack.c.b16 %v3011, %v3009
      %v3072 = vpack.c.b16 %v3012, %v3010
      %v3073 = vpack.c.b16 %v3015, %v3013
      %v3074 = vpack.c.b16 %v3016, %v3014
      %v3075 = vpack.c.b16 %v3019, %v3017
      %v3076 = vpack.c.b16 %v3020, %v3018
      %v3077 = vpack.c.b16 %v3023, %v3021
      %v3078 = vpack.c.b16 %v3024, %v3022
      %v3079 = vpack.c.b16 %v3027, %v3025
      %v3080 = vpack.c.b16 %v3028, %v3026
      %v3081 = vpack.c.b16 %v3031, %v3029
      %v3082 = vpack.c.b16 %v3032, %v3030
      %v3083 = vpack.c.b16 %v3035, %v3033
      %v3084 = vpack.c.b16 %v3036, %v3034
      %3133 = vmatprep.subr.bf16.mxu0 %v3038
      %3134 = vmatpush1.bf16.msra.mxu0 %v3037
      %3135 = vmatprep.subr.bf16.mxu0 %v3040
      %3136 = vmatpush1.bf16.msra.mxu0 %v3039
      %3137 = vmatprep.subr.bf16.mxu0 %v3042
      %3138 = vmatpush1.bf16.msra.mxu0 %v3041
      %3139 = vmatprep.subr.bf16.mxu0 %v3044
      %3140 = vmatpush1.bf16.msra.mxu0 %v3043
      %3141 = vmatprep.subr.bf16.mxu0 %v3046
      %3142 = vmatpush1.bf16.msra.mxu0 %v3045
      %3143 = vmatprep.subr.bf16.mxu0 %v3048
      %3144 = vmatpush1.bf16.msra.mxu0 %v3047
      %3145 = vmatprep.subr.bf16.mxu0 %v3050
      %3146 = vmatpush1.bf16.msra.mxu0 %v3049
      %3147 = vmatprep.subr.bf16.mxu0 %v3052
      %3148 = vmatpush1.bf16.msra.mxu0 %v3051
      %3149 = vmatprep.subr.bf16.mxu0 %v3054
      %3150 = vmatpush1.bf16.msra.mxu0 %v3053
      %3151 = vmatprep.subr.bf16.mxu0 %v3056
      %3152 = vmatpush1.bf16.msra.mxu0 %v3055
      %3153 = vmatprep.subr.bf16.mxu0 %v3058
      %3154 = vmatpush1.bf16.msra.mxu0 %v3057
      %3155 = vmatprep.subr.bf16.mxu0 %v3060
      %3156 = vmatpush1.bf16.msra.mxu0 %v3059
      %3157 = vmatprep.subr.bf16.mxu0 %v3062
      %3158 = vmatpush1.bf16.msra.mxu0 %v3061
      %3159 = vmatprep.subr.bf16.mxu0 %v3064
      %3160 = vmatpush1.bf16.msra.mxu0 %v3063
      %3161 = vmatprep.subr.bf16.mxu0 %v3066
      %3162 = vmatpush1.bf16.msra.mxu0 %v3065
      %3163 = vmatprep.subr.bf16.mxu0 %v3068
      %3164 = vmatpush1.bf16.msra.mxu0 %v3067
      %3165 = vmatprep.mubr.bf16.mxu0 %v1820
      %3166 = vmatmul.mubr.bf16.gmra.mrb[0].mxu0 %v1718
      %v3167 = vpop.f32.mrb[0].mxu0
      %v3168 = vadd.f32 %v2735, %v3167
      %v3169 = vpop.f32.mrb[0].mxu0
      %v3170 = vadd.f32 %v2737, %v3169
      %v3171 = vpop.f32.mrb[0].mxu0
      %v3172 = vadd.f32 %v2739, %v3171
      %v3173 = vpop.f32.mrb[0].mxu0
      %v3174 = vadd.f32 %v2741, %v3173
      %3175 = vmatprep.mubr.bf16.mxu0 %v1832
      %3176 = vmatmul.mubr.bf16.gmra.mrb[0].mxu0 %v1719
      %v3177 = vpop.f32.mrb[0].mxu0
      %v3178 = vadd.f32 %v2745, %v3177
      %v3179 = vpop.f32.mrb[0].mxu0
      %v3180 = vadd.f32 %v2747, %v3179
      %v3181 = vpop.f32.mrb[0].mxu0
      %v3182 = vadd.f32 %v2749, %v3181
      %v3183 = vpop.f32.mrb[0].mxu0
      %v3184 = vadd.f32 %v2751, %v3183
      %3185 = vmatprep.mubr.bf16.mxu0 %v1844
      %3186 = vmatmul.mubr.bf16.gmra.mrb[0].mxu0 %v1720
      %v3187 = vpop.f32.mrb[0].mxu0
      %v3188 = vadd.f32 %v2755, %v3187
      %v3189 = vpop.f32.mrb[0].mxu0
      %v3190 = vadd.f32 %v2757, %v3189
      %v3191 = vpop.f32.mrb[0].mxu0
      %v3192 = vadd.f32 %v2759, %v3191
      %v3193 = vpop.f32.mrb[0].mxu0
      %v3194 = vadd.f32 %v2761, %v3193
      %3195 = vmatprep.mubr.bf16.mxu0 %v1856
      %3196 = vmatmul.mubr.bf16.gmra.mrb[0].mxu0 %v1721
      %v3197 = vpop.f32.mrb[0].mxu0
      %v3198 = vadd.f32 %v2765, %v3197
      %v3199 = vpop.f32.mrb[0].mxu0
      %v3200 = vadd.f32 %v2767, %v3199
      %v3201 = vpop.f32.mrb[0].mxu0
      %v3202 = vadd.f32 %v2769, %v3201
      %v3203 = vpop.f32.mrb[0].mxu0
      %v3204 = vadd.f32 %v2771, %v3203
      %3205 = vmatprep.mubr.bf16.mxu0 %v1868
      %3206 = vmatmul.mubr.bf16.gmra.mrb[0].mxu0 %v1722
      %v3207 = vpop.f32.mrb[0].mxu0
      %v3208 = vadd.f32 %v2775, %v3207
      %v3209 = vpop.f32.mrb[0].mxu0
      %v3210 = vadd.f32 %v2777, %v3209
      %v3211 = vpop.f32.mrb[0].mxu0
      %v3212 = vadd.f32 %v2779, %v3211
      %v3213 = vpop.f32.mrb[0].mxu0
      %v3214 = vadd.f32 %v2781, %v3213
      %3215 = vmatprep.mubr.bf16.mxu0 %v1880
      %3216 = vmatmul.mubr.bf16.gmra.mrb[0].mxu0 %v1723
      %v3217 = vpop.f32.mrb[0].mxu0
      %v3218 = vadd.f32 %v2785, %v3217
      %v3219 = vpop.f32.mrb[0].mxu0
      %v3220 = vadd.f32 %v2787, %v3219
      %v3221 = vpop.f32.mrb[0].mxu0
      %v3222 = vadd.f32 %v2789, %v3221
      %v3223 = vpop.f32.mrb[0].mxu0
      %v3224 = vadd.f32 %v2791, %v3223
      %3225 = vmatprep.mubr.bf16.mxu0 %v1892
      %3226 = vmatmul.mubr.bf16.gmra.mrb[0].mxu0 %v1724
      %v3227 = vpop.f32.mrb[0].mxu0
      %v3228 = vadd.f32 %v2795, %v3227
      %v3229 = vpop.f32.mrb[0].mxu0
      %v3230 = vadd.f32 %v2797, %v3229
      %v3231 = vpop.f32.mrb[0].mxu0
      %v3232 = vadd.f32 %v2799, %v3231
      %v3233 = vpop.f32.mrb[0].mxu0
      %v3234 = vadd.f32 %v2801, %v3233
      %3235 = vmatprep.mubr.bf16.mxu0 %v1904
      %3236 = vmatmul.mubr.bf16.gmra.mrb[0].mxu0 %v1725
      %v3237 = vpop.f32.mrb[0].mxu0
      %v3238 = vadd.f32 %v2805, %v3237
      %v3239 = vpop.f32.mrb[0].mxu0
      %v3240 = vadd.f32 %v2807, %v3239
      %v3241 = vpop.f32.mrb[0].mxu0
      %v3242 = vadd.f32 %v2809, %v3241
      %v3243 = vpop.f32.mrb[0].mxu0
      %v3244 = vadd.f32 %v2811, %v3243
      %3245 = vmatprep.mubr.bf16.mxu0 %v1916
      %3246 = vmatmul.mubr.bf16.gmra.mrb[0].mxu0 %v1726
      %v3247 = vpop.f32.mrb[0].mxu0
      %v3248 = vadd.f32 %v2815, %v3247
      %v3249 = vpop.f32.mrb[0].mxu0
      %v3250 = vadd.f32 %v2817, %v3249
      %v3251 = vpop.f32.mrb[0].mxu0
      %v3252 = vadd.f32 %v2819, %v3251
      %v3253 = vpop.f32.mrb[0].mxu0
      %v3254 = vadd.f32 %v2821, %v3253
      %3255 = vmatprep.mubr.bf16.mxu0 %v1928
      %3256 = vmatmul.mubr.bf16.gmra.mrb[0].mxu0 %v1727
      %v3257 = vpop.f32.mrb[0].mxu0
      %v3258 = vadd.f32 %v2825, %v3257
      %v3259 = vpop.f32.mrb[0].mxu0
      %v3260 = vadd.f32 %v2827, %v3259
      %v3261 = vpop.f32.mrb[0].mxu0
      %v3262 = vadd.f32 %v2829, %v3261
      %v3263 = vpop.f32.mrb[0].mxu0
      %v3264 = vadd.f32 %v2831, %v3263
      %3265 = vmatprep.mubr.bf16.mxu0 %v1940
      %3266 = vmatmul.mubr.bf16.gmra.mrb[0].mxu0 %v1728
      %v3267 = vpop.f32.mrb[0].mxu0
      %v3268 = vadd.f32 %v2835, %v3267
      %v3269 = vpop.f32.mrb[0].mxu0
      %v3270 = vadd.f32 %v2837, %v3269
      %v3271 = vpop.f32.mrb[0].mxu0
      %v3272 = vadd.f32 %v2839, %v3271
      %v3273 = vpop.f32.mrb[0].mxu0
      %v3274 = vadd.f32 %v2841, %v3273
      %3275 = vmatprep.mubr.bf16.mxu0 %v1952
      %3276 = vmatmul.mubr.bf16.gmra.mrb[0].mxu0 %v1729
      %v3277 = vpop.f32.mrb[0].mxu0
      %v3278 = vadd.f32 %v2845, %v3277
      %v3279 = vpop.f32.mrb[0].mxu0
      %v3280 = vadd.f32 %v2847, %v3279
      %v3281 = vpop.f32.mrb[0].mxu0
      %v3282 = vadd.f32 %v2849, %v3281
      %v3283 = vpop.f32.mrb[0].mxu0
      %v3284 = vadd.f32 %v2851, %v3283
      %3285 = vmatprep.mubr.bf16.mxu0 %v1964
      %3286 = vmatmul.mubr.bf16.gmra.mrb[0].mxu0 %v1730
      %v3287 = vpop.f32.mrb[0].mxu0
      %v3288 = vadd.f32 %v2855, %v3287
      %v3289 = vpop.f32.mrb[0].mxu0
      %v3290 = vadd.f32 %v2857, %v3289
      %v3291 = vpop.f32.mrb[0].mxu0
      %v3292 = vadd.f32 %v2859, %v3291
      %v3293 = vpop.f32.mrb[0].mxu0
      %v3294 = vadd.f32 %v2861, %v3293
      %3295 = vmatprep.mubr.bf16.mxu0 %v1976
      %3296 = vmatmul.mubr.bf16.gmra.mrb[0].mxu0 %v1731
      %v3297 = vpop.f32.mrb[0].mxu0
      %v3298 = vadd.f32 %v2865, %v3297
      %v3299 = vpop.f32.mrb[0].mxu0
      %v3300 = vadd.f32 %v2867, %v3299
      %v3301 = vpop.f32.mrb[0].mxu0
      %v3302 = vadd.f32 %v2869, %v3301
      %v3303 = vpop.f32.mrb[0].mxu0
      %v3304 = vadd.f32 %v2871, %v3303
      %3305 = vmatprep.mubr.bf16.mxu0 %v1988
      %3306 = vmatmul.mubr.bf16.gmra.mrb[0].mxu0 %v1732
      %v3307 = vpop.f32.mrb[0].mxu0
      %v3308 = vadd.f32 %v2875, %v3307
      %v3309 = vpop.f32.mrb[0].mxu0
      %v3310 = vadd.f32 %v2877, %v3309
      %v3311 = vpop.f32.mrb[0].mxu0
      %v3312 = vadd.f32 %v2879, %v3311
      %v3313 = vpop.f32.mrb[0].mxu0
      %v3314 = vadd.f32 %v2881, %v3313
      %3315 = vmatprep.mubr.bf16.mxu0 %v2000
      %3316 = vmatmul.mubr.bf16.gmra.mrb[0].mxu0 %v1733
      %v3317 = vpop.f32.mrb[0].mxu0
      %v3318 = vadd.f32 %v2885, %v3317
      %v3319 = vpop.f32.mrb[0].mxu0
      %v3320 = vadd.f32 %v2887, %v3319
      %v3321 = vpop.f32.mrb[0].mxu0
      %v3322 = vadd.f32 %v2889, %v3321
      %v3323 = vpop.f32.mrb[0].mxu0
      %v3324 = vadd.f32 %v2891, %v3323
      %3325 = vdwg.mxu0
      %3326 = vmatprep.subr.bf16.mxu0 %v3070
      %3327 = vmatpush1.bf16.msra.mxu0 %v3069
      %3328 = vmatprep.subr.bf16.mxu0 %v3072
      %3329 = vmatpush1.bf16.msra.mxu0 %v3071
      %3330 = vmatprep.subr.bf16.mxu0 %v3074
      %3331 = vmatpush1.bf16.msra.mxu0 %v3073
      %3332 = vmatprep.subr.bf16.mxu0 %v3076
      %3333 = vmatpush1.bf16.msra.mxu0 %v3075
      %3334 = vmatprep.subr.bf16.mxu0 %v3078
      %3335 = vmatpush1.bf16.msra.mxu0 %v3077
      %3336 = vmatprep.subr.bf16.mxu0 %v3080
      %3337 = vmatpush1.bf16.msra.mxu0 %v3079
      %3338 = vmatprep.subr.bf16.mxu0 %v3082
      %3339 = vmatpush1.bf16.msra.mxu0 %v3081
      %3340 = vmatprep.subr.bf16.mxu0 %v3084
      %3341 = vmatpush1.bf16.msra.mxu0 %v3083
      %3342 = vmatprep.subr.bf16.mxu0 0
      %3343 = vmatpush1.bf16.msra.mxu0 0
      %3344 = vmatprep.subr.bf16.mxu0 0
      %3345 = vmatpush1.bf16.msra.mxu0 0
      %3346 = vmatprep.subr.bf16.mxu0 0
      %3347 = vmatpush1.bf16.msra.mxu0 0
      %3348 = vmatprep.subr.bf16.mxu0 0
      %3349 = vmatpush1.bf16.msra.mxu0 0
      %3350 = vmatprep.subr.bf16.mxu0 0
      %3351 = vmatpush1.bf16.msra.mxu0 0
      %3352 = vmatprep.subr.bf16.mxu0 0
      %3353 = vmatpush1.bf16.msra.mxu0 0
      %3354 = vmatprep.subr.bf16.mxu0 0
      %3355 = vmatpush1.bf16.msra.mxu0 0
      %3356 = vmatprep.subr.bf16.mxu0 0
      %3357 = vmatpush1.bf16.msra.mxu0 0
      %3358 = vmatprep.mubr.bf16.mxu0 0
      %3359 = vmatmul.mubr.bf16.gmra.mrb[0].mxu0 %v2100
      %v3360 = vpop.f32.mrb[0].mxu0
      %v3361 = vadd.f32 %v3168, %v3360
      %v3362 = vpop.f32.mrb[0].mxu0
      %v3363 = vadd.f32 %v3170, %v3362
      %v3364 = vpop.f32.mrb[0].mxu0
      %v3365 = vadd.f32 %v3172, %v3364
      %v3366 = vpop.f32.mrb[0].mxu0
      %v3367 = vadd.f32 %v3174, %v3366
      %3368 = vmatprep.mubr.bf16.mxu0 0
      %3369 = vmatmul.mubr.bf16.gmra.mrb[0].mxu0 %v2103
      %v3370 = vpop.f32.mrb[0].mxu0
      %v3371 = vadd.f32 %v3178, %v3370
      %v3372 = vpop.f32.mrb[0].mxu0
      %v3373 = vadd.f32 %v3180, %v3372
      %v3374 = vpop.f32.mrb[0].mxu0
      %v3375 = vadd.f32 %v3182, %v3374
      %v3376 = vpop.f32.mrb[0].mxu0
      %v3377 = vadd.f32 %v3184, %v3376
      %3378 = vmatprep.mubr.bf16.mxu0 0
      %3379 = vmatmul.mubr.bf16.gmra.mrb[0].mxu0 %v2106
      %v3380 = vpop.f32.mrb[0].mxu0
      %v3381 = vadd.f32 %v3188, %v3380
      %v3382 = vpop.f32.mrb[0].mxu0
      %v3383 = vadd.f32 %v3190, %v3382
      %v3384 = vpop.f32.mrb[0].mxu0
      %v3385 = vadd.f32 %v3192, %v3384
      %v3386 = vpop.f32.mrb[0].mxu0
      %v3387 = vadd.f32 %v3194, %v3386
      %3388 = vmatprep.mubr.bf16.mxu0 0
      %3389 = vmatmul.mubr.bf16.gmra.mrb[0].mxu0 %v2109
      %v3390 = vpop.f32.mrb[0].mxu0
      %v3391 = vadd.f32 %v3198, %v3390
      %v3392 = vpop.f32.mrb[0].mxu0
      %v3393 = vadd.f32 %v3200, %v3392
      %v3394 = vpop.f32.mrb[0].mxu0
      %v3395 = vadd.f32 %v3202, %v3394
      %v3396 = vpop.f32.mrb[0].mxu0
      %v3397 = vadd.f32 %v3204, %v3396
      %3398 = vmatprep.mubr.bf16.mxu0 0
      %3399 = vmatmul.mubr.bf16.gmra.mrb[0].mxu0 %v2112
      %v3400 = vpop.f32.mrb[0].mxu0
      %v3401 = vadd.f32 %v3208, %v3400
      %v3402 = vpop.f32.mrb[0].mxu0
      %v3403 = vadd.f32 %v3210, %v3402
      %v3404 = vpop.f32.mrb[0].mxu0
      %v3405 = vadd.f32 %v3212, %v3404
      %v3406 = vpop.f32.mrb[0].mxu0
      %v3407 = vadd.f32 %v3214, %v3406
      %3408 = vmatprep.mubr.bf16.mxu0 0
      %3409 = vmatmul.mubr.bf16.gmra.mrb[0].mxu0 %v2115
      %v3410 = vpop.f32.mrb[0].mxu0
      %v3411 = vadd.f32 %v3218, %v3410
      %v3412 = vpop.f32.mrb[0].mxu0
      %v3413 = vadd.f32 %v3220, %v3412
      %v3414 = vpop.f32.mrb[0].mxu0
      %v3415 = vadd.f32 %v3222, %v3414
      %v3416 = vpop.f32.mrb[0].mxu0
      %v3417 = vadd.f32 %v3224, %v3416
      %3418 = vmatprep.mubr.bf16.mxu0 0
      %3419 = vmatmul.mubr.bf16.gmra.mrb[0].mxu0 %v2118
      %v3420 = vpop.f32.mrb[0].mxu0
      %v3421 = vadd.f32 %v3228, %v3420
      %v3422 = vpop.f32.mrb[0].mxu0
      %v3423 = vadd.f32 %v3230, %v3422
      %v3424 = vpop.f32.mrb[0].mxu0
      %v3425 = vadd.f32 %v3232, %v3424
      %v3426 = vpop.f32.mrb[0].mxu0
      %v3427 = vadd.f32 %v3234, %v3426
      %3428 = vmatprep.mubr.bf16.mxu0 0
      %3429 = vmatmul.mubr.bf16.gmra.mrb[0].mxu0 %v2121
      %v3430 = vpop.f32.mrb[0].mxu0
      %v3431 = vadd.f32 %v3238, %v3430
      %v3432 = vpop.f32.mrb[0].mxu0
      %v3433 = vadd.f32 %v3240, %v3432
      %v3434 = vpop.f32.mrb[0].mxu0
      %v3435 = vadd.f32 %v3242, %v3434
      %v3436 = vpop.f32.mrb[0].mxu0
      %v3437 = vadd.f32 %v3244, %v3436
      %3438 = vmatprep.mubr.bf16.mxu0 0
      %3439 = vmatmul.mubr.bf16.gmra.mrb[0].mxu0 %v2124
      %v3440 = vpop.f32.mrb[0].mxu0
      %v3441 = vadd.f32 %v3248, %v3440
      %v3442 = vpop.f32.mrb[0].mxu0
      %v3443 = vadd.f32 %v3250, %v3442
      %v3444 = vpop.f32.mrb[0].mxu0
      %v3445 = vadd.f32 %v3252, %v3444
      %v3446 = vpop.f32.mrb[0].mxu0
      %v3447 = vadd.f32 %v3254, %v3446
      %3448 = vmatprep.mubr.bf16.mxu0 0
      %3449 = vmatmul.mubr.bf16.gmra.mrb[0].mxu0 %v2127
      %v3450 = vpop.f32.mrb[0].mxu0
      %v3451 = vadd.f32 %v3258, %v3450
      %v3452 = vpop.f32.mrb[0].mxu0
      %v3453 = vadd.f32 %v3260, %v3452
      %v3454 = vpop.f32.mrb[0].mxu0
      %v3455 = vadd.f32 %v3262, %v3454
      %v3456 = vpop.f32.mrb[0].mxu0
      %v3457 = vadd.f32 %v3264, %v3456
      %3458 = vmatprep.mubr.bf16.mxu0 0
      %3459 = vmatmul.mubr.bf16.gmra.mrb[0].mxu0 %v2130
      %v3460 = vpop.f32.mrb[0].mxu0
      %v3461 = vadd.f32 %v3268, %v3460
      %v3462 = vpop.f32.mrb[0].mxu0
      %v3463 = vadd.f32 %v3270, %v3462
      %v3464 = vpop.f32.mrb[0].mxu0
      %v3465 = vadd.f32 %v3272, %v3464
      %v3466 = vpop.f32.mrb[0].mxu0
      %v3467 = vadd.f32 %v3274, %v3466
      %3468 = vmatprep.mubr.bf16.mxu0 0
      %3469 = vmatmul.mubr.bf16.gmra.mrb[0].mxu0 %v2133
      %v3470 = vpop.f32.mrb[0].mxu0
      %v3471 = vadd.f32 %v3278, %v3470
      %v3472 = vpop.f32.mrb[0].mxu0
      %v3473 = vadd.f32 %v3280, %v3472
      %v3474 = vpop.f32.mrb[0].mxu0
      %v3475 = vadd.f32 %v3282, %v3474
      %v3476 = vpop.f32.mrb[0].mxu0
      %v3477 = vadd.f32 %v3284, %v3476
      %3478 = vmatprep.mubr.bf16.mxu0 0
      %3479 = vmatmul.mubr.bf16.gmra.mrb[0].mxu0 %v2136
      %v3480 = vpop.f32.mrb[0].mxu0
      %v3481 = vadd.f32 %v3288, %v3480
      %v3482 = vpop.f32.mrb[0].mxu0
      %v3483 = vadd.f32 %v3290, %v3482
      %v3484 = vpop.f32.mrb[0].mxu0
      %v3485 = vadd.f32 %v3292, %v3484
      %v3486 = vpop.f32.mrb[0].mxu0
      %v3487 = vadd.f32 %v3294, %v3486
      %3488 = vmatprep.mubr.bf16.mxu0 0
      %3489 = vmatmul.mubr.bf16.gmra.mrb[0].mxu0 %v2139
      %v3490 = vpop.f32.mrb[0].mxu0
      %v3491 = vadd.f32 %v3298, %v3490
      %v3492 = vpop.f32.mrb[0].mxu0
      %v3493 = vadd.f32 %v3300, %v3492
      %v3494 = vpop.f32.mrb[0].mxu0
      %v3495 = vadd.f32 %v3302, %v3494
      %v3496 = vpop.f32.mrb[0].mxu0
      %v3497 = vadd.f32 %v3304, %v3496
      %3498 = vmatprep.mubr.bf16.mxu0 0
      %3499 = vmatmul.mubr.bf16.gmra.mrb[0].mxu0 %v2142
      %v3500 = vpop.f32.mrb[0].mxu0
      %v3501 = vadd.f32 %v3308, %v3500
      %v3502 = vpop.f32.mrb[0].mxu0
      %v3503 = vadd.f32 %v3310, %v3502
      %v3504 = vpop.f32.mrb[0].mxu0
      %v3505 = vadd.f32 %v3312, %v3504
      %v3506 = vpop.f32.mrb[0].mxu0
      %v3507 = vadd.f32 %v3314, %v3506
      %3508 = vmatprep.mubr.bf16.mxu0 0
      %3509 = vmatmul.mubr.bf16.gmra.mrb[0].mxu0 %v2145
      %v3510 = vpop.f32.mrb[0].mxu0
      %v3511 = vadd.f32 %v3318, %v3510
      %v3512 = vpop.f32.mrb[0].mxu0
      %v3513 = vadd.f32 %v3320, %v3512
      %v3514 = vpop.f32.mrb[0].mxu0
      %v3515 = vadd.f32 %v3322, %v3514
      %v3516 = vpop.f32.mrb[0].mxu0
      %v3517 = vadd.f32 %v3324, %v3516
      %3518 = vdwg.mxu0
      %s3519 = scalar_lea.vmem %s3, 768
      %v3520 = vld [vmem:[%s3519] sm:$0xff]
      %v3521 = vld [vmem:[%s3519 + $0x8] sm:$0xff]
      %v3522 = vld [vmem:[%s3519 + $0x10] sm:$0xff]
      %v3523 = vld [vmem:[%s3519 + $0x18] sm:$0xff]
      %v3524 = vld [vmem:[%s3519 + $0x20] sm:$0xff]
      %v3525 = vld [vmem:[%s3519 + $0x28] sm:$0xff]
      %v3526 = vld [vmem:[%s3519 + $0x30] sm:$0xff]
      %v3527 = vld [vmem:[%s3519 + $0x38] sm:$0xff]
      %v3528 = vld [vmem:[%s3519 + $0x40] sm:$0xff]
      %v3529 = vld [vmem:[%s3519 + $0x48] sm:$0xff]
      %v3530 = vld [vmem:[%s3519 + $0x50] sm:$0xff]
      %v3531 = vld [vmem:[%s3519 + $0x58] sm:$0xff]
      %v3532 = vld [vmem:[%s3519 + $0x60] sm:$0xff]
      %v3533 = vld [vmem:[%s3519 + $0x68] sm:$0xff]
      %v3534 = vld [vmem:[%s3519 + $0x70] sm:$0xff]
      %v3535 = vld [vmem:[%s3519 + $0x78] sm:$0xff]
      %v3536 = vld [vmem:[%s3519 + $0x80] sm:$0xff]
      %v3537 = vld [vmem:[%s3519 + $0x88] sm:$0xff]
      %v3538 = vld [vmem:[%s3519 + $0x90] sm:$0xff]
      %v3539 = vld [vmem:[%s3519 + $0x98] sm:$0xff]
      %v3540 = vld [vmem:[%s3519 + $0xa0] sm:$0xff]
      %v3541 = vld [vmem:[%s3519 + $0xa8] sm:$0xff]
      %v3542 = vld [vmem:[%s3519 + $0xb0] sm:$0xff]
      %v3543 = vld [vmem:[%s3519 + $0xb8] sm:$0xff]
      %v3544 = vld [vmem:[%s3519 + $0xc0] sm:$0xff]
      %v3545 = vld [vmem:[%s3519 + $0xc8] sm:$0xff]
      %v3546 = vld [vmem:[%s3519 + $0xd0] sm:$0xff]
      %v3547 = vld [vmem:[%s3519 + $0xd8] sm:$0xff]
      %v3548 = vld [vmem:[%s3519 + $0xe0] sm:$0xff]
      %v3549 = vld [vmem:[%s3519 + $0xe8] sm:$0xff]
      %v3550 = vld [vmem:[%s3519 + $0xf0] sm:$0xff]
      %v3551 = vld [vmem:[%s3519 + $0xf8] sm:$0xff]
      %v3552 = vld [vmem:[%s3519 + $0x100] sm:$0xff]
      %v3553 = vld [vmem:[%s3519 + $0x108] sm:$0xff]
      %v3554 = vld [vmem:[%s3519 + $0x110] sm:$0xff]
      %v3555 = vld [vmem:[%s3519 + $0x118] sm:$0xff]
      %v3556 = vld [vmem:[%s3519 + $0x120] sm:$0xff]
      %v3557 = vld [vmem:[%s3519 + $0x128] sm:$0xff]
      %v3558 = vld [vmem:[%s3519 + $0x130] sm:$0xff]
      %v3559 = vld [vmem:[%s3519 + $0x138] sm:$0xff]
      %v3560 = vld [vmem:[%s3519 + $0x140] sm:$0xff]
      %v3561 = vld [vmem:[%s3519 + $0x148] sm:$0xff]
      %v3562 = vld [vmem:[%s3519 + $0x150] sm:$0xff]
      %v3563 = vld [vmem:[%s3519 + $0x158] sm:$0xff]
      %v3564 = vld [vmem:[%s3519 + $0x160] sm:$0xff]
      %v3565 = vld [vmem:[%s3519 + $0x168] sm:$0xff]
      %v3566 = vld [vmem:[%s3519 + $0x170] sm:$0xff]
      %v3567 = vld [vmem:[%s3519 + $0x178] sm:$0xff]
      %v3616 = vunpack.c.l.b16 %v3520
      %v3617 = vunpack.c.h.b16 %v3520
      %v3618 = vunpack.c.l.b16 %v3521
      %v3619 = vunpack.c.h.b16 %v3521
      %v3620 = vunpack.c.l.b16 %v3522
      %v3621 = vunpack.c.h.b16 %v3522
      %v3622 = vunpack.c.l.b16 %v3523
      %v3623 = vunpack.c.h.b16 %v3523
      %v3624 = vunpack.c.l.b16 %v3524
      %v3625 = vunpack.c.h.b16 %v3524
      %v3626 = vunpack.c.l.b16 %v3525
      %v3627 = vunpack.c.h.b16 %v3525
      %v3628 = vunpack.c.l.b16 %v3526
      %v3629 = vunpack.c.h.b16 %v3526
      %v3630 = vunpack.c.l.b16 %v3527
      %v3631 = vunpack.c.h.b16 %v3527
      %v3632 = vunpack.c.l.b16 %v3528
      %v3633 = vunpack.c.h.b16 %v3528
      %v3634 = vunpack.c.l.b16 %v3529
      %v3635 = vunpack.c.h.b16 %v3529
      %v3636 = vunpack.c.l.b16 %v3530
      %v3637 = vunpack.c.h.b16 %v3530
      %v3638 = vunpack.c.l.b16 %v3531
      %v3639 = vunpack.c.h.b16 %v3531
      %v3640 = vunpack.c.l.b16 %v3532
      %v3641 = vunpack.c.h.b16 %v3532
      %v3642 = vunpack.c.l.b16 %v3533
      %v3643 = vunpack.c.h.b16 %v3533
      %v3644 = vunpack.c.l.b16 %v3534
      %v3645 = vunpack.c.h.b16 %v3534
      %v3646 = vunpack.c.l.b16 %v3535
      %v3647 = vunpack.c.h.b16 %v3535
      %v3648 = vunpack.c.l.b16 %v3536
      %v3649 = vunpack.c.h.b16 %v3536
      %v3650 = vunpack.c.l.b16 %v3537
      %v3651 = vunpack.c.h.b16 %v3537
      %v3652 = vunpack.c.l.b16 %v3538
      %v3653 = vunpack.c.h.b16 %v3538
      %v3654 = vunpack.c.l.b16 %v3539
      %v3655 = vunpack.c.h.b16 %v3539
      %v3656 = vunpack.c.l.b16 %v3540
      %v3657 = vunpack.c.h.b16 %v3540
      %v3658 = vunpack.c.l.b16 %v3541
      %v3659 = vunpack.c.h.b16 %v3541
      %v3660 = vunpack.c.l.b16 %v3542
      %v3661 = vunpack.c.h.b16 %v3542
      %v3662 = vunpack.c.l.b16 %v3543
      %v3663 = vunpack.c.h.b16 %v3543
      %v3664 = vunpack.c.l.b16 %v3544
      %v3665 = vunpack.c.h.b16 %v3544
      %v3666 = vunpack.c.l.b16 %v3545
      %v3667 = vunpack.c.h.b16 %v3545
      %v3668 = vunpack.c.l.b16 %v3546
      %v3669 = vunpack.c.h.b16 %v3546
      %v3670 = vunpack.c.l.b16 %v3547
      %v3671 = vunpack.c.h.b16 %v3547
      %v3672 = vunpack.c.l.b16 %v3548
      %v3673 = vunpack.c.h.b16 %v3548
      %v3674 = vunpack.c.l.b16 %v3549
      %v3675 = vunpack.c.h.b16 %v3549
      %v3676 = vunpack.c.l.b16 %v3550
      %v3677 = vunpack.c.h.b16 %v3550
      %v3678 = vunpack.c.l.b16 %v3551
      %v3679 = vunpack.c.h.b16 %v3551
      %v3680 = vunpack.c.l.b16 %v3552
      %v3681 = vunpack.c.h.b16 %v3552
      %v3682 = vunpack.c.l.b16 %v3553
      %v3683 = vunpack.c.h.b16 %v3553
      %v3684 = vunpack.c.l.b16 %v3554
      %v3685 = vunpack.c.h.b16 %v3554
      %v3686 = vunpack.c.l.b16 %v3555
      %v3687 = vunpack.c.h.b16 %v3555
      %v3688 = vunpack.c.l.b16 %v3556
      %v3689 = vunpack.c.h.b16 %v3556
      %v3690 = vunpack.c.l.b16 %v3557
      %v3691 = vunpack.c.h.b16 %v3557
      %v3692 = vunpack.c.l.b16 %v3558
      %v3693 = vunpack.c.h.b16 %v3558
      %v3694 = vunpack.c.l.b16 %v3559
      %v3695 = vunpack.c.h.b16 %v3559
      %v3696 = vunpack.c.l.b16 %v3560
      %v3697 = vunpack.c.h.b16 %v3560
      %v3698 = vunpack.c.l.b16 %v3561
      %v3699 = vunpack.c.h.b16 %v3561
      %v3700 = vunpack.c.l.b16 %v3562
      %v3701 = vunpack.c.h.b16 %v3562
      %v3702 = vunpack.c.l.b16 %v3563
      %v3703 = vunpack.c.h.b16 %v3563
      %v3704 = vunpack.c.l.b16 %v3564
      %v3705 = vunpack.c.h.b16 %v3564
      %v3706 = vunpack.c.l.b16 %v3565
      %v3707 = vunpack.c.h.b16 %v3565
      %v3708 = vunpack.c.l.b16 %v3566
      %v3709 = vunpack.c.h.b16 %v3566
      %v3710 = vunpack.c.l.b16 %v3567
      %v3711 = vunpack.c.h.b16 %v3567
      %v3712 = vpack.c.b16 %v3618, %v3616
      %v3713 = vpack.c.b16 %v3619, %v3617
      %v3714 = vpack.c.b16 %v3622, %v3620
      %v3715 = vpack.c.b16 %v3623, %v3621
      %v3716 = vpack.c.b16 %v3626, %v3624
      %v3717 = vpack.c.b16 %v3627, %v3625
      %v3718 = vpack.c.b16 %v3630, %v3628
      %v3719 = vpack.c.b16 %v3631, %v3629
      %v3720 = vpack.c.b16 %v3634, %v3632
      %v3721 = vpack.c.b16 %v3635, %v3633
      %v3722 = vpack.c.b16 %v3638, %v3636
      %v3723 = vpack.c.b16 %v3639, %v3637
      %v3724 = vpack.c.b16 %v3642, %v3640
      %v3725 = vpack.c.b16 %v3643, %v3641
      %v3726 = vpack.c.b16 %v3646, %v3644
      %v3727 = vpack.c.b16 %v3647, %v3645
      %v3728 = vpack.c.b16 %v3650, %v3648
      %v3729 = vpack.c.b16 %v3651, %v3649
      %v3730 = vpack.c.b16 %v3654, %v3652
      %v3731 = vpack.c.b16 %v3655, %v3653
      %v3732 = vpack.c.b16 %v3658, %v3656
      %v3733 = vpack.c.b16 %v3659, %v3657
      %v3734 = vpack.c.b16 %v3662, %v3660
      %v3735 = vpack.c.b16 %v3663, %v3661
      %v3736 = vpack.c.b16 %v3666, %v3664
      %v3737 = vpack.c.b16 %v3667, %v3665
      %v3738 = vpack.c.b16 %v3670, %v3668
      %v3739 = vpack.c.b16 %v3671, %v3669
      %v3740 = vpack.c.b16 %v3674, %v3672
      %v3741 = vpack.c.b16 %v3675, %v3673
      %v3742 = vpack.c.b16 %v3678, %v3676
      %v3743 = vpack.c.b16 %v3679, %v3677
      %v3744 = vpack.c.b16 %v3682, %v3680
      %v3745 = vpack.c.b16 %v3683, %v3681
      %v3746 = vpack.c.b16 %v3686, %v3684
      %v3747 = vpack.c.b16 %v3687, %v3685
      %v3748 = vpack.c.b16 %v3690, %v3688
      %v3749 = vpack.c.b16 %v3691, %v3689
      %v3750 = vpack.c.b16 %v3694, %v3692
      %v3751 = vpack.c.b16 %v3695, %v3693
      %v3752 = vpack.c.b16 %v3698, %v3696
      %v3753 = vpack.c.b16 %v3699, %v3697
      %v3754 = vpack.c.b16 %v3702, %v3700
      %v3755 = vpack.c.b16 %v3703, %v3701
      %v3756 = vpack.c.b16 %v3706, %v3704
      %v3757 = vpack.c.b16 %v3707, %v3705
      %v3758 = vpack.c.b16 %v3710, %v3708
      %v3759 = vpack.c.b16 %v3711, %v3709
      %3808 = vmatprep.subr.bf16.mxu0 %v3713
      %3809 = vmatpush1.bf16.msra.mxu0 %v3712
      %3810 = vmatprep.subr.bf16.mxu0 %v3715
      %3811 = vmatpush1.bf16.msra.mxu0 %v3714
      %3812 = vmatprep.subr.bf16.mxu0 %v3717
      %3813 = vmatpush1.bf16.msra.mxu0 %v3716
      %3814 = vmatprep.subr.bf16.mxu0 %v3719
      %3815 = vmatpush1.bf16.msra.mxu0 %v3718
      %3816 = vmatprep.subr.bf16.mxu0 %v3721
      %3817 = vmatpush1.bf16.msra.mxu0 %v3720
      %3818 = vmatprep.subr.bf16.mxu0 %v3723
      %3819 = vmatpush1.bf16.msra.mxu0 %v3722
      %3820 = vmatprep.subr.bf16.mxu0 %v3725
      %3821 = vmatpush1.bf16.msra.mxu0 %v3724
      %3822 = vmatprep.subr.bf16.mxu0 %v3727
      %3823 = vmatpush1.bf16.msra.mxu0 %v3726
      %3824 = vmatprep.subr.bf16.mxu0 %v3729
      %3825 = vmatpush1.bf16.msra.mxu0 %v3728
      %3826 = vmatprep.subr.bf16.mxu0 %v3731
      %3827 = vmatpush1.bf16.msra.mxu0 %v3730
      %3828 = vmatprep.subr.bf16.mxu0 %v3733
      %3829 = vmatpush1.bf16.msra.mxu0 %v3732
      %3830 = vmatprep.subr.bf16.mxu0 %v3735
      %3831 = vmatpush1.bf16.msra.mxu0 %v3734
      %3832 = vmatprep.subr.bf16.mxu0 %v3737
      %3833 = vmatpush1.bf16.msra.mxu0 %v3736
      %3834 = vmatprep.subr.bf16.mxu0 %v3739
      %3835 = vmatpush1.bf16.msra.mxu0 %v3738
      %3836 = vmatprep.subr.bf16.mxu0 %v3741
      %3837 = vmatpush1.bf16.msra.mxu0 %v3740
      %3838 = vmatprep.subr.bf16.mxu0 %v3743
      %3839 = vmatpush1.bf16.msra.mxu0 %v3742
      %3840 = vmatprep.mubr.bf16.mxu0 %v1844
      %3841 = vmatmul.mubr.bf16.gmra.mrb[0].mxu0 %v1720
      %v3842 = vpop.f32.mrb[0].mxu0
      %v3843 = vadd.f32 0.0, %v3842
      %v3844 = vpop.f32.mrb[0].mxu0
      %v3845 = vadd.f32 0.0, %v3844
      %v3846 = vpop.f32.mrb[0].mxu0
      %v3847 = vadd.f32 0.0, %v3846
      %v3848 = vpop.f32.mrb[0].mxu0
      %v3849 = vadd.f32 0.0, %v3848
      %3850 = vmatprep.mubr.bf16.mxu0 %v1856
      %3851 = vmatmul.mubr.bf16.gmra.mrb[0].mxu0 %v1721
      %v3852 = vpop.f32.mrb[0].mxu0
      %v3853 = vadd.f32 0.0, %v3852
      %v3854 = vpop.f32.mrb[0].mxu0
      %v3855 = vadd.f32 0.0, %v3854
      %v3856 = vpop.f32.mrb[0].mxu0
      %v3857 = vadd.f32 0.0, %v3856
      %v3858 = vpop.f32.mrb[0].mxu0
      %v3859 = vadd.f32 0.0, %v3858
      %3860 = vmatprep.mubr.bf16.mxu0 %v1868
      %3861 = vmatmul.mubr.bf16.gmra.mrb[0].mxu0 %v1722
      %v3862 = vpop.f32.mrb[0].mxu0
      %v3863 = vadd.f32 0.0, %v3862
      %v3864 = vpop.f32.mrb[0].mxu0
      %v3865 = vadd.f32 0.0, %v3864
      %v3866 = vpop.f32.mrb[0].mxu0
      %v3867 = vadd.f32 0.0, %v3866
      %v3868 = vpop.f32.mrb[0].mxu0
      %v3869 = vadd.f32 0.0, %v3868
      %3870 = vmatprep.mubr.bf16.mxu0 %v1880
      %3871 = vmatmul.mubr.bf16.gmra.mrb[0].mxu0 %v1723
      %v3872 = vpop.f32.mrb[0].mxu0
      %v3873 = vadd.f32 0.0, %v3872
      %v3874 = vpop.f32.mrb[0].mxu0
      %v3875 = vadd.f32 0.0, %v3874
      %v3876 = vpop.f32.mrb[0].mxu0
      %v3877 = vadd.f32 0.0, %v3876
      %v3878 = vpop.f32.mrb[0].mxu0
      %v3879 = vadd.f32 0.0, %v3878
      %3880 = vmatprep.mubr.bf16.mxu0 %v1892
      %3881 = vmatmul.mubr.bf16.gmra.mrb[0].mxu0 %v1724
      %v3882 = vpop.f32.mrb[0].mxu0
      %v3883 = vadd.f32 0.0, %v3882
      %v3884 = vpop.f32.mrb[0].mxu0
      %v3885 = vadd.f32 0.0, %v3884
      %v3886 = vpop.f32.mrb[0].mxu0
      %v3887 = vadd.f32 0.0, %v3886
      %v3888 = vpop.f32.mrb[0].mxu0
      %v3889 = vadd.f32 0.0, %v3888
      %3890 = vmatprep.mubr.bf16.mxu0 %v1904
      %3891 = vmatmul.mubr.bf16.gmra.mrb[0].mxu0 %v1725
      %v3892 = vpop.f32.mrb[0].mxu0
      %v3893 = vadd.f32 0.0, %v3892
      %v3894 = vpop.f32.mrb[0].mxu0
      %v3895 = vadd.f32 0.0, %v3894
      %v3896 = vpop.f32.mrb[0].mxu0
      %v3897 = vadd.f32 0.0, %v3896
      %v3898 = vpop.f32.mrb[0].mxu0
      %v3899 = vadd.f32 0.0, %v3898
      %3900 = vmatprep.mubr.bf16.mxu0 %v1916
      %3901 = vmatmul.mubr.bf16.gmra.mrb[0].mxu0 %v1726
      %v3902 = vpop.f32.mrb[0].mxu0
      %v3903 = vadd.f32 0.0, %v3902
      %v3904 = vpop.f32.mrb[0].mxu0
      %v3905 = vadd.f32 0.0, %v3904
      %v3906 = vpop.f32.mrb[0].mxu0
      %v3907 = vadd.f32 0.0, %v3906
      %v3908 = vpop.f32.mrb[0].mxu0
      %v3909 = vadd.f32 0.0, %v3908
      %3910 = vmatprep.mubr.bf16.mxu0 %v1928
      %3911 = vmatmul.mubr.bf16.gmra.mrb[0].mxu0 %v1727
      %v3912 = vpop.f32.mrb[0].mxu0
      %v3913 = vadd.f32 0.0, %v3912
      %v3914 = vpop.f32.mrb[0].mxu0
      %v3915 = vadd.f32 0.0, %v3914
      %v3916 = vpop.f32.mrb[0].mxu0
      %v3917 = vadd.f32 0.0, %v3916
      %v3918 = vpop.f32.mrb[0].mxu0
      %v3919 = vadd.f32 0.0, %v3918
      %3920 = vmatprep.mubr.bf16.mxu0 %v1940
      %3921 = vmatmul.mubr.bf16.gmra.mrb[0].mxu0 %v1728
      %v3922 = vpop.f32.mrb[0].mxu0
      %v3923 = vadd.f32 0.0, %v3922
      %v3924 = vpop.f32.mrb[0].mxu0
      %v3925 = vadd.f32 0.0, %v3924
      %v3926 = vpop.f32.mrb[0].mxu0
      %v3927 = vadd.f32 0.0, %v3926
      %v3928 = vpop.f32.mrb[0].mxu0
      %v3929 = vadd.f32 0.0, %v3928
      %3930 = vmatprep.mubr.bf16.mxu0 %v1952
      %3931 = vmatmul.mubr.bf16.gmra.mrb[0].mxu0 %v1729
      %v3932 = vpop.f32.mrb[0].mxu0
      %v3933 = vadd.f32 0.0, %v3932
      %v3934 = vpop.f32.mrb[0].mxu0
      %v3935 = vadd.f32 0.0, %v3934
      %v3936 = vpop.f32.mrb[0].mxu0
      %v3937 = vadd.f32 0.0, %v3936
      %v3938 = vpop.f32.mrb[0].mxu0
      %v3939 = vadd.f32 0.0, %v3938
      %3940 = vmatprep.mubr.bf16.mxu0 %v1964
      %3941 = vmatmul.mubr.bf16.gmra.mrb[0].mxu0 %v1730
      %v3942 = vpop.f32.mrb[0].mxu0
      %v3943 = vadd.f32 0.0, %v3942
      %v3944 = vpop.f32.mrb[0].mxu0
      %v3945 = vadd.f32 0.0, %v3944
      %v3946 = vpop.f32.mrb[0].mxu0
      %v3947 = vadd.f32 0.0, %v3946
      %v3948 = vpop.f32.mrb[0].mxu0
      %v3949 = vadd.f32 0.0, %v3948
      %3950 = vmatprep.mubr.bf16.mxu0 %v1976
      %3951 = vmatmul.mubr.bf16.gmra.mrb[0].mxu0 %v1731
      %v3952 = vpop.f32.mrb[0].mxu0
      %v3953 = vadd.f32 0.0, %v3952
      %v3954 = vpop.f32.mrb[0].mxu0
      %v3955 = vadd.f32 0.0, %v3954
      %v3956 = vpop.f32.mrb[0].mxu0
      %v3957 = vadd.f32 0.0, %v3956
      %v3958 = vpop.f32.mrb[0].mxu0
      %v3959 = vadd.f32 0.0, %v3958
      %3960 = vmatprep.mubr.bf16.mxu0 %v1988
      %3961 = vmatmul.mubr.bf16.gmra.mrb[0].mxu0 %v1732
      %v3962 = vpop.f32.mrb[0].mxu0
      %v3963 = vadd.f32 0.0, %v3962
      %v3964 = vpop.f32.mrb[0].mxu0
      %v3965 = vadd.f32 0.0, %v3964
      %v3966 = vpop.f32.mrb[0].mxu0
      %v3967 = vadd.f32 0.0, %v3966
      %v3968 = vpop.f32.mrb[0].mxu0
      %v3969 = vadd.f32 0.0, %v3968
      %3970 = vmatprep.mubr.bf16.mxu0 %v2000
      %3971 = vmatmul.mubr.bf16.gmra.mrb[0].mxu0 %v1733
      %v3972 = vpop.f32.mrb[0].mxu0
      %v3973 = vadd.f32 0.0, %v3972
      %v3974 = vpop.f32.mrb[0].mxu0
      %v3975 = vadd.f32 0.0, %v3974
      %v3976 = vpop.f32.mrb[0].mxu0
      %v3977 = vadd.f32 0.0, %v3976
      %v3978 = vpop.f32.mrb[0].mxu0
      %v3979 = vadd.f32 0.0, %v3978
      %3980 = vmatprep.mubr.bf16.mxu0 %v2012
      %3981 = vmatmul.mubr.bf16.gmra.mrb[0].mxu0 %v1734
      %v3982 = vpop.f32.mrb[0].mxu0
      %v3983 = vadd.f32 0.0, %v3982
      %v3984 = vpop.f32.mrb[0].mxu0
      %v3985 = vadd.f32 0.0, %v3984
      %v3986 = vpop.f32.mrb[0].mxu0
      %v3987 = vadd.f32 0.0, %v3986
      %v3988 = vpop.f32.mrb[0].mxu0
      %v3989 = vadd.f32 0.0, %v3988
      %3990 = vmatprep.mubr.bf16.mxu0 %v2024
      %3991 = vmatmul.mubr.bf16.gmra.mrb[0].mxu0 %v1735
      %v3992 = vpop.f32.mrb[0].mxu0
      %v3993 = vadd.f32 0.0, %v3992
      %v3994 = vpop.f32.mrb[0].mxu0
      %v3995 = vadd.f32 0.0, %v3994
      %v3996 = vpop.f32.mrb[0].mxu0
      %v3997 = vadd.f32 0.0, %v3996
      %v3998 = vpop.f32.mrb[0].mxu0
      %v3999 = vadd.f32 0.0, %v3998
      %4000 = vdwg.mxu0
      %4001 = vmatprep.subr.bf16.mxu0 %v3745
      %4002 = vmatpush1.bf16.msra.mxu0 %v3744
      %4003 = vmatprep.subr.bf16.mxu0 %v3747
      %4004 = vmatpush1.bf16.msra.mxu0 %v3746
      %4005 = vmatprep.subr.bf16.mxu0 %v3749
      %4006 = vmatpush1.bf16.msra.mxu0 %v3748
      %4007 = vmatprep.subr.bf16.mxu0 %v3751
      %4008 = vmatpush1.bf16.msra.mxu0 %v3750
      %4009 = vmatprep.subr.bf16.mxu0 %v3753
      %4010 = vmatpush1.bf16.msra.mxu0 %v3752
      %4011 = vmatprep.subr.bf16.mxu0 %v3755
      %4012 = vmatpush1.bf16.msra.mxu0 %v3754
      %4013 = vmatprep.subr.bf16.mxu0 %v3757
      %4014 = vmatpush1.bf16.msra.mxu0 %v3756
      %4015 = vmatprep.subr.bf16.mxu0 %v3759
      %4016 = vmatpush1.bf16.msra.mxu0 %v3758
      %4017 = vmatprep.subr.bf16.mxu0 0
      %4018 = vmatpush1.bf16.msra.mxu0 0
      %4019 = vmatprep.subr.bf16.mxu0 0
      %4020 = vmatpush1.bf16.msra.mxu0 0
      %4021 = vmatprep.subr.bf16.mxu0 0
      %4022 = vmatpush1.bf16.msra.mxu0 0
      %4023 = vmatprep.subr.bf16.mxu0 0
      %4024 = vmatpush1.bf16.msra.mxu0 0
      %4025 = vmatprep.subr.bf16.mxu0 0
      %4026 = vmatpush1.bf16.msra.mxu0 0
      %4027 = vmatprep.subr.bf16.mxu0 0
      %4028 = vmatpush1.bf16.msra.mxu0 0
      %4029 = vmatprep.subr.bf16.mxu0 0
      %4030 = vmatpush1.bf16.msra.mxu0 0
      %4031 = vmatprep.subr.bf16.mxu0 0
      %4032 = vmatpush1.bf16.msra.mxu0 0
      %4033 = vmatprep.mubr.bf16.mxu0 0
      %4034 = vmatmul.mubr.bf16.gmra.mrb[0].mxu0 %v2106
      %v4035 = vpop.f32.mrb[0].mxu0
      %v4036 = vadd.f32 %v3843, %v4035
      %v4037 = vpop.f32.mrb[0].mxu0
      %v4038 = vadd.f32 %v3845, %v4037
      %v4039 = vpop.f32.mrb[0].mxu0
      %v4040 = vadd.f32 %v3847, %v4039
      %v4041 = vpop.f32.mrb[0].mxu0
      %v4042 = vadd.f32 %v3849, %v4041
      %4043 = vmatprep.mubr.bf16.mxu0 0
      %4044 = vmatmul.mubr.bf16.gmra.mrb[0].mxu0 %v2109
      %v4045 = vpop.f32.mrb[0].mxu0
      %v4046 = vadd.f32 %v3853, %v4045
      %v4047 = vpop.f32.mrb[0].mxu0
      %v4048 = vadd.f32 %v3855, %v4047
      %v4049 = vpop.f32.mrb[0].mxu0
      %v4050 = vadd.f32 %v3857, %v4049
      %v4051 = vpop.f32.mrb[0].mxu0
      %v4052 = vadd.f32 %v3859, %v4051
      %4053 = vmatprep.mubr.bf16.mxu0 0
      %4054 = vmatmul.mubr.bf16.gmra.mrb[0].mxu0 %v2112
      %v4055 = vpop.f32.mrb[0].mxu0
      %v4056 = vadd.f32 %v3863, %v4055
      %v4057 = vpop.f32.mrb[0].mxu0
      %v4058 = vadd.f32 %v3865, %v4057
      %v4059 = vpop.f32.mrb[0].mxu0
      %v4060 = vadd.f32 %v3867, %v4059
      %v4061 = vpop.f32.mrb[0].mxu0
      %v4062 = vadd.f32 %v3869, %v4061
      %4063 = vmatprep.mubr.bf16.mxu0 0
      %4064 = vmatmul.mubr.bf16.gmra.mrb[0].mxu0 %v2115
      %v4065 = vpop.f32.mrb[0].mxu0
      %v4066 = vadd.f32 %v3873, %v4065
      %v4067 = vpop.f32.mrb[0].mxu0
      %v4068 = vadd.f32 %v3875, %v4067
      %v4069 = vpop.f32.mrb[0].mxu0
      %v4070 = vadd.f32 %v3877, %v4069
      %v4071 = vpop.f32.mrb[0].mxu0
      %v4072 = vadd.f32 %v3879, %v4071
      %4073 = vmatprep.mubr.bf16.mxu0 0
      %4074 = vmatmul.mubr.bf16.gmra.mrb[0].mxu0 %v2118
      %v4075 = vpop.f32.mrb[0].mxu0
      %v4076 = vadd.f32 %v3883, %v4075
      %v4077 = vpop.f32.mrb[0].mxu0
      %v4078 = vadd.f32 %v3885, %v4077
      %v4079 = vpop.f32.mrb[0].mxu0
      %v4080 = vadd.f32 %v3887, %v4079
      %v4081 = vpop.f32.mrb[0].mxu0
      %v4082 = vadd.f32 %v3889, %v4081
      %4083 = vmatprep.mubr.bf16.mxu0 0
      %4084 = vmatmul.mubr.bf16.gmra.mrb[0].mxu0 %v2121
      %v4085 = vpop.f32.mrb[0].mxu0
      %v4086 = vadd.f32 %v3893, %v4085
      %v4087 = vpop.f32.mrb[0].mxu0
      %v4088 = vadd.f32 %v3895, %v4087
      %v4089 = vpop.f32.mrb[0].mxu0
      %v4090 = vadd.f32 %v3897, %v4089
      %v4091 = vpop.f32.mrb[0].mxu0
      %v4092 = vadd.f32 %v3899, %v4091
      %4093 = vmatprep.mubr.bf16.mxu0 0
      %4094 = vmatmul.mubr.bf16.gmra.mrb[0].mxu0 %v2124
      %v4095 = vpop.f32.mrb[0].mxu0
      %v4096 = vadd.f32 %v3903, %v4095
      %v4097 = vpop.f32.mrb[0].mxu0
      %v4098 = vadd.f32 %v3905, %v4097
      %v4099 = vpop.f32.mrb[0].mxu0
      %v4100 = vadd.f32 %v3907, %v4099
      %v4101 = vpop.f32.mrb[0].mxu0
      %v4102 = vadd.f32 %v3909, %v4101
      %4103 = vmatprep.mubr.bf16.mxu0 0
      %4104 = vmatmul.mubr.bf16.gmra.mrb[0].mxu0 %v2127
      %v4105 = vpop.f32.mrb[0].mxu0
      %v4106 = vadd.f32 %v3913, %v4105
      %v4107 = vpop.f32.mrb[0].mxu0
      %v4108 = vadd.f32 %v3915, %v4107
      %v4109 = vpop.f32.mrb[0].mxu0
      %v4110 = vadd.f32 %v3917, %v4109
      %v4111 = vpop.f32.mrb[0].mxu0
      %v4112 = vadd.f32 %v3919, %v4111
      %4113 = vmatprep.mubr.bf16.mxu0 0
      %4114 = vmatmul.mubr.bf16.gmra.mrb[0].mxu0 %v2130
      %v4115 = vpop.f32.mrb[0].mxu0
      %v4116 = vadd.f32 %v3923, %v4115
      %v4117 = vpop.f32.mrb[0].mxu0
      %v4118 = vadd.f32 %v3925, %v4117
      %v4119 = vpop.f32.mrb[0].mxu0
      %v4120 = vadd.f32 %v3927, %v4119
      %v4121 = vpop.f32.mrb[0].mxu0
      %v4122 = vadd.f32 %v3929, %v4121
      %4123 = vmatprep.mubr.bf16.mxu0 0
      %4124 = vmatmul.mubr.bf16.gmra.mrb[0].mxu0 %v2133
      %v4125 = vpop.f32.mrb[0].mxu0
      %v4126 = vadd.f32 %v3933, %v4125
      %v4127 = vpop.f32.mrb[0].mxu0
      %v4128 = vadd.f32 %v3935, %v4127
      %v4129 = vpop.f32.mrb[0].mxu0
      %v4130 = vadd.f32 %v3937, %v4129
      %v4131 = vpop.f32.mrb[0].mxu0
      %v4132 = vadd.f32 %v3939, %v4131
      %4133 = vmatprep.mubr.bf16.mxu0 0
      %4134 = vmatmul.mubr.bf16.gmra.mrb[0].mxu0 %v2136
      %v4135 = vpop.f32.mrb[0].mxu0
      %v4136 = vadd.f32 %v3943, %v4135
      %v4137 = vpop.f32.mrb[0].mxu0
      %v4138 = vadd.f32 %v3945, %v4137
      %v4139 = vpop.f32.mrb[0].mxu0
      %v4140 = vadd.f32 %v3947, %v4139
      %v4141 = vpop.f32.mrb[0].mxu0
      %v4142 = vadd.f32 %v3949, %v4141
      %4143 = vmatprep.mubr.bf16.mxu0 0
      %4144 = vmatmul.mubr.bf16.gmra.mrb[0].mxu0 %v2139
      %v4145 = vpop.f32.mrb[0].mxu0
      %v4146 = vadd.f32 %v3953, %v4145
      %v4147 = vpop.f32.mrb[0].mxu0
      %v4148 = vadd.f32 %v3955, %v4147
      %v4149 = vpop.f32.mrb[0].mxu0
      %v4150 = vadd.f32 %v3957, %v4149
      %v4151 = vpop.f32.mrb[0].mxu0
      %v4152 = vadd.f32 %v3959, %v4151
      %4153 = vmatprep.mubr.bf16.mxu0 0
      %4154 = vmatmul.mubr.bf16.gmra.mrb[0].mxu0 %v2142
      %v4155 = vpop.f32.mrb[0].mxu0
      %v4156 = vadd.f32 %v3963, %v4155
      %v4157 = vpop.f32.mrb[0].mxu0
      %v4158 = vadd.f32 %v3965, %v4157
      %v4159 = vpop.f32.mrb[0].mxu0
      %v4160 = vadd.f32 %v3967, %v4159
      %v4161 = vpop.f32.mrb[0].mxu0
      %v4162 = vadd.f32 %v3969, %v4161
      %4163 = vmatprep.mubr.bf16.mxu0 0
      %4164 = vmatmul.mubr.bf16.gmra.mrb[0].mxu0 %v2145
      %v4165 = vpop.f32.mrb[0].mxu0
      %v4166 = vadd.f32 %v3973, %v4165
      %v4167 = vpop.f32.mrb[0].mxu0
      %v4168 = vadd.f32 %v3975, %v4167
      %v4169 = vpop.f32.mrb[0].mxu0
      %v4170 = vadd.f32 %v3977, %v4169
      %v4171 = vpop.f32.mrb[0].mxu0
      %v4172 = vadd.f32 %v3979, %v4171
      %4173 = vmatprep.mubr.bf16.mxu0 0
      %4174 = vmatmul.mubr.bf16.gmra.mrb[0].mxu0 %v2148
      %v4175 = vpop.f32.mrb[0].mxu0
      %v4176 = vadd.f32 %v3983, %v4175
      %v4177 = vpop.f32.mrb[0].mxu0
      %v4178 = vadd.f32 %v3985, %v4177
      %v4179 = vpop.f32.mrb[0].mxu0
      %v4180 = vadd.f32 %v3987, %v4179
      %v4181 = vpop.f32.mrb[0].mxu0
      %v4182 = vadd.f32 %v3989, %v4181
      %4183 = vmatprep.mubr.bf16.mxu0 0
      %4184 = vmatmul.mubr.bf16.gmra.mrb[0].mxu0 %v2151
      %v4185 = vpop.f32.mrb[0].mxu0
      %v4186 = vadd.f32 %v3993, %v4185
      %v4187 = vpop.f32.mrb[0].mxu0
      %v4188 = vadd.f32 %v3995, %v4187
      %v4189 = vpop.f32.mrb[0].mxu0
      %v4190 = vadd.f32 %v3997, %v4189
      %v4191 = vpop.f32.mrb[0].mxu0
      %v4192 = vadd.f32 %v3999, %v4191
      %4193 = vdwg.mxu0
      %v4194 = vadd.f32 %v3361, %v4036
      %v4195 = vadd.f32 %v3363, %v4038
      %v4196 = vadd.f32 %v3365, %v4040
      %v4197 = vadd.f32 %v3367, %v4042
      %v4198 = vadd.f32 %v3371, %v4046
      %v4199 = vadd.f32 %v3373, %v4048
      %v4200 = vadd.f32 %v3375, %v4050
      %v4201 = vadd.f32 %v3377, %v4052
      %v4202 = vadd.f32 %v3381, %v4056
      %v4203 = vadd.f32 %v3383, %v4058
      %v4204 = vadd.f32 %v3385, %v4060
      %v4205 = vadd.f32 %v3387, %v4062
      %v4206 = vadd.f32 %v3391, %v4066
      %v4207 = vadd.f32 %v3393, %v4068
      %v4208 = vadd.f32 %v3395, %v4070
      %v4209 = vadd.f32 %v3397, %v4072
      %v4210 = vadd.f32 %v3401, %v4076
      %v4211 = vadd.f32 %v3403, %v4078
      %v4212 = vadd.f32 %v3405, %v4080
      %v4213 = vadd.f32 %v3407, %v4082
      %v4214 = vadd.f32 %v3411, %v4086
      %v4215 = vadd.f32 %v3413, %v4088
      %v4216 = vadd.f32 %v3415, %v4090
      %v4217 = vadd.f32 %v3417, %v4092
      %v4218 = vadd.f32 %v3421, %v4096
      %v4219 = vadd.f32 %v3423, %v4098
      %v4220 = vadd.f32 %v3425, %v4100
      %v4221 = vadd.f32 %v3427, %v4102
      %v4222 = vadd.f32 %v3431, %v4106
      %v4223 = vadd.f32 %v3433, %v4108
      %v4224 = vadd.f32 %v3435, %v4110
      %v4225 = vadd.f32 %v3437, %v4112
      %v4226 = vadd.f32 %v3441, %v4116
      %v4227 = vadd.f32 %v3443, %v4118
      %v4228 = vadd.f32 %v3445, %v4120
      %v4229 = vadd.f32 %v3447, %v4122
      %v4230 = vadd.f32 %v3451, %v4126
      %v4231 = vadd.f32 %v3453, %v4128
      %v4232 = vadd.f32 %v3455, %v4130
      %v4233 = vadd.f32 %v3457, %v4132
      %v4234 = vadd.f32 %v3461, %v4136
      %v4235 = vadd.f32 %v3463, %v4138
      %v4236 = vadd.f32 %v3465, %v4140
      %v4237 = vadd.f32 %v3467, %v4142
      %v4238 = vadd.f32 %v3471, %v4146
      %v4239 = vadd.f32 %v3473, %v4148
      %v4240 = vadd.f32 %v3475, %v4150
      %v4241 = vadd.f32 %v3477, %v4152
      %v4242 = vadd.f32 %v3481, %v4156
      %v4243 = vadd.f32 %v3483, %v4158
      %v4244 = vadd.f32 %v3485, %v4160
      %v4245 = vadd.f32 %v3487, %v4162
      %v4246 = vadd.f32 %v3491, %v4166
      %v4247 = vadd.f32 %v3493, %v4168
      %v4248 = vadd.f32 %v3495, %v4170
      %v4249 = vadd.f32 %v3497, %v4172
      %v4250 = vadd.f32 %v3501, %v4176
      %v4251 = vadd.f32 %v3503, %v4178
      %v4252 = vadd.f32 %v3505, %v4180
      %v4253 = vadd.f32 %v3507, %v4182
      %v4254 = vadd.f32 %v3511, %v4186
      %v4255 = vadd.f32 %v3513, %v4188
      %v4256 = vadd.f32 %v3515, %v4190
      %v4257 = vadd.f32 %v3517, %v4192
      %v4258 = vld [vmem:[%s4] sm:$0x3]
      %v4260 = vlaneseq
      %v4261 = vshrl.u32 %v4260, 7
      %v4262 = vsub.s32 0, %v4261
      %v4263 = vrot.slane %v4258, %v4262
      %v4264 = vlaneseq
      %v4265 = vshrl.u32 %v4264, 7
      %v4266 = vsub.s32 1, %v4265
      %v4267 = vrot.slane %v4258, %v4266
      %v4270 = vadd.f32 %v4194, %v4263
      %v4271 = vadd.f32 %v4195, %v4267
      %v4272 = vadd.f32 %v4196, %v4263
      %v4273 = vadd.f32 %v4197, %v4267
      %v4274 = vadd.f32 %v4198, %v4263
      %v4275 = vadd.f32 %v4199, %v4267
      %v4276 = vadd.f32 %v4200, %v4263
      %v4277 = vadd.f32 %v4201, %v4267
      %v4278 = vadd.f32 %v4202, %v4263
      %v4279 = vadd.f32 %v4203, %v4267
      %v4280 = vadd.f32 %v4204, %v4263
      %v4281 = vadd.f32 %v4205, %v4267
      %v4282 = vadd.f32 %v4206, %v4263
      %v4283 = vadd.f32 %v4207, %v4267
      %v4284 = vadd.f32 %v4208, %v4263
      %v4285 = vadd.f32 %v4209, %v4267
      %v4286 = vadd.f32 %v4210, %v4263
      %v4287 = vadd.f32 %v4211, %v4267
      %v4288 = vadd.f32 %v4212, %v4263
      %v4289 = vadd.f32 %v4213, %v4267
      %v4290 = vadd.f32 %v4214, %v4263
      %v4291 = vadd.f32 %v4215, %v4267
      %v4292 = vadd.f32 %v4216, %v4263
      %v4293 = vadd.f32 %v4217, %v4267
      %v4294 = vadd.f32 %v4218, %v4263
      %v4295 = vadd.f32 %v4219, %v4267
      %v4296 = vadd.f32 %v4220, %v4263
      %v4297 = vadd.f32 %v4221, %v4267
      %v4298 = vadd.f32 %v4222, %v4263
      %v4299 = vadd.f32 %v4223, %v4267
      %v4300 = vadd.f32 %v4224, %v4263
      %v4301 = vadd.f32 %v4225, %v4267
      %v4302 = vadd.f32 %v4226, %v4263
      %v4303 = vadd.f32 %v4227, %v4267
      %v4304 = vadd.f32 %v4228, %v4263
      %v4305 = vadd.f32 %v4229, %v4267
      %v4306 = vadd.f32 %v4230, %v4263
      %v4307 = vadd.f32 %v4231, %v4267
      %v4308 = vadd.f32 %v4232, %v4263
      %v4309 = vadd.f32 %v4233, %v4267
      %v4310 = vadd.f32 %v4234, %v4263
      %v4311 = vadd.f32 %v4235, %v4267
      %v4312 = vadd.f32 %v4236, %v4263
      %v4313 = vadd.f32 %v4237, %v4267
      %v4314 = vadd.f32 %v4238, %v4263
      %v4315 = vadd.f32 %v4239, %v4267
      %v4316 = vadd.f32 %v4240, %v4263
      %v4317 = vadd.f32 %v4241, %v4267
      %v4318 = vadd.f32 %v4242, %v4263
      %v4319 = vadd.f32 %v4243, %v4267
      %v4320 = vadd.f32 %v4244, %v4263
      %v4321 = vadd.f32 %v4245, %v4267
      %v4322 = vadd.f32 %v4246, %v4263
      %v4323 = vadd.f32 %v4247, %v4267
      %v4324 = vadd.f32 %v4248, %v4263
      %v4325 = vadd.f32 %v4249, %v4267
      %v4326 = vadd.f32 %v4250, %v4263
      %v4327 = vadd.f32 %v4251, %v4267
      %v4328 = vadd.f32 %v4252, %v4263
      %v4329 = vadd.f32 %v4253, %v4267
      %v4330 = vadd.f32 %v4254, %v4263
      %v4331 = vadd.f32 %v4255, %v4267
      %v4332 = vadd.f32 %v4256, %v4263
      %v4333 = vadd.f32 %v4257, %v4267
      %vm4334 = vcmp.ge.f32.partialorder %v4270, 0.0
      %vm4335 = vcmp.ge.f32.partialorder %v4271, 0.0
      %vm4336 = vcmp.ge.f32.partialorder %v4272, 0.0
      %vm4337 = vcmp.ge.f32.partialorder %v4273, 0.0
      %vm4338 = vcmp.ge.f32.partialorder %v4274, 0.0
      %vm4339 = vcmp.ge.f32.partialorder %v4275, 0.0
      %vm4340 = vcmp.ge.f32.partialorder %v4276, 0.0
      %vm4341 = vcmp.ge.f32.partialorder %v4277, 0.0
      %vm4342 = vcmp.ge.f32.partialorder %v4278, 0.0
      %vm4343 = vcmp.ge.f32.partialorder %v4279, 0.0
      %vm4344 = vcmp.ge.f32.partialorder %v4280, 0.0
      %vm4345 = vcmp.ge.f32.partialorder %v4281, 0.0
      %vm4346 = vcmp.ge.f32.partialorder %v4282, 0.0
      %vm4347 = vcmp.ge.f32.partialorder %v4283, 0.0
      %vm4348 = vcmp.ge.f32.partialorder %v4284, 0.0
      %vm4349 = vcmp.ge.f32.partialorder %v4285, 0.0
      %vm4350 = vcmp.ge.f32.partialorder %v4286, 0.0
      %vm4351 = vcmp.ge.f32.partialorder %v4287, 0.0
      %vm4352 = vcmp.ge.f32.partialorder %v4288, 0.0
      %vm4353 = vcmp.ge.f32.partialorder %v4289, 0.0
      %vm4354 = vcmp.ge.f32.partialorder %v4290, 0.0
      %vm4355 = vcmp.ge.f32.partialorder %v4291, 0.0
      %vm4356 = vcmp.ge.f32.partialorder %v4292, 0.0
      %vm4357 = vcmp.ge.f32.partialorder %v4293, 0.0
      %vm4358 = vcmp.ge.f32.partialorder %v4294, 0.0
      %vm4359 = vcmp.ge.f32.partialorder %v4295, 0.0
      %vm4360 = vcmp.ge.f32.partialorder %v4296, 0.0
      %vm4361 = vcmp.ge.f32.partialorder %v4297, 0.0
      %vm4362 = vcmp.ge.f32.partialorder %v4298, 0.0
      %vm4363 = vcmp.ge.f32.partialorder %v4299, 0.0
      %vm4364 = vcmp.ge.f32.partialorder %v4300, 0.0
      %vm4365 = vcmp.ge.f32.partialorder %v4301, 0.0
      %vm4366 = vcmp.ge.f32.partialorder %v4302, 0.0
      %vm4367 = vcmp.ge.f32.partialorder %v4303, 0.0
      %vm4368 = vcmp.ge.f32.partialorder %v4304, 0.0
      %vm4369 = vcmp.ge.f32.partialorder %v4305, 0.0
      %vm4370 = vcmp.ge.f32.partialorder %v4306, 0.0
      %vm4371 = vcmp.ge.f32.partialorder %v4307, 0.0
      %vm4372 = vcmp.ge.f32.partialorder %v4308, 0.0
      %vm4373 = vcmp.ge.f32.partialorder %v4309, 0.0
      %vm4374 = vcmp.ge.f32.partialorder %v4310, 0.0
      %vm4375 = vcmp.ge.f32.partialorder %v4311, 0.0
      %vm4376 = vcmp.ge.f32.partialorder %v4312, 0.0
      %vm4377 = vcmp.ge.f32.partialorder %v4313, 0.0
      %vm4378 = vcmp.ge.f32.partialorder %v4314, 0.0
      %vm4379 = vcmp.ge.f32.partialorder %v4315, 0.0
      %vm4380 = vcmp.ge.f32.partialorder %v4316, 0.0
      %vm4381 = vcmp.ge.f32.partialorder %v4317, 0.0
      %vm4382 = vcmp.ge.f32.partialorder %v4318, 0.0
      %vm4383 = vcmp.ge.f32.partialorder %v4319, 0.0
      %vm4384 = vcmp.ge.f32.partialorder %v4320, 0.0
      %vm4385 = vcmp.ge.f32.partialorder %v4321, 0.0
      %vm4386 = vcmp.ge.f32.partialorder %v4322, 0.0
      %vm4387 = vcmp.ge.f32.partialorder %v4323, 0.0
      %vm4388 = vcmp.ge.f32.partialorder %v4324, 0.0
      %vm4389 = vcmp.ge.f32.partialorder %v4325, 0.0
      %vm4390 = vcmp.ge.f32.partialorder %v4326, 0.0
      %vm4391 = vcmp.ge.f32.partialorder %v4327, 0.0
      %vm4392 = vcmp.ge.f32.partialorder %v4328, 0.0
      %vm4393 = vcmp.ge.f32.partialorder %v4329, 0.0
      %vm4394 = vcmp.ge.f32.partialorder %v4330, 0.0
      %vm4395 = vcmp.ge.f32.partialorder %v4331, 0.0
      %vm4396 = vcmp.ge.f32.partialorder %v4332, 0.0
      %vm4397 = vcmp.ge.f32.partialorder %v4333, 0.0
      %v4398 = vmul.f32 %v4270, 0.01
      %v4399 = vmul.f32 %v4271, 0.01
      %v4400 = vmul.f32 %v4272, 0.01
      %v4401 = vmul.f32 %v4273, 0.01
      %v4402 = vmul.f32 %v4274, 0.01
      %v4403 = vmul.f32 %v4275, 0.01
      %v4404 = vmul.f32 %v4276, 0.01
      %v4405 = vmul.f32 %v4277, 0.01
      %v4406 = vmul.f32 %v4278, 0.01
      %v4407 = vmul.f32 %v4279, 0.01
      %v4408 = vmul.f32 %v4280, 0.01
      %v4409 = vmul.f32 %v4281, 0.01
      %v4410 = vmul.f32 %v4282, 0.01
      %v4411 = vmul.f32 %v4283, 0.01
      %v4412 = vmul.f32 %v4284, 0.01
      %v4413 = vmul.f32 %v4285, 0.01
      %v4414 = vmul.f32 %v4286, 0.01
      %v4415 = vmul.f32 %v4287, 0.01
      %v4416 = vmul.f32 %v4288, 0.01
      %v4417 = vmul.f32 %v4289, 0.01
      %v4418 = vmul.f32 %v4290, 0.01
      %v4419 = vmul.f32 %v4291, 0.01
      %v4420 = vmul.f32 %v4292, 0.01
      %v4421 = vmul.f32 %v4293, 0.01
      %v4422 = vmul.f32 %v4294, 0.01
      %v4423 = vmul.f32 %v4295, 0.01
      %v4424 = vmul.f32 %v4296, 0.01
      %v4425 = vmul.f32 %v4297, 0.01
      %v4426 = vmul.f32 %v4298, 0.01
      %v4427 = vmul.f32 %v4299, 0.01
      %v4428 = vmul.f32 %v4300, 0.01
      %v4429 = vmul.f32 %v4301, 0.01
      %v4430 = vmul.f32 %v4302, 0.01
      %v4431 = vmul.f32 %v4303, 0.01
      %v4432 = vmul.f32 %v4304, 0.01
      %v4433 = vmul.f32 %v4305, 0.01
      %v4434 = vmul.f32 %v4306, 0.01
      %v4435 = vmul.f32 %v4307, 0.01
      %v4436 = vmul.f32 %v4308, 0.01
      %v4437 = vmul.f32 %v4309, 0.01
      %v4438 = vmul.f32 %v4310, 0.01
      %v4439 = vmul.f32 %v4311, 0.01
      %v4440 = vmul.f32 %v4312, 0.01
      %v4441 = vmul.f32 %v4313, 0.01
      %v4442 = vmul.f32 %v4314, 0.01
      %v4443 = vmul.f32 %v4315, 0.01
      %v4444 = vmul.f32 %v4316, 0.01
      %v4445 = vmul.f32 %v4317, 0.01
      %v4446 = vmul.f32 %v4318, 0.01
      %v4447 = vmul.f32 %v4319, 0.01
      %v4448 = vmul.f32 %v4320, 0.01
      %v4449 = vmul.f32 %v4321, 0.01
      %v4450 = vmul.f32 %v4322, 0.01
      %v4451 = vmul.f32 %v4323, 0.01
      %v4452 = vmul.f32 %v4324, 0.01
      %v4453 = vmul.f32 %v4325, 0.01
      %v4454 = vmul.f32 %v4326, 0.01
      %v4455 = vmul.f32 %v4327, 0.01
      %v4456 = vmul.f32 %v4328, 0.01
      %v4457 = vmul.f32 %v4329, 0.01
      %v4458 = vmul.f32 %v4330, 0.01
      %v4459 = vmul.f32 %v4331, 0.01
      %v4460 = vmul.f32 %v4332, 0.01
      %v4461 = vmul.f32 %v4333, 0.01
      %v4462 = vsel %vm4334, %v4270, %v4398
      %v4463 = vsel %vm4335, %v4271, %v4399
      %v4464 = vsel %vm4336, %v4272, %v4400
      %v4465 = vsel %vm4337, %v4273, %v4401
      %v4466 = vsel %vm4338, %v4274, %v4402
      %v4467 = vsel %vm4339, %v4275, %v4403
      %v4468 = vsel %vm4340, %v4276, %v4404
      %v4469 = vsel %vm4341, %v4277, %v4405
      %v4470 = vsel %vm4342, %v4278, %v4406
      %v4471 = vsel %vm4343, %v4279, %v4407
      %v4472 = vsel %vm4344, %v4280, %v4408
      %v4473 = vsel %vm4345, %v4281, %v4409
      %v4474 = vsel %vm4346, %v4282, %v4410
      %v4475 = vsel %vm4347, %v4283, %v4411
      %v4476 = vsel %vm4348, %v4284, %v4412
      %v4477 = vsel %vm4349, %v4285, %v4413
      %v4478 = vsel %vm4350, %v4286, %v4414
      %v4479 = vsel %vm4351, %v4287, %v4415
      %v4480 = vsel %vm4352, %v4288, %v4416
      %v4481 = vsel %vm4353, %v4289, %v4417
      %v4482 = vsel %vm4354, %v4290, %v4418
      %v4483 = vsel %vm4355, %v4291, %v4419
      %v4484 = vsel %vm4356, %v4292, %v4420
      %v4485 = vsel %vm4357, %v4293, %v4421
      %v4486 = vsel %vm4358, %v4294, %v4422
      %v4487 = vsel %vm4359, %v4295, %v4423
      %v4488 = vsel %vm4360, %v4296, %v4424
      %v4489 = vsel %vm4361, %v4297, %v4425
      %v4490 = vsel %vm4362, %v4298, %v4426
      %v4491 = vsel %vm4363, %v4299, %v4427
      %v4492 = vsel %vm4364, %v4300, %v4428
      %v4493 = vsel %vm4365, %v4301, %v4429
      %v4494 = vsel %vm4366, %v4302, %v4430
      %v4495 = vsel %vm4367, %v4303, %v4431
      %v4496 = vsel %vm4368, %v4304, %v4432
      %v4497 = vsel %vm4369, %v4305, %v4433
      %v4498 = vsel %vm4370, %v4306, %v4434
      %v4499 = vsel %vm4371, %v4307, %v4435
      %v4500 = vsel %vm4372, %v4308, %v4436
      %v4501 = vsel %vm4373, %v4309, %v4437
      %v4502 = vsel %vm4374, %v4310, %v4438
      %v4503 = vsel %vm4375, %v4311, %v4439
      %v4504 = vsel %vm4376, %v4312, %v4440
      %v4505 = vsel %vm4377, %v4313, %v4441
      %v4506 = vsel %vm4378, %v4314, %v4442
      %v4507 = vsel %vm4379, %v4315, %v4443
      %v4508 = vsel %vm4380, %v4316, %v4444
      %v4509 = vsel %vm4381, %v4317, %v4445
      %v4510 = vsel %vm4382, %v4318, %v4446
      %v4511 = vsel %vm4383, %v4319, %v4447
      %v4512 = vsel %vm4384, %v4320, %v4448
      %v4513 = vsel %vm4385, %v4321, %v4449
      %v4514 = vsel %vm4386, %v4322, %v4450
      %v4515 = vsel %vm4387, %v4323, %v4451
      %v4516 = vsel %vm4388, %v4324, %v4452
      %v4517 = vsel %vm4389, %v4325, %v4453
      %v4518 = vsel %vm4390, %v4326, %v4454
      %v4519 = vsel %vm4391, %v4327, %v4455
      %v4520 = vsel %vm4392, %v4328, %v4456
      %v4521 = vsel %vm4393, %v4329, %v4457
      %v4522 = vsel %vm4394, %v4330, %v4458
      %v4523 = vsel %vm4395, %v4331, %v4459
      %v4524 = vsel %vm4396, %v4332, %v4460
      %v4525 = vsel %vm4397, %v4333, %v4461
      %v4526 = vpack.c.bf16 %v4464, %v4462
      %v4527 = vpack.c.bf16 %v4465, %v4463
      %v4528 = vpack.c.bf16 %v4468, %v4466
      %v4529 = vpack.c.bf16 %v4469, %v4467
      %v4530 = vpack.c.bf16 %v4472, %v4470
      %v4531 = vpack.c.bf16 %v4473, %v4471
      %v4532 = vpack.c.bf16 %v4476, %v4474
      %v4533 = vpack.c.bf16 %v4477, %v4475
      %v4534 = vpack.c.bf16 %v4480, %v4478
      %v4535 = vpack.c.bf16 %v4481, %v4479
      %v4536 = vpack.c.bf16 %v4484, %v4482
      %v4537 = vpack.c.bf16 %v4485, %v4483
      %v4538 = vpack.c.bf16 %v4488, %v4486
      %v4539 = vpack.c.bf16 %v4489, %v4487
      %v4540 = vpack.c.bf16 %v4492, %v4490
      %v4541 = vpack.c.bf16 %v4493, %v4491
      %v4542 = vpack.c.bf16 %v4496, %v4494
      %v4543 = vpack.c.bf16 %v4497, %v4495
      %v4544 = vpack.c.bf16 %v4500, %v4498
      %v4545 = vpack.c.bf16 %v4501, %v4499
      %v4546 = vpack.c.bf16 %v4504, %v4502
      %v4547 = vpack.c.bf16 %v4505, %v4503
      %v4548 = vpack.c.bf16 %v4508, %v4506
      %v4549 = vpack.c.bf16 %v4509, %v4507
      %v4550 = vpack.c.bf16 %v4512, %v4510
      %v4551 = vpack.c.bf16 %v4513, %v4511
      %v4552 = vpack.c.bf16 %v4516, %v4514
      %v4553 = vpack.c.bf16 %v4517, %v4515
      %v4554 = vpack.c.bf16 %v4520, %v4518
      %v4555 = vpack.c.bf16 %v4521, %v4519
      %v4556 = vpack.c.bf16 %v4524, %v4522
      %v4557 = vpack.c.bf16 %v4525, %v4523
      %v4558 = vld [vmem:[%s5] sm:$0xf]
      %v4559 = vld [vmem:[%s5 + $0x4] sm:$0xf]
      %v4560 = vld [vmem:[%s5 + $0x8] sm:$0xf]
      %v4561 = vld [vmem:[%s5 + $0xc] sm:$0xf]
      %v4562 = vld [vmem:[%s5 + $0x10] sm:$0xf]
      %v4563 = vld [vmem:[%s5 + $0x14] sm:$0xf]
      %v4564 = vld [vmem:[%s5 + $0x18] sm:$0xf]
      %v4565 = vld [vmem:[%s5 + $0x1c] sm:$0xf]
      %v4566 = vld [vmem:[%s5 + $0x20] sm:$0xf]
      %v4567 = vld [vmem:[%s5 + $0x24] sm:$0xf]
      %v4568 = vld [vmem:[%s5 + $0x28] sm:$0xf]
      %v4569 = vld [vmem:[%s5 + $0x2c] sm:$0xf]
      %v4570 = vld [vmem:[%s5 + $0x30] sm:$0xf]
      %v4571 = vld [vmem:[%s5 + $0x34] sm:$0xf]
      %v4572 = vld [vmem:[%s5 + $0x38] sm:$0xf]
      %v4573 = vld [vmem:[%s5 + $0x3c] sm:$0xf]
      %v4574 = vld [vmem:[%s5 + $0x40] sm:$0xf]
      %v4575 = vld [vmem:[%s5 + $0x44] sm:$0xf]
      %v4576 = vld [vmem:[%s5 + $0x48] sm:$0xf]
      %v4577 = vld [vmem:[%s5 + $0x4c] sm:$0xf]
      %v4578 = vld [vmem:[%s5 + $0x50] sm:$0xf]
      %v4579 = vld [vmem:[%s5 + $0x54] sm:$0xf]
      %v4580 = vld [vmem:[%s5 + $0x58] sm:$0xf]
      %v4581 = vld [vmem:[%s5 + $0x5c] sm:$0xf]
      %v4582 = vld [vmem:[%s5 + $0x60] sm:$0xf]
      %v4583 = vld [vmem:[%s5 + $0x64] sm:$0xf]
      %v4584 = vld [vmem:[%s5 + $0x68] sm:$0xf]
      %v4585 = vld [vmem:[%s5 + $0x6c] sm:$0xf]
      %v4586 = vld [vmem:[%s5 + $0x70] sm:$0xf]
      %v4587 = vld [vmem:[%s5 + $0x74] sm:$0xf]
      %v4588 = vld [vmem:[%s5 + $0x78] sm:$0xf]
      %v4589 = vld [vmem:[%s5 + $0x7c] sm:$0xf]
      %v4590 = vld [vmem:[%s6] sm:$0x1]
      %v4592 = vlaneseq
      %v4593 = vshrl.u32 %v4592, 7
      %v4594 = vsub.s32 0, %v4593
      %v4595 = vrot.slane %v4590, %v4594
      %v4629 = vunpack.c.l.b16 %v4558
      %v4630 = vunpack.c.l.b16 %v4559
      %v4631 = vunpack.c.l.b16 %v4560
      %v4632 = vunpack.c.l.b16 %v4561
      %v4633 = vunpack.c.l.b16 %v4562
      %v4634 = vunpack.c.l.b16 %v4563
      %v4635 = vunpack.c.l.b16 %v4564
      %v4636 = vunpack.c.l.b16 %v4565
      %v4637 = vunpack.c.l.b16 %v4566
      %v4638 = vunpack.c.l.b16 %v4567
      %v4639 = vunpack.c.l.b16 %v4568
      %v4640 = vunpack.c.l.b16 %v4569
      %v4641 = vunpack.c.l.b16 %v4570
      %v4642 = vunpack.c.l.b16 %v4571
      %v4643 = vunpack.c.l.b16 %v4572
      %v4644 = vunpack.c.l.b16 %v4573
      %v4645 = vunpack.c.l.b16 %v4574
      %v4646 = vunpack.c.l.b16 %v4575
      %v4647 = vunpack.c.l.b16 %v4576
      %v4648 = vunpack.c.l.b16 %v4577
      %v4649 = vunpack.c.l.b16 %v4578
      %v4650 = vunpack.c.l.b16 %v4579
      %v4651 = vunpack.c.l.b16 %v4580
      %v4652 = vunpack.c.l.b16 %v4581
      %v4653 = vunpack.c.l.b16 %v4582
      %v4654 = vunpack.c.l.b16 %v4583
      %v4655 = vunpack.c.l.b16 %v4584
      %v4656 = vunpack.c.l.b16 %v4585
      %v4657 = vunpack.c.l.b16 %v4586
      %v4658 = vunpack.c.l.b16 %v4587
      %v4659 = vunpack.c.l.b16 %v4588
      %v4660 = vunpack.c.l.b16 %v4589
      %v4661 = vpack.c.b16 %v4630, %v4629
      %v4662 = vpack.c.b16 %v4632, %v4631
      %v4663 = vpack.c.b16 %v4634, %v4633
      %v4664 = vpack.c.b16 %v4636, %v4635
      %v4665 = vpack.c.b16 %v4638, %v4637
      %v4666 = vpack.c.b16 %v4640, %v4639
      %v4667 = vpack.c.b16 %v4642, %v4641
      %v4668 = vpack.c.b16 %v4644, %v4643
      %v4669 = vpack.c.b16 %v4646, %v4645
      %v4670 = vpack.c.b16 %v4648, %v4647
      %v4671 = vpack.c.b16 %v4650, %v4649
      %v4672 = vpack.c.b16 %v4652, %v4651
      %v4673 = vpack.c.b16 %v4654, %v4653
      %v4674 = vpack.c.b16 %v4656, %v4655
      %v4675 = vpack.c.b16 %v4658, %v4657
      %v4676 = vpack.c.b16 %v4660, %v4659
      %4693 = vmatprep.subr.bf16.mxu0 0
      %4694 = vmatpush1.bf16.msra.mxu0 %v4661
      %4695 = vmatprep.subr.bf16.mxu0 0
      %4696 = vmatpush1.bf16.msra.mxu0 %v4662
      %4697 = vmatprep.subr.bf16.mxu0 0
      %4698 = vmatpush1.bf16.msra.mxu0 %v4663
      %4699 = vmatprep.subr.bf16.mxu0 0
      %4700 = vmatpush1.bf16.msra.mxu0 %v4664
      %4701 = vmatprep.subr.bf16.mxu0 0
      %4702 = vmatpush1.bf16.msra.mxu0 %v4665
      %4703 = vmatprep.subr.bf16.mxu0 0
      %4704 = vmatpush1.bf16.msra.mxu0 %v4666
      %4705 = vmatprep.subr.bf16.mxu0 0
      %4706 = vmatpush1.bf16.msra.mxu0 %v4667
      %4707 = vmatprep.subr.bf16.mxu0 0
      %4708 = vmatpush1.bf16.msra.mxu0 %v4668
      %4709 = vmatprep.subr.bf16.mxu0 0
      %4710 = vmatpush1.bf16.msra.mxu0 %v4669
      %4711 = vmatprep.subr.bf16.mxu0 0
      %4712 = vmatpush1.bf16.msra.mxu0 %v4670
      %4713 = vmatprep.subr.bf16.mxu0 0
      %4714 = vmatpush1.bf16.msra.mxu0 %v4671
      %4715 = vmatprep.subr.bf16.mxu0 0
      %4716 = vmatpush1.bf16.msra.mxu0 %v4672
      %4717 = vmatprep.subr.bf16.mxu0 0
      %4718 = vmatpush1.bf16.msra.mxu0 %v4673
      %4719 = vmatprep.subr.bf16.mxu0 0
      %4720 = vmatpush1.bf16.msra.mxu0 %v4674
      %4721 = vmatprep.subr.bf16.mxu0 0
      %4722 = vmatpush1.bf16.msra.mxu0 %v4675
      %4723 = vmatprep.subr.bf16.mxu0 0
      %4724 = vmatpush1.bf16.msra.mxu0 %v4676
      %4725 = vmatprep.mubr.bf16.mxu0 %v4527
      %4726 = vmatmul.mubr.bf16.gmra.mrb[0].mxu0 %v4526
      %v4727 = vpop.f32.mrb[0].mxu0
      %v4728 = vadd.f32 %v4595, %v4727
      %v4729 = vpop.f32.mrb[0].mxu0
      %v4730 = vpop.f32.mrb[0].mxu0
      %v4731 = vadd.f32 %v4595, %v4730
      %v4732 = vpop.f32.mrb[0].mxu0
      %4733 = vmatprep.mubr.bf16.mxu0 %v4529
      %4734 = vmatmul.mubr.bf16.gmra.mrb[0].mxu0 %v4528
      %v4735 = vpop.f32.mrb[0].mxu0
      %v4736 = vadd.f32 %v4595, %v4735
      %v4737 = vpop.f32.mrb[0].mxu0
      %v4738 = vpop.f32.mrb[0].mxu0
      %v4739 = vadd.f32 %v4595, %v4738
      %v4740 = vpop.f32.mrb[0].mxu0
      %4741 = vmatprep.mubr.bf16.mxu0 %v4531
      %4742 = vmatmul.mubr.bf16.gmra.mrb[0].mxu0 %v4530
      %v4743 = vpop.f32.mrb[0].mxu0
      %v4744 = vadd.f32 %v4595, %v4743
      %v4745 = vpop.f32.mrb[0].mxu0
      %v4746 = vpop.f32.mrb[0].mxu0
      %v4747 = vadd.f32 %v4595, %v4746
      %v4748 = vpop.f32.mrb[0].mxu0
      %4749 = vmatprep.mubr.bf16.mxu0 %v4533
      %4750 = vmatmul.mubr.bf16.gmra.mrb[0].mxu0 %v4532
      %v4751 = vpop.f32.mrb[0].mxu0
      %v4752 = vadd.f32 %v4595, %v4751
      %v4753 = vpop.f32.mrb[0].mxu0
      %v4754 = vpop.f32.mrb[0].mxu0
      %v4755 = vadd.f32 %v4595, %v4754
      %v4756 = vpop.f32.mrb[0].mxu0
      %4757 = vmatprep.mubr.bf16.mxu0 %v4535
      %4758 = vmatmul.mubr.bf16.gmra.mrb[0].mxu0 %v4534
      %v4759 = vpop.f32.mrb[0].mxu0
      %v4760 = vadd.f32 %v4595, %v4759
      %v4761 = vpop.f32.mrb[0].mxu0
      %v4762 = vpop.f32.mrb[0].mxu0
      %v4763 = vadd.f32 %v4595, %v4762
      %v4764 = vpop.f32.mrb[0].mxu0
      %4765 = vmatprep.mubr.bf16.mxu0 %v4537
      %4766 = vmatmul.mubr.bf16.gmra.mrb[0].mxu0 %v4536
      %v4767 = vpop.f32.mrb[0].mxu0
      %v4768 = vadd.f32 %v4595, %v4767
      %v4769 = vpop.f32.mrb[0].mxu0
      %v4770 = vpop.f32.mrb[0].mxu0
      %v4771 = vadd.f32 %v4595, %v4770
      %v4772 = vpop.f32.mrb[0].mxu0
      %4773 = vmatprep.mubr.bf16.mxu0 %v4539
      %4774 = vmatmul.mubr.bf16.gmra.mrb[0].mxu0 %v4538
      %v4775 = vpop.f32.mrb[0].mxu0
      %v4776 = vadd.f32 %v4595, %v4775
      %v4777 = vpop.f32.mrb[0].mxu0
      %v4778 = vpop.f32.mrb[0].mxu0
      %v4779 = vadd.f32 %v4595, %v4778
      %v4780 = vpop.f32.mrb[0].mxu0
      %4781 = vmatprep.mubr.bf16.mxu0 %v4541
      %4782 = vmatmul.mubr.bf16.gmra.mrb[0].mxu0 %v4540
      %v4783 = vpop.f32.mrb[0].mxu0
      %v4784 = vadd.f32 %v4595, %v4783
      %v4785 = vpop.f32.mrb[0].mxu0
      %v4786 = vpop.f32.mrb[0].mxu0
      %v4787 = vadd.f32 %v4595, %v4786
      %v4788 = vpop.f32.mrb[0].mxu0
      %4789 = vmatprep.mubr.bf16.mxu0 %v4543
      %4790 = vmatmul.mubr.bf16.gmra.mrb[0].mxu0 %v4542
      %v4791 = vpop.f32.mrb[0].mxu0
      %v4792 = vadd.f32 %v4595, %v4791
      %v4793 = vpop.f32.mrb[0].mxu0
      %v4794 = vpop.f32.mrb[0].mxu0
      %v4795 = vadd.f32 %v4595, %v4794
      %v4796 = vpop.f32.mrb[0].mxu0
      %4797 = vmatprep.mubr.bf16.mxu0 %v4545
      %4798 = vmatmul.mubr.bf16.gmra.mrb[0].mxu0 %v4544
      %v4799 = vpop.f32.mrb[0].mxu0
      %v4800 = vadd.f32 %v4595, %v4799
      %v4801 = vpop.f32.mrb[0].mxu0
      %v4802 = vpop.f32.mrb[0].mxu0
      %v4803 = vadd.f32 %v4595, %v4802
      %v4804 = vpop.f32.mrb[0].mxu0
      %4805 = vmatprep.mubr.bf16.mxu0 %v4547
      %4806 = vmatmul.mubr.bf16.gmra.mrb[0].mxu0 %v4546
      %v4807 = vpop.f32.mrb[0].mxu0
      %v4808 = vadd.f32 %v4595, %v4807
      %v4809 = vpop.f32.mrb[0].mxu0
      %v4810 = vpop.f32.mrb[0].mxu0
      %v4811 = vadd.f32 %v4595, %v4810
      %v4812 = vpop.f32.mrb[0].mxu0
      %4813 = vmatprep.mubr.bf16.mxu0 %v4549
      %4814 = vmatmul.mubr.bf16.gmra.mrb[0].mxu0 %v4548
      %v4815 = vpop.f32.mrb[0].mxu0
      %v4816 = vadd.f32 %v4595, %v4815
      %v4817 = vpop.f32.mrb[0].mxu0
      %v4818 = vpop.f32.mrb[0].mxu0
      %v4819 = vadd.f32 %v4595, %v4818
      %v4820 = vpop.f32.mrb[0].mxu0
      %4821 = vmatprep.mubr.bf16.mxu0 %v4551
      %4822 = vmatmul.mubr.bf16.gmra.mrb[0].mxu0 %v4550
      %v4823 = vpop.f32.mrb[0].mxu0
      %v4824 = vadd.f32 %v4595, %v4823
      %v4825 = vpop.f32.mrb[0].mxu0
      %v4826 = vpop.f32.mrb[0].mxu0
      %v4827 = vadd.f32 %v4595, %v4826
      %v4828 = vpop.f32.mrb[0].mxu0
      %4829 = vmatprep.mubr.bf16.mxu0 %v4553
      %4830 = vmatmul.mubr.bf16.gmra.mrb[0].mxu0 %v4552
      %v4831 = vpop.f32.mrb[0].mxu0
      %v4832 = vadd.f32 %v4595, %v4831
      %v4833 = vpop.f32.mrb[0].mxu0
      %v4834 = vpop.f32.mrb[0].mxu0
      %v4835 = vadd.f32 %v4595, %v4834
      %v4836 = vpop.f32.mrb[0].mxu0
      %4837 = vmatprep.mubr.bf16.mxu0 %v4555
      %4838 = vmatmul.mubr.bf16.gmra.mrb[0].mxu0 %v4554
      %v4839 = vpop.f32.mrb[0].mxu0
      %v4840 = vadd.f32 %v4595, %v4839
      %v4841 = vpop.f32.mrb[0].mxu0
      %v4842 = vpop.f32.mrb[0].mxu0
      %v4843 = vadd.f32 %v4595, %v4842
      %v4844 = vpop.f32.mrb[0].mxu0
      %4845 = vmatprep.mubr.bf16.mxu0 %v4557
      %4846 = vmatmul.mubr.bf16.gmra.mrb[0].mxu0 %v4556
      %v4847 = vpop.f32.mrb[0].mxu0
      %v4848 = vadd.f32 %v4595, %v4847
      %v4849 = vpop.f32.mrb[0].mxu0
      %v4850 = vpop.f32.mrb[0].mxu0
      %v4851 = vadd.f32 %v4595, %v4850
      %v4852 = vpop.f32.mrb[0].mxu0
      %4853 = vdwg.mxu0
      %vm4854 = vcmp.ge.f32.partialorder %v4728, 0.0
      %vm4855 = vcmp.ge.f32.partialorder %v4731, 0.0
      %vm4856 = vcmp.ge.f32.partialorder %v4736, 0.0
      %vm4857 = vcmp.ge.f32.partialorder %v4739, 0.0
      %vm4858 = vcmp.ge.f32.partialorder %v4744, 0.0
      %vm4859 = vcmp.ge.f32.partialorder %v4747, 0.0
      %vm4860 = vcmp.ge.f32.partialorder %v4752, 0.0
      %vm4861 = vcmp.ge.f32.partialorder %v4755, 0.0
      %vm4862 = vcmp.ge.f32.partialorder %v4760, 0.0
      %vm4863 = vcmp.ge.f32.partialorder %v4763, 0.0
      %vm4864 = vcmp.ge.f32.partialorder %v4768, 0.0
      %vm4865 = vcmp.ge.f32.partialorder %v4771, 0.0
      %vm4866 = vcmp.ge.f32.partialorder %v4776, 0.0
      %vm4867 = vcmp.ge.f32.partialorder %v4779, 0.0
      %vm4868 = vcmp.ge.f32.partialorder %v4784, 0.0
      %vm4869 = vcmp.ge.f32.partialorder %v4787, 0.0
      %vm4870 = vcmp.ge.f32.partialorder %v4792, 0.0
      %vm4871 = vcmp.ge.f32.partialorder %v4795, 0.0
      %vm4872 = vcmp.ge.f32.partialorder %v4800, 0.0
      %vm4873 = vcmp.ge.f32.partialorder %v4803, 0.0
      %vm4874 = vcmp.ge.f32.partialorder %v4808, 0.0
      %vm4875 = vcmp.ge.f32.partialorder %v4811, 0.0
      %vm4876 = vcmp.ge.f32.partialorder %v4816, 0.0
      %vm4877 = vcmp.ge.f32.partialorder %v4819, 0.0
      %vm4878 = vcmp.ge.f32.partialorder %v4824, 0.0
      %vm4879 = vcmp.ge.f32.partialorder %v4827, 0.0
      %vm4880 = vcmp.ge.f32.partialorder %v4832, 0.0
      %vm4881 = vcmp.ge.f32.partialorder %v4835, 0.0
      %vm4882 = vcmp.ge.f32.partialorder %v4840, 0.0
      %vm4883 = vcmp.ge.f32.partialorder %v4843, 0.0
      %vm4884 = vcmp.ge.f32.partialorder %v4848, 0.0
      %vm4885 = vcmp.ge.f32.partialorder %v4851, 0.0
      %v4886 = vmul.f32 %v4728, 0.01
      %v4887 = vmul.f32 %v4731, 0.01
      %v4888 = vmul.f32 %v4736, 0.01
      %v4889 = vmul.f32 %v4739, 0.01
      %v4890 = vmul.f32 %v4744, 0.01
      %v4891 = vmul.f32 %v4747, 0.01
      %v4892 = vmul.f32 %v4752, 0.01
      %v4893 = vmul.f32 %v4755, 0.01
      %v4894 = vmul.f32 %v4760, 0.01
      %v4895 = vmul.f32 %v4763, 0.01
      %v4896 = vmul.f32 %v4768, 0.01
      %v4897 = vmul.f32 %v4771, 0.01
      %v4898 = vmul.f32 %v4776, 0.01
      %v4899 = vmul.f32 %v4779, 0.01
      %v4900 = vmul.f32 %v4784, 0.01
      %v4901 = vmul.f32 %v4787, 0.01
      %v4902 = vmul.f32 %v4792, 0.01
      %v4903 = vmul.f32 %v4795, 0.01
      %v4904 = vmul.f32 %v4800, 0.01
      %v4905 = vmul.f32 %v4803, 0.01
      %v4906 = vmul.f32 %v4808, 0.01
      %v4907 = vmul.f32 %v4811, 0.01
      %v4908 = vmul.f32 %v4816, 0.01
      %v4909 = vmul.f32 %v4819, 0.01
      %v4910 = vmul.f32 %v4824, 0.01
      %v4911 = vmul.f32 %v4827, 0.01
      %v4912 = vmul.f32 %v4832, 0.01
      %v4913 = vmul.f32 %v4835, 0.01
      %v4914 = vmul.f32 %v4840, 0.01
      %v4915 = vmul.f32 %v4843, 0.01
      %v4916 = vmul.f32 %v4848, 0.01
      %v4917 = vmul.f32 %v4851, 0.01
      %v4918 = vsel %vm4854, %v4728, %v4886
      %v4919 = vsel %vm4855, %v4731, %v4887
      %v4920 = vsel %vm4856, %v4736, %v4888
      %v4921 = vsel %vm4857, %v4739, %v4889
      %v4922 = vsel %vm4858, %v4744, %v4890
      %v4923 = vsel %vm4859, %v4747, %v4891
      %v4924 = vsel %vm4860, %v4752, %v4892
      %v4925 = vsel %vm4861, %v4755, %v4893
      %v4926 = vsel %vm4862, %v4760, %v4894
      %v4927 = vsel %vm4863, %v4763, %v4895
      %v4928 = vsel %vm4864, %v4768, %v4896
      %v4929 = vsel %vm4865, %v4771, %v4897
      %v4930 = vsel %vm4866, %v4776, %v4898
      %v4931 = vsel %vm4867, %v4779, %v4899
      %v4932 = vsel %vm4868, %v4784, %v4900
      %v4933 = vsel %vm4869, %v4787, %v4901
      %v4934 = vsel %vm4870, %v4792, %v4902
      %v4935 = vsel %vm4871, %v4795, %v4903
      %v4936 = vsel %vm4872, %v4800, %v4904
      %v4937 = vsel %vm4873, %v4803, %v4905
      %v4938 = vsel %vm4874, %v4808, %v4906
      %v4939 = vsel %vm4875, %v4811, %v4907
      %v4940 = vsel %vm4876, %v4816, %v4908
      %v4941 = vsel %vm4877, %v4819, %v4909
      %v4942 = vsel %vm4878, %v4824, %v4910
      %v4943 = vsel %vm4879, %v4827, %v4911
      %v4944 = vsel %vm4880, %v4832, %v4912
      %v4945 = vsel %vm4881, %v4835, %v4913
      %v4946 = vsel %vm4882, %v4840, %v4914
      %v4947 = vsel %vm4883, %v4843, %v4915
      %v4948 = vsel %vm4884, %v4848, %v4916
      %v4949 = vsel %vm4885, %v4851, %v4917
      %v4950 = vpack.c.bf16 %v4919, %v4918
      %v4951 = vpack.c.bf16 %v4921, %v4920
      %v4952 = vpack.c.bf16 %v4923, %v4922
      %v4953 = vpack.c.bf16 %v4925, %v4924
      %v4954 = vpack.c.bf16 %v4927, %v4926
      %v4955 = vpack.c.bf16 %v4929, %v4928
      %v4956 = vpack.c.bf16 %v4931, %v4930
      %v4957 = vpack.c.bf16 %v4933, %v4932
      %v4958 = vpack.c.bf16 %v4935, %v4934
      %v4959 = vpack.c.bf16 %v4937, %v4936
      %v4960 = vpack.c.bf16 %v4939, %v4938
      %v4961 = vpack.c.bf16 %v4941, %v4940
      %v4962 = vpack.c.bf16 %v4943, %v4942
      %v4963 = vpack.c.bf16 %v4945, %v4944
      %v4964 = vpack.c.bf16 %v4947, %v4946
      %v4965 = vpack.c.bf16 %v4949, %v4948
      %v4982 = vunpack.c.l.b16 %v4950
      %v4983 = vunpack.c.h.b16 %v4950
      %v4984 = vunpack.c.l.b16 %v4951
      %v4985 = vunpack.c.h.b16 %v4951
      %v4986 = vunpack.c.l.b16 %v4952
      %v4987 = vunpack.c.h.b16 %v4952
      %v4988 = vunpack.c.l.b16 %v4953
      %v4989 = vunpack.c.h.b16 %v4953
      %v4990 = vunpack.c.l.b16 %v4954
      %v4991 = vunpack.c.h.b16 %v4954
      %v4992 = vunpack.c.l.b16 %v4955
      %v4993 = vunpack.c.h.b16 %v4955
      %v4994 = vunpack.c.l.b16 %v4956
      %v4995 = vunpack.c.h.b16 %v4956
      %v4996 = vunpack.c.l.b16 %v4957
      %v4997 = vunpack.c.h.b16 %v4957
      %v4998 = vunpack.c.l.b16 %v4958
      %v4999 = vunpack.c.h.b16 %v4958
      %v5000 = vunpack.c.l.b16 %v4959
      %v5001 = vunpack.c.h.b16 %v4959
      %v5002 = vunpack.c.l.b16 %v4960
      %v5003 = vunpack.c.h.b16 %v4960
      %v5004 = vunpack.c.l.b16 %v4961
      %v5005 = vunpack.c.h.b16 %v4961
      %v5006 = vunpack.c.l.b16 %v4962
      %v5007 = vunpack.c.h.b16 %v4962
      %v5008 = vunpack.c.l.b16 %v4963
      %v5009 = vunpack.c.h.b16 %v4963
      %v5010 = vunpack.c.l.b16 %v4964
      %v5011 = vunpack.c.h.b16 %v4964
      %v5012 = vunpack.c.l.b16 %v4965
      %v5013 = vunpack.c.h.b16 %v4965
      %v5014 = vpack.c.b16 %v4982, %v4982
      %v5015 = vpack.c.b16 %v4983, %v4983
      %v5016 = vpack.c.b16 %v4984, %v4984
      %v5017 = vpack.c.b16 %v4985, %v4985
      %v5018 = vpack.c.b16 %v4986, %v4986
      %v5019 = vpack.c.b16 %v4987, %v4987
      %v5020 = vpack.c.b16 %v4988, %v4988
      %v5021 = vpack.c.b16 %v4989, %v4989
      %v5022 = vpack.c.b16 %v4990, %v4990
      %v5023 = vpack.c.b16 %v4991, %v4991
      %v5024 = vpack.c.b16 %v4992, %v4992
      %v5025 = vpack.c.b16 %v4993, %v4993
      %v5026 = vpack.c.b16 %v4994, %v4994
      %v5027 = vpack.c.b16 %v4995, %v4995
      %v5028 = vpack.c.b16 %v4996, %v4996
      %v5029 = vpack.c.b16 %v4997, %v4997
      %v5030 = vpack.c.b16 %v4998, %v4998
      %v5031 = vpack.c.b16 %v4999, %v4999
      %v5032 = vpack.c.b16 %v5000, %v5000
      %v5033 = vpack.c.b16 %v5001, %v5001
      %v5034 = vpack.c.b16 %v5002, %v5002
      %v5035 = vpack.c.b16 %v5003, %v5003
      %v5036 = vpack.c.b16 %v5004, %v5004
      %v5037 = vpack.c.b16 %v5005, %v5005
      %v5038 = vpack.c.b16 %v5006, %v5006
      %v5039 = vpack.c.b16 %v5007, %v5007
      %v5040 = vpack.c.b16 %v5008, %v5008
      %v5041 = vpack.c.b16 %v5009, %v5009
      %v5042 = vpack.c.b16 %v5010, %v5010
      %v5043 = vpack.c.b16 %v5011, %v5011
      %v5044 = vpack.c.b16 %v5012, %v5012
      %v5045 = vpack.c.b16 %v5013, %v5013
      %5078 = vst [vmem:[%s280] sm:$0xf] %v5014
      %5079 = vst [vmem:[%s280 + $0x4] sm:$0xf] %v5015
      %5080 = vst [vmem:[%s280 + $0x8] sm:$0xf] %v5016
      %5081 = vst [vmem:[%s280 + $0xc] sm:$0xf] %v5017
      %5082 = vst [vmem:[%s280 + $0x10] sm:$0xf] %v5018
      %5083 = vst [vmem:[%s280 + $0x14] sm:$0xf] %v5019
      %5084 = vst [vmem:[%s280 + $0x18] sm:$0xf] %v5020
      %5085 = vst [vmem:[%s280 + $0x1c] sm:$0xf] %v5021
      %5086 = vst [vmem:[%s280 + $0x20] sm:$0xf] %v5022
      %5087 = vst [vmem:[%s280 + $0x24] sm:$0xf] %v5023
      %5088 = vst [vmem:[%s280 + $0x28] sm:$0xf] %v5024
      %5089 = vst [vmem:[%s280 + $0x2c] sm:$0xf] %v5025
      %5090 = vst [vmem:[%s280 + $0x30] sm:$0xf] %v5026
      %5091 = vst [vmem:[%s280 + $0x34] sm:$0xf] %v5027
      %5092 = vst [vmem:[%s280 + $0x38] sm:$0xf] %v5028
      %5093 = vst [vmem:[%s280 + $0x3c] sm:$0xf] %v5029
      %5094 = vst [vmem:[%s280 + $0x40] sm:$0xf] %v5030
      %5095 = vst [vmem:[%s280 + $0x44] sm:$0xf] %v5031
      %5096 = vst [vmem:[%s280 + $0x48] sm:$0xf] %v5032
      %5097 = vst [vmem:[%s280 + $0x4c] sm:$0xf] %v5033
      %5098 = vst [vmem:[%s280 + $0x50] sm:$0xf] %v5034
      %5099 = vst [vmem:[%s280 + $0x54] sm:$0xf] %v5035
      %5100 = vst [vmem:[%s280 + $0x58] sm:$0xf] %v5036
      %5101 = vst [vmem:[%s280 + $0x5c] sm:$0xf] %v5037
      %5102 = vst [vmem:[%s280 + $0x60] sm:$0xf] %v5038
      %5103 = vst [vmem:[%s280 + $0x64] sm:$0xf] %v5039
      %5104 = vst [vmem:[%s280 + $0x68] sm:$0xf] %v5040
      %5105 = vst [vmem:[%s280 + $0x6c] sm:$0xf] %v5041
      %5106 = vst [vmem:[%s280 + $0x70] sm:$0xf] %v5042
      %5107 = vst [vmem:[%s280 + $0x74] sm:$0xf] %v5043
      %5108 = vst [vmem:[%s280 + $0x78] sm:$0xf] %v5044
      %5109 = vst [vmem:[%s280 + $0x7c] sm:$0xf] %v5045
      %vm5110 = vcmask 1044484
      %vm5111 = vmor %vm291, %vm5110
      %v5112 = vrot.slane %v5014, 7
      %v5113 = vrot.slane %v5112, 4
      %v5114 = vrot.slane %v5015, 7
      %v5115 = vsel %vm5111, %v5113, %v5114
      %v5116 = vrot.slane %v5114, 4
      %v5117 = vrot.slane %v5016, 7
      %v5118 = vrot.slane %v5117, 4
      %v5119 = vrot.slane %v5017, 7
      %v5120 = vsel %vm5111, %v5118, %v5119
      %v5121 = vrot.slane %v5119, 4
      %v5122 = vrot.slane %v5018, 7
      %v5123 = vrot.slane %v5122, 4
      %v5124 = vrot.slane %v5019, 7
      %v5125 = vsel %vm5111, %v5123, %v5124
      %v5126 = vrot.slane %v5124, 4
      %v5127 = vrot.slane %v5020, 7
      %v5128 = vrot.slane %v5127, 4
      %v5129 = vrot.slane %v5021, 7
      %v5130 = vsel %vm5111, %v5128, %v5129
      %v5131 = vrot.slane %v5129, 4
      %v5132 = vrot.slane %v5022, 7
      %v5133 = vrot.slane %v5132, 4
      %v5134 = vrot.slane %v5023, 7
      %v5135 = vsel %vm5111, %v5133, %v5134
      %v5136 = vrot.slane %v5134, 4
      %v5137 = vrot.slane %v5024, 7
      %v5138 = vrot.slane %v5137, 4
      %v5139 = vrot.slane %v5025, 7
      %v5140 = vsel %vm5111, %v5138, %v5139
      %v5141 = vrot.slane %v5139, 4
      %v5142 = vrot.slane %v5026, 7
      %v5143 = vrot.slane %v5142, 4
      %v5144 = vrot.slane %v5027, 7
      %v5145 = vsel %vm5111, %v5143, %v5144
      %v5146 = vrot.slane %v5144, 4
      %v5147 = vrot.slane %v5028, 7
      %v5148 = vrot.slane %v5147, 4
      %v5149 = vrot.slane %v5029, 7
      %v5150 = vsel %vm5111, %v5148, %v5149
      %v5151 = vrot.slane %v5149, 4
      %v5152 = vrot.slane %v5030, 7
      %v5153 = vrot.slane %v5152, 4
      %v5154 = vrot.slane %v5031, 7
      %v5155 = vsel %vm5111, %v5153, %v5154
      %v5156 = vrot.slane %v5154, 4
      %v5157 = vrot.slane %v5032, 7
      %v5158 = vrot.slane %v5157, 4
      %v5159 = vrot.slane %v5033, 7
      %v5160 = vsel %vm5111, %v5158, %v5159
      %v5161 = vrot.slane %v5159, 4
      %v5162 = vrot.slane %v5034, 7
      %v5163 = vrot.slane %v5162, 4
      %v5164 = vrot.slane %v5035, 7
      %v5165 = vsel %vm5111, %v5163, %v5164
      %v5166 = vrot.slane %v5164, 4
      %v5167 = vrot.slane %v5036, 7
      %v5168 = vrot.slane %v5167, 4
      %v5169 = vrot.slane %v5037, 7
      %v5170 = vsel %vm5111, %v5168, %v5169
      %v5171 = vrot.slane %v5169, 4
      %v5172 = vrot.slane %v5038, 7
      %v5173 = vrot.slane %v5172, 4
      %v5174 = vrot.slane %v5039, 7
      %v5175 = vsel %vm5111, %v5173, %v5174
      %v5176 = vrot.slane %v5174, 4
      %v5177 = vrot.slane %v5040, 7
      %v5178 = vrot.slane %v5177, 4
      %v5179 = vrot.slane %v5041, 7
      %v5180 = vsel %vm5111, %v5178, %v5179
      %v5181 = vrot.slane %v5179, 4
      %v5182 = vrot.slane %v5042, 7
      %v5183 = vrot.slane %v5182, 4
      %v5184 = vrot.slane %v5043, 7
      %v5185 = vsel %vm5111, %v5183, %v5184
      %v5186 = vrot.slane %v5184, 4
      %v5187 = vrot.slane %v5044, 7
      %v5188 = vrot.slane %v5187, 4
      %v5189 = vrot.slane %v5045, 7
      %v5190 = vsel %vm5111, %v5188, %v5189
      %v5191 = vrot.slane %v5189, 4
      %s5240 = scalar_lea.vmem [#allocation3], 24
      %5241 = vst [vmem:[%s5240] sm:$0xe] %v5112
      %5242 = vst [vmem:[%s5240 + $0x4] sm:$0xf] %v5115
      %5243 = vst [vmem:[%s5240 + $0x8] sm:$0x1] %v5116
      %5244 = vst [vmem:[%s5240 + $0xc] sm:$0xe] %v5117
      %5245 = vst [vmem:[%s5240 + $0x10] sm:$0xf] %v5120
      %5246 = vst [vmem:[%s5240 + $0x14] sm:$0x1] %v5121
      %5247 = vst [vmem:[%s5240 + $0x18] sm:$0xe] %v5122
      %5248 = vst [vmem:[%s5240 + $0x1c] sm:$0xf] %v5125
      %5249 = vst [vmem:[%s5240 + $0x20] sm:$0x1] %v5126
      %5250 = vst [vmem:[%s5240 + $0x24] sm:$0xe] %v5127
      %5251 = vst [vmem:[%s5240 + $0x28] sm:$0xf] %v5130
      %5252 = vst [vmem:[%s5240 + $0x2c] sm:$0x1] %v5131
      %5253 = vst [vmem:[%s5240 + $0x30] sm:$0xe] %v5132
      %5254 = vst [vmem:[%s5240 + $0x34] sm:$0xf] %v5135
      %5255 = vst [vmem:[%s5240 + $0x38] sm:$0x1] %v5136
      %5256 = vst [vmem:[%s5240 + $0x3c] sm:$0xe] %v5137
      %5257 = vst [vmem:[%s5240 + $0x40] sm:$0xf] %v5140
      %5258 = vst [vmem:[%s5240 + $0x44] sm:$0x1] %v5141
      %5259 = vst [vmem:[%s5240 + $0x48] sm:$0xe] %v5142
      %5260 = vst [vmem:[%s5240 + $0x4c] sm:$0xf] %v5145
      %5261 = vst [vmem:[%s5240 + $0x50] sm:$0x1] %v5146
      %5262 = vst [vmem:[%s5240 + $0x54] sm:$0xe] %v5147
      %5263 = vst [vmem:[%s5240 + $0x58] sm:$0xf] %v5150
      %5264 = vst [vmem:[%s5240 + $0x5c] sm:$0x1] %v5151
      %5265 = vst [vmem:[%s5240 + $0x60] sm:$0xe] %v5152
      %5266 = vst [vmem:[%s5240 + $0x64] sm:$0xf] %v5155
      %5267 = vst [vmem:[%s5240 + $0x68] sm:$0x1] %v5156
      %5268 = vst [vmem:[%s5240 + $0x6c] sm:$0xe] %v5157
      %5269 = vst [vmem:[%s5240 + $0x70] sm:$0xf] %v5160
      %5270 = vst [vmem:[%s5240 + $0x74] sm:$0x1] %v5161
      %5271 = vst [vmem:[%s5240 + $0x78] sm:$0xe] %v5162
      %5272 = vst [vmem:[%s5240 + $0x7c] sm:$0xf] %v5165
      %5273 = vst [vmem:[%s5240 + $0x80] sm:$0x1] %v5166
      %5274 = vst [vmem:[%s5240 + $0x84] sm:$0xe] %v5167
      %5275 = vst [vmem:[%s5240 + $0x88] sm:$0xf] %v5170
      %5276 = vst [vmem:[%s5240 + $0x8c] sm:$0x1] %v5171
      %5277 = vst [vmem:[%s5240 + $0x90] sm:$0xe] %v5172
      %5278 = vst [vmem:[%s5240 + $0x94] sm:$0xf] %v5175
      %5279 = vst [vmem:[%s5240 + $0x98] sm:$0x1] %v5176
      %5280 = vst [vmem:[%s5240 + $0x9c] sm:$0xe] %v5177
      %5281 = vst [vmem:[%s5240 + $0xa0] sm:$0xf] %v5180
      %5282 = vst [vmem:[%s5240 + $0xa4] sm:$0x1] %v5181
      %5283 = vst [vmem:[%s5240 + $0xa8] sm:$0xe] %v5182
      %5284 = vst [vmem:[%s5240 + $0xac] sm:$0xf] %v5185
      %5285 = vst [vmem:[%s5240 + $0xb0] sm:$0x1] %v5186
      %5286 = vst [vmem:[%s5240 + $0xb4] sm:$0xe] %v5187
      %5287 = vst [vmem:[%s5240 + $0xb8] sm:$0xf] %v5190
      %5288 = vst [vmem:[%s5240 + $0xbc] sm:$0x1] %v5191
      %v5289 = vld [vmem:[#allocation3] sm:$0xf]
      %v5290 = vld [vmem:[#allocation3 + $0x4] sm:$0xf]
      %v5291 = vld [vmem:[#allocation3 + $0x8] sm:$0x3]
      %v5292 = vld [vmem:[#allocation3 + $0xc] sm:$0xf]
      %v5293 = vld [vmem:[#allocation3 + $0x10] sm:$0xf]
      %v5294 = vld [vmem:[#allocation3 + $0x14] sm:$0x3]
      %v5295 = vld [vmem:[#allocation3 + $0x18] sm:$0xf]
      %v5296 = vld [vmem:[#allocation3 + $0x1c] sm:$0xf]
      %v5297 = vld [vmem:[#allocation3 + $0x20] sm:$0x3]
      %v5298 = vld [vmem:[#allocation3 + $0x24] sm:$0xf]
      %v5299 = vld [vmem:[#allocation3 + $0x28] sm:$0xf]
      %v5300 = vld [vmem:[#allocation3 + $0x2c] sm:$0x3]
      %v5301 = vld [vmem:[#allocation3 + $0x30] sm:$0xf]
      %v5302 = vld [vmem:[#allocation3 + $0x34] sm:$0xf]
      %v5303 = vld [vmem:[#allocation3 + $0x38] sm:$0x3]
      %v5304 = vld [vmem:[#allocation3 + $0x3c] sm:$0xf]
      %v5305 = vld [vmem:[#allocation3 + $0x40] sm:$0xf]
      %v5306 = vld [vmem:[#allocation3 + $0x44] sm:$0x3]
      %v5307 = vld [vmem:[#allocation3 + $0x48] sm:$0xf]
      %v5308 = vld [vmem:[#allocation3 + $0x4c] sm:$0xf]
      %v5309 = vld [vmem:[#allocation3 + $0x50] sm:$0x3]
      %v5310 = vld [vmem:[#allocation3 + $0x54] sm:$0xf]
      %v5311 = vld [vmem:[#allocation3 + $0x58] sm:$0xf]
      %v5312 = vld [vmem:[#allocation3 + $0x5c] sm:$0x3]
      %v5313 = vld [vmem:[#allocation3 + $0x60] sm:$0xf]
      %v5314 = vld [vmem:[#allocation3 + $0x64] sm:$0xf]
      %v5315 = vld [vmem:[#allocation3 + $0x68] sm:$0x3]
      %v5316 = vld [vmem:[#allocation3 + $0x6c] sm:$0xf]
      %v5317 = vld [vmem:[#allocation3 + $0x70] sm:$0xf]
      %v5318 = vld [vmem:[#allocation3 + $0x74] sm:$0x3]
      %v5319 = vld [vmem:[#allocation3 + $0x78] sm:$0xf]
      %v5320 = vld [vmem:[#allocation3 + $0x7c] sm:$0xf]
      %v5321 = vld [vmem:[#allocation3 + $0x80] sm:$0x3]
      %v5322 = vld [vmem:[#allocation3 + $0x84] sm:$0xf]
      %v5323 = vld [vmem:[#allocation3 + $0x88] sm:$0xf]
      %v5324 = vld [vmem:[#allocation3 + $0x8c] sm:$0x3]
      %v5325 = vld [vmem:[#allocation3 + $0x90] sm:$0xf]
      %v5326 = vld [vmem:[#allocation3 + $0x94] sm:$0xf]
      %v5327 = vld [vmem:[#allocation3 + $0x98] sm:$0x3]
      %v5328 = vld [vmem:[#allocation3 + $0x9c] sm:$0xf]
      %v5329 = vld [vmem:[#allocation3 + $0xa0] sm:$0xf]
      %v5330 = vld [vmem:[#allocation3 + $0xa4] sm:$0x3]
      %v5331 = vld [vmem:[#allocation3 + $0xa8] sm:$0xf]
      %v5332 = vld [vmem:[#allocation3 + $0xac] sm:$0xf]
      %v5333 = vld [vmem:[#allocation3 + $0xb0] sm:$0x3]
      %v5334 = vld [vmem:[#allocation3 + $0xb4] sm:$0xf]
      %v5335 = vld [vmem:[#allocation3 + $0xb8] sm:$0xf]
      %v5336 = vld [vmem:[#allocation3 + $0xbc] sm:$0x3]
      %s5337 = scalar_lea.vmem [#allocation3], 12
      %v5338 = vld [vmem:[%s5337] sm:$0xf]
      %v5339 = vld [vmem:[%s5337 + $0x4] sm:$0xf]
      %v5340 = vld [vmem:[%s5337 + $0x8] sm:$0x3]
      %v5341 = vld [vmem:[%s5337 + $0xc] sm:$0xf]
      %v5342 = vld [vmem:[%s5337 + $0x10] sm:$0xf]
      %v5343 = vld [vmem:[%s5337 + $0x14] sm:$0x3]
      %v5344 = vld [vmem:[%s5337 + $0x18] sm:$0xf]
      %v5345 = vld [vmem:[%s5337 + $0x1c] sm:$0xf]
      %v5346 = vld [vmem:[%s5337 + $0x20] sm:$0x3]
      %v5347 = vld [vmem:[%s5337 + $0x24] sm:$0xf]
      %v5348 = vld [vmem:[%s5337 + $0x28] sm:$0xf]
      %v5349 = vld [vmem:[%s5337 + $0x2c] sm:$0x3]
      %v5350 = vld [vmem:[%s5337 + $0x30] sm:$0xf]
      %v5351 = vld [vmem:[%s5337 + $0x34] sm:$0xf]
      %v5352 = vld [vmem:[%s5337 + $0x38] sm:$0x3]
      %v5353 = vld [vmem:[%s5337 + $0x3c] sm:$0xf]
      %v5354 = vld [vmem:[%s5337 + $0x40] sm:$0xf]
      %v5355 = vld [vmem:[%s5337 + $0x44] sm:$0x3]
      %v5356 = vld [vmem:[%s5337 + $0x48] sm:$0xf]
      %v5357 = vld [vmem:[%s5337 + $0x4c] sm:$0xf]
      %v5358 = vld [vmem:[%s5337 + $0x50] sm:$0x3]
      %v5359 = vld [vmem:[%s5337 + $0x54] sm:$0xf]
      %v5360 = vld [vmem:[%s5337 + $0x58] sm:$0xf]
      %v5361 = vld [vmem:[%s5337 + $0x5c] sm:$0x3]
      %v5362 = vld [vmem:[%s5337 + $0x60] sm:$0xf]
      %v5363 = vld [vmem:[%s5337 + $0x64] sm:$0xf]
      %v5364 = vld [vmem:[%s5337 + $0x68] sm:$0x3]
      %v5365 = vld [vmem:[%s5337 + $0x6c] sm:$0xf]
      %v5366 = vld [vmem:[%s5337 + $0x70] sm:$0xf]
      %v5367 = vld [vmem:[%s5337 + $0x74] sm:$0x3]
      %v5368 = vld [vmem:[%s5337 + $0x78] sm:$0xf]
      %v5369 = vld [vmem:[%s5337 + $0x7c] sm:$0xf]
      %v5370 = vld [vmem:[%s5337 + $0x80] sm:$0x3]
      %v5371 = vld [vmem:[%s5337 + $0x84] sm:$0xf]
      %v5372 = vld [vmem:[%s5337 + $0x88] sm:$0xf]
      %v5373 = vld [vmem:[%s5337 + $0x8c] sm:$0x3]
      %v5374 = vld [vmem:[%s5337 + $0x90] sm:$0xf]
      %v5375 = vld [vmem:[%s5337 + $0x94] sm:$0xf]
      %v5376 = vld [vmem:[%s5337 + $0x98] sm:$0x3]
      %v5377 = vld [vmem:[%s5337 + $0x9c] sm:$0xf]
      %v5378 = vld [vmem:[%s5337 + $0xa0] sm:$0xf]
      %v5379 = vld [vmem:[%s5337 + $0xa4] sm:$0x3]
      %v5380 = vld [vmem:[%s5337 + $0xa8] sm:$0xf]
      %v5381 = vld [vmem:[%s5337 + $0xac] sm:$0xf]
      %v5382 = vld [vmem:[%s5337 + $0xb0] sm:$0x3]
      %v5383 = vld [vmem:[%s5337 + $0xb4] sm:$0xf]
      %v5384 = vld [vmem:[%s5337 + $0xb8] sm:$0xf]
      %v5385 = vld [vmem:[%s5337 + $0xbc] sm:$0x3]
      %v5386 = vmax.bf16 %v5289, %v5338
      %v5387 = vmax.bf16 %v5290, %v5339
      %v5388 = vmax.bf16 %v5291, %v5340
      %v5389 = vmax.bf16 %v5292, %v5341
      %v5390 = vmax.bf16 %v5293, %v5342
      %v5391 = vmax.bf16 %v5294, %v5343
      %v5392 = vmax.bf16 %v5295, %v5344
      %v5393 = vmax.bf16 %v5296, %v5345
      %v5394 = vmax.bf16 %v5297, %v5346
      %v5395 = vmax.bf16 %v5298, %v5347
      %v5396 = vmax.bf16 %v5299, %v5348
      %v5397 = vmax.bf16 %v5300, %v5349
      %v5398 = vmax.bf16 %v5301, %v5350
      %v5399 = vmax.bf16 %v5302, %v5351
      %v5400 = vmax.bf16 %v5303, %v5352
      %v5401 = vmax.bf16 %v5304, %v5353
      %v5402 = vmax.bf16 %v5305, %v5354
      %v5403 = vmax.bf16 %v5306, %v5355
      %v5404 = vmax.bf16 %v5307, %v5356
      %v5405 = vmax.bf16 %v5308, %v5357
      %v5406 = vmax.bf16 %v5309, %v5358
      %v5407 = vmax.bf16 %v5310, %v5359
      %v5408 = vmax.bf16 %v5311, %v5360
      %v5409 = vmax.bf16 %v5312, %v5361
      %v5410 = vmax.bf16 %v5313, %v5362
      %v5411 = vmax.bf16 %v5314, %v5363
      %v5412 = vmax.bf16 %v5315, %v5364
      %v5413 = vmax.bf16 %v5316, %v5365
      %v5414 = vmax.bf16 %v5317, %v5366
      %v5415 = vmax.bf16 %v5318, %v5367
      %v5416 = vmax.bf16 %v5319, %v5368
      %v5417 = vmax.bf16 %v5320, %v5369
      %v5418 = vmax.bf16 %v5321, %v5370
      %v5419 = vmax.bf16 %v5322, %v5371
      %v5420 = vmax.bf16 %v5323, %v5372
      %v5421 = vmax.bf16 %v5324, %v5373
      %v5422 = vmax.bf16 %v5325, %v5374
      %v5423 = vmax.bf16 %v5326, %v5375
      %v5424 = vmax.bf16 %v5327, %v5376
      %v5425 = vmax.bf16 %v5328, %v5377
      %v5426 = vmax.bf16 %v5329, %v5378
      %v5427 = vmax.bf16 %v5330, %v5379
      %v5428 = vmax.bf16 %v5331, %v5380
      %v5429 = vmax.bf16 %v5332, %v5381
      %v5430 = vmax.bf16 %v5333, %v5382
      %v5431 = vmax.bf16 %v5334, %v5383
      %v5432 = vmax.bf16 %v5335, %v5384
      %v5433 = vmax.bf16 %v5336, %v5385
      %v5434 = vld [vmem:[%s5240] sm:$0xf]
      %v5435 = vld [vmem:[%s5240 + $0x4] sm:$0xf]
      %v5436 = vld [vmem:[%s5240 + $0x8] sm:$0x3]
      %v5437 = vld [vmem:[%s5240 + $0xc] sm:$0xf]
      %v5438 = vld [vmem:[%s5240 + $0x10] sm:$0xf]
      %v5439 = vld [vmem:[%s5240 + $0x14] sm:$0x3]
      %v5440 = vld [vmem:[%s5240 + $0x18] sm:$0xf]
      %v5441 = vld [vmem:[%s5240 + $0x1c] sm:$0xf]
      %v5442 = vld [vmem:[%s5240 + $0x20] sm:$0x3]
      %v5443 = vld [vmem:[%s5240 + $0x24] sm:$0xf]
      %v5444 = vld [vmem:[%s5240 + $0x28] sm:$0xf]
      %v5445 = vld [vmem:[%s5240 + $0x2c] sm:$0x3]
      %v5446 = vld [vmem:[%s5240 + $0x30] sm:$0xf]
      %v5447 = vld [vmem:[%s5240 + $0x34] sm:$0xf]
      %v5448 = vld [vmem:[%s5240 + $0x38] sm:$0x3]
      %v5449 = vld [vmem:[%s5240 + $0x3c] sm:$0xf]
      %v5450 = vld [vmem:[%s5240 + $0x40] sm:$0xf]
      %v5451 = vld [vmem:[%s5240 + $0x44] sm:$0x3]
      %v5452 = vld [vmem:[%s5240 + $0x48] sm:$0xf]
      %v5453 = vld [vmem:[%s5240 + $0x4c] sm:$0xf]
      %v5454 = vld [vmem:[%s5240 + $0x50] sm:$0x3]
      %v5455 = vld [vmem:[%s5240 + $0x54] sm:$0xf]
      %v5456 = vld [vmem:[%s5240 + $0x58] sm:$0xf]
      %v5457 = vld [vmem:[%s5240 + $0x5c] sm:$0x3]
      %v5458 = vld [vmem:[%s5240 + $0x60] sm:$0xf]
      %v5459 = vld [vmem:[%s5240 + $0x64] sm:$0xf]
      %v5460 = vld [vmem:[%s5240 + $0x68] sm:$0x3]
      %v5461 = vld [vmem:[%s5240 + $0x6c] sm:$0xf]
      %v5462 = vld [vmem:[%s5240 + $0x70] sm:$0xf]
      %v5463 = vld [vmem:[%s5240 + $0x74] sm:$0x3]
      %v5464 = vld [vmem:[%s5240 + $0x78] sm:$0xf]
      %v5465 = vld [vmem:[%s5240 + $0x7c] sm:$0xf]
      %v5466 = vld [vmem:[%s5240 + $0x80] sm:$0x3]
      %v5467 = vld [vmem:[%s5240 + $0x84] sm:$0xf]
      %v5468 = vld [vmem:[%s5240 + $0x88] sm:$0xf]
      %v5469 = vld [vmem:[%s5240 + $0x8c] sm:$0x3]
      %v5470 = vld [vmem:[%s5240 + $0x90] sm:$0xf]
      %v5471 = vld [vmem:[%s5240 + $0x94] sm:$0xf]
      %v5472 = vld [vmem:[%s5240 + $0x98] sm:$0x3]
      %v5473 = vld [vmem:[%s5240 + $0x9c] sm:$0xf]
      %v5474 = vld [vmem:[%s5240 + $0xa0] sm:$0xf]
      %v5475 = vld [vmem:[%s5240 + $0xa4] sm:$0x3]
      %v5476 = vld [vmem:[%s5240 + $0xa8] sm:$0xf]
      %v5477 = vld [vmem:[%s5240 + $0xac] sm:$0xf]
      %v5478 = vld [vmem:[%s5240 + $0xb0] sm:$0x3]
      %v5479 = vld [vmem:[%s5240 + $0xb4] sm:$0xf]
      %v5480 = vld [vmem:[%s5240 + $0xb8] sm:$0xf]
      %v5481 = vld [vmem:[%s5240 + $0xbc] sm:$0x3]
      %v5482 = vmax.bf16 %v5386, %v5434
      %v5483 = vmax.bf16 %v5387, %v5435
      %v5484 = vmax.bf16 %v5388, %v5436
      %v5485 = vmax.bf16 %v5389, %v5437
      %v5486 = vmax.bf16 %v5390, %v5438
      %v5487 = vmax.bf16 %v5391, %v5439
      %v5488 = vmax.bf16 %v5392, %v5440
      %v5489 = vmax.bf16 %v5393, %v5441
      %v5490 = vmax.bf16 %v5394, %v5442
      %v5491 = vmax.bf16 %v5395, %v5443
      %v5492 = vmax.bf16 %v5396, %v5444
      %v5493 = vmax.bf16 %v5397, %v5445
      %v5494 = vmax.bf16 %v5398, %v5446
      %v5495 = vmax.bf16 %v5399, %v5447
      %v5496 = vmax.bf16 %v5400, %v5448
      %v5497 = vmax.bf16 %v5401, %v5449
      %v5498 = vmax.bf16 %v5402, %v5450
      %v5499 = vmax.bf16 %v5403, %v5451
      %v5500 = vmax.bf16 %v5404, %v5452
      %v5501 = vmax.bf16 %v5405, %v5453
      %v5502 = vmax.bf16 %v5406, %v5454
      %v5503 = vmax.bf16 %v5407, %v5455
      %v5504 = vmax.bf16 %v5408, %v5456
      %v5505 = vmax.bf16 %v5409, %v5457
      %v5506 = vmax.bf16 %v5410, %v5458
      %v5507 = vmax.bf16 %v5411, %v5459
      %v5508 = vmax.bf16 %v5412, %v5460
      %v5509 = vmax.bf16 %v5413, %v5461
      %v5510 = vmax.bf16 %v5414, %v5462
      %v5511 = vmax.bf16 %v5415, %v5463
      %v5512 = vmax.bf16 %v5416, %v5464
      %v5513 = vmax.bf16 %v5417, %v5465
      %v5514 = vmax.bf16 %v5418, %v5466
      %v5515 = vmax.bf16 %v5419, %v5467
      %v5516 = vmax.bf16 %v5420, %v5468
      %v5517 = vmax.bf16 %v5421, %v5469
      %v5518 = vmax.bf16 %v5422, %v5470
      %v5519 = vmax.bf16 %v5423, %v5471
      %v5520 = vmax.bf16 %v5424, %v5472
      %v5521 = vmax.bf16 %v5425, %v5473
      %v5522 = vmax.bf16 %v5426, %v5474
      %v5523 = vmax.bf16 %v5427, %v5475
      %v5524 = vmax.bf16 %v5428, %v5476
      %v5525 = vmax.bf16 %v5429, %v5477
      %v5526 = vmax.bf16 %v5430, %v5478
      %v5527 = vmax.bf16 %v5431, %v5479
      %v5528 = vmax.bf16 %v5432, %v5480
      %v5529 = vmax.bf16 %v5433, %v5481
      %s5530 = scalar_lea.vmem [#allocation3], 36
      %v5531 = vld [vmem:[%s5530] sm:$0xf]
      %v5532 = vld [vmem:[%s5530 + $0x4] sm:$0xf]
      %v5533 = vld [vmem:[%s5530 + $0x8] sm:$0x3]
      %v5534 = vld [vmem:[%s5530 + $0xc] sm:$0xf]
      %v5535 = vld [vmem:[%s5530 + $0x10] sm:$0xf]
      %v5536 = vld [vmem:[%s5530 + $0x14] sm:$0x3]
      %v5537 = vld [vmem:[%s5530 + $0x18] sm:$0xf]
      %v5538 = vld [vmem:[%s5530 + $0x1c] sm:$0xf]
      %v5539 = vld [vmem:[%s5530 + $0x20] sm:$0x3]
      %v5540 = vld [vmem:[%s5530 + $0x24] sm:$0xf]
      %v5541 = vld [vmem:[%s5530 + $0x28] sm:$0xf]
      %v5542 = vld [vmem:[%s5530 + $0x2c] sm:$0x3]
      %v5543 = vld [vmem:[%s5530 + $0x30] sm:$0xf]
      %v5544 = vld [vmem:[%s5530 + $0x34] sm:$0xf]
      %v5545 = vld [vmem:[%s5530 + $0x38] sm:$0x3]
      %v5546 = vld [vmem:[%s5530 + $0x3c] sm:$0xf]
      %v5547 = vld [vmem:[%s5530 + $0x40] sm:$0xf]
      %v5548 = vld [vmem:[%s5530 + $0x44] sm:$0x3]
      %v5549 = vld [vmem:[%s5530 + $0x48] sm:$0xf]
      %v5550 = vld [vmem:[%s5530 + $0x4c] sm:$0xf]
      %v5551 = vld [vmem:[%s5530 + $0x50] sm:$0x3]
      %v5552 = vld [vmem:[%s5530 + $0x54] sm:$0xf]
      %v5553 = vld [vmem:[%s5530 + $0x58] sm:$0xf]
      %v5554 = vld [vmem:[%s5530 + $0x5c] sm:$0x3]
      %v5555 = vld [vmem:[%s5530 + $0x60] sm:$0xf]
      %v5556 = vld [vmem:[%s5530 + $0x64] sm:$0xf]
      %v5557 = vld [vmem:[%s5530 + $0x68] sm:$0x3]
      %v5558 = vld [vmem:[%s5530 + $0x6c] sm:$0xf]
      %v5559 = vld [vmem:[%s5530 + $0x70] sm:$0xf]
      %v5560 = vld [vmem:[%s5530 + $0x74] sm:$0x3]
      %v5561 = vld [vmem:[%s5530 + $0x78] sm:$0xf]
      %v5562 = vld [vmem:[%s5530 + $0x7c] sm:$0xf]
      %v5563 = vld [vmem:[%s5530 + $0x80] sm:$0x3]
      %v5564 = vld [vmem:[%s5530 + $0x84] sm:$0xf]
      %v5565 = vld [vmem:[%s5530 + $0x88] sm:$0xf]
      %v5566 = vld [vmem:[%s5530 + $0x8c] sm:$0x3]
      %v5567 = vld [vmem:[%s5530 + $0x90] sm:$0xf]
      %v5568 = vld [vmem:[%s5530 + $0x94] sm:$0xf]
      %v5569 = vld [vmem:[%s5530 + $0x98] sm:$0x3]
      %v5570 = vld [vmem:[%s5530 + $0x9c] sm:$0xf]
      %v5571 = vld [vmem:[%s5530 + $0xa0] sm:$0xf]
      %v5572 = vld [vmem:[%s5530 + $0xa4] sm:$0x3]
      %v5573 = vld [vmem:[%s5530 + $0xa8] sm:$0xf]
      %v5574 = vld [vmem:[%s5530 + $0xac] sm:$0xf]
      %v5575 = vld [vmem:[%s5530 + $0xb0] sm:$0x3]
      %v5576 = vld [vmem:[%s5530 + $0xb4] sm:$0xf]
      %v5577 = vld [vmem:[%s5530 + $0xb8] sm:$0xf]
      %v5578 = vld [vmem:[%s5530 + $0xbc] sm:$0x3]
      %v5579 = vmax.bf16 %v5482, %v5531
      %v5580 = vmax.bf16 %v5483, %v5532
      %v5581 = vmax.bf16 %v5484, %v5533
      %v5582 = vmax.bf16 %v5485, %v5534
      %v5583 = vmax.bf16 %v5486, %v5535
      %v5584 = vmax.bf16 %v5487, %v5536
      %v5585 = vmax.bf16 %v5488, %v5537
      %v5586 = vmax.bf16 %v5489, %v5538
      %v5587 = vmax.bf16 %v5490, %v5539
      %v5588 = vmax.bf16 %v5491, %v5540
      %v5589 = vmax.bf16 %v5492, %v5541
      %v5590 = vmax.bf16 %v5493, %v5542
      %v5591 = vmax.bf16 %v5494, %v5543
      %v5592 = vmax.bf16 %v5495, %v5544
      %v5593 = vmax.bf16 %v5496, %v5545
      %v5594 = vmax.bf16 %v5497, %v5546
      %v5595 = vmax.bf16 %v5498, %v5547
      %v5596 = vmax.bf16 %v5499, %v5548
      %v5597 = vmax.bf16 %v5500, %v5549
      %v5598 = vmax.bf16 %v5501, %v5550
      %v5599 = vmax.bf16 %v5502, %v5551
      %v5600 = vmax.bf16 %v5503, %v5552
      %v5601 = vmax.bf16 %v5504, %v5553
      %v5602 = vmax.bf16 %v5505, %v5554
      %v5603 = vmax.bf16 %v5506, %v5555
      %v5604 = vmax.bf16 %v5507, %v5556
      %v5605 = vmax.bf16 %v5508, %v5557
      %v5606 = vmax.bf16 %v5509, %v5558
      %v5607 = vmax.bf16 %v5510, %v5559
      %v5608 = vmax.bf16 %v5511, %v5560
      %v5609 = vmax.bf16 %v5512, %v5561
      %v5610 = vmax.bf16 %v5513, %v5562
      %v5611 = vmax.bf16 %v5514, %v5563
      %v5612 = vmax.bf16 %v5515, %v5564
      %v5613 = vmax.bf16 %v5516, %v5565
      %v5614 = vmax.bf16 %v5517, %v5566
      %v5615 = vmax.bf16 %v5518, %v5567
      %v5616 = vmax.bf16 %v5519, %v5568
      %v5617 = vmax.bf16 %v5520, %v5569
      %v5618 = vmax.bf16 %v5521, %v5570
      %v5619 = vmax.bf16 %v5522, %v5571
      %v5620 = vmax.bf16 %v5523, %v5572
      %v5621 = vmax.bf16 %v5524, %v5573
      %v5622 = vmax.bf16 %v5525, %v5574
      %v5623 = vmax.bf16 %v5526, %v5575
      %v5624 = vmax.bf16 %v5527, %v5576
      %v5625 = vmax.bf16 %v5528, %v5577
      %v5626 = vmax.bf16 %v5529, %v5578
      %s5627 = scalar_lea.vmem [#allocation3], 48
      %v5628 = vld [vmem:[%s5627] sm:$0xf]
      %v5629 = vld [vmem:[%s5627 + $0x4] sm:$0xf]
      %v5630 = vld [vmem:[%s5627 + $0x8] sm:$0x3]
      %v5631 = vld [vmem:[%s5627 + $0xc] sm:$0xf]
      %v5632 = vld [vmem:[%s5627 + $0x10] sm:$0xf]
      %v5633 = vld [vmem:[%s5627 + $0x14] sm:$0x3]
      %v5634 = vld [vmem:[%s5627 + $0x18] sm:$0xf]
      %v5635 = vld [vmem:[%s5627 + $0x1c] sm:$0xf]
      %v5636 = vld [vmem:[%s5627 + $0x20] sm:$0x3]
      %v5637 = vld [vmem:[%s5627 + $0x24] sm:$0xf]
      %v5638 = vld [vmem:[%s5627 + $0x28] sm:$0xf]
      %v5639 = vld [vmem:[%s5627 + $0x2c] sm:$0x3]
      %v5640 = vld [vmem:[%s5627 + $0x30] sm:$0xf]
      %v5641 = vld [vmem:[%s5627 + $0x34] sm:$0xf]
      %v5642 = vld [vmem:[%s5627 + $0x38] sm:$0x3]
      %v5643 = vld [vmem:[%s5627 + $0x3c] sm:$0xf]
      %v5644 = vld [vmem:[%s5627 + $0x40] sm:$0xf]
      %v5645 = vld [vmem:[%s5627 + $0x44] sm:$0x3]
      %v5646 = vld [vmem:[%s5627 + $0x48] sm:$0xf]
      %v5647 = vld [vmem:[%s5627 + $0x4c] sm:$0xf]
      %v5648 = vld [vmem:[%s5627 + $0x50] sm:$0x3]
      %v5649 = vld [vmem:[%s5627 + $0x54] sm:$0xf]
      %v5650 = vld [vmem:[%s5627 + $0x58] sm:$0xf]
      %v5651 = vld [vmem:[%s5627 + $0x5c] sm:$0x3]
      %v5652 = vld [vmem:[%s5627 + $0x60] sm:$0xf]
      %v5653 = vld [vmem:[%s5627 + $0x64] sm:$0xf]
      %v5654 = vld [vmem:[%s5627 + $0x68] sm:$0x3]
      %v5655 = vld [vmem:[%s5627 + $0x6c] sm:$0xf]
      %v5656 = vld [vmem:[%s5627 + $0x70] sm:$0xf]
      %v5657 = vld [vmem:[%s5627 + $0x74] sm:$0x3]
      %v5658 = vld [vmem:[%s5627 + $0x78] sm:$0xf]
      %v5659 = vld [vmem:[%s5627 + $0x7c] sm:$0xf]
      %v5660 = vld [vmem:[%s5627 + $0x80] sm:$0x3]
      %v5661 = vld [vmem:[%s5627 + $0x84] sm:$0xf]
      %v5662 = vld [vmem:[%s5627 + $0x88] sm:$0xf]
      %v5663 = vld [vmem:[%s5627 + $0x8c] sm:$0x3]
      %v5664 = vld [vmem:[%s5627 + $0x90] sm:$0xf]
      %v5665 = vld [vmem:[%s5627 + $0x94] sm:$0xf]
      %v5666 = vld [vmem:[%s5627 + $0x98] sm:$0x3]
      %v5667 = vld [vmem:[%s5627 + $0x9c] sm:$0xf]
      %v5668 = vld [vmem:[%s5627 + $0xa0] sm:$0xf]
      %v5669 = vld [vmem:[%s5627 + $0xa4] sm:$0x3]
      %v5670 = vld [vmem:[%s5627 + $0xa8] sm:$0xf]
      %v5671 = vld [vmem:[%s5627 + $0xac] sm:$0xf]
      %v5672 = vld [vmem:[%s5627 + $0xb0] sm:$0x3]
      %v5673 = vld [vmem:[%s5627 + $0xb4] sm:$0xf]
      %v5674 = vld [vmem:[%s5627 + $0xb8] sm:$0xf]
      %v5675 = vld [vmem:[%s5627 + $0xbc] sm:$0x3]
      %v5676 = vmax.bf16 %v5579, %v5628
      %v5677 = vmax.bf16 %v5580, %v5629
      %v5678 = vmax.bf16 %v5581, %v5630
      %v5679 = vmax.bf16 %v5582, %v5631
      %v5680 = vmax.bf16 %v5583, %v5632
      %v5681 = vmax.bf16 %v5584, %v5633
      %v5682 = vmax.bf16 %v5585, %v5634
      %v5683 = vmax.bf16 %v5586, %v5635
      %v5684 = vmax.bf16 %v5587, %v5636
      %v5685 = vmax.bf16 %v5588, %v5637
      %v5686 = vmax.bf16 %v5589, %v5638
      %v5687 = vmax.bf16 %v5590, %v5639
      %v5688 = vmax.bf16 %v5591, %v5640
      %v5689 = vmax.bf16 %v5592, %v5641
      %v5690 = vmax.bf16 %v5593, %v5642
      %v5691 = vmax.bf16 %v5594, %v5643
      %v5692 = vmax.bf16 %v5595, %v5644
      %v5693 = vmax.bf16 %v5596, %v5645
      %v5694 = vmax.bf16 %v5597, %v5646
      %v5695 = vmax.bf16 %v5598, %v5647
      %v5696 = vmax.bf16 %v5599, %v5648
      %v5697 = vmax.bf16 %v5600, %v5649
      %v5698 = vmax.bf16 %v5601, %v5650
      %v5699 = vmax.bf16 %v5602, %v5651
      %v5700 = vmax.bf16 %v5603, %v5652
      %v5701 = vmax.bf16 %v5604, %v5653
      %v5702 = vmax.bf16 %v5605, %v5654
      %v5703 = vmax.bf16 %v5606, %v5655
      %v5704 = vmax.bf16 %v5607, %v5656
      %v5705 = vmax.bf16 %v5608, %v5657
      %v5706 = vmax.bf16 %v5609, %v5658
      %v5707 = vmax.bf16 %v5610, %v5659
      %v5708 = vmax.bf16 %v5611, %v5660
      %v5709 = vmax.bf16 %v5612, %v5661
      %v5710 = vmax.bf16 %v5613, %v5662
      %v5711 = vmax.bf16 %v5614, %v5663
      %v5712 = vmax.bf16 %v5615, %v5664
      %v5713 = vmax.bf16 %v5616, %v5665
      %v5714 = vmax.bf16 %v5617, %v5666
      %v5715 = vmax.bf16 %v5618, %v5667
      %v5716 = vmax.bf16 %v5619, %v5668
      %v5717 = vmax.bf16 %v5620, %v5669
      %v5718 = vmax.bf16 %v5621, %v5670
      %v5719 = vmax.bf16 %v5622, %v5671
      %v5720 = vmax.bf16 %v5623, %v5672
      %v5721 = vmax.bf16 %v5624, %v5673
      %v5722 = vmax.bf16 %v5625, %v5674
      %v5723 = vmax.bf16 %v5626, %v5675
      %vm5724 = vsmask.f32 3328
      %vm5725 = vsmask.f32 7440
      %vm5726 = vmor %vm5724, %vm5725
      %v5728 = vshrl.u32 %v5676, 16
      %v5730 = vrot.slane %v5728, 4
      %v5731 = vshll.u32 %v5676, 16
      %v5733 = vrot.slane %v5731, 5
      %v5734 = vor.u32 %v5730, %v5733
      %v5735 = vrot.slane %v5734, 4
      %v5737 = vshll.u32 %v5677, 16
      %v5739 = vrot.slane %v5737, 5
      %v5740 = vsel %vm5726, %v5735, %v5739
      %v5741 = vshrl.u32 %v5677, 16
      %v5743 = vrot.slane %v5741, 4
      %v5744 = vor.u32 %v5743, %v5739
      %v5745 = vrot.slane %v5744, 4
      %v5747 = vshll.u32 %v5678, 16
      %v5749 = vrot.slane %v5747, 5
      %v5750 = vsel %vm5726, %v5745, %v5749
      %v5752 = vshrl.u32 %v5679, 16
      %v5754 = vrot.slane %v5752, 4
      %v5755 = vshll.u32 %v5679, 16
      %v5757 = vrot.slane %v5755, 5
      %v5758 = vor.u32 %v5754, %v5757
      %v5759 = vrot.slane %v5758, 4
      %v5761 = vshll.u32 %v5680, 16
      %v5763 = vrot.slane %v5761, 5
      %v5764 = vsel %vm5726, %v5759, %v5763
      %v5765 = vshrl.u32 %v5680, 16
      %v5767 = vrot.slane %v5765, 4
      %v5768 = vor.u32 %v5767, %v5763
      %v5769 = vrot.slane %v5768, 4
      %v5771 = vshll.u32 %v5681, 16
      %v5773 = vrot.slane %v5771, 5
      %v5774 = vsel %vm5726, %v5769, %v5773
      %v5776 = vshrl.u32 %v5682, 16
      %v5778 = vrot.slane %v5776, 4
      %v5779 = vshll.u32 %v5682, 16
      %v5781 = vrot.slane %v5779, 5
      %v5782 = vor.u32 %v5778, %v5781
      %v5783 = vrot.slane %v5782, 4
      %v5785 = vshll.u32 %v5683, 16
      %v5787 = vrot.slane %v5785, 5
      %v5788 = vsel %vm5726, %v5783, %v5787
      %v5789 = vshrl.u32 %v5683, 16
      %v5791 = vrot.slane %v5789, 4
      %v5792 = vor.u32 %v5791, %v5787
      %v5793 = vrot.slane %v5792, 4
      %v5795 = vshll.u32 %v5684, 16
      %v5797 = vrot.slane %v5795, 5
      %v5798 = vsel %vm5726, %v5793, %v5797
      %v5800 = vshrl.u32 %v5685, 16
      %v5802 = vrot.slane %v5800, 4
      %v5803 = vshll.u32 %v5685, 16
      %v5805 = vrot.slane %v5803, 5
      %v5806 = vor.u32 %v5802, %v5805
      %v5807 = vrot.slane %v5806, 4
      %v5809 = vshll.u32 %v5686, 16
      %v5811 = vrot.slane %v5809, 5
      %v5812 = vsel %vm5726, %v5807, %v5811
      %v5813 = vshrl.u32 %v5686, 16
      %v5815 = vrot.slane %v5813, 4
      %v5816 = vor.u32 %v5815, %v5811
      %v5817 = vrot.slane %v5816, 4
      %v5819 = vshll.u32 %v5687, 16
      %v5821 = vrot.slane %v5819, 5
      %v5822 = vsel %vm5726, %v5817, %v5821
      %v5824 = vshrl.u32 %v5688, 16
      %v5826 = vrot.slane %v5824, 4
      %v5827 = vshll.u32 %v5688, 16
      %v5829 = vrot.slane %v5827, 5
      %v5830 = vor.u32 %v5826, %v5829
      %v5831 = vrot.slane %v5830, 4
      %v5833 = vshll.u32 %v5689, 16
      %v5835 = vrot.slane %v5833, 5
      %v5836 = vsel %vm5726, %v5831, %v5835
      %v5837 = vshrl.u32 %v5689, 16
      %v5839 = vrot.slane %v5837, 4
      %v5840 = vor.u32 %v5839, %v5835
      %v5841 = vrot.slane %v5840, 4
      %v5843 = vshll.u32 %v5690, 16
      %v5845 = vrot.slane %v5843, 5
      %v5846 = vsel %vm5726, %v5841, %v5845
      %v5848 = vshrl.u32 %v5691, 16
      %v5850 = vrot.slane %v5848, 4
      %v5851 = vshll.u32 %v5691, 16
      %v5853 = vrot.slane %v5851, 5
      %v5854 = vor.u32 %v5850, %v5853
      %v5855 = vrot.slane %v5854, 4
      %v5857 = vshll.u32 %v5692, 16
      %v5859 = vrot.slane %v5857, 5
      %v5860 = vsel %vm5726, %v5855, %v5859
      %v5861 = vshrl.u32 %v5692, 16
      %v5863 = vrot.slane %v5861, 4
      %v5864 = vor.u32 %v5863, %v5859
      %v5865 = vrot.slane %v5864, 4
      %v5867 = vshll.u32 %v5693, 16
      %v5869 = vrot.slane %v5867, 5
      %v5870 = vsel %vm5726, %v5865, %v5869
      %v5872 = vshrl.u32 %v5694, 16
      %v5874 = vrot.slane %v5872, 4
      %v5875 = vshll.u32 %v5694, 16
      %v5877 = vrot.slane %v5875, 5
      %v5878 = vor.u32 %v5874, %v5877
      %v5879 = vrot.slane %v5878, 4
      %v5881 = vshll.u32 %v5695, 16
      %v5883 = vrot.slane %v5881, 5
      %v5884 = vsel %vm5726, %v5879, %v5883
      %v5885 = vshrl.u32 %v5695, 16
      %v5887 = vrot.slane %v5885, 4
      %v5888 = vor.u32 %v5887, %v5883
      %v5889 = vrot.slane %v5888, 4
      %v5891 = vshll.u32 %v5696, 16
      %v5893 = vrot.slane %v5891, 5
      %v5894 = vsel %vm5726, %v5889, %v5893
      %v5896 = vshrl.u32 %v5697, 16
      %v5898 = vrot.slane %v5896, 4
      %v5899 = vshll.u32 %v5697, 16
      %v5901 = vrot.slane %v5899, 5
      %v5902 = vor.u32 %v5898, %v5901
      %v5903 = vrot.slane %v5902, 4
      %v5905 = vshll.u32 %v5698, 16
      %v5907 = vrot.slane %v5905, 5
      %v5908 = vsel %vm5726, %v5903, %v5907
      %v5909 = vshrl.u32 %v5698, 16
      %v5911 = vrot.slane %v5909, 4
      %v5912 = vor.u32 %v5911, %v5907
      %v5913 = vrot.slane %v5912, 4
      %v5915 = vshll.u32 %v5699, 16
      %v5917 = vrot.slane %v5915, 5
      %v5918 = vsel %vm5726, %v5913, %v5917
      %v5920 = vshrl.u32 %v5700, 16
      %v5922 = vrot.slane %v5920, 4
      %v5923 = vshll.u32 %v5700, 16
      %v5925 = vrot.slane %v5923, 5
      %v5926 = vor.u32 %v5922, %v5925
      %v5927 = vrot.slane %v5926, 4
      %v5929 = vshll.u32 %v5701, 16
      %v5931 = vrot.slane %v5929, 5
      %v5932 = vsel %vm5726, %v5927, %v5931
      %v5933 = vshrl.u32 %v5701, 16
      %v5935 = vrot.slane %v5933, 4
      %v5936 = vor.u32 %v5935, %v5931
      %v5937 = vrot.slane %v5936, 4
      %v5939 = vshll.u32 %v5702, 16
      %v5941 = vrot.slane %v5939, 5
      %v5942 = vsel %vm5726, %v5937, %v5941
      %v5944 = vshrl.u32 %v5703, 16
      %v5946 = vrot.slane %v5944, 4
      %v5947 = vshll.u32 %v5703, 16
      %v5949 = vrot.slane %v5947, 5
      %v5950 = vor.u32 %v5946, %v5949
      %v5951 = vrot.slane %v5950, 4
      %v5953 = vshll.u32 %v5704, 16
      %v5955 = vrot.slane %v5953, 5
      %v5956 = vsel %vm5726, %v5951, %v5955
      %v5957 = vshrl.u32 %v5704, 16
      %v5959 = vrot.slane %v5957, 4
      %v5960 = vor.u32 %v5959, %v5955
      %v5961 = vrot.slane %v5960, 4
      %v5963 = vshll.u32 %v5705, 16
      %v5965 = vrot.slane %v5963, 5
      %v5966 = vsel %vm5726, %v5961, %v5965
      %v5968 = vshrl.u32 %v5706, 16
      %v5970 = vrot.slane %v5968, 4
      %v5971 = vshll.u32 %v5706, 16
      %v5973 = vrot.slane %v5971, 5
      %v5974 = vor.u32 %v5970, %v5973
      %v5975 = vrot.slane %v5974, 4
      %v5977 = vshll.u32 %v5707, 16
      %v5979 = vrot.slane %v5977, 5
      %v5980 = vsel %vm5726, %v5975, %v5979
      %v5981 = vshrl.u32 %v5707, 16
      %v5983 = vrot.slane %v5981, 4
      %v5984 = vor.u32 %v5983, %v5979
      %v5985 = vrot.slane %v5984, 4
      %v5987 = vshll.u32 %v5708, 16
      %v5989 = vrot.slane %v5987, 5
      %v5990 = vsel %vm5726, %v5985, %v5989
      %v5992 = vshrl.u32 %v5709, 16
      %v5994 = vrot.slane %v5992, 4
      %v5995 = vshll.u32 %v5709, 16
      %v5997 = vrot.slane %v5995, 5
      %v5998 = vor.u32 %v5994, %v5997
      %v5999 = vrot.slane %v5998, 4
      %v6001 = vshll.u32 %v5710, 16
      %v6003 = vrot.slane %v6001, 5
      %v6004 = vsel %vm5726, %v5999, %v6003
      %v6005 = vshrl.u32 %v5710, 16
      %v6007 = vrot.slane %v6005, 4
      %v6008 = vor.u32 %v6007, %v6003
      %v6009 = vrot.slane %v6008, 4
      %v6011 = vshll.u32 %v5711, 16
      %v6013 = vrot.slane %v6011, 5
      %v6014 = vsel %vm5726, %v6009, %v6013
      %v6016 = vshrl.u32 %v5712, 16
      %v6018 = vrot.slane %v6016, 4
      %v6019 = vshll.u32 %v5712, 16
      %v6021 = vrot.slane %v6019, 5
      %v6022 = vor.u32 %v6018, %v6021
      %v6023 = vrot.slane %v6022, 4
      %v6025 = vshll.u32 %v5713, 16
      %v6027 = vrot.slane %v6025, 5
      %v6028 = vsel %vm5726, %v6023, %v6027
      %v6029 = vshrl.u32 %v5713, 16
      %v6031 = vrot.slane %v6029, 4
      %v6032 = vor.u32 %v6031, %v6027
      %v6033 = vrot.slane %v6032, 4
      %v6035 = vshll.u32 %v5714, 16
      %v6037 = vrot.slane %v6035, 5
      %v6038 = vsel %vm5726, %v6033, %v6037
      %v6040 = vshrl.u32 %v5715, 16
      %v6042 = vrot.slane %v6040, 4
      %v6043 = vshll.u32 %v5715, 16
      %v6045 = vrot.slane %v6043, 5
      %v6046 = vor.u32 %v6042, %v6045
      %v6047 = vrot.slane %v6046, 4
      %v6049 = vshll.u32 %v5716, 16
      %v6051 = vrot.slane %v6049, 5
      %v6052 = vsel %vm5726, %v6047, %v6051
      %v6053 = vshrl.u32 %v5716, 16
      %v6055 = vrot.slane %v6053, 4
      %v6056 = vor.u32 %v6055, %v6051
      %v6057 = vrot.slane %v6056, 4
      %v6059 = vshll.u32 %v5717, 16
      %v6061 = vrot.slane %v6059, 5
      %v6062 = vsel %vm5726, %v6057, %v6061
      %v6064 = vshrl.u32 %v5718, 16
      %v6066 = vrot.slane %v6064, 4
      %v6067 = vshll.u32 %v5718, 16
      %v6069 = vrot.slane %v6067, 5
      %v6070 = vor.u32 %v6066, %v6069
      %v6071 = vrot.slane %v6070, 4
      %v6073 = vshll.u32 %v5719, 16
      %v6075 = vrot.slane %v6073, 5
      %v6076 = vsel %vm5726, %v6071, %v6075
      %v6077 = vshrl.u32 %v5719, 16
      %v6079 = vrot.slane %v6077, 4
      %v6080 = vor.u32 %v6079, %v6075
      %v6081 = vrot.slane %v6080, 4
      %v6083 = vshll.u32 %v5720, 16
      %v6085 = vrot.slane %v6083, 5
      %v6086 = vsel %vm5726, %v6081, %v6085
      %v6088 = vshrl.u32 %v5721, 16
      %v6090 = vrot.slane %v6088, 4
      %v6091 = vshll.u32 %v5721, 16
      %v6093 = vrot.slane %v6091, 5
      %v6094 = vor.u32 %v6090, %v6093
      %v6095 = vrot.slane %v6094, 4
      %v6097 = vshll.u32 %v5722, 16
      %v6099 = vrot.slane %v6097, 5
      %v6100 = vsel %vm5726, %v6095, %v6099
      %v6101 = vshrl.u32 %v5722, 16
      %v6103 = vrot.slane %v6101, 4
      %v6104 = vor.u32 %v6103, %v6099
      %v6105 = vrot.slane %v6104, 4
      %v6107 = vshll.u32 %v5723, 16
      %v6109 = vrot.slane %v6107, 5
      %v6110 = vsel %vm5726, %v6105, %v6109
      %v6143 = vmax.bf16 %v5676, %v5740
      %v6144 = vmax.bf16 %v5677, %v5750
      %v6145 = vmax.bf16 %v5679, %v5764
      %v6146 = vmax.bf16 %v5680, %v5774
      %v6147 = vmax.bf16 %v5682, %v5788
      %v6148 = vmax.bf16 %v5683, %v5798
      %v6149 = vmax.bf16 %v5685, %v5812
      %v6150 = vmax.bf16 %v5686, %v5822
      %v6151 = vmax.bf16 %v5688, %v5836
      %v6152 = vmax.bf16 %v5689, %v5846
      %v6153 = vmax.bf16 %v5691, %v5860
      %v6154 = vmax.bf16 %v5692, %v5870
      %v6155 = vmax.bf16 %v5694, %v5884
      %v6156 = vmax.bf16 %v5695, %v5894
      %v6157 = vmax.bf16 %v5697, %v5908
      %v6158 = vmax.bf16 %v5698, %v5918
      %v6159 = vmax.bf16 %v5700, %v5932
      %v6160 = vmax.bf16 %v5701, %v5942
      %v6161 = vmax.bf16 %v5703, %v5956
      %v6162 = vmax.bf16 %v5704, %v5966
      %v6163 = vmax.bf16 %v5706, %v5980
      %v6164 = vmax.bf16 %v5707, %v5990
      %v6165 = vmax.bf16 %v5709, %v6004
      %v6166 = vmax.bf16 %v5710, %v6014
      %v6167 = vmax.bf16 %v5712, %v6028
      %v6168 = vmax.bf16 %v5713, %v6038
      %v6169 = vmax.bf16 %v5715, %v6052
      %v6170 = vmax.bf16 %v5716, %v6062
      %v6171 = vmax.bf16 %v5718, %v6076
      %v6172 = vmax.bf16 %v5719, %v6086
      %v6173 = vmax.bf16 %v5721, %v6100
      %v6174 = vmax.bf16 %v5722, %v6110
      %vm6223 = vcmask 1042432
      %vm6224 = vcmask 1046532
      %vm6225 = vmor %vm6223, %vm6224
      %v6226 = vrot.slane %v5676, 5
      %v6227 = vrot.slane %v6226, 4
      %v6228 = vrot.slane %v5677, 5
      %v6229 = vsel %vm6225, %v6227, %v6228
      %v6230 = vrot.slane %v6228, 4
      %v6231 = vrot.slane %v5678, 5
      %v6232 = vsel %vm6225, %v6230, %v6231
      %v6233 = vrot.slane %v5679, 5
      %v6234 = vrot.slane %v6233, 4
      %v6235 = vrot.slane %v5680, 5
      %v6236 = vsel %vm6225, %v6234, %v6235
      %v6237 = vrot.slane %v6235, 4
      %v6238 = vrot.slane %v5681, 5
      %v6239 = vsel %vm6225, %v6237, %v6238
      %v6240 = vrot.slane %v5682, 5
      %v6241 = vrot.slane %v6240, 4
      %v6242 = vrot.slane %v5683, 5
      %v6243 = vsel %vm6225, %v6241, %v6242
      %v6244 = vrot.slane %v6242, 4
      %v6245 = vrot.slane %v5684, 5
      %v6246 = vsel %vm6225, %v6244, %v6245
      %v6247 = vrot.slane %v5685, 5
      %v6248 = vrot.slane %v6247, 4
      %v6249 = vrot.slane %v5686, 5
      %v6250 = vsel %vm6225, %v6248, %v6249
      %v6251 = vrot.slane %v6249, 4
      %v6252 = vrot.slane %v5687, 5
      %v6253 = vsel %vm6225, %v6251, %v6252
      %v6254 = vrot.slane %v5688, 5
      %v6255 = vrot.slane %v6254, 4
      %v6256 = vrot.slane %v5689, 5
      %v6257 = vsel %vm6225, %v6255, %v6256
      %v6258 = vrot.slane %v6256, 4
      %v6259 = vrot.slane %v5690, 5
      %v6260 = vsel %vm6225, %v6258, %v6259
      %v6261 = vrot.slane %v5691, 5
      %v6262 = vrot.slane %v6261, 4
      %v6263 = vrot.slane %v5692, 5
      %v6264 = vsel %vm6225, %v6262, %v6263
      %v6265 = vrot.slane %v6263, 4
      %v6266 = vrot.slane %v5693, 5
      %v6267 = vsel %vm6225, %v6265, %v6266
      %v6268 = vrot.slane %v5694, 5
      %v6269 = vrot.slane %v6268, 4
      %v6270 = vrot.slane %v5695, 5
      %v6271 = vsel %vm6225, %v6269, %v6270
      %v6272 = vrot.slane %v6270, 4
      %v6273 = vrot.slane %v5696, 5
      %v6274 = vsel %vm6225, %v6272, %v6273
      %v6275 = vrot.slane %v5697, 5
      %v6276 = vrot.slane %v6275, 4
      %v6277 = vrot.slane %v5698, 5
      %v6278 = vsel %vm6225, %v6276, %v6277
      %v6279 = vrot.slane %v6277, 4
      %v6280 = vrot.slane %v5699, 5
      %v6281 = vsel %vm6225, %v6279, %v6280
      %v6282 = vrot.slane %v5700, 5
      %v6283 = vrot.slane %v6282, 4
      %v6284 = vrot.slane %v5701, 5
      %v6285 = vsel %vm6225, %v6283, %v6284
      %v6286 = vrot.slane %v6284, 4
      %v6287 = vrot.slane %v5702, 5
      %v6288 = vsel %vm6225, %v6286, %v6287
      %v6289 = vrot.slane %v5703, 5
      %v6290 = vrot.slane %v6289, 4
      %v6291 = vrot.slane %v5704, 5
      %v6292 = vsel %vm6225, %v6290, %v6291
      %v6293 = vrot.slane %v6291, 4
      %v6294 = vrot.slane %v5705, 5
      %v6295 = vsel %vm6225, %v6293, %v6294
      %v6296 = vrot.slane %v5706, 5
      %v6297 = vrot.slane %v6296, 4
      %v6298 = vrot.slane %v5707, 5
      %v6299 = vsel %vm6225, %v6297, %v6298
      %v6300 = vrot.slane %v6298, 4
      %v6301 = vrot.slane %v5708, 5
      %v6302 = vsel %vm6225, %v6300, %v6301
      %v6303 = vrot.slane %v5709, 5
      %v6304 = vrot.slane %v6303, 4
      %v6305 = vrot.slane %v5710, 5
      %v6306 = vsel %vm6225, %v6304, %v6305
      %v6307 = vrot.slane %v6305, 4
      %v6308 = vrot.slane %v5711, 5
      %v6309 = vsel %vm6225, %v6307, %v6308
      %v6310 = vrot.slane %v5712, 5
      %v6311 = vrot.slane %v6310, 4
      %v6312 = vrot.slane %v5713, 5
      %v6313 = vsel %vm6225, %v6311, %v6312
      %v6314 = vrot.slane %v6312, 4
      %v6315 = vrot.slane %v5714, 5
      %v6316 = vsel %vm6225, %v6314, %v6315
      %v6317 = vrot.slane %v5715, 5
      %v6318 = vrot.slane %v6317, 4
      %v6319 = vrot.slane %v5716, 5
      %v6320 = vsel %vm6225, %v6318, %v6319
      %v6321 = vrot.slane %v6319, 4
      %v6322 = vrot.slane %v5717, 5
      %v6323 = vsel %vm6225, %v6321, %v6322
      %v6324 = vrot.slane %v5718, 5
      %v6325 = vrot.slane %v6324, 4
      %v6326 = vrot.slane %v5719, 5
      %v6327 = vsel %vm6225, %v6325, %v6326
      %v6328 = vrot.slane %v6326, 4
      %v6329 = vrot.slane %v5720, 5
      %v6330 = vsel %vm6225, %v6328, %v6329
      %v6331 = vrot.slane %v5721, 5
      %v6332 = vrot.slane %v6331, 4
      %v6333 = vrot.slane %v5722, 5
      %v6334 = vsel %vm6225, %v6332, %v6333
      %v6335 = vrot.slane %v6333, 4
      %v6336 = vrot.slane %v5723, 5
      %v6337 = vsel %vm6225, %v6335, %v6336
      %v6370 = vmax.bf16 %v6143, %v6229
      %v6371 = vmax.bf16 %v6144, %v6232
      %v6372 = vmax.bf16 %v6145, %v6236
      %v6373 = vmax.bf16 %v6146, %v6239
      %v6374 = vmax.bf16 %v6147, %v6243
      %v6375 = vmax.bf16 %v6148, %v6246
      %v6376 = vmax.bf16 %v6149, %v6250
      %v6377 = vmax.bf16 %v6150, %v6253
      %v6378 = vmax.bf16 %v6151, %v6257
      %v6379 = vmax.bf16 %v6152, %v6260
      %v6380 = vmax.bf16 %v6153, %v6264
      %v6381 = vmax.bf16 %v6154, %v6267
      %v6382 = vmax.bf16 %v6155, %v6271
      %v6383 = vmax.bf16 %v6156, %v6274
      %v6384 = vmax.bf16 %v6157, %v6278
      %v6385 = vmax.bf16 %v6158, %v6281
      %v6386 = vmax.bf16 %v6159, %v6285
      %v6387 = vmax.bf16 %v6160, %v6288
      %v6388 = vmax.bf16 %v6161, %v6292
      %v6389 = vmax.bf16 %v6162, %v6295
      %v6390 = vmax.bf16 %v6163, %v6299
      %v6391 = vmax.bf16 %v6164, %v6302
      %v6392 = vmax.bf16 %v6165, %v6306
      %v6393 = vmax.bf16 %v6166, %v6309
      %v6394 = vmax.bf16 %v6167, %v6313
      %v6395 = vmax.bf16 %v6168, %v6316
      %v6396 = vmax.bf16 %v6169, %v6320
      %v6397 = vmax.bf16 %v6170, %v6323
      %v6398 = vmax.bf16 %v6171, %v6327
      %v6399 = vmax.bf16 %v6172, %v6330
      %v6400 = vmax.bf16 %v6173, %v6334
      %v6401 = vmax.bf16 %v6174, %v6337
      %vm6402 = vsmask.f32 2304
      %vm6403 = vsmask.f32 6416
      %vm6404 = vmor %vm6402, %vm6403
      %v6405 = vrot.slane %v5728, 5
      %v6406 = vrot.slane %v5731, 6
      %v6407 = vor.u32 %v6405, %v6406
      %v6408 = vrot.slane %v6407, 4
      %v6409 = vrot.slane %v5741, 5
      %v6410 = vrot.slane %v5737, 6
      %v6411 = vor.u32 %v6409, %v6410
      %v6412 = vsel %vm6404, %v6408, %v6411
      %v6413 = vrot.slane %v6411, 4
      %v6414 = vshrl.u32 %v5678, 16
      %v6416 = vrot.slane %v6414, 5
      %v6417 = vrot.slane %v5747, 6
      %v6418 = vor.u32 %v6416, %v6417
      %v6419 = vsel %vm6404, %v6413, %v6418
      %v6420 = vrot.slane %v5752, 5
      %v6421 = vrot.slane %v5755, 6
      %v6422 = vor.u32 %v6420, %v6421
      %v6423 = vrot.slane %v6422, 4
      %v6424 = vrot.slane %v5765, 5
      %v6425 = vrot.slane %v5761, 6
      %v6426 = vor.u32 %v6424, %v6425
      %v6427 = vsel %vm6404, %v6423, %v6426
      %v6428 = vrot.slane %v6426, 4
      %v6429 = vshrl.u32 %v5681, 16
      %v6431 = vrot.slane %v6429, 5
      %v6432 = vrot.slane %v5771, 6
      %v6433 = vor.u32 %v6431, %v6432
      %v6434 = vsel %vm6404, %v6428, %v6433
      %v6435 = vrot.slane %v5776, 5
      %v6436 = vrot.slane %v5779, 6
      %v6437 = vor.u32 %v6435, %v6436
      %v6438 = vrot.slane %v6437, 4
      %v6439 = vrot.slane %v5789, 5
      %v6440 = vrot.slane %v5785, 6
      %v6441 = vor.u32 %v6439, %v6440
      %v6442 = vsel %vm6404, %v6438, %v6441
      %v6443 = vrot.slane %v6441, 4
      %v6444 = vshrl.u32 %v5684, 16
      %v6446 = vrot.slane %v6444, 5
      %v6447 = vrot.slane %v5795, 6
      %v6448 = vor.u32 %v6446, %v6447
      %v6449 = vsel %vm6404, %v6443, %v6448
      %v6450 = vrot.slane %v5800, 5
      %v6451 = vrot.slane %v5803, 6
      %v6452 = vor.u32 %v6450, %v6451
      %v6453 = vrot.slane %v6452, 4
      %v6454 = vrot.slane %v5813, 5
      %v6455 = vrot.slane %v5809, 6
      %v6456 = vor.u32 %v6454, %v6455
      %v6457 = vsel %vm6404, %v6453, %v6456
      %v6458 = vrot.slane %v6456, 4
      %v6459 = vshrl.u32 %v5687, 16
      %v6461 = vrot.slane %v6459, 5
      %v6462 = vrot.slane %v5819, 6
      %v6463 = vor.u32 %v6461, %v6462
      %v6464 = vsel %vm6404, %v6458, %v6463
      %v6465 = vrot.slane %v5824, 5
      %v6466 = vrot.slane %v5827, 6
      %v6467 = vor.u32 %v6465, %v6466
      %v6468 = vrot.slane %v6467, 4
      %v6469 = vrot.slane %v5837, 5
      %v6470 = vrot.slane %v5833, 6
      %v6471 = vor.u32 %v6469, %v6470
      %v6472 = vsel %vm6404, %v6468, %v6471
      %v6473 = vrot.slane %v6471, 4
      %v6474 = vshrl.u32 %v5690, 16
      %v6476 = vrot.slane %v6474, 5
      %v6477 = vrot.slane %v5843, 6
      %v6478 = vor.u32 %v6476, %v6477
      %v6479 = vsel %vm6404, %v6473, %v6478
      %v6480 = vrot.slane %v5848, 5
      %v6481 = vrot.slane %v5851, 6
      %v6482 = vor.u32 %v6480, %v6481
      %v6483 = vrot.slane %v6482, 4
      %v6484 = vrot.slane %v5861, 5
      %v6485 = vrot.slane %v5857, 6
      %v6486 = vor.u32 %v6484, %v6485
      %v6487 = vsel %vm6404, %v6483, %v6486
      %v6488 = vrot.slane %v6486, 4
      %v6489 = vshrl.u32 %v5693, 16
      %v6491 = vrot.slane %v6489, 5
      %v6492 = vrot.slane %v5867, 6
      %v6493 = vor.u32 %v6491, %v6492
      %v6494 = vsel %vm6404, %v6488, %v6493
      %v6495 = vrot.slane %v5872, 5
      %v6496 = vrot.slane %v5875, 6
      %v6497 = vor.u32 %v6495, %v6496
      %v6498 = vrot.slane %v6497, 4
      %v6499 = vrot.slane %v5885, 5
      %v6500 = vrot.slane %v5881, 6
      %v6501 = vor.u32 %v6499, %v6500
      %v6502 = vsel %vm6404, %v6498, %v6501
      %v6503 = vrot.slane %v6501, 4
      %v6504 = vshrl.u32 %v5696, 16
      %v6506 = vrot.slane %v6504, 5
      %v6507 = vrot.slane %v5891, 6
      %v6508 = vor.u32 %v6506, %v6507
      %v6509 = vsel %vm6404, %v6503, %v6508
      %v6510 = vrot.slane %v5896, 5
      %v6511 = vrot.slane %v5899, 6
      %v6512 = vor.u32 %v6510, %v6511
      %v6513 = vrot.slane %v6512, 4
      %v6514 = vrot.slane %v5909, 5
      %v6515 = vrot.slane %v5905, 6
      %v6516 = vor.u32 %v6514, %v6515
      %v6517 = vsel %vm6404, %v6513, %v6516
      %v6518 = vrot.slane %v6516, 4
      %v6519 = vshrl.u32 %v5699, 16
      %v6521 = vrot.slane %v6519, 5
      %v6522 = vrot.slane %v5915, 6
      %v6523 = vor.u32 %v6521, %v6522
      %v6524 = vsel %vm6404, %v6518, %v6523
      %v6525 = vrot.slane %v5920, 5
      %v6526 = vrot.slane %v5923, 6
      %v6527 = vor.u32 %v6525, %v6526
      %v6528 = vrot.slane %v6527, 4
      %v6529 = vrot.slane %v5933, 5
      %v6530 = vrot.slane %v5929, 6
      %v6531 = vor.u32 %v6529, %v6530
      %v6532 = vsel %vm6404, %v6528, %v6531
      %v6533 = vrot.slane %v6531, 4
      %v6534 = vshrl.u32 %v5702, 16
      %v6536 = vrot.slane %v6534, 5
      %v6537 = vrot.slane %v5939, 6
      %v6538 = vor.u32 %v6536, %v6537
      %v6539 = vsel %vm6404, %v6533, %v6538
      %v6540 = vrot.slane %v5944, 5
      %v6541 = vrot.slane %v5947, 6
      %v6542 = vor.u32 %v6540, %v6541
      %v6543 = vrot.slane %v6542, 4
      %v6544 = vrot.slane %v5957, 5
      %v6545 = vrot.slane %v5953, 6
      %v6546 = vor.u32 %v6544, %v6545
      %v6547 = vsel %vm6404, %v6543, %v6546
      %v6548 = vrot.slane %v6546, 4
      %v6549 = vshrl.u32 %v5705, 16
      %v6551 = vrot.slane %v6549, 5
      %v6552 = vrot.slane %v5963, 6
      %v6553 = vor.u32 %v6551, %v6552
      %v6554 = vsel %vm6404, %v6548, %v6553
      %v6555 = vrot.slane %v5968, 5
      %v6556 = vrot.slane %v5971, 6
      %v6557 = vor.u32 %v6555, %v6556
      %v6558 = vrot.slane %v6557, 4
      %v6559 = vrot.slane %v5981, 5
      %v6560 = vrot.slane %v5977, 6
      %v6561 = vor.u32 %v6559, %v6560
      %v6562 = vsel %vm6404, %v6558, %v6561
      %v6563 = vrot.slane %v6561, 4
      %v6564 = vshrl.u32 %v5708, 16
      %v6566 = vrot.slane %v6564, 5
      %v6567 = vrot.slane %v5987, 6
      %v6568 = vor.u32 %v6566, %v6567
      %v6569 = vsel %vm6404, %v6563, %v6568
      %v6570 = vrot.slane %v5992, 5
      %v6571 = vrot.slane %v5995, 6
      %v6572 = vor.u32 %v6570, %v6571
      %v6573 = vrot.slane %v6572, 4
      %v6574 = vrot.slane %v6005, 5
      %v6575 = vrot.slane %v6001, 6
      %v6576 = vor.u32 %v6574, %v6575
      %v6577 = vsel %vm6404, %v6573, %v6576
      %v6578 = vrot.slane %v6576, 4
      %v6579 = vshrl.u32 %v5711, 16
      %v6581 = vrot.slane %v6579, 5
      %v6582 = vrot.slane %v6011, 6
      %v6583 = vor.u32 %v6581, %v6582
      %v6584 = vsel %vm6404, %v6578, %v6583
      %v6585 = vrot.slane %v6016, 5
      %v6586 = vrot.slane %v6019, 6
      %v6587 = vor.u32 %v6585, %v6586
      %v6588 = vrot.slane %v6587, 4
      %v6589 = vrot.slane %v6029, 5
      %v6590 = vrot.slane %v6025, 6
      %v6591 = vor.u32 %v6589, %v6590
      %v6592 = vsel %vm6404, %v6588, %v6591
      %v6593 = vrot.slane %v6591, 4
      %v6594 = vshrl.u32 %v5714, 16
      %v6596 = vrot.slane %v6594, 5
      %v6597 = vrot.slane %v6035, 6
      %v6598 = vor.u32 %v6596, %v6597
      %v6599 = vsel %vm6404, %v6593, %v6598
      %v6600 = vrot.slane %v6040, 5
      %v6601 = vrot.slane %v6043, 6
      %v6602 = vor.u32 %v6600, %v6601
      %v6603 = vrot.slane %v6602, 4
      %v6604 = vrot.slane %v6053, 5
      %v6605 = vrot.slane %v6049, 6
      %v6606 = vor.u32 %v6604, %v6605
      %v6607 = vsel %vm6404, %v6603, %v6606
      %v6608 = vrot.slane %v6606, 4
      %v6609 = vshrl.u32 %v5717, 16
      %v6611 = vrot.slane %v6609, 5
      %v6612 = vrot.slane %v6059, 6
      %v6613 = vor.u32 %v6611, %v6612
      %v6614 = vsel %vm6404, %v6608, %v6613
      %v6615 = vrot.slane %v6064, 5
      %v6616 = vrot.slane %v6067, 6
      %v6617 = vor.u32 %v6615, %v6616
      %v6618 = vrot.slane %v6617, 4
      %v6619 = vrot.slane %v6077, 5
      %v6620 = vrot.slane %v6073, 6
      %v6621 = vor.u32 %v6619, %v6620
      %v6622 = vsel %vm6404, %v6618, %v6621
      %v6623 = vrot.slane %v6621, 4
      %v6624 = vshrl.u32 %v5720, 16
      %v6626 = vrot.slane %v6624, 5
      %v6627 = vrot.slane %v6083, 6
      %v6628 = vor.u32 %v6626, %v6627
      %v6629 = vsel %vm6404, %v6623, %v6628
      %v6630 = vrot.slane %v6088, 5
      %v6631 = vrot.slane %v6091, 6
      %v6632 = vor.u32 %v6630, %v6631
      %v6633 = vrot.slane %v6632, 4
      %v6634 = vrot.slane %v6101, 5
      %v6635 = vrot.slane %v6097, 6
      %v6636 = vor.u32 %v6634, %v6635
      %v6637 = vsel %vm6404, %v6633, %v6636
      %v6638 = vrot.slane %v6636, 4
      %v6639 = vshrl.u32 %v5723, 16
      %v6641 = vrot.slane %v6639, 5
      %v6642 = vrot.slane %v6107, 6
      %v6643 = vor.u32 %v6641, %v6642
      %v6644 = vsel %vm6404, %v6638, %v6643
      %v6677 = vmax.bf16 %v6370, %v6412
      %v6678 = vmax.bf16 %v6371, %v6419
      %v6679 = vmax.bf16 %v6372, %v6427
      %v6680 = vmax.bf16 %v6373, %v6434
      %v6681 = vmax.bf16 %v6374, %v6442
      %v6682 = vmax.bf16 %v6375, %v6449
      %v6683 = vmax.bf16 %v6376, %v6457
      %v6684 = vmax.bf16 %v6377, %v6464
      %v6685 = vmax.bf16 %v6378, %v6472
      %v6686 = vmax.bf16 %v6379, %v6479
      %v6687 = vmax.bf16 %v6380, %v6487
      %v6688 = vmax.bf16 %v6381, %v6494
      %v6689 = vmax.bf16 %v6382, %v6502
      %v6690 = vmax.bf16 %v6383, %v6509
      %v6691 = vmax.bf16 %v6384, %v6517
      %v6692 = vmax.bf16 %v6385, %v6524
      %v6693 = vmax.bf16 %v6386, %v6532
      %v6694 = vmax.bf16 %v6387, %v6539
      %v6695 = vmax.bf16 %v6388, %v6547
      %v6696 = vmax.bf16 %v6389, %v6554
      %v6697 = vmax.bf16 %v6390, %v6562
      %v6698 = vmax.bf16 %v6391, %v6569
      %v6699 = vmax.bf16 %v6392, %v6577
      %v6700 = vmax.bf16 %v6393, %v6584
      %v6701 = vmax.bf16 %v6394, %v6592
      %v6702 = vmax.bf16 %v6395, %v6599
      %v6703 = vmax.bf16 %v6396, %v6607
      %v6704 = vmax.bf16 %v6397, %v6614
      %v6705 = vmax.bf16 %v6398, %v6622
      %v6706 = vmax.bf16 %v6399, %v6629
      %v6707 = vmax.bf16 %v6400, %v6637
      %v6708 = vmax.bf16 %v6401, %v6644
      %vm6709 = vcmask 1041408
      %vm6710 = vcmask 1045508
      %vm6711 = vmor %vm6709, %vm6710
      %v6712 = vrot.slane %v5676, 6
      %v6713 = vrot.slane %v6712, 4
      %v6714 = vrot.slane %v5677, 6
      %v6715 = vsel %vm6711, %v6713, %v6714
      %v6716 = vrot.slane %v6714, 4
      %v6717 = vrot.slane %v5678, 6
      %v6718 = vsel %vm6711, %v6716, %v6717
      %v6719 = vrot.slane %v5679, 6
      %v6720 = vrot.slane %v6719, 4
      %v6721 = vrot.slane %v5680, 6
      %v6722 = vsel %vm6711, %v6720, %v6721
      %v6723 = vrot.slane %v6721, 4
      %v6724 = vrot.slane %v5681, 6
      %v6725 = vsel %vm6711, %v6723, %v6724
      %v6726 = vrot.slane %v5682, 6
      %v6727 = vrot.slane %v6726, 4
      %v6728 = vrot.slane %v5683, 6
      %v6729 = vsel %vm6711, %v6727, %v6728
      %v6730 = vrot.slane %v6728, 4
      %v6731 = vrot.slane %v5684, 6
      %v6732 = vsel %vm6711, %v6730, %v6731
      %v6733 = vrot.slane %v5685, 6
      %v6734 = vrot.slane %v6733, 4
      %v6735 = vrot.slane %v5686, 6
      %v6736 = vsel %vm6711, %v6734, %v6735
      %v6737 = vrot.slane %v6735, 4
      %v6738 = vrot.slane %v5687, 6
      %v6739 = vsel %vm6711, %v6737, %v6738
      %v6740 = vrot.slane %v5688, 6
      %v6741 = vrot.slane %v6740, 4
      %v6742 = vrot.slane %v5689, 6
      %v6743 = vsel %vm6711, %v6741, %v6742
      %v6744 = vrot.slane %v6742, 4
      %v6745 = vrot.slane %v5690, 6
      %v6746 = vsel %vm6711, %v6744, %v6745
      %v6747 = vrot.slane %v5691, 6
      %v6748 = vrot.slane %v6747, 4
      %v6749 = vrot.slane %v5692, 6
      %v6750 = vsel %vm6711, %v6748, %v6749
      %v6751 = vrot.slane %v6749, 4
      %v6752 = vrot.slane %v5693, 6
      %v6753 = vsel %vm6711, %v6751, %v6752
      %v6754 = vrot.slane %v5694, 6
      %v6755 = vrot.slane %v6754, 4
      %v6756 = vrot.slane %v5695, 6
      %v6757 = vsel %vm6711, %v6755, %v6756
      %v6758 = vrot.slane %v6756, 4
      %v6759 = vrot.slane %v5696, 6
      %v6760 = vsel %vm6711, %v6758, %v6759
      %v6761 = vrot.slane %v5697, 6
      %v6762 = vrot.slane %v6761, 4
      %v6763 = vrot.slane %v5698, 6
      %v6764 = vsel %vm6711, %v6762, %v6763
      %v6765 = vrot.slane %v6763, 4
      %v6766 = vrot.slane %v5699, 6
      %v6767 = vsel %vm6711, %v6765, %v6766
      %v6768 = vrot.slane %v5700, 6
      %v6769 = vrot.slane %v6768, 4
      %v6770 = vrot.slane %v5701, 6
      %v6771 = vsel %vm6711, %v6769, %v6770
      %v6772 = vrot.slane %v6770, 4
      %v6773 = vrot.slane %v5702, 6
      %v6774 = vsel %vm6711, %v6772, %v6773
      %v6775 = vrot.slane %v5703, 6
      %v6776 = vrot.slane %v6775, 4
      %v6777 = vrot.slane %v5704, 6
      %v6778 = vsel %vm6711, %v6776, %v6777
      %v6779 = vrot.slane %v6777, 4
      %v6780 = vrot.slane %v5705, 6
      %v6781 = vsel %vm6711, %v6779, %v6780
      %v6782 = vrot.slane %v5706, 6
      %v6783 = vrot.slane %v6782, 4
      %v6784 = vrot.slane %v5707, 6
      %v6785 = vsel %vm6711, %v6783, %v6784
      %v6786 = vrot.slane %v6784, 4
      %v6787 = vrot.slane %v5708, 6
      %v6788 = vsel %vm6711, %v6786, %v6787
      %v6789 = vrot.slane %v5709, 6
      %v6790 = vrot.slane %v6789, 4
      %v6791 = vrot.slane %v5710, 6
      %v6792 = vsel %vm6711, %v6790, %v6791
      %v6793 = vrot.slane %v6791, 4
      %v6794 = vrot.slane %v5711, 6
      %v6795 = vsel %vm6711, %v6793, %v6794
      %v6796 = vrot.slane %v5712, 6
      %v6797 = vrot.slane %v6796, 4
      %v6798 = vrot.slane %v5713, 6
      %v6799 = vsel %vm6711, %v6797, %v6798
      %v6800 = vrot.slane %v6798, 4
      %v6801 = vrot.slane %v5714, 6
      %v6802 = vsel %vm6711, %v6800, %v6801
      %v6803 = vrot.slane %v5715, 6
      %v6804 = vrot.slane %v6803, 4
      %v6805 = vrot.slane %v5716, 6
      %v6806 = vsel %vm6711, %v6804, %v6805
      %v6807 = vrot.slane %v6805, 4
      %v6808 = vrot.slane %v5717, 6
      %v6809 = vsel %vm6711, %v6807, %v6808
      %v6810 = vrot.slane %v5718, 6
      %v6811 = vrot.slane %v6810, 4
      %v6812 = vrot.slane %v5719, 6
      %v6813 = vsel %vm6711, %v6811, %v6812
      %v6814 = vrot.slane %v6812, 4
      %v6815 = vrot.slane %v5720, 6
      %v6816 = vsel %vm6711, %v6814, %v6815
      %v6817 = vrot.slane %v5721, 6
      %v6818 = vrot.slane %v6817, 4
      %v6819 = vrot.slane %v5722, 6
      %v6820 = vsel %vm6711, %v6818, %v6819
      %v6821 = vrot.slane %v6819, 4
      %v6822 = vrot.slane %v5723, 6
      %v6823 = vsel %vm6711, %v6821, %v6822
      %v6856 = vmax.bf16 %v6677, %v6715
      %v6857 = vmax.bf16 %v6678, %v6718
      %v6858 = vmax.bf16 %v6679, %v6722
      %v6859 = vmax.bf16 %v6680, %v6725
      %v6860 = vmax.bf16 %v6681, %v6729
      %v6861 = vmax.bf16 %v6682, %v6732
      %v6862 = vmax.bf16 %v6683, %v6736
      %v6863 = vmax.bf16 %v6684, %v6739
      %v6864 = vmax.bf16 %v6685, %v6743
      %v6865 = vmax.bf16 %v6686, %v6746
      %v6866 = vmax.bf16 %v6687, %v6750
      %v6867 = vmax.bf16 %v6688, %v6753
      %v6868 = vmax.bf16 %v6689, %v6757
      %v6869 = vmax.bf16 %v6690, %v6760
      %v6870 = vmax.bf16 %v6691, %v6764
      %v6871 = vmax.bf16 %v6692, %v6767
      %v6872 = vmax.bf16 %v6693, %v6771
      %v6873 = vmax.bf16 %v6694, %v6774
      %v6874 = vmax.bf16 %v6695, %v6778
      %v6875 = vmax.bf16 %v6696, %v6781
      %v6876 = vmax.bf16 %v6697, %v6785
      %v6877 = vmax.bf16 %v6698, %v6788
      %v6878 = vmax.bf16 %v6699, %v6792
      %v6879 = vmax.bf16 %v6700, %v6795
      %v6880 = vmax.bf16 %v6701, %v6799
      %v6881 = vmax.bf16 %v6702, %v6802
      %v6882 = vmax.bf16 %v6703, %v6806
      %v6883 = vmax.bf16 %v6704, %v6809
      %v6884 = vmax.bf16 %v6705, %v6813
      %v6885 = vmax.bf16 %v6706, %v6816
      %v6886 = vmax.bf16 %v6707, %v6820
      %v6887 = vmax.bf16 %v6708, %v6823
      %s6888 = scalar_lea.vmem %s280, 128
      %6889 = vst [vmem:[%s6888] sm:$0xf] %v6856
      %6890 = vst [vmem:[%s6888 + $0x4] sm:$0xf] %v6857
      %6891 = vst [vmem:[%s6888 + $0x8] sm:$0xf] %v6858
      %6892 = vst [vmem:[%s6888 + $0xc] sm:$0xf] %v6859
      %6893 = vst [vmem:[%s6888 + $0x10] sm:$0xf] %v6860
      %6894 = vst [vmem:[%s6888 + $0x14] sm:$0xf] %v6861
      %6895 = vst [vmem:[%s6888 + $0x18] sm:$0xf] %v6862
      %6896 = vst [vmem:[%s6888 + $0x1c] sm:$0xf] %v6863
      %6897 = vst [vmem:[%s6888 + $0x20] sm:$0xf] %v6864
      %6898 = vst [vmem:[%s6888 + $0x24] sm:$0xf] %v6865
      %6899 = vst [vmem:[%s6888 + $0x28] sm:$0xf] %v6866
      %6900 = vst [vmem:[%s6888 + $0x2c] sm:$0xf] %v6867
      %6901 = vst [vmem:[%s6888 + $0x30] sm:$0xf] %v6868
      %6902 = vst [vmem:[%s6888 + $0x34] sm:$0xf] %v6869
      %6903 = vst [vmem:[%s6888 + $0x38] sm:$0xf] %v6870
      %6904 = vst [vmem:[%s6888 + $0x3c] sm:$0xf] %v6871
      %6905 = vst [vmem:[%s6888 + $0x40] sm:$0xf] %v6872
      %6906 = vst [vmem:[%s6888 + $0x44] sm:$0xf] %v6873
      %6907 = vst [vmem:[%s6888 + $0x48] sm:$0xf] %v6874
      %6908 = vst [vmem:[%s6888 + $0x4c] sm:$0xf] %v6875
      %6909 = vst [vmem:[%s6888 + $0x50] sm:$0xf] %v6876
      %6910 = vst [vmem:[%s6888 + $0x54] sm:$0xf] %v6877
      %6911 = vst [vmem:[%s6888 + $0x58] sm:$0xf] %v6878
      %6912 = vst [vmem:[%s6888 + $0x5c] sm:$0xf] %v6879
      %6913 = vst [vmem:[%s6888 + $0x60] sm:$0xf] %v6880
      %6914 = vst [vmem:[%s6888 + $0x64] sm:$0xf] %v6881
      %6915 = vst [vmem:[%s6888 + $0x68] sm:$0xf] %v6882
      %6916 = vst [vmem:[%s6888 + $0x6c] sm:$0xf] %v6883
      %6917 = vst [vmem:[%s6888 + $0x70] sm:$0xf] %v6884
      %6918 = vst [vmem:[%s6888 + $0x74] sm:$0xf] %v6885
      %6919 = vst [vmem:[%s6888 + $0x78] sm:$0xf] %v6886
      %6920 = vst [vmem:[%s6888 + $0x7c] sm:$0xf] %v6887
      %v6953 = vrot.slane %v6856, 7
      %v6954 = vrot.slane %v6953, 4
      %v6955 = vrot.slane %v6857, 7
      %v6956 = vsel %vm5111, %v6954, %v6955
      %v6957 = vrot.slane %v6955, 4
      %v6958 = vrot.slane %v6858, 7
      %v6959 = vrot.slane %v6958, 4
      %v6960 = vrot.slane %v6859, 7
      %v6961 = vsel %vm5111, %v6959, %v6960
      %v6962 = vrot.slane %v6960, 4
      %v6963 = vrot.slane %v6860, 7
      %v6964 = vrot.slane %v6963, 4
      %v6965 = vrot.slane %v6861, 7
      %v6966 = vsel %vm5111, %v6964, %v6965
      %v6967 = vrot.slane %v6965, 4
      %v6968 = vrot.slane %v6862, 7
      %v6969 = vrot.slane %v6968, 4
      %v6970 = vrot.slane %v6863, 7
      %v6971 = vsel %vm5111, %v6969, %v6970
      %v6972 = vrot.slane %v6970, 4
      %v6973 = vrot.slane %v6864, 7
      %v6974 = vrot.slane %v6973, 4
      %v6975 = vrot.slane %v6865, 7
      %v6976 = vsel %vm5111, %v6974, %v6975
      %v6977 = vrot.slane %v6975, 4
      %v6978 = vrot.slane %v6866, 7
      %v6979 = vrot.slane %v6978, 4
      %v6980 = vrot.slane %v6867, 7
      %v6981 = vsel %vm5111, %v6979, %v6980
      %v6982 = vrot.slane %v6980, 4
      %v6983 = vrot.slane %v6868, 7
      %v6984 = vrot.slane %v6983, 4
      %v6985 = vrot.slane %v6869, 7
      %v6986 = vsel %vm5111, %v6984, %v6985
      %v6987 = vrot.slane %v6985, 4
      %v6988 = vrot.slane %v6870, 7
      %v6989 = vrot.slane %v6988, 4
      %v6990 = vrot.slane %v6871, 7
      %v6991 = vsel %vm5111, %v6989, %v6990
      %v6992 = vrot.slane %v6990, 4
      %v6993 = vrot.slane %v6872, 7
      %v6994 = vrot.slane %v6993, 4
      %v6995 = vrot.slane %v6873, 7
      %v6996 = vsel %vm5111, %v6994, %v6995
      %v6997 = vrot.slane %v6995, 4
      %v6998 = vrot.slane %v6874, 7
      %v6999 = vrot.slane %v6998, 4
      %v7000 = vrot.slane %v6875, 7
      %v7001 = vsel %vm5111, %v6999, %v7000
      %v7002 = vrot.slane %v7000, 4
      %v7003 = vrot.slane %v6876, 7
      %v7004 = vrot.slane %v7003, 4
      %v7005 = vrot.slane %v6877, 7
      %v7006 = vsel %vm5111, %v7004, %v7005
      %v7007 = vrot.slane %v7005, 4
      %v7008 = vrot.slane %v6878, 7
      %v7009 = vrot.slane %v7008, 4
      %v7010 = vrot.slane %v6879, 7
      %v7011 = vsel %vm5111, %v7009, %v7010
      %v7012 = vrot.slane %v7010, 4
      %v7013 = vrot.slane %v6880, 7
      %v7014 = vrot.slane %v7013, 4
      %v7015 = vrot.slane %v6881, 7
      %v7016 = vsel %vm5111, %v7014, %v7015
      %v7017 = vrot.slane %v7015, 4
      %v7018 = vrot.slane %v6882, 7
      %v7019 = vrot.slane %v7018, 4
      %v7020 = vrot.slane %v6883, 7
      %v7021 = vsel %vm5111, %v7019, %v7020
      %v7022 = vrot.slane %v7020, 4
      %v7023 = vrot.slane %v6884, 7
      %v7024 = vrot.slane %v7023, 4
      %v7025 = vrot.slane %v6885, 7
      %v7026 = vsel %vm5111, %v7024, %v7025
      %v7027 = vrot.slane %v7025, 4
      %v7028 = vrot.slane %v6886, 7
      %v7029 = vrot.slane %v7028, 4
      %v7030 = vrot.slane %v6887, 7
      %v7031 = vsel %vm5111, %v7029, %v7030
      %v7032 = vrot.slane %v7030, 4
      %7081 = vst [vmem:[%s5240] sm:$0xe] %v6953
      %7082 = vst [vmem:[%s5240 + $0x4] sm:$0xf] %v6956
      %7083 = vst [vmem:[%s5240 + $0x8] sm:$0x1] %v6957
      %7084 = vst [vmem:[%s5240 + $0xc] sm:$0xe] %v6958
      %7085 = vst [vmem:[%s5240 + $0x10] sm:$0xf] %v6961
      %7086 = vst [vmem:[%s5240 + $0x14] sm:$0x1] %v6962
      %7087 = vst [vmem:[%s5240 + $0x18] sm:$0xe] %v6963
      %7088 = vst [vmem:[%s5240 + $0x1c] sm:$0xf] %v6966
      %7089 = vst [vmem:[%s5240 + $0x20] sm:$0x1] %v6967
      %7090 = vst [vmem:[%s5240 + $0x24] sm:$0xe] %v6968
      %7091 = vst [vmem:[%s5240 + $0x28] sm:$0xf] %v6971
      %7092 = vst [vmem:[%s5240 + $0x2c] sm:$0x1] %v6972
      %7093 = vst [vmem:[%s5240 + $0x30] sm:$0xe] %v6973
      %7094 = vst [vmem:[%s5240 + $0x34] sm:$0xf] %v6976
      %7095 = vst [vmem:[%s5240 + $0x38] sm:$0x1] %v6977
      %7096 = vst [vmem:[%s5240 + $0x3c] sm:$0xe] %v6978
      %7097 = vst [vmem:[%s5240 + $0x40] sm:$0xf] %v6981
      %7098 = vst [vmem:[%s5240 + $0x44] sm:$0x1] %v6982
      %7099 = vst [vmem:[%s5240 + $0x48] sm:$0xe] %v6983
      %7100 = vst [vmem:[%s5240 + $0x4c] sm:$0xf] %v6986
      %7101 = vst [vmem:[%s5240 + $0x50] sm:$0x1] %v6987
      %7102 = vst [vmem:[%s5240 + $0x54] sm:$0xe] %v6988
      %7103 = vst [vmem:[%s5240 + $0x58] sm:$0xf] %v6991
      %7104 = vst [vmem:[%s5240 + $0x5c] sm:$0x1] %v6992
      %7105 = vst [vmem:[%s5240 + $0x60] sm:$0xe] %v6993
      %7106 = vst [vmem:[%s5240 + $0x64] sm:$0xf] %v6996
      %7107 = vst [vmem:[%s5240 + $0x68] sm:$0x1] %v6997
      %7108 = vst [vmem:[%s5240 + $0x6c] sm:$0xe] %v6998
      %7109 = vst [vmem:[%s5240 + $0x70] sm:$0xf] %v7001
      %7110 = vst [vmem:[%s5240 + $0x74] sm:$0x1] %v7002
      %7111 = vst [vmem:[%s5240 + $0x78] sm:$0xe] %v7003
      %7112 = vst [vmem:[%s5240 + $0x7c] sm:$0xf] %v7006
      %7113 = vst [vmem:[%s5240 + $0x80] sm:$0x1] %v7007
      %7114 = vst [vmem:[%s5240 + $0x84] sm:$0xe] %v7008
      %7115 = vst [vmem:[%s5240 + $0x88] sm:$0xf] %v7011
      %7116 = vst [vmem:[%s5240 + $0x8c] sm:$0x1] %v7012
      %7117 = vst [vmem:[%s5240 + $0x90] sm:$0xe] %v7013
      %7118 = vst [vmem:[%s5240 + $0x94] sm:$0xf] %v7016
      %7119 = vst [vmem:[%s5240 + $0x98] sm:$0x1] %v7017
      %7120 = vst [vmem:[%s5240 + $0x9c] sm:$0xe] %v7018
      %7121 = vst [vmem:[%s5240 + $0xa0] sm:$0xf] %v7021
      %7122 = vst [vmem:[%s5240 + $0xa4] sm:$0x1] %v7022
      %7123 = vst [vmem:[%s5240 + $0xa8] sm:$0xe] %v7023
      %7124 = vst [vmem:[%s5240 + $0xac] sm:$0xf] %v7026
      %7125 = vst [vmem:[%s5240 + $0xb0] sm:$0x1] %v7027
      %7126 = vst [vmem:[%s5240 + $0xb4] sm:$0xe] %v7028
      %7127 = vst [vmem:[%s5240 + $0xb8] sm:$0xf] %v7031
      %7128 = vst [vmem:[%s5240 + $0xbc] sm:$0x1] %v7032
      %v7129 = vld [vmem:[#allocation3] sm:$0xf]
      %v7130 = vld [vmem:[#allocation3 + $0x4] sm:$0xf]
      %v7131 = vld [vmem:[#allocation3 + $0x8] sm:$0x3]
      %v7132 = vld [vmem:[#allocation3 + $0xc] sm:$0xf]
      %v7133 = vld [vmem:[#allocation3 + $0x10] sm:$0xf]
      %v7134 = vld [vmem:[#allocation3 + $0x14] sm:$0x3]
      %v7135 = vld [vmem:[#allocation3 + $0x18] sm:$0xf]
      %v7136 = vld [vmem:[#allocation3 + $0x1c] sm:$0xf]
      %v7137 = vld [vmem:[#allocation3 + $0x20] sm:$0x3]
      %v7138 = vld [vmem:[#allocation3 + $0x24] sm:$0xf]
      %v7139 = vld [vmem:[#allocation3 + $0x28] sm:$0xf]
      %v7140 = vld [vmem:[#allocation3 + $0x2c] sm:$0x3]
      %v7141 = vld [vmem:[#allocation3 + $0x30] sm:$0xf]
      %v7142 = vld [vmem:[#allocation3 + $0x34] sm:$0xf]
      %v7143 = vld [vmem:[#allocation3 + $0x38] sm:$0x3]
      %v7144 = vld [vmem:[#allocation3 + $0x3c] sm:$0xf]
      %v7145 = vld [vmem:[#allocation3 + $0x40] sm:$0xf]
      %v7146 = vld [vmem:[#allocation3 + $0x44] sm:$0x3]
      %v7147 = vld [vmem:[#allocation3 + $0x48] sm:$0xf]
      %v7148 = vld [vmem:[#allocation3 + $0x4c] sm:$0xf]
      %v7149 = vld [vmem:[#allocation3 + $0x50] sm:$0x3]
      %v7150 = vld [vmem:[#allocation3 + $0x54] sm:$0xf]
      %v7151 = vld [vmem:[#allocation3 + $0x58] sm:$0xf]
      %v7152 = vld [vmem:[#allocation3 + $0x5c] sm:$0x3]
      %v7153 = vld [vmem:[#allocation3 + $0x60] sm:$0xf]
      %v7154 = vld [vmem:[#allocation3 + $0x64] sm:$0xf]
      %v7155 = vld [vmem:[#allocation3 + $0x68] sm:$0x3]
      %v7156 = vld [vmem:[#allocation3 + $0x6c] sm:$0xf]
      %v7157 = vld [vmem:[#allocation3 + $0x70] sm:$0xf]
      %v7158 = vld [vmem:[#allocation3 + $0x74] sm:$0x3]
      %v7159 = vld [vmem:[#allocation3 + $0x78] sm:$0xf]
      %v7160 = vld [vmem:[#allocation3 + $0x7c] sm:$0xf]
      %v7161 = vld [vmem:[#allocation3 + $0x80] sm:$0x3]
      %v7162 = vld [vmem:[#allocation3 + $0x84] sm:$0xf]
      %v7163 = vld [vmem:[#allocation3 + $0x88] sm:$0xf]
      %v7164 = vld [vmem:[#allocation3 + $0x8c] sm:$0x3]
      %v7165 = vld [vmem:[#allocation3 + $0x90] sm:$0xf]
      %v7166 = vld [vmem:[#allocation3 + $0x94] sm:$0xf]
      %v7167 = vld [vmem:[#allocation3 + $0x98] sm:$0x3]
      %v7168 = vld [vmem:[#allocation3 + $0x9c] sm:$0xf]
      %v7169 = vld [vmem:[#allocation3 + $0xa0] sm:$0xf]
      %v7170 = vld [vmem:[#allocation3 + $0xa4] sm:$0x3]
      %v7171 = vld [vmem:[#allocation3 + $0xa8] sm:$0xf]
      %v7172 = vld [vmem:[#allocation3 + $0xac] sm:$0xf]
      %v7173 = vld [vmem:[#allocation3 + $0xb0] sm:$0x3]
      %v7174 = vld [vmem:[#allocation3 + $0xb4] sm:$0xf]
      %v7175 = vld [vmem:[#allocation3 + $0xb8] sm:$0xf]
      %v7176 = vld [vmem:[#allocation3 + $0xbc] sm:$0x3]
      %v7177 = vld [vmem:[%s5337] sm:$0xf]
      %v7178 = vld [vmem:[%s5337 + $0x4] sm:$0xf]
      %v7179 = vld [vmem:[%s5337 + $0x8] sm:$0x3]
      %v7180 = vld [vmem:[%s5337 + $0xc] sm:$0xf]
      %v7181 = vld [vmem:[%s5337 + $0x10] sm:$0xf]
      %v7182 = vld [vmem:[%s5337 + $0x14] sm:$0x3]
      %v7183 = vld [vmem:[%s5337 + $0x18] sm:$0xf]
      %v7184 = vld [vmem:[%s5337 + $0x1c] sm:$0xf]
      %v7185 = vld [vmem:[%s5337 + $0x20] sm:$0x3]
      %v7186 = vld [vmem:[%s5337 + $0x24] sm:$0xf]
      %v7187 = vld [vmem:[%s5337 + $0x28] sm:$0xf]
      %v7188 = vld [vmem:[%s5337 + $0x2c] sm:$0x3]
      %v7189 = vld [vmem:[%s5337 + $0x30] sm:$0xf]
      %v7190 = vld [vmem:[%s5337 + $0x34] sm:$0xf]
      %v7191 = vld [vmem:[%s5337 + $0x38] sm:$0x3]
      %v7192 = vld [vmem:[%s5337 + $0x3c] sm:$0xf]
      %v7193 = vld [vmem:[%s5337 + $0x40] sm:$0xf]
      %v7194 = vld [vmem:[%s5337 + $0x44] sm:$0x3]
      %v7195 = vld [vmem:[%s5337 + $0x48] sm:$0xf]
      %v7196 = vld [vmem:[%s5337 + $0x4c] sm:$0xf]
      %v7197 = vld [vmem:[%s5337 + $0x50] sm:$0x3]
      %v7198 = vld [vmem:[%s5337 + $0x54] sm:$0xf]
      %v7199 = vld [vmem:[%s5337 + $0x58] sm:$0xf]
      %v7200 = vld [vmem:[%s5337 + $0x5c] sm:$0x3]
      %v7201 = vld [vmem:[%s5337 + $0x60] sm:$0xf]
      %v7202 = vld [vmem:[%s5337 + $0x64] sm:$0xf]
      %v7203 = vld [vmem:[%s5337 + $0x68] sm:$0x3]
      %v7204 = vld [vmem:[%s5337 + $0x6c] sm:$0xf]
      %v7205 = vld [vmem:[%s5337 + $0x70] sm:$0xf]
      %v7206 = vld [vmem:[%s5337 + $0x74] sm:$0x3]
      %v7207 = vld [vmem:[%s5337 + $0x78] sm:$0xf]
      %v7208 = vld [vmem:[%s5337 + $0x7c] sm:$0xf]
      %v7209 = vld [vmem:[%s5337 + $0x80] sm:$0x3]
      %v7210 = vld [vmem:[%s5337 + $0x84] sm:$0xf]
      %v7211 = vld [vmem:[%s5337 + $0x88] sm:$0xf]
      %v7212 = vld [vmem:[%s5337 + $0x8c] sm:$0x3]
      %v7213 = vld [vmem:[%s5337 + $0x90] sm:$0xf]
      %v7214 = vld [vmem:[%s5337 + $0x94] sm:$0xf]
      %v7215 = vld [vmem:[%s5337 + $0x98] sm:$0x3]
      %v7216 = vld [vmem:[%s5337 + $0x9c] sm:$0xf]
      %v7217 = vld [vmem:[%s5337 + $0xa0] sm:$0xf]
      %v7218 = vld [vmem:[%s5337 + $0xa4] sm:$0x3]
      %v7219 = vld [vmem:[%s5337 + $0xa8] sm:$0xf]
      %v7220 = vld [vmem:[%s5337 + $0xac] sm:$0xf]
      %v7221 = vld [vmem:[%s5337 + $0xb0] sm:$0x3]
      %v7222 = vld [vmem:[%s5337 + $0xb4] sm:$0xf]
      %v7223 = vld [vmem:[%s5337 + $0xb8] sm:$0xf]
      %v7224 = vld [vmem:[%s5337 + $0xbc] sm:$0x3]
      %v7225 = vmax.bf16 %v7129, %v7177
      %v7226 = vmax.bf16 %v7130, %v7178
      %v7227 = vmax.bf16 %v7131, %v7179
      %v7228 = vmax.bf16 %v7132, %v7180
      %v7229 = vmax.bf16 %v7133, %v7181
      %v7230 = vmax.bf16 %v7134, %v7182
      %v7231 = vmax.bf16 %v7135, %v7183
      %v7232 = vmax.bf16 %v7136, %v7184
      %v7233 = vmax.bf16 %v7137, %v7185
      %v7234 = vmax.bf16 %v7138, %v7186
      %v7235 = vmax.bf16 %v7139, %v7187
      %v7236 = vmax.bf16 %v7140, %v7188
      %v7237 = vmax.bf16 %v7141, %v7189
      %v7238 = vmax.bf16 %v7142, %v7190
      %v7239 = vmax.bf16 %v7143, %v7191
      %v7240 = vmax.bf16 %v7144, %v7192
      %v7241 = vmax.bf16 %v7145, %v7193
      %v7242 = vmax.bf16 %v7146, %v7194
      %v7243 = vmax.bf16 %v7147, %v7195
      %v7244 = vmax.bf16 %v7148, %v7196
      %v7245 = vmax.bf16 %v7149, %v7197
      %v7246 = vmax.bf16 %v7150, %v7198
      %v7247 = vmax.bf16 %v7151, %v7199
      %v7248 = vmax.bf16 %v7152, %v7200
      %v7249 = vmax.bf16 %v7153, %v7201
      %v7250 = vmax.bf16 %v7154, %v7202
      %v7251 = vmax.bf16 %v7155, %v7203
      %v7252 = vmax.bf16 %v7156, %v7204
      %v7253 = vmax.bf16 %v7157, %v7205
      %v7254 = vmax.bf16 %v7158, %v7206
      %v7255 = vmax.bf16 %v7159, %v7207
      %v7256 = vmax.bf16 %v7160, %v7208
      %v7257 = vmax.bf16 %v7161, %v7209
      %v7258 = vmax.bf16 %v7162, %v7210
      %v7259 = vmax.bf16 %v7163, %v7211
      %v7260 = vmax.bf16 %v7164, %v7212
      %v7261 = vmax.bf16 %v7165, %v7213
      %v7262 = vmax.bf16 %v7166, %v7214
      %v7263 = vmax.bf16 %v7167, %v7215
      %v7264 = vmax.bf16 %v7168, %v7216
      %v7265 = vmax.bf16 %v7169, %v7217
      %v7266 = vmax.bf16 %v7170, %v7218
      %v7267 = vmax.bf16 %v7171, %v7219
      %v7268 = vmax.bf16 %v7172, %v7220
      %v7269 = vmax.bf16 %v7173, %v7221
      %v7270 = vmax.bf16 %v7174, %v7222
      %v7271 = vmax.bf16 %v7175, %v7223
      %v7272 = vmax.bf16 %v7176, %v7224
      %v7273 = vld [vmem:[%s5240] sm:$0xf]
      %v7274 = vld [vmem:[%s5240 + $0x4] sm:$0xf]
      %v7275 = vld [vmem:[%s5240 + $0x8] sm:$0x3]
      %v7276 = vld [vmem:[%s5240 + $0xc] sm:$0xf]
      %v7277 = vld [vmem:[%s5240 + $0x10] sm:$0xf]
      %v7278 = vld [vmem:[%s5240 + $0x14] sm:$0x3]
      %v7279 = vld [vmem:[%s5240 + $0x18] sm:$0xf]
      %v7280 = vld [vmem:[%s5240 + $0x1c] sm:$0xf]
      %v7281 = vld [vmem:[%s5240 + $0x20] sm:$0x3]
      %v7282 = vld [vmem:[%s5240 + $0x24] sm:$0xf]
      %v7283 = vld [vmem:[%s5240 + $0x28] sm:$0xf]
      %v7284 = vld [vmem:[%s5240 + $0x2c] sm:$0x3]
      %v7285 = vld [vmem:[%s5240 + $0x30] sm:$0xf]
      %v7286 = vld [vmem:[%s5240 + $0x34] sm:$0xf]
      %v7287 = vld [vmem:[%s5240 + $0x38] sm:$0x3]
      %v7288 = vld [vmem:[%s5240 + $0x3c] sm:$0xf]
      %v7289 = vld [vmem:[%s5240 + $0x40] sm:$0xf]
      %v7290 = vld [vmem:[%s5240 + $0x44] sm:$0x3]
      %v7291 = vld [vmem:[%s5240 + $0x48] sm:$0xf]
      %v7292 = vld [vmem:[%s5240 + $0x4c] sm:$0xf]
      %v7293 = vld [vmem:[%s5240 + $0x50] sm:$0x3]
      %v7294 = vld [vmem:[%s5240 + $0x54] sm:$0xf]
      %v7295 = vld [vmem:[%s5240 + $0x58] sm:$0xf]
      %v7296 = vld [vmem:[%s5240 + $0x5c] sm:$0x3]
      %v7297 = vld [vmem:[%s5240 + $0x60] sm:$0xf]
      %v7298 = vld [vmem:[%s5240 + $0x64] sm:$0xf]
      %v7299 = vld [vmem:[%s5240 + $0x68] sm:$0x3]
      %v7300 = vld [vmem:[%s5240 + $0x6c] sm:$0xf]
      %v7301 = vld [vmem:[%s5240 + $0x70] sm:$0xf]
      %v7302 = vld [vmem:[%s5240 + $0x74] sm:$0x3]
      %v7303 = vld [vmem:[%s5240 + $0x78] sm:$0xf]
      %v7304 = vld [vmem:[%s5240 + $0x7c] sm:$0xf]
      %v7305 = vld [vmem:[%s5240 + $0x80] sm:$0x3]
      %v7306 = vld [vmem:[%s5240 + $0x84] sm:$0xf]
      %v7307 = vld [vmem:[%s5240 + $0x88] sm:$0xf]
      %v7308 = vld [vmem:[%s5240 + $0x8c] sm:$0x3]
      %v7309 = vld [vmem:[%s5240 + $0x90] sm:$0xf]
      %v7310 = vld [vmem:[%s5240 + $0x94] sm:$0xf]
      %v7311 = vld [vmem:[%s5240 + $0x98] sm:$0x3]
      %v7312 = vld [vmem:[%s5240 + $0x9c] sm:$0xf]
      %v7313 = vld [vmem:[%s5240 + $0xa0] sm:$0xf]
      %v7314 = vld [vmem:[%s5240 + $0xa4] sm:$0x3]
      %v7315 = vld [vmem:[%s5240 + $0xa8] sm:$0xf]
      %v7316 = vld [vmem:[%s5240 + $0xac] sm:$0xf]
      %v7317 = vld [vmem:[%s5240 + $0xb0] sm:$0x3]
      %v7318 = vld [vmem:[%s5240 + $0xb4] sm:$0xf]
      %v7319 = vld [vmem:[%s5240 + $0xb8] sm:$0xf]
      %v7320 = vld [vmem:[%s5240 + $0xbc] sm:$0x3]
      %v7321 = vmax.bf16 %v7225, %v7273
      %v7322 = vmax.bf16 %v7226, %v7274
      %v7323 = vmax.bf16 %v7227, %v7275
      %v7324 = vmax.bf16 %v7228, %v7276
      %v7325 = vmax.bf16 %v7229, %v7277
      %v7326 = vmax.bf16 %v7230, %v7278
      %v7327 = vmax.bf16 %v7231, %v7279
      %v7328 = vmax.bf16 %v7232, %v7280
      %v7329 = vmax.bf16 %v7233, %v7281
      %v7330 = vmax.bf16 %v7234, %v7282
      %v7331 = vmax.bf16 %v7235, %v7283
      %v7332 = vmax.bf16 %v7236, %v7284
      %v7333 = vmax.bf16 %v7237, %v7285
      %v7334 = vmax.bf16 %v7238, %v7286
      %v7335 = vmax.bf16 %v7239, %v7287
      %v7336 = vmax.bf16 %v7240, %v7288
      %v7337 = vmax.bf16 %v7241, %v7289
      %v7338 = vmax.bf16 %v7242, %v7290
      %v7339 = vmax.bf16 %v7243, %v7291
      %v7340 = vmax.bf16 %v7244, %v7292
      %v7341 = vmax.bf16 %v7245, %v7293
      %v7342 = vmax.bf16 %v7246, %v7294
      %v7343 = vmax.bf16 %v7247, %v7295
      %v7344 = vmax.bf16 %v7248, %v7296
      %v7345 = vmax.bf16 %v7249, %v7297
      %v7346 = vmax.bf16 %v7250, %v7298
      %v7347 = vmax.bf16 %v7251, %v7299
      %v7348 = vmax.bf16 %v7252, %v7300
      %v7349 = vmax.bf16 %v7253, %v7301
      %v7350 = vmax.bf16 %v7254, %v7302
      %v7351 = vmax.bf16 %v7255, %v7303
      %v7352 = vmax.bf16 %v7256, %v7304
      %v7353 = vmax.bf16 %v7257, %v7305
      %v7354 = vmax.bf16 %v7258, %v7306
      %v7355 = vmax.bf16 %v7259, %v7307
      %v7356 = vmax.bf16 %v7260, %v7308
      %v7357 = vmax.bf16 %v7261, %v7309
      %v7358 = vmax.bf16 %v7262, %v7310
      %v7359 = vmax.bf16 %v7263, %v7311
      %v7360 = vmax.bf16 %v7264, %v7312
      %v7361 = vmax.bf16 %v7265, %v7313
      %v7362 = vmax.bf16 %v7266, %v7314
      %v7363 = vmax.bf16 %v7267, %v7315
      %v7364 = vmax.bf16 %v7268, %v7316
      %v7365 = vmax.bf16 %v7269, %v7317
      %v7366 = vmax.bf16 %v7270, %v7318
      %v7367 = vmax.bf16 %v7271, %v7319
      %v7368 = vmax.bf16 %v7272, %v7320
      %v7369 = vld [vmem:[%s5530] sm:$0xf]
      %v7370 = vld [vmem:[%s5530 + $0x4] sm:$0xf]
      %v7371 = vld [vmem:[%s5530 + $0x8] sm:$0x3]
      %v7372 = vld [vmem:[%s5530 + $0xc] sm:$0xf]
      %v7373 = vld [vmem:[%s5530 + $0x10] sm:$0xf]
      %v7374 = vld [vmem:[%s5530 + $0x14] sm:$0x3]
      %v7375 = vld [vmem:[%s5530 + $0x18] sm:$0xf]
      %v7376 = vld [vmem:[%s5530 + $0x1c] sm:$0xf]
      %v7377 = vld [vmem:[%s5530 + $0x20] sm:$0x3]
      %v7378 = vld [vmem:[%s5530 + $0x24] sm:$0xf]
      %v7379 = vld [vmem:[%s5530 + $0x28] sm:$0xf]
      %v7380 = vld [vmem:[%s5530 + $0x2c] sm:$0x3]
      %v7381 = vld [vmem:[%s5530 + $0x30] sm:$0xf]
      %v7382 = vld [vmem:[%s5530 + $0x34] sm:$0xf]
      %v7383 = vld [vmem:[%s5530 + $0x38] sm:$0x3]
      %v7384 = vld [vmem:[%s5530 + $0x3c] sm:$0xf]
      %v7385 = vld [vmem:[%s5530 + $0x40] sm:$0xf]
      %v7386 = vld [vmem:[%s5530 + $0x44] sm:$0x3]
      %v7387 = vld [vmem:[%s5530 + $0x48] sm:$0xf]
      %v7388 = vld [vmem:[%s5530 + $0x4c] sm:$0xf]
      %v7389 = vld [vmem:[%s5530 + $0x50] sm:$0x3]
      %v7390 = vld [vmem:[%s5530 + $0x54] sm:$0xf]
      %v7391 = vld [vmem:[%s5530 + $0x58] sm:$0xf]
      %v7392 = vld [vmem:[%s5530 + $0x5c] sm:$0x3]
      %v7393 = vld [vmem:[%s5530 + $0x60] sm:$0xf]
      %v7394 = vld [vmem:[%s5530 + $0x64] sm:$0xf]
      %v7395 = vld [vmem:[%s5530 + $0x68] sm:$0x3]
      %v7396 = vld [vmem:[%s5530 + $0x6c] sm:$0xf]
      %v7397 = vld [vmem:[%s5530 + $0x70] sm:$0xf]
      %v7398 = vld [vmem:[%s5530 + $0x74] sm:$0x3]
      %v7399 = vld [vmem:[%s5530 + $0x78] sm:$0xf]
      %v7400 = vld [vmem:[%s5530 + $0x7c] sm:$0xf]
      %v7401 = vld [vmem:[%s5530 + $0x80] sm:$0x3]
      %v7402 = vld [vmem:[%s5530 + $0x84] sm:$0xf]
      %v7403 = vld [vmem:[%s5530 + $0x88] sm:$0xf]
      %v7404 = vld [vmem:[%s5530 + $0x8c] sm:$0x3]
      %v7405 = vld [vmem:[%s5530 + $0x90] sm:$0xf]
      %v7406 = vld [vmem:[%s5530 + $0x94] sm:$0xf]
      %v7407 = vld [vmem:[%s5530 + $0x98] sm:$0x3]
      %v7408 = vld [vmem:[%s5530 + $0x9c] sm:$0xf]
      %v7409 = vld [vmem:[%s5530 + $0xa0] sm:$0xf]
      %v7410 = vld [vmem:[%s5530 + $0xa4] sm:$0x3]
      %v7411 = vld [vmem:[%s5530 + $0xa8] sm:$0xf]
      %v7412 = vld [vmem:[%s5530 + $0xac] sm:$0xf]
      %v7413 = vld [vmem:[%s5530 + $0xb0] sm:$0x3]
      %v7414 = vld [vmem:[%s5530 + $0xb4] sm:$0xf]
      %v7415 = vld [vmem:[%s5530 + $0xb8] sm:$0xf]
      %v7416 = vld [vmem:[%s5530 + $0xbc] sm:$0x3]
      %v7417 = vmax.bf16 %v7321, %v7369
      %v7418 = vmax.bf16 %v7322, %v7370
      %v7419 = vmax.bf16 %v7323, %v7371
      %v7420 = vmax.bf16 %v7324, %v7372
      %v7421 = vmax.bf16 %v7325, %v7373
      %v7422 = vmax.bf16 %v7326, %v7374
      %v7423 = vmax.bf16 %v7327, %v7375
      %v7424 = vmax.bf16 %v7328, %v7376
      %v7425 = vmax.bf16 %v7329, %v7377
      %v7426 = vmax.bf16 %v7330, %v7378
      %v7427 = vmax.bf16 %v7331, %v7379
      %v7428 = vmax.bf16 %v7332, %v7380
      %v7429 = vmax.bf16 %v7333, %v7381
      %v7430 = vmax.bf16 %v7334, %v7382
      %v7431 = vmax.bf16 %v7335, %v7383
      %v7432 = vmax.bf16 %v7336, %v7384
      %v7433 = vmax.bf16 %v7337, %v7385
      %v7434 = vmax.bf16 %v7338, %v7386
      %v7435 = vmax.bf16 %v7339, %v7387
      %v7436 = vmax.bf16 %v7340, %v7388
      %v7437 = vmax.bf16 %v7341, %v7389
      %v7438 = vmax.bf16 %v7342, %v7390
      %v7439 = vmax.bf16 %v7343, %v7391
      %v7440 = vmax.bf16 %v7344, %v7392
      %v7441 = vmax.bf16 %v7345, %v7393
      %v7442 = vmax.bf16 %v7346, %v7394
      %v7443 = vmax.bf16 %v7347, %v7395
      %v7444 = vmax.bf16 %v7348, %v7396
      %v7445 = vmax.bf16 %v7349, %v7397
      %v7446 = vmax.bf16 %v7350, %v7398
      %v7447 = vmax.bf16 %v7351, %v7399
      %v7448 = vmax.bf16 %v7352, %v7400
      %v7449 = vmax.bf16 %v7353, %v7401
      %v7450 = vmax.bf16 %v7354, %v7402
      %v7451 = vmax.bf16 %v7355, %v7403
      %v7452 = vmax.bf16 %v7356, %v7404
      %v7453 = vmax.bf16 %v7357, %v7405
      %v7454 = vmax.bf16 %v7358, %v7406
      %v7455 = vmax.bf16 %v7359, %v7407
      %v7456 = vmax.bf16 %v7360, %v7408
      %v7457 = vmax.bf16 %v7361, %v7409
      %v7458 = vmax.bf16 %v7362, %v7410
      %v7459 = vmax.bf16 %v7363, %v7411
      %v7460 = vmax.bf16 %v7364, %v7412
      %v7461 = vmax.bf16 %v7365, %v7413
      %v7462 = vmax.bf16 %v7366, %v7414
      %v7463 = vmax.bf16 %v7367, %v7415
      %v7464 = vmax.bf16 %v7368, %v7416
      %v7465 = vld [vmem:[%s5627] sm:$0xf]
      %v7466 = vld [vmem:[%s5627 + $0x4] sm:$0xf]
      %v7467 = vld [vmem:[%s5627 + $0x8] sm:$0x3]
      %v7468 = vld [vmem:[%s5627 + $0xc] sm:$0xf]
      %v7469 = vld [vmem:[%s5627 + $0x10] sm:$0xf]
      %v7470 = vld [vmem:[%s5627 + $0x14] sm:$0x3]
      %v7471 = vld [vmem:[%s5627 + $0x18] sm:$0xf]
      %v7472 = vld [vmem:[%s5627 + $0x1c] sm:$0xf]
      %v7473 = vld [vmem:[%s5627 + $0x20] sm:$0x3]
      %v7474 = vld [vmem:[%s5627 + $0x24] sm:$0xf]
      %v7475 = vld [vmem:[%s5627 + $0x28] sm:$0xf]
      %v7476 = vld [vmem:[%s5627 + $0x2c] sm:$0x3]
      %v7477 = vld [vmem:[%s5627 + $0x30] sm:$0xf]
      %v7478 = vld [vmem:[%s5627 + $0x34] sm:$0xf]
      %v7479 = vld [vmem:[%s5627 + $0x38] sm:$0x3]
      %v7480 = vld [vmem:[%s5627 + $0x3c] sm:$0xf]
      %v7481 = vld [vmem:[%s5627 + $0x40] sm:$0xf]
      %v7482 = vld [vmem:[%s5627 + $0x44] sm:$0x3]
      %v7483 = vld [vmem:[%s5627 + $0x48] sm:$0xf]
      %v7484 = vld [vmem:[%s5627 + $0x4c] sm:$0xf]
      %v7485 = vld [vmem:[%s5627 + $0x50] sm:$0x3]
      %v7486 = vld [vmem:[%s5627 + $0x54] sm:$0xf]
      %v7487 = vld [vmem:[%s5627 + $0x58] sm:$0xf]
      %v7488 = vld [vmem:[%s5627 + $0x5c] sm:$0x3]
      %v7489 = vld [vmem:[%s5627 + $0x60] sm:$0xf]
      %v7490 = vld [vmem:[%s5627 + $0x64] sm:$0xf]
      %v7491 = vld [vmem:[%s5627 + $0x68] sm:$0x3]
      %v7492 = vld [vmem:[%s5627 + $0x6c] sm:$0xf]
      %v7493 = vld [vmem:[%s5627 + $0x70] sm:$0xf]
      %v7494 = vld [vmem:[%s5627 + $0x74] sm:$0x3]
      %v7495 = vld [vmem:[%s5627 + $0x78] sm:$0xf]
      %v7496 = vld [vmem:[%s5627 + $0x7c] sm:$0xf]
      %v7497 = vld [vmem:[%s5627 + $0x80] sm:$0x3]
      %v7498 = vld [vmem:[%s5627 + $0x84] sm:$0xf]
      %v7499 = vld [vmem:[%s5627 + $0x88] sm:$0xf]
      %v7500 = vld [vmem:[%s5627 + $0x8c] sm:$0x3]
      %v7501 = vld [vmem:[%s5627 + $0x90] sm:$0xf]
      %v7502 = vld [vmem:[%s5627 + $0x94] sm:$0xf]
      %v7503 = vld [vmem:[%s5627 + $0x98] sm:$0x3]
      %v7504 = vld [vmem:[%s5627 + $0x9c] sm:$0xf]
      %v7505 = vld [vmem:[%s5627 + $0xa0] sm:$0xf]
      %v7506 = vld [vmem:[%s5627 + $0xa4] sm:$0x3]
      %v7507 = vld [vmem:[%s5627 + $0xa8] sm:$0xf]
      %v7508 = vld [vmem:[%s5627 + $0xac] sm:$0xf]
      %v7509 = vld [vmem:[%s5627 + $0xb0] sm:$0x3]
      %v7510 = vld [vmem:[%s5627 + $0xb4] sm:$0xf]
      %v7511 = vld [vmem:[%s5627 + $0xb8] sm:$0xf]
      %v7512 = vld [vmem:[%s5627 + $0xbc] sm:$0x3]
      %v7513 = vmax.bf16 %v7417, %v7465
      %v7514 = vmax.bf16 %v7418, %v7466
      %v7515 = vmax.bf16 %v7419, %v7467
      %v7516 = vmax.bf16 %v7420, %v7468
      %v7517 = vmax.bf16 %v7421, %v7469
      %v7518 = vmax.bf16 %v7422, %v7470
      %v7519 = vmax.bf16 %v7423, %v7471
      %v7520 = vmax.bf16 %v7424, %v7472
      %v7521 = vmax.bf16 %v7425, %v7473
      %v7522 = vmax.bf16 %v7426, %v7474
      %v7523 = vmax.bf16 %v7427, %v7475
      %v7524 = vmax.bf16 %v7428, %v7476
      %v7525 = vmax.bf16 %v7429, %v7477
      %v7526 = vmax.bf16 %v7430, %v7478
      %v7527 = vmax.bf16 %v7431, %v7479
      %v7528 = vmax.bf16 %v7432, %v7480
      %v7529 = vmax.bf16 %v7433, %v7481
      %v7530 = vmax.bf16 %v7434, %v7482
      %v7531 = vmax.bf16 %v7435, %v7483
      %v7532 = vmax.bf16 %v7436, %v7484
      %v7533 = vmax.bf16 %v7437, %v7485
      %v7534 = vmax.bf16 %v7438, %v7486
      %v7535 = vmax.bf16 %v7439, %v7487
      %v7536 = vmax.bf16 %v7440, %v7488
      %v7537 = vmax.bf16 %v7441, %v7489
      %v7538 = vmax.bf16 %v7442, %v7490
      %v7539 = vmax.bf16 %v7443, %v7491
      %v7540 = vmax.bf16 %v7444, %v7492
      %v7541 = vmax.bf16 %v7445, %v7493
      %v7542 = vmax.bf16 %v7446, %v7494
      %v7543 = vmax.bf16 %v7447, %v7495
      %v7544 = vmax.bf16 %v7448, %v7496
      %v7545 = vmax.bf16 %v7449, %v7497
      %v7546 = vmax.bf16 %v7450, %v7498
      %v7547 = vmax.bf16 %v7451, %v7499
      %v7548 = vmax.bf16 %v7452, %v7500
      %v7549 = vmax.bf16 %v7453, %v7501
      %v7550 = vmax.bf16 %v7454, %v7502
      %v7551 = vmax.bf16 %v7455, %v7503
      %v7552 = vmax.bf16 %v7456, %v7504
      %v7553 = vmax.bf16 %v7457, %v7505
      %v7554 = vmax.bf16 %v7458, %v7506
      %v7555 = vmax.bf16 %v7459, %v7507
      %v7556 = vmax.bf16 %v7460, %v7508
      %v7557 = vmax.bf16 %v7461, %v7509
      %v7558 = vmax.bf16 %v7462, %v7510
      %v7559 = vmax.bf16 %v7463, %v7511
      %v7560 = vmax.bf16 %v7464, %v7512
      %v7562 = vshrl.u32 %v7513, 16
      %v7564 = vrot.slane %v7562, 4
      %v7565 = vshll.u32 %v7513, 16
      %v7567 = vrot.slane %v7565, 5
      %v7568 = vor.u32 %v7564, %v7567
      %v7569 = vrot.slane %v7568, 4
      %v7571 = vshll.u32 %v7514, 16
      %v7573 = vrot.slane %v7571, 5
      %v7574 = vsel %vm5726, %v7569, %v7573
      %v7575 = vshrl.u32 %v7514, 16
      %v7577 = vrot.slane %v7575, 4
      %v7578 = vor.u32 %v7577, %v7573
      %v7579 = vrot.slane %v7578, 4
      %v7581 = vshll.u32 %v7515, 16
      %v7583 = vrot.slane %v7581, 5
      %v7584 = vsel %vm5726, %v7579, %v7583
      %v7586 = vshrl.u32 %v7516, 16
      %v7588 = vrot.slane %v7586, 4
      %v7589 = vshll.u32 %v7516, 16
      %v7591 = vrot.slane %v7589, 5
      %v7592 = vor.u32 %v7588, %v7591
      %v7593 = vrot.slane %v7592, 4
      %v7595 = vshll.u32 %v7517, 16
      %v7597 = vrot.slane %v7595, 5
      %v7598 = vsel %vm5726, %v7593, %v7597
      %v7599 = vshrl.u32 %v7517, 16
      %v7601 = vrot.slane %v7599, 4
      %v7602 = vor.u32 %v7601, %v7597
      %v7603 = vrot.slane %v7602, 4
      %v7605 = vshll.u32 %v7518, 16
      %v7607 = vrot.slane %v7605, 5
      %v7608 = vsel %vm5726, %v7603, %v7607
      %v7610 = vshrl.u32 %v7519, 16
      %v7612 = vrot.slane %v7610, 4
      %v7613 = vshll.u32 %v7519, 16
      %v7615 = vrot.slane %v7613, 5
      %v7616 = vor.u32 %v7612, %v7615
      %v7617 = vrot.slane %v7616, 4
      %v7619 = vshll.u32 %v7520, 16
      %v7621 = vrot.slane %v7619, 5
      %v7622 = vsel %vm5726, %v7617, %v7621
      %v7623 = vshrl.u32 %v7520, 16
      %v7625 = vrot.slane %v7623, 4
      %v7626 = vor.u32 %v7625, %v7621
      %v7627 = vrot.slane %v7626, 4
      %v7629 = vshll.u32 %v7521, 16
      %v7631 = vrot.slane %v7629, 5
      %v7632 = vsel %vm5726, %v7627, %v7631
      %v7634 = vshrl.u32 %v7522, 16
      %v7636 = vrot.slane %v7634, 4
      %v7637 = vshll.u32 %v7522, 16
      %v7639 = vrot.slane %v7637, 5
      %v7640 = vor.u32 %v7636, %v7639
      %v7641 = vrot.slane %v7640, 4
      %v7643 = vshll.u32 %v7523, 16
      %v7645 = vrot.slane %v7643, 5
      %v7646 = vsel %vm5726, %v7641, %v7645
      %v7647 = vshrl.u32 %v7523, 16
      %v7649 = vrot.slane %v7647, 4
      %v7650 = vor.u32 %v7649, %v7645
      %v7651 = vrot.slane %v7650, 4
      %v7653 = vshll.u32 %v7524, 16
      %v7655 = vrot.slane %v7653, 5
      %v7656 = vsel %vm5726, %v7651, %v7655
      %v7658 = vshrl.u32 %v7525, 16
      %v7660 = vrot.slane %v7658, 4
      %v7661 = vshll.u32 %v7525, 16
      %v7663 = vrot.slane %v7661, 5
      %v7664 = vor.u32 %v7660, %v7663
      %v7665 = vrot.slane %v7664, 4
      %v7667 = vshll.u32 %v7526, 16
      %v7669 = vrot.slane %v7667, 5
      %v7670 = vsel %vm5726, %v7665, %v7669
      %v7671 = vshrl.u32 %v7526, 16
      %v7673 = vrot.slane %v7671, 4
      %v7674 = vor.u32 %v7673, %v7669
      %v7675 = vrot.slane %v7674, 4
      %v7677 = vshll.u32 %v7527, 16
      %v7679 = vrot.slane %v7677, 5
      %v7680 = vsel %vm5726, %v7675, %v7679
      %v7682 = vshrl.u32 %v7528, 16
      %v7684 = vrot.slane %v7682, 4
      %v7685 = vshll.u32 %v7528, 16
      %v7687 = vrot.slane %v7685, 5
      %v7688 = vor.u32 %v7684, %v7687
      %v7689 = vrot.slane %v7688, 4
      %v7691 = vshll.u32 %v7529, 16
      %v7693 = vrot.slane %v7691, 5
      %v7694 = vsel %vm5726, %v7689, %v7693
      %v7695 = vshrl.u32 %v7529, 16
      %v7697 = vrot.slane %v7695, 4
      %v7698 = vor.u32 %v7697, %v7693
      %v7699 = vrot.slane %v7698, 4
      %v7701 = vshll.u32 %v7530, 16
      %v7703 = vrot.slane %v7701, 5
      %v7704 = vsel %vm5726, %v7699, %v7703
      %v7706 = vshrl.u32 %v7531, 16
      %v7708 = vrot.slane %v7706, 4
      %v7709 = vshll.u32 %v7531, 16
      %v7711 = vrot.slane %v7709, 5
      %v7712 = vor.u32 %v7708, %v7711
      %v7713 = vrot.slane %v7712, 4
      %v7715 = vshll.u32 %v7532, 16
      %v7717 = vrot.slane %v7715, 5
      %v7718 = vsel %vm5726, %v7713, %v7717
      %v7719 = vshrl.u32 %v7532, 16
      %v7721 = vrot.slane %v7719, 4
      %v7722 = vor.u32 %v7721, %v7717
      %v7723 = vrot.slane %v7722, 4
      %v7725 = vshll.u32 %v7533, 16
      %v7727 = vrot.slane %v7725, 5
      %v7728 = vsel %vm5726, %v7723, %v7727
      %v7730 = vshrl.u32 %v7534, 16
      %v7732 = vrot.slane %v7730, 4
      %v7733 = vshll.u32 %v7534, 16
      %v7735 = vrot.slane %v7733, 5
      %v7736 = vor.u32 %v7732, %v7735
      %v7737 = vrot.slane %v7736, 4
      %v7739 = vshll.u32 %v7535, 16
      %v7741 = vrot.slane %v7739, 5
      %v7742 = vsel %vm5726, %v7737, %v7741
      %v7743 = vshrl.u32 %v7535, 16
      %v7745 = vrot.slane %v7743, 4
      %v7746 = vor.u32 %v7745, %v7741
      %v7747 = vrot.slane %v7746, 4
      %v7749 = vshll.u32 %v7536, 16
      %v7751 = vrot.slane %v7749, 5
      %v7752 = vsel %vm5726, %v7747, %v7751
      %v7754 = vshrl.u32 %v7537, 16
      %v7756 = vrot.slane %v7754, 4
      %v7757 = vshll.u32 %v7537, 16
      %v7759 = vrot.slane %v7757, 5
      %v7760 = vor.u32 %v7756, %v7759
      %v7761 = vrot.slane %v7760, 4
      %v7763 = vshll.u32 %v7538, 16
      %v7765 = vrot.slane %v7763, 5
      %v7766 = vsel %vm5726, %v7761, %v7765
      %v7767 = vshrl.u32 %v7538, 16
      %v7769 = vrot.slane %v7767, 4
      %v7770 = vor.u32 %v7769, %v7765
      %v7771 = vrot.slane %v7770, 4
      %v7773 = vshll.u32 %v7539, 16
      %v7775 = vrot.slane %v7773, 5
      %v7776 = vsel %vm5726, %v7771, %v7775
      %v7778 = vshrl.u32 %v7540, 16
      %v7780 = vrot.slane %v7778, 4
      %v7781 = vshll.u32 %v7540, 16
      %v7783 = vrot.slane %v7781, 5
      %v7784 = vor.u32 %v7780, %v7783
      %v7785 = vrot.slane %v7784, 4
      %v7787 = vshll.u32 %v7541, 16
      %v7789 = vrot.slane %v7787, 5
      %v7790 = vsel %vm5726, %v7785, %v7789
      %v7791 = vshrl.u32 %v7541, 16
      %v7793 = vrot.slane %v7791, 4
      %v7794 = vor.u32 %v7793, %v7789
      %v7795 = vrot.slane %v7794, 4
      %v7797 = vshll.u32 %v7542, 16
      %v7799 = vrot.slane %v7797, 5
      %v7800 = vsel %vm5726, %v7795, %v7799
      %v7802 = vshrl.u32 %v7543, 16
      %v7804 = vrot.slane %v7802, 4
      %v7805 = vshll.u32 %v7543, 16
      %v7807 = vrot.slane %v7805, 5
      %v7808 = vor.u32 %v7804, %v7807
      %v7809 = vrot.slane %v7808, 4
      %v7811 = vshll.u32 %v7544, 16
      %v7813 = vrot.slane %v7811, 5
      %v7814 = vsel %vm5726, %v7809, %v7813
      %v7815 = vshrl.u32 %v7544, 16
      %v7817 = vrot.slane %v7815, 4
      %v7818 = vor.u32 %v7817, %v7813
      %v7819 = vrot.slane %v7818, 4
      %v7821 = vshll.u32 %v7545, 16
      %v7823 = vrot.slane %v7821, 5
      %v7824 = vsel %vm5726, %v7819, %v7823
      %v7826 = vshrl.u32 %v7546, 16
      %v7828 = vrot.slane %v7826, 4
      %v7829 = vshll.u32 %v7546, 16
      %v7831 = vrot.slane %v7829, 5
      %v7832 = vor.u32 %v7828, %v7831
      %v7833 = vrot.slane %v7832, 4
      %v7835 = vshll.u32 %v7547, 16
      %v7837 = vrot.slane %v7835, 5
      %v7838 = vsel %vm5726, %v7833, %v7837
      %v7839 = vshrl.u32 %v7547, 16
      %v7841 = vrot.slane %v7839, 4
      %v7842 = vor.u32 %v7841, %v7837
      %v7843 = vrot.slane %v7842, 4
      %v7845 = vshll.u32 %v7548, 16
      %v7847 = vrot.slane %v7845, 5
      %v7848 = vsel %vm5726, %v7843, %v7847
      %v7850 = vshrl.u32 %v7549, 16
      %v7852 = vrot.slane %v7850, 4
      %v7853 = vshll.u32 %v7549, 16
      %v7855 = vrot.slane %v7853, 5
      %v7856 = vor.u32 %v7852, %v7855
      %v7857 = vrot.slane %v7856, 4
      %v7859 = vshll.u32 %v7550, 16
      %v7861 = vrot.slane %v7859, 5
      %v7862 = vsel %vm5726, %v7857, %v7861
      %v7863 = vshrl.u32 %v7550, 16
      %v7865 = vrot.slane %v7863, 4
      %v7866 = vor.u32 %v7865, %v7861
      %v7867 = vrot.slane %v7866, 4
      %v7869 = vshll.u32 %v7551, 16
      %v7871 = vrot.slane %v7869, 5
      %v7872 = vsel %vm5726, %v7867, %v7871
      %v7874 = vshrl.u32 %v7552, 16
      %v7876 = vrot.slane %v7874, 4
      %v7877 = vshll.u32 %v7552, 16
      %v7879 = vrot.slane %v7877, 5
      %v7880 = vor.u32 %v7876, %v7879
      %v7881 = vrot.slane %v7880, 4
      %v7883 = vshll.u32 %v7553, 16
      %v7885 = vrot.slane %v7883, 5
      %v7886 = vsel %vm5726, %v7881, %v7885
      %v7887 = vshrl.u32 %v7553, 16
      %v7889 = vrot.slane %v7887, 4
      %v7890 = vor.u32 %v7889, %v7885
      %v7891 = vrot.slane %v7890, 4
      %v7893 = vshll.u32 %v7554, 16
      %v7895 = vrot.slane %v7893, 5
      %v7896 = vsel %vm5726, %v7891, %v7895
      %v7898 = vshrl.u32 %v7555, 16
      %v7900 = vrot.slane %v7898, 4
      %v7901 = vshll.u32 %v7555, 16
      %v7903 = vrot.slane %v7901, 5
      %v7904 = vor.u32 %v7900, %v7903
      %v7905 = vrot.slane %v7904, 4
      %v7907 = vshll.u32 %v7556, 16
      %v7909 = vrot.slane %v7907, 5
      %v7910 = vsel %vm5726, %v7905, %v7909
      %v7911 = vshrl.u32 %v7556, 16
      %v7913 = vrot.slane %v7911, 4
      %v7914 = vor.u32 %v7913, %v7909
      %v7915 = vrot.slane %v7914, 4
      %v7917 = vshll.u32 %v7557, 16
      %v7919 = vrot.slane %v7917, 5
      %v7920 = vsel %vm5726, %v7915, %v7919
      %v7922 = vshrl.u32 %v7558, 16
      %v7924 = vrot.slane %v7922, 4
      %v7925 = vshll.u32 %v7558, 16
      %v7927 = vrot.slane %v7925, 5
      %v7928 = vor.u32 %v7924, %v7927
      %v7929 = vrot.slane %v7928, 4
      %v7931 = vshll.u32 %v7559, 16
      %v7933 = vrot.slane %v7931, 5
      %v7934 = vsel %vm5726, %v7929, %v7933
      %v7935 = vshrl.u32 %v7559, 16
      %v7937 = vrot.slane %v7935, 4
      %v7938 = vor.u32 %v7937, %v7933
      %v7939 = vrot.slane %v7938, 4
      %v7941 = vshll.u32 %v7560, 16
      %v7943 = vrot.slane %v7941, 5
      %v7944 = vsel %vm5726, %v7939, %v7943
      %v7977 = vmax.bf16 %v7513, %v7574
      %v7978 = vmax.bf16 %v7514, %v7584
      %v7979 = vmax.bf16 %v7516, %v7598
      %v7980 = vmax.bf16 %v7517, %v7608
      %v7981 = vmax.bf16 %v7519, %v7622
      %v7982 = vmax.bf16 %v7520, %v7632
      %v7983 = vmax.bf16 %v7522, %v7646
      %v7984 = vmax.bf16 %v7523, %v7656
      %v7985 = vmax.bf16 %v7525, %v7670
      %v7986 = vmax.bf16 %v7526, %v7680
      %v7987 = vmax.bf16 %v7528, %v7694
      %v7988 = vmax.bf16 %v7529, %v7704
      %v7989 = vmax.bf16 %v7531, %v7718
      %v7990 = vmax.bf16 %v7532, %v7728
      %v7991 = vmax.bf16 %v7534, %v7742
      %v7992 = vmax.bf16 %v7535, %v7752
      %v7993 = vmax.bf16 %v7537, %v7766
      %v7994 = vmax.bf16 %v7538, %v7776
      %v7995 = vmax.bf16 %v7540, %v7790
      %v7996 = vmax.bf16 %v7541, %v7800
      %v7997 = vmax.bf16 %v7543, %v7814
      %v7998 = vmax.bf16 %v7544, %v7824
      %v7999 = vmax.bf16 %v7546, %v7838
      %v8000 = vmax.bf16 %v7547, %v7848
      %v8001 = vmax.bf16 %v7549, %v7862
      %v8002 = vmax.bf16 %v7550, %v7872
      %v8003 = vmax.bf16 %v7552, %v7886
      %v8004 = vmax.bf16 %v7553, %v7896
      %v8005 = vmax.bf16 %v7555, %v7910
      %v8006 = vmax.bf16 %v7556, %v7920
      %v8007 = vmax.bf16 %v7558, %v7934
      %v8008 = vmax.bf16 %v7559, %v7944
      %v8057 = vrot.slane %v7513, 5
      %v8058 = vrot.slane %v8057, 4
      %v8059 = vrot.slane %v7514, 5
      %v8060 = vsel %vm6225, %v8058, %v8059
      %v8061 = vrot.slane %v8059, 4
      %v8062 = vrot.slane %v7515, 5
      %v8063 = vsel %vm6225, %v8061, %v8062
      %v8064 = vrot.slane %v7516, 5
      %v8065 = vrot.slane %v8064, 4
      %v8066 = vrot.slane %v7517, 5
      %v8067 = vsel %vm6225, %v8065, %v8066
      %v8068 = vrot.slane %v8066, 4
      %v8069 = vrot.slane %v7518, 5
      %v8070 = vsel %vm6225, %v8068, %v8069
      %v8071 = vrot.slane %v7519, 5
      %v8072 = vrot.slane %v8071, 4
      %v8073 = vrot.slane %v7520, 5
      %v8074 = vsel %vm6225, %v8072, %v8073
      %v8075 = vrot.slane %v8073, 4
      %v8076 = vrot.slane %v7521, 5
      %v8077 = vsel %vm6225, %v8075, %v8076
      %v8078 = vrot.slane %v7522, 5
      %v8079 = vrot.slane %v8078, 4
      %v8080 = vrot.slane %v7523, 5
      %v8081 = vsel %vm6225, %v8079, %v8080
      %v8082 = vrot.slane %v8080, 4
      %v8083 = vrot.slane %v7524, 5
      %v8084 = vsel %vm6225, %v8082, %v8083
      %v8085 = vrot.slane %v7525, 5
      %v8086 = vrot.slane %v8085, 4
      %v8087 = vrot.slane %v7526, 5
      %v8088 = vsel %vm6225, %v8086, %v8087
      %v8089 = vrot.slane %v8087, 4
      %v8090 = vrot.slane %v7527, 5
      %v8091 = vsel %vm6225, %v8089, %v8090
      %v8092 = vrot.slane %v7528, 5
      %v8093 = vrot.slane %v8092, 4
      %v8094 = vrot.slane %v7529, 5
      %v8095 = vsel %vm6225, %v8093, %v8094
      %v8096 = vrot.slane %v8094, 4
      %v8097 = vrot.slane %v7530, 5
      %v8098 = vsel %vm6225, %v8096, %v8097
      %v8099 = vrot.slane %v7531, 5
      %v8100 = vrot.slane %v8099, 4
      %v8101 = vrot.slane %v7532, 5
      %v8102 = vsel %vm6225, %v8100, %v8101
      %v8103 = vrot.slane %v8101, 4
      %v8104 = vrot.slane %v7533, 5
      %v8105 = vsel %vm6225, %v8103, %v8104
      %v8106 = vrot.slane %v7534, 5
      %v8107 = vrot.slane %v8106, 4
      %v8108 = vrot.slane %v7535, 5
      %v8109 = vsel %vm6225, %v8107, %v8108
      %v8110 = vrot.slane %v8108, 4
      %v8111 = vrot.slane %v7536, 5
      %v8112 = vsel %vm6225, %v8110, %v8111
      %v8113 = vrot.slane %v7537, 5
      %v8114 = vrot.slane %v8113, 4
      %v8115 = vrot.slane %v7538, 5
      %v8116 = vsel %vm6225, %v8114, %v8115
      %v8117 = vrot.slane %v8115, 4
      %v8118 = vrot.slane %v7539, 5
      %v8119 = vsel %vm6225, %v8117, %v8118
      %v8120 = vrot.slane %v7540, 5
      %v8121 = vrot.slane %v8120, 4
      %v8122 = vrot.slane %v7541, 5
      %v8123 = vsel %vm6225, %v8121, %v8122
      %v8124 = vrot.slane %v8122, 4
      %v8125 = vrot.slane %v7542, 5
      %v8126 = vsel %vm6225, %v8124, %v8125
      %v8127 = vrot.slane %v7543, 5
      %v8128 = vrot.slane %v8127, 4
      %v8129 = vrot.slane %v7544, 5
      %v8130 = vsel %vm6225, %v8128, %v8129
      %v8131 = vrot.slane %v8129, 4
      %v8132 = vrot.slane %v7545, 5
      %v8133 = vsel %vm6225, %v8131, %v8132
      %v8134 = vrot.slane %v7546, 5
      %v8135 = vrot.slane %v8134, 4
      %v8136 = vrot.slane %v7547, 5
      %v8137 = vsel %vm6225, %v8135, %v8136
      %v8138 = vrot.slane %v8136, 4
      %v8139 = vrot.slane %v7548, 5
      %v8140 = vsel %vm6225, %v8138, %v8139
      %v8141 = vrot.slane %v7549, 5
      %v8142 = vrot.slane %v8141, 4
      %v8143 = vrot.slane %v7550, 5
      %v8144 = vsel %vm6225, %v8142, %v8143
      %v8145 = vrot.slane %v8143, 4
      %v8146 = vrot.slane %v7551, 5
      %v8147 = vsel %vm6225, %v8145, %v8146
      %v8148 = vrot.slane %v7552, 5
      %v8149 = vrot.slane %v8148, 4
      %v8150 = vrot.slane %v7553, 5
      %v8151 = vsel %vm6225, %v8149, %v8150
      %v8152 = vrot.slane %v8150, 4
      %v8153 = vrot.slane %v7554, 5
      %v8154 = vsel %vm6225, %v8152, %v8153
      %v8155 = vrot.slane %v7555, 5
      %v8156 = vrot.slane %v8155, 4
      %v8157 = vrot.slane %v7556, 5
      %v8158 = vsel %vm6225, %v8156, %v8157
      %v8159 = vrot.slane %v8157, 4
      %v8160 = vrot.slane %v7557, 5
      %v8161 = vsel %vm6225, %v8159, %v8160
      %v8162 = vrot.slane %v7558, 5
      %v8163 = vrot.slane %v8162, 4
      %v8164 = vrot.slane %v7559, 5
      %v8165 = vsel %vm6225, %v8163, %v8164
      %v8166 = vrot.slane %v8164, 4
      %v8167 = vrot.slane %v7560, 5
      %v8168 = vsel %vm6225, %v8166, %v8167
      %v8201 = vmax.bf16 %v7977, %v8060
      %v8202 = vmax.bf16 %v7978, %v8063
      %v8203 = vmax.bf16 %v7979, %v8067
      %v8204 = vmax.bf16 %v7980, %v8070
      %v8205 = vmax.bf16 %v7981, %v8074
      %v8206 = vmax.bf16 %v7982, %v8077
      %v8207 = vmax.bf16 %v7983, %v8081
      %v8208 = vmax.bf16 %v7984, %v8084
      %v8209 = vmax.bf16 %v7985, %v8088
      %v8210 = vmax.bf16 %v7986, %v8091
      %v8211 = vmax.bf16 %v7987, %v8095
      %v8212 = vmax.bf16 %v7988, %v8098
      %v8213 = vmax.bf16 %v7989, %v8102
      %v8214 = vmax.bf16 %v7990, %v8105
      %v8215 = vmax.bf16 %v7991, %v8109
      %v8216 = vmax.bf16 %v7992, %v8112
      %v8217 = vmax.bf16 %v7993, %v8116
      %v8218 = vmax.bf16 %v7994, %v8119
      %v8219 = vmax.bf16 %v7995, %v8123
      %v8220 = vmax.bf16 %v7996, %v8126
      %v8221 = vmax.bf16 %v7997, %v8130
      %v8222 = vmax.bf16 %v7998, %v8133
      %v8223 = vmax.bf16 %v7999, %v8137
      %v8224 = vmax.bf16 %v8000, %v8140
      %v8225 = vmax.bf16 %v8001, %v8144
      %v8226 = vmax.bf16 %v8002, %v8147
      %v8227 = vmax.bf16 %v8003, %v8151
      %v8228 = vmax.bf16 %v8004, %v8154
      %v8229 = vmax.bf16 %v8005, %v8158
      %v8230 = vmax.bf16 %v8006, %v8161
      %v8231 = vmax.bf16 %v8007, %v8165
      %v8232 = vmax.bf16 %v8008, %v8168
      %v8233 = vrot.slane %v7562, 5
      %v8234 = vrot.slane %v7565, 6
      %v8235 = vor.u32 %v8233, %v8234
      %v8236 = vrot.slane %v8235, 4
      %v8237 = vrot.slane %v7575, 5
      %v8238 = vrot.slane %v7571, 6
      %v8239 = vor.u32 %v8237, %v8238
      %v8240 = vsel %vm6404, %v8236, %v8239
      %v8241 = vrot.slane %v8239, 4
      %v8242 = vshrl.u32 %v7515, 16
      %v8244 = vrot.slane %v8242, 5
      %v8245 = vrot.slane %v7581, 6
      %v8246 = vor.u32 %v8244, %v8245
      %v8247 = vsel %vm6404, %v8241, %v8246
      %v8248 = vrot.slane %v7586, 5
      %v8249 = vrot.slane %v7589, 6
      %v8250 = vor.u32 %v8248, %v8249
      %v8251 = vrot.slane %v8250, 4
      %v8252 = vrot.slane %v7599, 5
      %v8253 = vrot.slane %v7595, 6
      %v8254 = vor.u32 %v8252, %v8253
      %v8255 = vsel %vm6404, %v8251, %v8254
      %v8256 = vrot.slane %v8254, 4
      %v8257 = vshrl.u32 %v7518, 16
      %v8259 = vrot.slane %v8257, 5
      %v8260 = vrot.slane %v7605, 6
      %v8261 = vor.u32 %v8259, %v8260
      %v8262 = vsel %vm6404, %v8256, %v8261
      %v8263 = vrot.slane %v7610, 5
      %v8264 = vrot.slane %v7613, 6
      %v8265 = vor.u32 %v8263, %v8264
      %v8266 = vrot.slane %v8265, 4
      %v8267 = vrot.slane %v7623, 5
      %v8268 = vrot.slane %v7619, 6
      %v8269 = vor.u32 %v8267, %v8268
      %v8270 = vsel %vm6404, %v8266, %v8269
      %v8271 = vrot.slane %v8269, 4
      %v8272 = vshrl.u32 %v7521, 16
      %v8274 = vrot.slane %v8272, 5
      %v8275 = vrot.slane %v7629, 6
      %v8276 = vor.u32 %v8274, %v8275
      %v8277 = vsel %vm6404, %v8271, %v8276
      %v8278 = vrot.slane %v7634, 5
      %v8279 = vrot.slane %v7637, 6
      %v8280 = vor.u32 %v8278, %v8279
      %v8281 = vrot.slane %v8280, 4
      %v8282 = vrot.slane %v7647, 5
      %v8283 = vrot.slane %v7643, 6
      %v8284 = vor.u32 %v8282, %v8283
      %v8285 = vsel %vm6404, %v8281, %v8284
      %v8286 = vrot.slane %v8284, 4
      %v8287 = vshrl.u32 %v7524, 16
      %v8289 = vrot.slane %v8287, 5
      %v8290 = vrot.slane %v7653, 6
      %v8291 = vor.u32 %v8289, %v8290
      %v8292 = vsel %vm6404, %v8286, %v8291
      %v8293 = vrot.slane %v7658, 5
      %v8294 = vrot.slane %v7661, 6
      %v8295 = vor.u32 %v8293, %v8294
      %v8296 = vrot.slane %v8295, 4
      %v8297 = vrot.slane %v7671, 5
      %v8298 = vrot.slane %v7667, 6
      %v8299 = vor.u32 %v8297, %v8298
      %v8300 = vsel %vm6404, %v8296, %v8299
      %v8301 = vrot.slane %v8299, 4
      %v8302 = vshrl.u32 %v7527, 16
      %v8304 = vrot.slane %v8302, 5
      %v8305 = vrot.slane %v7677, 6
      %v8306 = vor.u32 %v8304, %v8305
      %v8307 = vsel %vm6404, %v8301, %v8306
      %v8308 = vrot.slane %v7682, 5
      %v8309 = vrot.slane %v7685, 6
      %v8310 = vor.u32 %v8308, %v8309
      %v8311 = vrot.slane %v8310, 4
      %v8312 = vrot.slane %v7695, 5
      %v8313 = vrot.slane %v7691, 6
      %v8314 = vor.u32 %v8312, %v8313
      %v8315 = vsel %vm6404, %v8311, %v8314
      %v8316 = vrot.slane %v8314, 4
      %v8317 = vshrl.u32 %v7530, 16
      %v8319 = vrot.slane %v8317, 5
      %v8320 = vrot.slane %v7701, 6
      %v8321 = vor.u32 %v8319, %v8320
      %v8322 = vsel %vm6404, %v8316, %v8321
      %v8323 = vrot.slane %v7706, 5
      %v8324 = vrot.slane %v7709, 6
      %v8325 = vor.u32 %v8323, %v8324
      %v8326 = vrot.slane %v8325, 4
      %v8327 = vrot.slane %v7719, 5
      %v8328 = vrot.slane %v7715, 6
      %v8329 = vor.u32 %v8327, %v8328
      %v8330 = vsel %vm6404, %v8326, %v8329
      %v8331 = vrot.slane %v8329, 4
      %v8332 = vshrl.u32 %v7533, 16
      %v8334 = vrot.slane %v8332, 5
      %v8335 = vrot.slane %v7725, 6
      %v8336 = vor.u32 %v8334, %v8335
      %v8337 = vsel %vm6404, %v8331, %v8336
      %v8338 = vrot.slane %v7730, 5
      %v8339 = vrot.slane %v7733, 6
      %v8340 = vor.u32 %v8338, %v8339
      %v8341 = vrot.slane %v8340, 4
      %v8342 = vrot.slane %v7743, 5
      %v8343 = vrot.slane %v7739, 6
      %v8344 = vor.u32 %v8342, %v8343
      %v8345 = vsel %vm6404, %v8341, %v8344
      %v8346 = vrot.slane %v8344, 4
      %v8347 = vshrl.u32 %v7536, 16
      %v8349 = vrot.slane %v8347, 5
      %v8350 = vrot.slane %v7749, 6
      %v8351 = vor.u32 %v8349, %v8350
      %v8352 = vsel %vm6404, %v8346, %v8351
      %v8353 = vrot.slane %v7754, 5
      %v8354 = vrot.slane %v7757, 6
      %v8355 = vor.u32 %v8353, %v8354
      %v8356 = vrot.slane %v8355, 4
      %v8357 = vrot.slane %v7767, 5
      %v8358 = vrot.slane %v7763, 6
      %v8359 = vor.u32 %v8357, %v8358
      %v8360 = vsel %vm6404, %v8356, %v8359
      %v8361 = vrot.slane %v8359, 4
      %v8362 = vshrl.u32 %v7539, 16
      %v8364 = vrot.slane %v8362, 5
      %v8365 = vrot.slane %v7773, 6
      %v8366 = vor.u32 %v8364, %v8365
      %v8367 = vsel %vm6404, %v8361, %v8366
      %v8368 = vrot.slane %v7778, 5
      %v8369 = vrot.slane %v7781, 6
      %v8370 = vor.u32 %v8368, %v8369
      %v8371 = vrot.slane %v8370, 4
      %v8372 = vrot.slane %v7791, 5
      %v8373 = vrot.slane %v7787, 6
      %v8374 = vor.u32 %v8372, %v8373
      %v8375 = vsel %vm6404, %v8371, %v8374
      %v8376 = vrot.slane %v8374, 4
      %v8377 = vshrl.u32 %v7542, 16
      %v8379 = vrot.slane %v8377, 5
      %v8380 = vrot.slane %v7797, 6
      %v8381 = vor.u32 %v8379, %v8380
      %v8382 = vsel %vm6404, %v8376, %v8381
      %v8383 = vrot.slane %v7802, 5
      %v8384 = vrot.slane %v7805, 6
      %v8385 = vor.u32 %v8383, %v8384
      %v8386 = vrot.slane %v8385, 4
      %v8387 = vrot.slane %v7815, 5
      %v8388 = vrot.slane %v7811, 6
      %v8389 = vor.u32 %v8387, %v8388
      %v8390 = vsel %vm6404, %v8386, %v8389
      %v8391 = vrot.slane %v8389, 4
      %v8392 = vshrl.u32 %v7545, 16
      %v8394 = vrot.slane %v8392, 5
      %v8395 = vrot.slane %v7821, 6
      %v8396 = vor.u32 %v8394, %v8395
      %v8397 = vsel %vm6404, %v8391, %v8396
      %v8398 = vrot.slane %v7826, 5
      %v8399 = vrot.slane %v7829, 6
      %v8400 = vor.u32 %v8398, %v8399
      %v8401 = vrot.slane %v8400, 4
      %v8402 = vrot.slane %v7839, 5
      %v8403 = vrot.slane %v7835, 6
      %v8404 = vor.u32 %v8402, %v8403
      %v8405 = vsel %vm6404, %v8401, %v8404
      %v8406 = vrot.slane %v8404, 4
      %v8407 = vshrl.u32 %v7548, 16
      %v8409 = vrot.slane %v8407, 5
      %v8410 = vrot.slane %v7845, 6
      %v8411 = vor.u32 %v8409, %v8410
      %v8412 = vsel %vm6404, %v8406, %v8411
      %v8413 = vrot.slane %v7850, 5
      %v8414 = vrot.slane %v7853, 6
      %v8415 = vor.u32 %v8413, %v8414
      %v8416 = vrot.slane %v8415, 4
      %v8417 = vrot.slane %v7863, 5
      %v8418 = vrot.slane %v7859, 6
      %v8419 = vor.u32 %v8417, %v8418
      %v8420 = vsel %vm6404, %v8416, %v8419
      %v8421 = vrot.slane %v8419, 4
      %v8422 = vshrl.u32 %v7551, 16
      %v8424 = vrot.slane %v8422, 5
      %v8425 = vrot.slane %v7869, 6
      %v8426 = vor.u32 %v8424, %v8425
      %v8427 = vsel %vm6404, %v8421, %v8426
      %v8428 = vrot.slane %v7874, 5
      %v8429 = vrot.slane %v7877, 6
      %v8430 = vor.u32 %v8428, %v8429
      %v8431 = vrot.slane %v8430, 4
      %v8432 = vrot.slane %v7887, 5
      %v8433 = vrot.slane %v7883, 6
      %v8434 = vor.u32 %v8432, %v8433
      %v8435 = vsel %vm6404, %v8431, %v8434
      %v8436 = vrot.slane %v8434, 4
      %v8437 = vshrl.u32 %v7554, 16
      %v8439 = vrot.slane %v8437, 5
      %v8440 = vrot.slane %v7893, 6
      %v8441 = vor.u32 %v8439, %v8440
      %v8442 = vsel %vm6404, %v8436, %v8441
      %v8443 = vrot.slane %v7898, 5
      %v8444 = vrot.slane %v7901, 6
      %v8445 = vor.u32 %v8443, %v8444
      %v8446 = vrot.slane %v8445, 4
      %v8447 = vrot.slane %v7911, 5
      %v8448 = vrot.slane %v7907, 6
      %v8449 = vor.u32 %v8447, %v8448
      %v8450 = vsel %vm6404, %v8446, %v8449
      %v8451 = vrot.slane %v8449, 4
      %v8452 = vshrl.u32 %v7557, 16
      %v8454 = vrot.slane %v8452, 5
      %v8455 = vrot.slane %v7917, 6
      %v8456 = vor.u32 %v8454, %v8455
      %v8457 = vsel %vm6404, %v8451, %v8456
      %v8458 = vrot.slane %v7922, 5
      %v8459 = vrot.slane %v7925, 6
      %v8460 = vor.u32 %v8458, %v8459
      %v8461 = vrot.slane %v8460, 4
      %v8462 = vrot.slane %v7935, 5
      %v8463 = vrot.slane %v7931, 6
      %v8464 = vor.u32 %v8462, %v8463
      %v8465 = vsel %vm6404, %v8461, %v8464
      %v8466 = vrot.slane %v8464, 4
      %v8467 = vshrl.u32 %v7560, 16
      %v8469 = vrot.slane %v8467, 5
      %v8470 = vrot.slane %v7941, 6
      %v8471 = vor.u32 %v8469, %v8470
      %v8472 = vsel %vm6404, %v8466, %v8471
      %v8505 = vmax.bf16 %v8201, %v8240
      %v8506 = vmax.bf16 %v8202, %v8247
      %v8507 = vmax.bf16 %v8203, %v8255
      %v8508 = vmax.bf16 %v8204, %v8262
      %v8509 = vmax.bf16 %v8205, %v8270
      %v8510 = vmax.bf16 %v8206, %v8277
      %v8511 = vmax.bf16 %v8207, %v8285
      %v8512 = vmax.bf16 %v8208, %v8292
      %v8513 = vmax.bf16 %v8209, %v8300
      %v8514 = vmax.bf16 %v8210, %v8307
      %v8515 = vmax.bf16 %v8211, %v8315
      %v8516 = vmax.bf16 %v8212, %v8322
      %v8517 = vmax.bf16 %v8213, %v8330
      %v8518 = vmax.bf16 %v8214, %v8337
      %v8519 = vmax.bf16 %v8215, %v8345
      %v8520 = vmax.bf16 %v8216, %v8352
      %v8521 = vmax.bf16 %v8217, %v8360
      %v8522 = vmax.bf16 %v8218, %v8367
      %v8523 = vmax.bf16 %v8219, %v8375
      %v8524 = vmax.bf16 %v8220, %v8382
      %v8525 = vmax.bf16 %v8221, %v8390
      %v8526 = vmax.bf16 %v8222, %v8397
      %v8527 = vmax.bf16 %v8223, %v8405
      %v8528 = vmax.bf16 %v8224, %v8412
      %v8529 = vmax.bf16 %v8225, %v8420
      %v8530 = vmax.bf16 %v8226, %v8427
      %v8531 = vmax.bf16 %v8227, %v8435
      %v8532 = vmax.bf16 %v8228, %v8442
      %v8533 = vmax.bf16 %v8229, %v8450
      %v8534 = vmax.bf16 %v8230, %v8457
      %v8535 = vmax.bf16 %v8231, %v8465
      %v8536 = vmax.bf16 %v8232, %v8472
      %v8537 = vrot.slane %v7513, 6
      %v8538 = vrot.slane %v8537, 4
      %v8539 = vrot.slane %v7514, 6
      %v8540 = vsel %vm6711, %v8538, %v8539
      %v8541 = vrot.slane %v8539, 4
      %v8542 = vrot.slane %v7515, 6
      %v8543 = vsel %vm6711, %v8541, %v8542
      %v8544 = vrot.slane %v7516, 6
      %v8545 = vrot.slane %v8544, 4
      %v8546 = vrot.slane %v7517, 6
      %v8547 = vsel %vm6711, %v8545, %v8546
      %v8548 = vrot.slane %v8546, 4
      %v8549 = vrot.slane %v7518, 6
      %v8550 = vsel %vm6711, %v8548, %v8549
      %v8551 = vrot.slane %v7519, 6
      %v8552 = vrot.slane %v8551, 4
      %v8553 = vrot.slane %v7520, 6
      %v8554 = vsel %vm6711, %v8552, %v8553
      %v8555 = vrot.slane %v8553, 4
      %v8556 = vrot.slane %v7521, 6
      %v8557 = vsel %vm6711, %v8555, %v8556
      %v8558 = vrot.slane %v7522, 6
      %v8559 = vrot.slane %v8558, 4
      %v8560 = vrot.slane %v7523, 6
      %v8561 = vsel %vm6711, %v8559, %v8560
      %v8562 = vrot.slane %v8560, 4
      %v8563 = vrot.slane %v7524, 6
      %v8564 = vsel %vm6711, %v8562, %v8563
      %v8565 = vrot.slane %v7525, 6
      %v8566 = vrot.slane %v8565, 4
      %v8567 = vrot.slane %v7526, 6
      %v8568 = vsel %vm6711, %v8566, %v8567
      %v8569 = vrot.slane %v8567, 4
      %v8570 = vrot.slane %v7527, 6
      %v8571 = vsel %vm6711, %v8569, %v8570
      %v8572 = vrot.slane %v7528, 6
      %v8573 = vrot.slane %v8572, 4
      %v8574 = vrot.slane %v7529, 6
      %v8575 = vsel %vm6711, %v8573, %v8574
      %v8576 = vrot.slane %v8574, 4
      %v8577 = vrot.slane %v7530, 6
      %v8578 = vsel %vm6711, %v8576, %v8577
      %v8579 = vrot.slane %v7531, 6
      %v8580 = vrot.slane %v8579, 4
      %v8581 = vrot.slane %v7532, 6
      %v8582 = vsel %vm6711, %v8580, %v8581
      %v8583 = vrot.slane %v8581, 4
      %v8584 = vrot.slane %v7533, 6
      %v8585 = vsel %vm6711, %v8583, %v8584
      %v8586 = vrot.slane %v7534, 6
      %v8587 = vrot.slane %v8586, 4
      %v8588 = vrot.slane %v7535, 6
      %v8589 = vsel %vm6711, %v8587, %v8588
      %v8590 = vrot.slane %v8588, 4
      %v8591 = vrot.slane %v7536, 6
      %v8592 = vsel %vm6711, %v8590, %v8591
      %v8593 = vrot.slane %v7537, 6
      %v8594 = vrot.slane %v8593, 4
      %v8595 = vrot.slane %v7538, 6
      %v8596 = vsel %vm6711, %v8594, %v8595
      %v8597 = vrot.slane %v8595, 4
      %v8598 = vrot.slane %v7539, 6
      %v8599 = vsel %vm6711, %v8597, %v8598
      %v8600 = vrot.slane %v7540, 6
      %v8601 = vrot.slane %v8600, 4
      %v8602 = vrot.slane %v7541, 6
      %v8603 = vsel %vm6711, %v8601, %v8602
      %v8604 = vrot.slane %v8602, 4
      %v8605 = vrot.slane %v7542, 6
      %v8606 = vsel %vm6711, %v8604, %v8605
      %v8607 = vrot.slane %v7543, 6
      %v8608 = vrot.slane %v8607, 4
      %v8609 = vrot.slane %v7544, 6
      %v8610 = vsel %vm6711, %v8608, %v8609
      %v8611 = vrot.slane %v8609, 4
      %v8612 = vrot.slane %v7545, 6
      %v8613 = vsel %vm6711, %v8611, %v8612
      %v8614 = vrot.slane %v7546, 6
      %v8615 = vrot.slane %v8614, 4
      %v8616 = vrot.slane %v7547, 6
      %v8617 = vsel %vm6711, %v8615, %v8616
      %v8618 = vrot.slane %v8616, 4
      %v8619 = vrot.slane %v7548, 6
      %v8620 = vsel %vm6711, %v8618, %v8619
      %v8621 = vrot.slane %v7549, 6
      %v8622 = vrot.slane %v8621, 4
      %v8623 = vrot.slane %v7550, 6
      %v8624 = vsel %vm6711, %v8622, %v8623
      %v8625 = vrot.slane %v8623, 4
      %v8626 = vrot.slane %v7551, 6
      %v8627 = vsel %vm6711, %v8625, %v8626
      %v8628 = vrot.slane %v7552, 6
      %v8629 = vrot.slane %v8628, 4
      %v8630 = vrot.slane %v7553, 6
      %v8631 = vsel %vm6711, %v8629, %v8630
      %v8632 = vrot.slane %v8630, 4
      %v8633 = vrot.slane %v7554, 6
      %v8634 = vsel %vm6711, %v8632, %v8633
      %v8635 = vrot.slane %v7555, 6
      %v8636 = vrot.slane %v8635, 4
      %v8637 = vrot.slane %v7556, 6
      %v8638 = vsel %vm6711, %v8636, %v8637
      %v8639 = vrot.slane %v8637, 4
      %v8640 = vrot.slane %v7557, 6
      %v8641 = vsel %vm6711, %v8639, %v8640
      %v8642 = vrot.slane %v7558, 6
      %v8643 = vrot.slane %v8642, 4
      %v8644 = vrot.slane %v7559, 6
      %v8645 = vsel %vm6711, %v8643, %v8644
      %v8646 = vrot.slane %v8644, 4
      %v8647 = vrot.slane %v7560, 6
      %v8648 = vsel %vm6711, %v8646, %v8647
      %v8681 = vmax.bf16 %v8505, %v8540
      %v8682 = vmax.bf16 %v8506, %v8543
      %v8683 = vmax.bf16 %v8507, %v8547
      %v8684 = vmax.bf16 %v8508, %v8550
      %v8685 = vmax.bf16 %v8509, %v8554
      %v8686 = vmax.bf16 %v8510, %v8557
      %v8687 = vmax.bf16 %v8511, %v8561
      %v8688 = vmax.bf16 %v8512, %v8564
      %v8689 = vmax.bf16 %v8513, %v8568
      %v8690 = vmax.bf16 %v8514, %v8571
      %v8691 = vmax.bf16 %v8515, %v8575
      %v8692 = vmax.bf16 %v8516, %v8578
      %v8693 = vmax.bf16 %v8517, %v8582
      %v8694 = vmax.bf16 %v8518, %v8585
      %v8695 = vmax.bf16 %v8519, %v8589
      %v8696 = vmax.bf16 %v8520, %v8592
      %v8697 = vmax.bf16 %v8521, %v8596
      %v8698 = vmax.bf16 %v8522, %v8599
      %v8699 = vmax.bf16 %v8523, %v8603
      %v8700 = vmax.bf16 %v8524, %v8606
      %v8701 = vmax.bf16 %v8525, %v8610
      %v8702 = vmax.bf16 %v8526, %v8613
      %v8703 = vmax.bf16 %v8527, %v8617
      %v8704 = vmax.bf16 %v8528, %v8620
      %v8705 = vmax.bf16 %v8529, %v8624
      %v8706 = vmax.bf16 %v8530, %v8627
      %v8707 = vmax.bf16 %v8531, %v8631
      %v8708 = vmax.bf16 %v8532, %v8634
      %v8709 = vmax.bf16 %v8533, %v8638
      %v8710 = vmax.bf16 %v8534, %v8641
      %v8711 = vmax.bf16 %v8535, %v8645
      %v8712 = vmax.bf16 %v8536, %v8648
      %s8713 = scalar_lea.vmem %s280, 256
      %8714 = vst [vmem:[%s8713] sm:$0xf] %v8681
      %8715 = vst [vmem:[%s8713 + $0x4] sm:$0xf] %v8682
      %8716 = vst [vmem:[%s8713 + $0x8] sm:$0xf] %v8683
      %8717 = vst [vmem:[%s8713 + $0xc] sm:$0xf] %v8684
      %8718 = vst [vmem:[%s8713 + $0x10] sm:$0xf] %v8685
      %8719 = vst [vmem:[%s8713 + $0x14] sm:$0xf] %v8686
      %8720 = vst [vmem:[%s8713 + $0x18] sm:$0xf] %v8687
      %8721 = vst [vmem:[%s8713 + $0x1c] sm:$0xf] %v8688
      %8722 = vst [vmem:[%s8713 + $0x20] sm:$0xf] %v8689
      %8723 = vst [vmem:[%s8713 + $0x24] sm:$0xf] %v8690
      %8724 = vst [vmem:[%s8713 + $0x28] sm:$0xf] %v8691
      %8725 = vst [vmem:[%s8713 + $0x2c] sm:$0xf] %v8692
      %8726 = vst [vmem:[%s8713 + $0x30] sm:$0xf] %v8693
      %8727 = vst [vmem:[%s8713 + $0x34] sm:$0xf] %v8694
      %8728 = vst [vmem:[%s8713 + $0x38] sm:$0xf] %v8695
      %8729 = vst [vmem:[%s8713 + $0x3c] sm:$0xf] %v8696
      %8730 = vst [vmem:[%s8713 + $0x40] sm:$0xf] %v8697
      %8731 = vst [vmem:[%s8713 + $0x44] sm:$0xf] %v8698
      %8732 = vst [vmem:[%s8713 + $0x48] sm:$0xf] %v8699
      %8733 = vst [vmem:[%s8713 + $0x4c] sm:$0xf] %v8700
      %8734 = vst [vmem:[%s8713 + $0x50] sm:$0xf] %v8701
      %8735 = vst [vmem:[%s8713 + $0x54] sm:$0xf] %v8702
      %8736 = vst [vmem:[%s8713 + $0x58] sm:$0xf] %v8703
      %8737 = vst [vmem:[%s8713 + $0x5c] sm:$0xf] %v8704
      %8738 = vst [vmem:[%s8713 + $0x60] sm:$0xf] %v8705
      %8739 = vst [vmem:[%s8713 + $0x64] sm:$0xf] %v8706
      %8740 = vst [vmem:[%s8713 + $0x68] sm:$0xf] %v8707
      %8741 = vst [vmem:[%s8713 + $0x6c] sm:$0xf] %v8708
      %8742 = vst [vmem:[%s8713 + $0x70] sm:$0xf] %v8709
      %8743 = vst [vmem:[%s8713 + $0x74] sm:$0xf] %v8710
      %8744 = vst [vmem:[%s8713 + $0x78] sm:$0xf] %v8711
      %8745 = vst [vmem:[%s8713 + $0x7c] sm:$0xf] %v8712
      %v8778 = vrot.slane %v8681, 7
      %v8779 = vrot.slane %v8778, 4
      %v8780 = vrot.slane %v8682, 7
      %v8781 = vsel %vm5111, %v8779, %v8780
      %v8782 = vrot.slane %v8780, 4
      %v8783 = vrot.slane %v8683, 7
      %v8784 = vrot.slane %v8783, 4
      %v8785 = vrot.slane %v8684, 7
      %v8786 = vsel %vm5111, %v8784, %v8785
      %v8787 = vrot.slane %v8785, 4
      %v8788 = vrot.slane %v8685, 7
      %v8789 = vrot.slane %v8788, 4
      %v8790 = vrot.slane %v8686, 7
      %v8791 = vsel %vm5111, %v8789, %v8790
      %v8792 = vrot.slane %v8790, 4
      %v8793 = vrot.slane %v8687, 7
      %v8794 = vrot.slane %v8793, 4
      %v8795 = vrot.slane %v8688, 7
      %v8796 = vsel %vm5111, %v8794, %v8795
      %v8797 = vrot.slane %v8795, 4
      %v8798 = vrot.slane %v8689, 7
      %v8799 = vrot.slane %v8798, 4
      %v8800 = vrot.slane %v8690, 7
      %v8801 = vsel %vm5111, %v8799, %v8800
      %v8802 = vrot.slane %v8800, 4
      %v8803 = vrot.slane %v8691, 7
      %v8804 = vrot.slane %v8803, 4
      %v8805 = vrot.slane %v8692, 7
      %v8806 = vsel %vm5111, %v8804, %v8805
      %v8807 = vrot.slane %v8805, 4
      %v8808 = vrot.slane %v8693, 7
      %v8809 = vrot.slane %v8808, 4
      %v8810 = vrot.slane %v8694, 7
      %v8811 = vsel %vm5111, %v8809, %v8810
      %v8812 = vrot.slane %v8810, 4
      %v8813 = vrot.slane %v8695, 7
      %v8814 = vrot.slane %v8813, 4
      %v8815 = vrot.slane %v8696, 7
      %v8816 = vsel %vm5111, %v8814, %v8815
      %v8817 = vrot.slane %v8815, 4
      %v8818 = vrot.slane %v8697, 7
      %v8819 = vrot.slane %v8818, 4
      %v8820 = vrot.slane %v8698, 7
      %v8821 = vsel %vm5111, %v8819, %v8820
      %v8822 = vrot.slane %v8820, 4
      %v8823 = vrot.slane %v8699, 7
      %v8824 = vrot.slane %v8823, 4
      %v8825 = vrot.slane %v8700, 7
      %v8826 = vsel %vm5111, %v8824, %v8825
      %v8827 = vrot.slane %v8825, 4
      %v8828 = vrot.slane %v8701, 7
      %v8829 = vrot.slane %v8828, 4
      %v8830 = vrot.slane %v8702, 7
      %v8831 = vsel %vm5111, %v8829, %v8830
      %v8832 = vrot.slane %v8830, 4
      %v8833 = vrot.slane %v8703, 7
      %v8834 = vrot.slane %v8833, 4
      %v8835 = vrot.slane %v8704, 7
      %v8836 = vsel %vm5111, %v8834, %v8835
      %v8837 = vrot.slane %v8835, 4
      %v8838 = vrot.slane %v8705, 7
      %v8839 = vrot.slane %v8838, 4
      %v8840 = vrot.slane %v8706, 7
      %v8841 = vsel %vm5111, %v8839, %v8840
      %v8842 = vrot.slane %v8840, 4
      %v8843 = vrot.slane %v8707, 7
      %v8844 = vrot.slane %v8843, 4
      %v8845 = vrot.slane %v8708, 7
      %v8846 = vsel %vm5111, %v8844, %v8845
      %v8847 = vrot.slane %v8845, 4
      %v8848 = vrot.slane %v8709, 7
      %v8849 = vrot.slane %v8848, 4
      %v8850 = vrot.slane %v8710, 7
      %v8851 = vsel %vm5111, %v8849, %v8850
      %v8852 = vrot.slane %v8850, 4
      %v8853 = vrot.slane %v8711, 7
      %v8854 = vrot.slane %v8853, 4
      %v8855 = vrot.slane %v8712, 7
      %v8856 = vsel %vm5111, %v8854, %v8855
      %v8857 = vrot.slane %v8855, 4
      %8906 = vst [vmem:[%s5240] sm:$0xe] %v8778
      %8907 = vst [vmem:[%s5240 + $0x4] sm:$0xf] %v8781
      %8908 = vst [vmem:[%s5240 + $0x8] sm:$0x1] %v8782
      %8909 = vst [vmem:[%s5240 + $0xc] sm:$0xe] %v8783
      %8910 = vst [vmem:[%s5240 + $0x10] sm:$0xf] %v8786
      %8911 = vst [vmem:[%s5240 + $0x14] sm:$0x1] %v8787
      %8912 = vst [vmem:[%s5240 + $0x18] sm:$0xe] %v8788
      %8913 = vst [vmem:[%s5240 + $0x1c] sm:$0xf] %v8791
      %8914 = vst [vmem:[%s5240 + $0x20] sm:$0x1] %v8792
      %8915 = vst [vmem:[%s5240 + $0x24] sm:$0xe] %v8793
      %8916 = vst [vmem:[%s5240 + $0x28] sm:$0xf] %v8796
      %8917 = vst [vmem:[%s5240 + $0x2c] sm:$0x1] %v8797
      %8918 = vst [vmem:[%s5240 + $0x30] sm:$0xe] %v8798
      %8919 = vst [vmem:[%s5240 + $0x34] sm:$0xf] %v8801
      %8920 = vst [vmem:[%s5240 + $0x38] sm:$0x1] %v8802
      %8921 = vst [vmem:[%s5240 + $0x3c] sm:$0xe] %v8803
      %8922 = vst [vmem:[%s5240 + $0x40] sm:$0xf] %v8806
      %8923 = vst [vmem:[%s5240 + $0x44] sm:$0x1] %v8807
      %8924 = vst [vmem:[%s5240 + $0x48] sm:$0xe] %v8808
      %8925 = vst [vmem:[%s5240 + $0x4c] sm:$0xf] %v8811
      %8926 = vst [vmem:[%s5240 + $0x50] sm:$0x1] %v8812
      %8927 = vst [vmem:[%s5240 + $0x54] sm:$0xe] %v8813
      %8928 = vst [vmem:[%s5240 + $0x58] sm:$0xf] %v8816
      %8929 = vst [vmem:[%s5240 + $0x5c] sm:$0x1] %v8817
      %8930 = vst [vmem:[%s5240 + $0x60] sm:$0xe] %v8818
      %8931 = vst [vmem:[%s5240 + $0x64] sm:$0xf] %v8821
      %8932 = vst [vmem:[%s5240 + $0x68] sm:$0x1] %v8822
      %8933 = vst [vmem:[%s5240 + $0x6c] sm:$0xe] %v8823
      %8934 = vst [vmem:[%s5240 + $0x70] sm:$0xf] %v8826
      %8935 = vst [vmem:[%s5240 + $0x74] sm:$0x1] %v8827
      %8936 = vst [vmem:[%s5240 + $0x78] sm:$0xe] %v8828
      %8937 = vst [vmem:[%s5240 + $0x7c] sm:$0xf] %v8831
      %8938 = vst [vmem:[%s5240 + $0x80] sm:$0x1] %v8832
      %8939 = vst [vmem:[%s5240 + $0x84] sm:$0xe] %v8833
      %8940 = vst [vmem:[%s5240 + $0x88] sm:$0xf] %v8836
      %8941 = vst [vmem:[%s5240 + $0x8c] sm:$0x1] %v8837
      %8942 = vst [vmem:[%s5240 + $0x90] sm:$0xe] %v8838
      %8943 = vst [vmem:[%s5240 + $0x94] sm:$0xf] %v8841
      %8944 = vst [vmem:[%s5240 + $0x98] sm:$0x1] %v8842
      %8945 = vst [vmem:[%s5240 + $0x9c] sm:$0xe] %v8843
      %8946 = vst [vmem:[%s5240 + $0xa0] sm:$0xf] %v8846
      %8947 = vst [vmem:[%s5240 + $0xa4] sm:$0x1] %v8847
      %8948 = vst [vmem:[%s5240 + $0xa8] sm:$0xe] %v8848
      %8949 = vst [vmem:[%s5240 + $0xac] sm:$0xf] %v8851
      %8950 = vst [vmem:[%s5240 + $0xb0] sm:$0x1] %v8852
      %8951 = vst [vmem:[%s5240 + $0xb4] sm:$0xe] %v8853
      %8952 = vst [vmem:[%s5240 + $0xb8] sm:$0xf] %v8856
      %8953 = vst [vmem:[%s5240 + $0xbc] sm:$0x1] %v8857
      %v8954 = vld [vmem:[#allocation3] sm:$0xf]
      %v8955 = vld [vmem:[#allocation3 + $0x4] sm:$0xf]
      %v8956 = vld [vmem:[#allocation3 + $0x8] sm:$0x3]
      %v8957 = vld [vmem:[#allocation3 + $0xc] sm:$0xf]
      %v8958 = vld [vmem:[#allocation3 + $0x10] sm:$0xf]
      %v8959 = vld [vmem:[#allocation3 + $0x14] sm:$0x3]
      %v8960 = vld [vmem:[#allocation3 + $0x18] sm:$0xf]
      %v8961 = vld [vmem:[#allocation3 + $0x1c] sm:$0xf]
      %v8962 = vld [vmem:[#allocation3 + $0x20] sm:$0x3]
      %v8963 = vld [vmem:[#allocation3 + $0x24] sm:$0xf]
      %v8964 = vld [vmem:[#allocation3 + $0x28] sm:$0xf]
      %v8965 = vld [vmem:[#allocation3 + $0x2c] sm:$0x3]
      %v8966 = vld [vmem:[#allocation3 + $0x30] sm:$0xf]
      %v8967 = vld [vmem:[#allocation3 + $0x34] sm:$0xf]
      %v8968 = vld [vmem:[#allocation3 + $0x38] sm:$0x3]
      %v8969 = vld [vmem:[#allocation3 + $0x3c] sm:$0xf]
      %v8970 = vld [vmem:[#allocation3 + $0x40] sm:$0xf]
      %v8971 = vld [vmem:[#allocation3 + $0x44] sm:$0x3]
      %v8972 = vld [vmem:[#allocation3 + $0x48] sm:$0xf]
      %v8973 = vld [vmem:[#allocation3 + $0x4c] sm:$0xf]
      %v8974 = vld [vmem:[#allocation3 + $0x50] sm:$0x3]
      %v8975 = vld [vmem:[#allocation3 + $0x54] sm:$0xf]
      %v8976 = vld [vmem:[#allocation3 + $0x58] sm:$0xf]
      %v8977 = vld [vmem:[#allocation3 + $0x5c] sm:$0x3]
      %v8978 = vld [vmem:[#allocation3 + $0x60] sm:$0xf]
      %v8979 = vld [vmem:[#allocation3 + $0x64] sm:$0xf]
      %v8980 = vld [vmem:[#allocation3 + $0x68] sm:$0x3]
      %v8981 = vld [vmem:[#allocation3 + $0x6c] sm:$0xf]
      %v8982 = vld [vmem:[#allocation3 + $0x70] sm:$0xf]
      %v8983 = vld [vmem:[#allocation3 + $0x74] sm:$0x3]
      %v8984 = vld [vmem:[#allocation3 + $0x78] sm:$0xf]
      %v8985 = vld [vmem:[#allocation3 + $0x7c] sm:$0xf]
      %v8986 = vld [vmem:[#allocation3 + $0x80] sm:$0x3]
      %v8987 = vld [vmem:[#allocation3 + $0x84] sm:$0xf]
      %v8988 = vld [vmem:[#allocation3 + $0x88] sm:$0xf]
      %v8989 = vld [vmem:[#allocation3 + $0x8c] sm:$0x3]
      %v8990 = vld [vmem:[#allocation3 + $0x90] sm:$0xf]
      %v8991 = vld [vmem:[#allocation3 + $0x94] sm:$0xf]
      %v8992 = vld [vmem:[#allocation3 + $0x98] sm:$0x3]
      %v8993 = vld [vmem:[#allocation3 + $0x9c] sm:$0xf]
      %v8994 = vld [vmem:[#allocation3 + $0xa0] sm:$0xf]
      %v8995 = vld [vmem:[#allocation3 + $0xa4] sm:$0x3]
      %v8996 = vld [vmem:[#allocation3 + $0xa8] sm:$0xf]
      %v8997 = vld [vmem:[#allocation3 + $0xac] sm:$0xf]
      %v8998 = vld [vmem:[#allocation3 + $0xb0] sm:$0x3]
      %v8999 = vld [vmem:[#allocation3 + $0xb4] sm:$0xf]
      %v9000 = vld [vmem:[#allocation3 + $0xb8] sm:$0xf]
      %v9001 = vld [vmem:[#allocation3 + $0xbc] sm:$0x3]
      %v9002 = vld [vmem:[%s5337] sm:$0xf]
      %v9003 = vld [vmem:[%s5337 + $0x4] sm:$0xf]
      %v9004 = vld [vmem:[%s5337 + $0x8] sm:$0x3]
      %v9005 = vld [vmem:[%s5337 + $0xc] sm:$0xf]
      %v9006 = vld [vmem:[%s5337 + $0x10] sm:$0xf]
      %v9007 = vld [vmem:[%s5337 + $0x14] sm:$0x3]
      %v9008 = vld [vmem:[%s5337 + $0x18] sm:$0xf]
      %v9009 = vld [vmem:[%s5337 + $0x1c] sm:$0xf]
      %v9010 = vld [vmem:[%s5337 + $0x20] sm:$0x3]
      %v9011 = vld [vmem:[%s5337 + $0x24] sm:$0xf]
      %v9012 = vld [vmem:[%s5337 + $0x28] sm:$0xf]
      %v9013 = vld [vmem:[%s5337 + $0x2c] sm:$0x3]
      %v9014 = vld [vmem:[%s5337 + $0x30] sm:$0xf]
      %v9015 = vld [vmem:[%s5337 + $0x34] sm:$0xf]
      %v9016 = vld [vmem:[%s5337 + $0x38] sm:$0x3]
      %v9017 = vld [vmem:[%s5337 + $0x3c] sm:$0xf]
      %v9018 = vld [vmem:[%s5337 + $0x40] sm:$0xf]
      %v9019 = vld [vmem:[%s5337 + $0x44] sm:$0x3]
      %v9020 = vld [vmem:[%s5337 + $0x48] sm:$0xf]
      %v9021 = vld [vmem:[%s5337 + $0x4c] sm:$0xf]
      %v9022 = vld [vmem:[%s5337 + $0x50] sm:$0x3]
      %v9023 = vld [vmem:[%s5337 + $0x54] sm:$0xf]
      %v9024 = vld [vmem:[%s5337 + $0x58] sm:$0xf]
      %v9025 = vld [vmem:[%s5337 + $0x5c] sm:$0x3]
      %v9026 = vld [vmem:[%s5337 + $0x60] sm:$0xf]
      %v9027 = vld [vmem:[%s5337 + $0x64] sm:$0xf]
      %v9028 = vld [vmem:[%s5337 + $0x68] sm:$0x3]
      %v9029 = vld [vmem:[%s5337 + $0x6c] sm:$0xf]
      %v9030 = vld [vmem:[%s5337 + $0x70] sm:$0xf]
      %v9031 = vld [vmem:[%s5337 + $0x74] sm:$0x3]
      %v9032 = vld [vmem:[%s5337 + $0x78] sm:$0xf]
      %v9033 = vld [vmem:[%s5337 + $0x7c] sm:$0xf]
      %v9034 = vld [vmem:[%s5337 + $0x80] sm:$0x3]
      %v9035 = vld [vmem:[%s5337 + $0x84] sm:$0xf]
      %v9036 = vld [vmem:[%s5337 + $0x88] sm:$0xf]
      %v9037 = vld [vmem:[%s5337 + $0x8c] sm:$0x3]
      %v9038 = vld [vmem:[%s5337 + $0x90] sm:$0xf]
      %v9039 = vld [vmem:[%s5337 + $0x94] sm:$0xf]
      %v9040 = vld [vmem:[%s5337 + $0x98] sm:$0x3]
      %v9041 = vld [vmem:[%s5337 + $0x9c] sm:$0xf]
      %v9042 = vld [vmem:[%s5337 + $0xa0] sm:$0xf]
      %v9043 = vld [vmem:[%s5337 + $0xa4] sm:$0x3]
      %v9044 = vld [vmem:[%s5337 + $0xa8] sm:$0xf]
      %v9045 = vld [vmem:[%s5337 + $0xac] sm:$0xf]
      %v9046 = vld [vmem:[%s5337 + $0xb0] sm:$0x3]
      %v9047 = vld [vmem:[%s5337 + $0xb4] sm:$0xf]
      %v9048 = vld [vmem:[%s5337 + $0xb8] sm:$0xf]
      %v9049 = vld [vmem:[%s5337 + $0xbc] sm:$0x3]
      %v9050 = vmax.bf16 %v8954, %v9002
      %v9051 = vmax.bf16 %v8955, %v9003
      %v9052 = vmax.bf16 %v8956, %v9004
      %v9053 = vmax.bf16 %v8957, %v9005
      %v9054 = vmax.bf16 %v8958, %v9006
      %v9055 = vmax.bf16 %v8959, %v9007
      %v9056 = vmax.bf16 %v8960, %v9008
      %v9057 = vmax.bf16 %v8961, %v9009
      %v9058 = vmax.bf16 %v8962, %v9010
      %v9059 = vmax.bf16 %v8963, %v9011
      %v9060 = vmax.bf16 %v8964, %v9012
      %v9061 = vmax.bf16 %v8965, %v9013
      %v9062 = vmax.bf16 %v8966, %v9014
      %v9063 = vmax.bf16 %v8967, %v9015
      %v9064 = vmax.bf16 %v8968, %v9016
      %v9065 = vmax.bf16 %v8969, %v9017
      %v9066 = vmax.bf16 %v8970, %v9018
      %v9067 = vmax.bf16 %v8971, %v9019
      %v9068 = vmax.bf16 %v8972, %v9020
      %v9069 = vmax.bf16 %v8973, %v9021
      %v9070 = vmax.bf16 %v8974, %v9022
      %v9071 = vmax.bf16 %v8975, %v9023
      %v9072 = vmax.bf16 %v8976, %v9024
      %v9073 = vmax.bf16 %v8977, %v9025
      %v9074 = vmax.bf16 %v8978, %v9026
      %v9075 = vmax.bf16 %v8979, %v9027
      %v9076 = vmax.bf16 %v8980, %v9028
      %v9077 = vmax.bf16 %v8981, %v9029
      %v9078 = vmax.bf16 %v8982, %v9030
      %v9079 = vmax.bf16 %v8983, %v9031
      %v9080 = vmax.bf16 %v8984, %v9032
      %v9081 = vmax.bf16 %v8985, %v9033
      %v9082 = vmax.bf16 %v8986, %v9034
      %v9083 = vmax.bf16 %v8987, %v9035
      %v9084 = vmax.bf16 %v8988, %v9036
      %v9085 = vmax.bf16 %v8989, %v9037
      %v9086 = vmax.bf16 %v8990, %v9038
      %v9087 = vmax.bf16 %v8991, %v9039
      %v9088 = vmax.bf16 %v8992, %v9040
      %v9089 = vmax.bf16 %v8993, %v9041
      %v9090 = vmax.bf16 %v8994, %v9042
      %v9091 = vmax.bf16 %v8995, %v9043
      %v9092 = vmax.bf16 %v8996, %v9044
      %v9093 = vmax.bf16 %v8997, %v9045
      %v9094 = vmax.bf16 %v8998, %v9046
      %v9095 = vmax.bf16 %v8999, %v9047
      %v9096 = vmax.bf16 %v9000, %v9048
      %v9097 = vmax.bf16 %v9001, %v9049
      %v9098 = vld [vmem:[%s5240] sm:$0xf]
      %v9099 = vld [vmem:[%s5240 + $0x4] sm:$0xf]
      %v9100 = vld [vmem:[%s5240 + $0x8] sm:$0x3]
      %v9101 = vld [vmem:[%s5240 + $0xc] sm:$0xf]
      %v9102 = vld [vmem:[%s5240 + $0x10] sm:$0xf]
      %v9103 = vld [vmem:[%s5240 + $0x14] sm:$0x3]
      %v9104 = vld [vmem:[%s5240 + $0x18] sm:$0xf]
      %v9105 = vld [vmem:[%s5240 + $0x1c] sm:$0xf]
      %v9106 = vld [vmem:[%s5240 + $0x20] sm:$0x3]
      %v9107 = vld [vmem:[%s5240 + $0x24] sm:$0xf]
      %v9108 = vld [vmem:[%s5240 + $0x28] sm:$0xf]
      %v9109 = vld [vmem:[%s5240 + $0x2c] sm:$0x3]
      %v9110 = vld [vmem:[%s5240 + $0x30] sm:$0xf]
      %v9111 = vld [vmem:[%s5240 + $0x34] sm:$0xf]
      %v9112 = vld [vmem:[%s5240 + $0x38] sm:$0x3]
      %v9113 = vld [vmem:[%s5240 + $0x3c] sm:$0xf]
      %v9114 = vld [vmem:[%s5240 + $0x40] sm:$0xf]
      %v9115 = vld [vmem:[%s5240 + $0x44] sm:$0x3]
      %v9116 = vld [vmem:[%s5240 + $0x48] sm:$0xf]
      %v9117 = vld [vmem:[%s5240 + $0x4c] sm:$0xf]
      %v9118 = vld [vmem:[%s5240 + $0x50] sm:$0x3]
      %v9119 = vld [vmem:[%s5240 + $0x54] sm:$0xf]
      %v9120 = vld [vmem:[%s5240 + $0x58] sm:$0xf]
      %v9121 = vld [vmem:[%s5240 + $0x5c] sm:$0x3]
      %v9122 = vld [vmem:[%s5240 + $0x60] sm:$0xf]
      %v9123 = vld [vmem:[%s5240 + $0x64] sm:$0xf]
      %v9124 = vld [vmem:[%s5240 + $0x68] sm:$0x3]
      %v9125 = vld [vmem:[%s5240 + $0x6c] sm:$0xf]
      %v9126 = vld [vmem:[%s5240 + $0x70] sm:$0xf]
      %v9127 = vld [vmem:[%s5240 + $0x74] sm:$0x3]
      %v9128 = vld [vmem:[%s5240 + $0x78] sm:$0xf]
      %v9129 = vld [vmem:[%s5240 + $0x7c] sm:$0xf]
      %v9130 = vld [vmem:[%s5240 + $0x80] sm:$0x3]
      %v9131 = vld [vmem:[%s5240 + $0x84] sm:$0xf]
      %v9132 = vld [vmem:[%s5240 + $0x88] sm:$0xf]
      %v9133 = vld [vmem:[%s5240 + $0x8c] sm:$0x3]
      %v9134 = vld [vmem:[%s5240 + $0x90] sm:$0xf]
      %v9135 = vld [vmem:[%s5240 + $0x94] sm:$0xf]
      %v9136 = vld [vmem:[%s5240 + $0x98] sm:$0x3]
      %v9137 = vld [vmem:[%s5240 + $0x9c] sm:$0xf]
      %v9138 = vld [vmem:[%s5240 + $0xa0] sm:$0xf]
      %v9139 = vld [vmem:[%s5240 + $0xa4] sm:$0x3]
      %v9140 = vld [vmem:[%s5240 + $0xa8] sm:$0xf]
      %v9141 = vld [vmem:[%s5240 + $0xac] sm:$0xf]
      %v9142 = vld [vmem:[%s5240 + $0xb0] sm:$0x3]
      %v9143 = vld [vmem:[%s5240 + $0xb4] sm:$0xf]
      %v9144 = vld [vmem:[%s5240 + $0xb8] sm:$0xf]
      %v9145 = vld [vmem:[%s5240 + $0xbc] sm:$0x3]
      %v9146 = vmax.bf16 %v9050, %v9098
      %v9147 = vmax.bf16 %v9051, %v9099
      %v9148 = vmax.bf16 %v9052, %v9100
      %v9149 = vmax.bf16 %v9053, %v9101
      %v9150 = vmax.bf16 %v9054, %v9102
      %v9151 = vmax.bf16 %v9055, %v9103
      %v9152 = vmax.bf16 %v9056, %v9104
      %v9153 = vmax.bf16 %v9057, %v9105
      %v9154 = vmax.bf16 %v9058, %v9106
      %v9155 = vmax.bf16 %v9059, %v9107
      %v9156 = vmax.bf16 %v9060, %v9108
      %v9157 = vmax.bf16 %v9061, %v9109
      %v9158 = vmax.bf16 %v9062, %v9110
      %v9159 = vmax.bf16 %v9063, %v9111
      %v9160 = vmax.bf16 %v9064, %v9112
      %v9161 = vmax.bf16 %v9065, %v9113
      %v9162 = vmax.bf16 %v9066, %v9114
      %v9163 = vmax.bf16 %v9067, %v9115
      %v9164 = vmax.bf16 %v9068, %v9116
      %v9165 = vmax.bf16 %v9069, %v9117
      %v9166 = vmax.bf16 %v9070, %v9118
      %v9167 = vmax.bf16 %v9071, %v9119
      %v9168 = vmax.bf16 %v9072, %v9120
      %v9169 = vmax.bf16 %v9073, %v9121
      %v9170 = vmax.bf16 %v9074, %v9122
      %v9171 = vmax.bf16 %v9075, %v9123
      %v9172 = vmax.bf16 %v9076, %v9124
      %v9173 = vmax.bf16 %v9077, %v9125
      %v9174 = vmax.bf16 %v9078, %v9126
      %v9175 = vmax.bf16 %v9079, %v9127
      %v9176 = vmax.bf16 %v9080, %v9128
      %v9177 = vmax.bf16 %v9081, %v9129
      %v9178 = vmax.bf16 %v9082, %v9130
      %v9179 = vmax.bf16 %v9083, %v9131
      %v9180 = vmax.bf16 %v9084, %v9132
      %v9181 = vmax.bf16 %v9085, %v9133
      %v9182 = vmax.bf16 %v9086, %v9134
      %v9183 = vmax.bf16 %v9087, %v9135
      %v9184 = vmax.bf16 %v9088, %v9136
      %v9185 = vmax.bf16 %v9089, %v9137
      %v9186 = vmax.bf16 %v9090, %v9138
      %v9187 = vmax.bf16 %v9091, %v9139
      %v9188 = vmax.bf16 %v9092, %v9140
      %v9189 = vmax.bf16 %v9093, %v9141
      %v9190 = vmax.bf16 %v9094, %v9142
      %v9191 = vmax.bf16 %v9095, %v9143
      %v9192 = vmax.bf16 %v9096, %v9144
      %v9193 = vmax.bf16 %v9097, %v9145
      %v9194 = vld [vmem:[%s5530] sm:$0xf]
      %v9195 = vld [vmem:[%s5530 + $0x4] sm:$0xf]
      %v9196 = vld [vmem:[%s5530 + $0x8] sm:$0x3]
      %v9197 = vld [vmem:[%s5530 + $0xc] sm:$0xf]
      %v9198 = vld [vmem:[%s5530 + $0x10] sm:$0xf]
      %v9199 = vld [vmem:[%s5530 + $0x14] sm:$0x3]
      %v9200 = vld [vmem:[%s5530 + $0x18] sm:$0xf]
      %v9201 = vld [vmem:[%s5530 + $0x1c] sm:$0xf]
      %v9202 = vld [vmem:[%s5530 + $0x20] sm:$0x3]
      %v9203 = vld [vmem:[%s5530 + $0x24] sm:$0xf]
      %v9204 = vld [vmem:[%s5530 + $0x28] sm:$0xf]
      %v9205 = vld [vmem:[%s5530 + $0x2c] sm:$0x3]
      %v9206 = vld [vmem:[%s5530 + $0x30] sm:$0xf]
      %v9207 = vld [vmem:[%s5530 + $0x34] sm:$0xf]
      %v9208 = vld [vmem:[%s5530 + $0x38] sm:$0x3]
      %v9209 = vld [vmem:[%s5530 + $0x3c] sm:$0xf]
      %v9210 = vld [vmem:[%s5530 + $0x40] sm:$0xf]
      %v9211 = vld [vmem:[%s5530 + $0x44] sm:$0x3]
      %v9212 = vld [vmem:[%s5530 + $0x48] sm:$0xf]
      %v9213 = vld [vmem:[%s5530 + $0x4c] sm:$0xf]
      %v9214 = vld [vmem:[%s5530 + $0x50] sm:$0x3]
      %v9215 = vld [vmem:[%s5530 + $0x54] sm:$0xf]
      %v9216 = vld [vmem:[%s5530 + $0x58] sm:$0xf]
      %v9217 = vld [vmem:[%s5530 + $0x5c] sm:$0x3]
      %v9218 = vld [vmem:[%s5530 + $0x60] sm:$0xf]
      %v9219 = vld [vmem:[%s5530 + $0x64] sm:$0xf]
      %v9220 = vld [vmem:[%s5530 + $0x68] sm:$0x3]
      %v9221 = vld [vmem:[%s5530 + $0x6c] sm:$0xf]
      %v9222 = vld [vmem:[%s5530 + $0x70] sm:$0xf]
      %v9223 = vld [vmem:[%s5530 + $0x74] sm:$0x3]
      %v9224 = vld [vmem:[%s5530 + $0x78] sm:$0xf]
      %v9225 = vld [vmem:[%s5530 + $0x7c] sm:$0xf]
      %v9226 = vld [vmem:[%s5530 + $0x80] sm:$0x3]
      %v9227 = vld [vmem:[%s5530 + $0x84] sm:$0xf]
      %v9228 = vld [vmem:[%s5530 + $0x88] sm:$0xf]
      %v9229 = vld [vmem:[%s5530 + $0x8c] sm:$0x3]
      %v9230 = vld [vmem:[%s5530 + $0x90] sm:$0xf]
      %v9231 = vld [vmem:[%s5530 + $0x94] sm:$0xf]
      %v9232 = vld [vmem:[%s5530 + $0x98] sm:$0x3]
      %v9233 = vld [vmem:[%s5530 + $0x9c] sm:$0xf]
      %v9234 = vld [vmem:[%s5530 + $0xa0] sm:$0xf]
      %v9235 = vld [vmem:[%s5530 + $0xa4] sm:$0x3]
      %v9236 = vld [vmem:[%s5530 + $0xa8] sm:$0xf]
      %v9237 = vld [vmem:[%s5530 + $0xac] sm:$0xf]
      %v9238 = vld [vmem:[%s5530 + $0xb0] sm:$0x3]
      %v9239 = vld [vmem:[%s5530 + $0xb4] sm:$0xf]
      %v9240 = vld [vmem:[%s5530 + $0xb8] sm:$0xf]
      %v9241 = vld [vmem:[%s5530 + $0xbc] sm:$0x3]
      %v9242 = vmax.bf16 %v9146, %v9194
      %v9243 = vmax.bf16 %v9147, %v9195
      %v9244 = vmax.bf16 %v9148, %v9196
      %v9245 = vmax.bf16 %v9149, %v9197
      %v9246 = vmax.bf16 %v9150, %v9198
      %v9247 = vmax.bf16 %v9151, %v9199
      %v9248 = vmax.bf16 %v9152, %v9200
      %v9249 = vmax.bf16 %v9153, %v9201
      %v9250 = vmax.bf16 %v9154, %v9202
      %v9251 = vmax.bf16 %v9155, %v9203
      %v9252 = vmax.bf16 %v9156, %v9204
      %v9253 = vmax.bf16 %v9157, %v9205
      %v9254 = vmax.bf16 %v9158, %v9206
      %v9255 = vmax.bf16 %v9159, %v9207
      %v9256 = vmax.bf16 %v9160, %v9208
      %v9257 = vmax.bf16 %v9161, %v9209
      %v9258 = vmax.bf16 %v9162, %v9210
      %v9259 = vmax.bf16 %v9163, %v9211
      %v9260 = vmax.bf16 %v9164, %v9212
      %v9261 = vmax.bf16 %v9165, %v9213
      %v9262 = vmax.bf16 %v9166, %v9214
      %v9263 = vmax.bf16 %v9167, %v9215
      %v9264 = vmax.bf16 %v9168, %v9216
      %v9265 = vmax.bf16 %v9169, %v9217
      %v9266 = vmax.bf16 %v9170, %v9218
      %v9267 = vmax.bf16 %v9171, %v9219
      %v9268 = vmax.bf16 %v9172, %v9220
      %v9269 = vmax.bf16 %v9173, %v9221
      %v9270 = vmax.bf16 %v9174, %v9222
      %v9271 = vmax.bf16 %v9175, %v9223
      %v9272 = vmax.bf16 %v9176, %v9224
      %v9273 = vmax.bf16 %v9177, %v9225
      %v9274 = vmax.bf16 %v9178, %v9226
      %v9275 = vmax.bf16 %v9179, %v9227
      %v9276 = vmax.bf16 %v9180, %v9228
      %v9277 = vmax.bf16 %v9181, %v9229
      %v9278 = vmax.bf16 %v9182, %v9230
      %v9279 = vmax.bf16 %v9183, %v9231
      %v9280 = vmax.bf16 %v9184, %v9232
      %v9281 = vmax.bf16 %v9185, %v9233
      %v9282 = vmax.bf16 %v9186, %v9234
      %v9283 = vmax.bf16 %v9187, %v9235
      %v9284 = vmax.bf16 %v9188, %v9236
      %v9285 = vmax.bf16 %v9189, %v9237
      %v9286 = vmax.bf16 %v9190, %v9238
      %v9287 = vmax.bf16 %v9191, %v9239
      %v9288 = vmax.bf16 %v9192, %v9240
      %v9289 = vmax.bf16 %v9193, %v9241
      %v9290 = vld [vmem:[%s5627] sm:$0xf]
      %v9291 = vld [vmem:[%s5627 + $0x4] sm:$0xf]
      %v9292 = vld [vmem:[%s5627 + $0x8] sm:$0x3]
      %v9293 = vld [vmem:[%s5627 + $0xc] sm:$0xf]
      %v9294 = vld [vmem:[%s5627 + $0x10] sm:$0xf]
      %v9295 = vld [vmem:[%s5627 + $0x14] sm:$0x3]
      %v9296 = vld [vmem:[%s5627 + $0x18] sm:$0xf]
      %v9297 = vld [vmem:[%s5627 + $0x1c] sm:$0xf]
      %v9298 = vld [vmem:[%s5627 + $0x20] sm:$0x3]
      %v9299 = vld [vmem:[%s5627 + $0x24] sm:$0xf]
      %v9300 = vld [vmem:[%s5627 + $0x28] sm:$0xf]
      %v9301 = vld [vmem:[%s5627 + $0x2c] sm:$0x3]
      %v9302 = vld [vmem:[%s5627 + $0x30] sm:$0xf]
      %v9303 = vld [vmem:[%s5627 + $0x34] sm:$0xf]
      %v9304 = vld [vmem:[%s5627 + $0x38] sm:$0x3]
      %v9305 = vld [vmem:[%s5627 + $0x3c] sm:$0xf]
      %v9306 = vld [vmem:[%s5627 + $0x40] sm:$0xf]
      %v9307 = vld [vmem:[%s5627 + $0x44] sm:$0x3]
      %v9308 = vld [vmem:[%s5627 + $0x48] sm:$0xf]
      %v9309 = vld [vmem:[%s5627 + $0x4c] sm:$0xf]
      %v9310 = vld [vmem:[%s5627 + $0x50] sm:$0x3]
      %v9311 = vld [vmem:[%s5627 + $0x54] sm:$0xf]
      %v9312 = vld [vmem:[%s5627 + $0x58] sm:$0xf]
      %v9313 = vld [vmem:[%s5627 + $0x5c] sm:$0x3]
      %v9314 = vld [vmem:[%s5627 + $0x60] sm:$0xf]
      %v9315 = vld [vmem:[%s5627 + $0x64] sm:$0xf]
      %v9316 = vld [vmem:[%s5627 + $0x68] sm:$0x3]
      %v9317 = vld [vmem:[%s5627 + $0x6c] sm:$0xf]
      %v9318 = vld [vmem:[%s5627 + $0x70] sm:$0xf]
      %v9319 = vld [vmem:[%s5627 + $0x74] sm:$0x3]
      %v9320 = vld [vmem:[%s5627 + $0x78] sm:$0xf]
      %v9321 = vld [vmem:[%s5627 + $0x7c] sm:$0xf]
      %v9322 = vld [vmem:[%s5627 + $0x80] sm:$0x3]
      %v9323 = vld [vmem:[%s5627 + $0x84] sm:$0xf]
      %v9324 = vld [vmem:[%s5627 + $0x88] sm:$0xf]
      %v9325 = vld [vmem:[%s5627 + $0x8c] sm:$0x3]
      %v9326 = vld [vmem:[%s5627 + $0x90] sm:$0xf]
      %v9327 = vld [vmem:[%s5627 + $0x94] sm:$0xf]
      %v9328 = vld [vmem:[%s5627 + $0x98] sm:$0x3]
      %v9329 = vld [vmem:[%s5627 + $0x9c] sm:$0xf]
      %v9330 = vld [vmem:[%s5627 + $0xa0] sm:$0xf]
      %v9331 = vld [vmem:[%s5627 + $0xa4] sm:$0x3]
      %v9332 = vld [vmem:[%s5627 + $0xa8] sm:$0xf]
      %v9333 = vld [vmem:[%s5627 + $0xac] sm:$0xf]
      %v9334 = vld [vmem:[%s5627 + $0xb0] sm:$0x3]
      %v9335 = vld [vmem:[%s5627 + $0xb4] sm:$0xf]
      %v9336 = vld [vmem:[%s5627 + $0xb8] sm:$0xf]
      %v9337 = vld [vmem:[%s5627 + $0xbc] sm:$0x3]
      %v9338 = vmax.bf16 %v9242, %v9290
      %v9339 = vmax.bf16 %v9243, %v9291
      %v9340 = vmax.bf16 %v9244, %v9292
      %v9341 = vmax.bf16 %v9245, %v9293
      %v9342 = vmax.bf16 %v9246, %v9294
      %v9343 = vmax.bf16 %v9247, %v9295
      %v9344 = vmax.bf16 %v9248, %v9296
      %v9345 = vmax.bf16 %v9249, %v9297
      %v9346 = vmax.bf16 %v9250, %v9298
      %v9347 = vmax.bf16 %v9251, %v9299
      %v9348 = vmax.bf16 %v9252, %v9300
      %v9349 = vmax.bf16 %v9253, %v9301
      %v9350 = vmax.bf16 %v9254, %v9302
      %v9351 = vmax.bf16 %v9255, %v9303
      %v9352 = vmax.bf16 %v9256, %v9304
      %v9353 = vmax.bf16 %v9257, %v9305
      %v9354 = vmax.bf16 %v9258, %v9306
      %v9355 = vmax.bf16 %v9259, %v9307
      %v9356 = vmax.bf16 %v9260, %v9308
      %v9357 = vmax.bf16 %v9261, %v9309
      %v9358 = vmax.bf16 %v9262, %v9310
      %v9359 = vmax.bf16 %v9263, %v9311
      %v9360 = vmax.bf16 %v9264, %v9312
      %v9361 = vmax.bf16 %v9265, %v9313
      %v9362 = vmax.bf16 %v9266, %v9314
      %v9363 = vmax.bf16 %v9267, %v9315
      %v9364 = vmax.bf16 %v9268, %v9316
      %v9365 = vmax.bf16 %v9269, %v9317
      %v9366 = vmax.bf16 %v9270, %v9318
      %v9367 = vmax.bf16 %v9271, %v9319
      %v9368 = vmax.bf16 %v9272, %v9320
      %v9369 = vmax.bf16 %v9273, %v9321
      %v9370 = vmax.bf16 %v9274, %v9322
      %v9371 = vmax.bf16 %v9275, %v9323
      %v9372 = vmax.bf16 %v9276, %v9324
      %v9373 = vmax.bf16 %v9277, %v9325
      %v9374 = vmax.bf16 %v9278, %v9326
      %v9375 = vmax.bf16 %v9279, %v9327
      %v9376 = vmax.bf16 %v9280, %v9328
      %v9377 = vmax.bf16 %v9281, %v9329
      %v9378 = vmax.bf16 %v9282, %v9330
      %v9379 = vmax.bf16 %v9283, %v9331
      %v9380 = vmax.bf16 %v9284, %v9332
      %v9381 = vmax.bf16 %v9285, %v9333
      %v9382 = vmax.bf16 %v9286, %v9334
      %v9383 = vmax.bf16 %v9287, %v9335
      %v9384 = vmax.bf16 %v9288, %v9336
      %v9385 = vmax.bf16 %v9289, %v9337
      %v9387 = vshrl.u32 %v9338, 16
      %v9389 = vrot.slane %v9387, 4
      %v9390 = vshll.u32 %v9338, 16
      %v9392 = vrot.slane %v9390, 5
      %v9393 = vor.u32 %v9389, %v9392
      %v9394 = vrot.slane %v9393, 4
      %v9396 = vshll.u32 %v9339, 16
      %v9398 = vrot.slane %v9396, 5
      %v9399 = vsel %vm5726, %v9394, %v9398
      %v9400 = vshrl.u32 %v9339, 16
      %v9402 = vrot.slane %v9400, 4
      %v9403 = vor.u32 %v9402, %v9398
      %v9404 = vrot.slane %v9403, 4
      %v9406 = vshll.u32 %v9340, 16
      %v9408 = vrot.slane %v9406, 5
      %v9409 = vsel %vm5726, %v9404, %v9408
      %v9411 = vshrl.u32 %v9341, 16
      %v9413 = vrot.slane %v9411, 4
      %v9414 = vshll.u32 %v9341, 16
      %v9416 = vrot.slane %v9414, 5
      %v9417 = vor.u32 %v9413, %v9416
      %v9418 = vrot.slane %v9417, 4
      %v9420 = vshll.u32 %v9342, 16
      %v9422 = vrot.slane %v9420, 5
      %v9423 = vsel %vm5726, %v9418, %v9422
      %v9424 = vshrl.u32 %v9342, 16
      %v9426 = vrot.slane %v9424, 4
      %v9427 = vor.u32 %v9426, %v9422
      %v9428 = vrot.slane %v9427, 4
      %v9430 = vshll.u32 %v9343, 16
      %v9432 = vrot.slane %v9430, 5
      %v9433 = vsel %vm5726, %v9428, %v9432
      %v9435 = vshrl.u32 %v9344, 16
      %v9437 = vrot.slane %v9435, 4
      %v9438 = vshll.u32 %v9344, 16
      %v9440 = vrot.slane %v9438, 5
      %v9441 = vor.u32 %v9437, %v9440
      %v9442 = vrot.slane %v9441, 4
      %v9444 = vshll.u32 %v9345, 16
      %v9446 = vrot.slane %v9444, 5
      %v9447 = vsel %vm5726, %v9442, %v9446
      %v9448 = vshrl.u32 %v9345, 16
      %v9450 = vrot.slane %v9448, 4
      %v9451 = vor.u32 %v9450, %v9446
      %v9452 = vrot.slane %v9451, 4
      %v9454 = vshll.u32 %v9346, 16
      %v9456 = vrot.slane %v9454, 5
      %v9457 = vsel %vm5726, %v9452, %v9456
      %v9459 = vshrl.u32 %v9347, 16
      %v9461 = vrot.slane %v9459, 4
      %v9462 = vshll.u32 %v9347, 16
      %v9464 = vrot.slane %v9462, 5
      %v9465 = vor.u32 %v9461, %v9464
      %v9466 = vrot.slane %v9465, 4
      %v9468 = vshll.u32 %v9348, 16
      %v9470 = vrot.slane %v9468, 5
      %v9471 = vsel %vm5726, %v9466, %v9470
      %v9472 = vshrl.u32 %v9348, 16
      %v9474 = vrot.slane %v9472, 4
      %v9475 = vor.u32 %v9474, %v9470
      %v9476 = vrot.slane %v9475, 4
      %v9478 = vshll.u32 %v9349, 16
      %v9480 = vrot.slane %v9478, 5
      %v9481 = vsel %vm5726, %v9476, %v9480
      %v9483 = vshrl.u32 %v9350, 16
      %v9485 = vrot.slane %v9483, 4
      %v9486 = vshll.u32 %v9350, 16
      %v9488 = vrot.slane %v9486, 5
      %v9489 = vor.u32 %v9485, %v9488
      %v9490 = vrot.slane %v9489, 4
      %v9492 = vshll.u32 %v9351, 16
      %v9494 = vrot.slane %v9492, 5
      %v9495 = vsel %vm5726, %v9490, %v9494
      %v9496 = vshrl.u32 %v9351, 16
      %v9498 = vrot.slane %v9496, 4
      %v9499 = vor.u32 %v9498, %v9494
      %v9500 = vrot.slane %v9499, 4
      %v9502 = vshll.u32 %v9352, 16
      %v9504 = vrot.slane %v9502, 5
      %v9505 = vsel %vm5726, %v9500, %v9504
      %v9507 = vshrl.u32 %v9353, 16
      %v9509 = vrot.slane %v9507, 4
      %v9510 = vshll.u32 %v9353, 16
      %v9512 = vrot.slane %v9510, 5
      %v9513 = vor.u32 %v9509, %v9512
      %v9514 = vrot.slane %v9513, 4
      %v9516 = vshll.u32 %v9354, 16
      %v9518 = vrot.slane %v9516, 5
      %v9519 = vsel %vm5726, %v9514, %v9518
      %v9520 = vshrl.u32 %v9354, 16
      %v9522 = vrot.slane %v9520, 4
      %v9523 = vor.u32 %v9522, %v9518
      %v9524 = vrot.slane %v9523, 4
      %v9526 = vshll.u32 %v9355, 16
      %v9528 = vrot.slane %v9526, 5
      %v9529 = vsel %vm5726, %v9524, %v9528
      %v9531 = vshrl.u32 %v9356, 16
      %v9533 = vrot.slane %v9531, 4
      %v9534 = vshll.u32 %v9356, 16
      %v9536 = vrot.slane %v9534, 5
      %v9537 = vor.u32 %v9533, %v9536
      %v9538 = vrot.slane %v9537, 4
      %v9540 = vshll.u32 %v9357, 16
      %v9542 = vrot.slane %v9540, 5
      %v9543 = vsel %vm5726, %v9538, %v9542
      %v9544 = vshrl.u32 %v9357, 16
      %v9546 = vrot.slane %v9544, 4
      %v9547 = vor.u32 %v9546, %v9542
      %v9548 = vrot.slane %v9547, 4
      %v9550 = vshll.u32 %v9358, 16
      %v9552 = vrot.slane %v9550, 5
      %v9553 = vsel %vm5726, %v9548, %v9552
      %v9555 = vshrl.u32 %v9359, 16
      %v9557 = vrot.slane %v9555, 4
      %v9558 = vshll.u32 %v9359, 16
      %v9560 = vrot.slane %v9558, 5
      %v9561 = vor.u32 %v9557, %v9560
      %v9562 = vrot.slane %v9561, 4
      %v9564 = vshll.u32 %v9360, 16
      %v9566 = vrot.slane %v9564, 5
      %v9567 = vsel %vm5726, %v9562, %v9566
      %v9568 = vshrl.u32 %v9360, 16
      %v9570 = vrot.slane %v9568, 4
      %v9571 = vor.u32 %v9570, %v9566
      %v9572 = vrot.slane %v9571, 4
      %v9574 = vshll.u32 %v9361, 16
      %v9576 = vrot.slane %v9574, 5
      %v9577 = vsel %vm5726, %v9572, %v9576
      %v9579 = vshrl.u32 %v9362, 16
      %v9581 = vrot.slane %v9579, 4
      %v9582 = vshll.u32 %v9362, 16
      %v9584 = vrot.slane %v9582, 5
      %v9585 = vor.u32 %v9581, %v9584
      %v9586 = vrot.slane %v9585, 4
      %v9588 = vshll.u32 %v9363, 16
      %v9590 = vrot.slane %v9588, 5
      %v9591 = vsel %vm5726, %v9586, %v9590
      %v9592 = vshrl.u32 %v9363, 16
      %v9594 = vrot.slane %v9592, 4
      %v9595 = vor.u32 %v9594, %v9590
      %v9596 = vrot.slane %v9595, 4
      %v9598 = vshll.u32 %v9364, 16
      %v9600 = vrot.slane %v9598, 5
      %v9601 = vsel %vm5726, %v9596, %v9600
      %v9603 = vshrl.u32 %v9365, 16
      %v9605 = vrot.slane %v9603, 4
      %v9606 = vshll.u32 %v9365, 16
      %v9608 = vrot.slane %v9606, 5
      %v9609 = vor.u32 %v9605, %v9608
      %v9610 = vrot.slane %v9609, 4
      %v9612 = vshll.u32 %v9366, 16
      %v9614 = vrot.slane %v9612, 5
      %v9615 = vsel %vm5726, %v9610, %v9614
      %v9616 = vshrl.u32 %v9366, 16
      %v9618 = vrot.slane %v9616, 4
      %v9619 = vor.u32 %v9618, %v9614
      %v9620 = vrot.slane %v9619, 4
      %v9622 = vshll.u32 %v9367, 16
      %v9624 = vrot.slane %v9622, 5
      %v9625 = vsel %vm5726, %v9620, %v9624
      %v9627 = vshrl.u32 %v9368, 16
      %v9629 = vrot.slane %v9627, 4
      %v9630 = vshll.u32 %v9368, 16
      %v9632 = vrot.slane %v9630, 5
      %v9633 = vor.u32 %v9629, %v9632
      %v9634 = vrot.slane %v9633, 4
      %v9636 = vshll.u32 %v9369, 16
      %v9638 = vrot.slane %v9636, 5
      %v9639 = vsel %vm5726, %v9634, %v9638
      %v9640 = vshrl.u32 %v9369, 16
      %v9642 = vrot.slane %v9640, 4
      %v9643 = vor.u32 %v9642, %v9638
      %v9644 = vrot.slane %v9643, 4
      %v9646 = vshll.u32 %v9370, 16
      %v9648 = vrot.slane %v9646, 5
      %v9649 = vsel %vm5726, %v9644, %v9648
      %v9651 = vshrl.u32 %v9371, 16
      %v9653 = vrot.slane %v9651, 4
      %v9654 = vshll.u32 %v9371, 16
      %v9656 = vrot.slane %v9654, 5
      %v9657 = vor.u32 %v9653, %v9656
      %v9658 = vrot.slane %v9657, 4
      %v9660 = vshll.u32 %v9372, 16
      %v9662 = vrot.slane %v9660, 5
      %v9663 = vsel %vm5726, %v9658, %v9662
      %v9664 = vshrl.u32 %v9372, 16
      %v9666 = vrot.slane %v9664, 4
      %v9667 = vor.u32 %v9666, %v9662
      %v9668 = vrot.slane %v9667, 4
      %v9670 = vshll.u32 %v9373, 16
      %v9672 = vrot.slane %v9670, 5
      %v9673 = vsel %vm5726, %v9668, %v9672
      %v9675 = vshrl.u32 %v9374, 16
      %v9677 = vrot.slane %v9675, 4
      %v9678 = vshll.u32 %v9374, 16
      %v9680 = vrot.slane %v9678, 5
      %v9681 = vor.u32 %v9677, %v9680
      %v9682 = vrot.slane %v9681, 4
      %v9684 = vshll.u32 %v9375, 16
      %v9686 = vrot.slane %v9684, 5
      %v9687 = vsel %vm5726, %v9682, %v9686
      %v9688 = vshrl.u32 %v9375, 16
      %v9690 = vrot.slane %v9688, 4
      %v9691 = vor.u32 %v9690, %v9686
      %v9692 = vrot.slane %v9691, 4
      %v9694 = vshll.u32 %v9376, 16
      %v9696 = vrot.slane %v9694, 5
      %v9697 = vsel %vm5726, %v9692, %v9696
      %v9699 = vshrl.u32 %v9377, 16
      %v9701 = vrot.slane %v9699, 4
      %v9702 = vshll.u32 %v9377, 16
      %v9704 = vrot.slane %v9702, 5
      %v9705 = vor.u32 %v9701, %v9704
      %v9706 = vrot.slane %v9705, 4
      %v9708 = vshll.u32 %v9378, 16
      %v9710 = vrot.slane %v9708, 5
      %v9711 = vsel %vm5726, %v9706, %v9710
      %v9712 = vshrl.u32 %v9378, 16
      %v9714 = vrot.slane %v9712, 4
      %v9715 = vor.u32 %v9714, %v9710
      %v9716 = vrot.slane %v9715, 4
      %v9718 = vshll.u32 %v9379, 16
      %v9720 = vrot.slane %v9718, 5
      %v9721 = vsel %vm5726, %v9716, %v9720
      %v9723 = vshrl.u32 %v9380, 16
      %v9725 = vrot.slane %v9723, 4
      %v9726 = vshll.u32 %v9380, 16
      %v9728 = vrot.slane %v9726, 5
      %v9729 = vor.u32 %v9725, %v9728
      %v9730 = vrot.slane %v9729, 4
      %v9732 = vshll.u32 %v9381, 16
      %v9734 = vrot.slane %v9732, 5
      %v9735 = vsel %vm5726, %v9730, %v9734
      %v9736 = vshrl.u32 %v9381, 16
      %v9738 = vrot.slane %v9736, 4
      %v9739 = vor.u32 %v9738, %v9734
      %v9740 = vrot.slane %v9739, 4
      %v9742 = vshll.u32 %v9382, 16
      %v9744 = vrot.slane %v9742, 5
      %v9745 = vsel %vm5726, %v9740, %v9744
      %v9747 = vshrl.u32 %v9383, 16
      %v9749 = vrot.slane %v9747, 4
      %v9750 = vshll.u32 %v9383, 16
      %v9752 = vrot.slane %v9750, 5
      %v9753 = vor.u32 %v9749, %v9752
      %v9754 = vrot.slane %v9753, 4
      %v9756 = vshll.u32 %v9384, 16
      %v9758 = vrot.slane %v9756, 5
      %v9759 = vsel %vm5726, %v9754, %v9758
      %v9760 = vshrl.u32 %v9384, 16
      %v9762 = vrot.slane %v9760, 4
      %v9763 = vor.u32 %v9762, %v9758
      %v9764 = vrot.slane %v9763, 4
      %v9766 = vshll.u32 %v9385, 16
      %v9768 = vrot.slane %v9766, 5
      %v9769 = vsel %vm5726, %v9764, %v9768
      %v9802 = vmax.bf16 %v9338, %v9399
      %v9803 = vmax.bf16 %v9339, %v9409
      %v9804 = vmax.bf16 %v9341, %v9423
      %v9805 = vmax.bf16 %v9342, %v9433
      %v9806 = vmax.bf16 %v9344, %v9447
      %v9807 = vmax.bf16 %v9345, %v9457
      %v9808 = vmax.bf16 %v9347, %v9471
      %v9809 = vmax.bf16 %v9348, %v9481
      %v9810 = vmax.bf16 %v9350, %v9495
      %v9811 = vmax.bf16 %v9351, %v9505
      %v9812 = vmax.bf16 %v9353, %v9519
      %v9813 = vmax.bf16 %v9354, %v9529
      %v9814 = vmax.bf16 %v9356, %v9543
      %v9815 = vmax.bf16 %v9357, %v9553
      %v9816 = vmax.bf16 %v9359, %v9567
      %v9817 = vmax.bf16 %v9360, %v9577
      %v9818 = vmax.bf16 %v9362, %v9591
      %v9819 = vmax.bf16 %v9363, %v9601
      %v9820 = vmax.bf16 %v9365, %v9615
      %v9821 = vmax.bf16 %v9366, %v9625
      %v9822 = vmax.bf16 %v9368, %v9639
      %v9823 = vmax.bf16 %v9369, %v9649
      %v9824 = vmax.bf16 %v9371, %v9663
      %v9825 = vmax.bf16 %v9372, %v9673
      %v9826 = vmax.bf16 %v9374, %v9687
      %v9827 = vmax.bf16 %v9375, %v9697
      %v9828 = vmax.bf16 %v9377, %v9711
      %v9829 = vmax.bf16 %v9378, %v9721
      %v9830 = vmax.bf16 %v9380, %v9735
      %v9831 = vmax.bf16 %v9381, %v9745
      %v9832 = vmax.bf16 %v9383, %v9759
      %v9833 = vmax.bf16 %v9384, %v9769
      %v9882 = vrot.slane %v9338, 5
      %v9883 = vrot.slane %v9882, 4
      %v9884 = vrot.slane %v9339, 5
      %v9885 = vsel %vm6225, %v9883, %v9884
      %v9886 = vrot.slane %v9884, 4
      %v9887 = vrot.slane %v9340, 5
      %v9888 = vsel %vm6225, %v9886, %v9887
      %v9889 = vrot.slane %v9341, 5
      %v9890 = vrot.slane %v9889, 4
      %v9891 = vrot.slane %v9342, 5
      %v9892 = vsel %vm6225, %v9890, %v9891
      %v9893 = vrot.slane %v9891, 4
      %v9894 = vrot.slane %v9343, 5
      %v9895 = vsel %vm6225, %v9893, %v9894
      %v9896 = vrot.slane %v9344, 5
      %v9897 = vrot.slane %v9896, 4
      %v9898 = vrot.slane %v9345, 5
      %v9899 = vsel %vm6225, %v9897, %v9898
      %v9900 = vrot.slane %v9898, 4
      %v9901 = vrot.slane %v9346, 5
      %v9902 = vsel %vm6225, %v9900, %v9901
      %v9903 = vrot.slane %v9347, 5
      %v9904 = vrot.slane %v9903, 4
      %v9905 = vrot.slane %v9348, 5
      %v9906 = vsel %vm6225, %v9904, %v9905
      %v9907 = vrot.slane %v9905, 4
      %v9908 = vrot.slane %v9349, 5
      %v9909 = vsel %vm6225, %v9907, %v9908
      %v9910 = vrot.slane %v9350, 5
      %v9911 = vrot.slane %v9910, 4
      %v9912 = vrot.slane %v9351, 5
      %v9913 = vsel %vm6225, %v9911, %v9912
      %v9914 = vrot.slane %v9912, 4
      %v9915 = vrot.slane %v9352, 5
      %v9916 = vsel %vm6225, %v9914, %v9915
      %v9917 = vrot.slane %v9353, 5
      %v9918 = vrot.slane %v9917, 4
      %v9919 = vrot.slane %v9354, 5
      %v9920 = vsel %vm6225, %v9918, %v9919
      %v9921 = vrot.slane %v9919, 4
      %v9922 = vrot.slane %v9355, 5
      %v9923 = vsel %vm6225, %v9921, %v9922
      %v9924 = vrot.slane %v9356, 5
      %v9925 = vrot.slane %v9924, 4
      %v9926 = vrot.slane %v9357, 5
      %v9927 = vsel %vm6225, %v9925, %v9926
      %v9928 = vrot.slane %v9926, 4
      %v9929 = vrot.slane %v9358, 5
      %v9930 = vsel %vm6225, %v9928, %v9929
      %v9931 = vrot.slane %v9359, 5
      %v9932 = vrot.slane %v9931, 4
      %v9933 = vrot.slane %v9360, 5
      %v9934 = vsel %vm6225, %v9932, %v9933
      %v9935 = vrot.slane %v9933, 4
      %v9936 = vrot.slane %v9361, 5
      %v9937 = vsel %vm6225, %v9935, %v9936
      %v9938 = vrot.slane %v9362, 5
      %v9939 = vrot.slane %v9938, 4
      %v9940 = vrot.slane %v9363, 5
      %v9941 = vsel %vm6225, %v9939, %v9940
      %v9942 = vrot.slane %v9940, 4
      %v9943 = vrot.slane %v9364, 5
      %v9944 = vsel %vm6225, %v9942, %v9943
      %v9945 = vrot.slane %v9365, 5
      %v9946 = vrot.slane %v9945, 4
      %v9947 = vrot.slane %v9366, 5
      %v9948 = vsel %vm6225, %v9946, %v9947
      %v9949 = vrot.slane %v9947, 4
      %v9950 = vrot.slane %v9367, 5
      %v9951 = vsel %vm6225, %v9949, %v9950
      %v9952 = vrot.slane %v9368, 5
      %v9953 = vrot.slane %v9952, 4
      %v9954 = vrot.slane %v9369, 5
      %v9955 = vsel %vm6225, %v9953, %v9954
      %v9956 = vrot.slane %v9954, 4
      %v9957 = vrot.slane %v9370, 5
      %v9958 = vsel %vm6225, %v9956, %v9957
      %v9959 = vrot.slane %v9371, 5
      %v9960 = vrot.slane %v9959, 4
      %v9961 = vrot.slane %v9372, 5
      %v9962 = vsel %vm6225, %v9960, %v9961
      %v9963 = vrot.slane %v9961, 4
      %v9964 = vrot.slane %v9373, 5
      %v9965 = vsel %vm6225, %v9963, %v9964
      %v9966 = vrot.slane %v9374, 5
      %v9967 = vrot.slane %v9966, 4
      %v9968 = vrot.slane %v9375, 5
      %v9969 = vsel %vm6225, %v9967, %v9968
      %v9970 = vrot.slane %v9968, 4
      %v9971 = vrot.slane %v9376, 5
      %v9972 = vsel %vm6225, %v9970, %v9971
      %v9973 = vrot.slane %v9377, 5
      %v9974 = vrot.slane %v9973, 4
      %v9975 = vrot.slane %v9378, 5
      %v9976 = vsel %vm6225, %v9974, %v9975
      %v9977 = vrot.slane %v9975, 4
      %v9978 = vrot.slane %v9379, 5
      %v9979 = vsel %vm6225, %v9977, %v9978
      %v9980 = vrot.slane %v9380, 5
      %v9981 = vrot.slane %v9980, 4
      %v9982 = vrot.slane %v9381, 5
      %v9983 = vsel %vm6225, %v9981, %v9982
      %v9984 = vrot.slane %v9982, 4
      %v9985 = vrot.slane %v9382, 5
      %v9986 = vsel %vm6225, %v9984, %v9985
      %v9987 = vrot.slane %v9383, 5
      %v9988 = vrot.slane %v9987, 4
      %v9989 = vrot.slane %v9384, 5
      %v9990 = vsel %vm6225, %v9988, %v9989
      %v9991 = vrot.slane %v9989, 4
      %v9992 = vrot.slane %v9385, 5
      %v9993 = vsel %vm6225, %v9991, %v9992
      %v10026 = vmax.bf16 %v9802, %v9885
      %v10027 = vmax.bf16 %v9803, %v9888
      %v10028 = vmax.bf16 %v9804, %v9892
      %v10029 = vmax.bf16 %v9805, %v9895
      %v10030 = vmax.bf16 %v9806, %v9899
      %v10031 = vmax.bf16 %v9807, %v9902
      %v10032 = vmax.bf16 %v9808, %v9906
      %v10033 = vmax.bf16 %v9809, %v9909
      %v10034 = vmax.bf16 %v9810, %v9913
      %v10035 = vmax.bf16 %v9811, %v9916
      %v10036 = vmax.bf16 %v9812, %v9920
      %v10037 = vmax.bf16 %v9813, %v9923
      %v10038 = vmax.bf16 %v9814, %v9927
      %v10039 = vmax.bf16 %v9815, %v9930
      %v10040 = vmax.bf16 %v9816, %v9934
      %v10041 = vmax.bf16 %v9817, %v9937
      %v10042 = vmax.bf16 %v9818, %v9941
      %v10043 = vmax.bf16 %v9819, %v9944
      %v10044 = vmax.bf16 %v9820, %v9948
      %v10045 = vmax.bf16 %v9821, %v9951
      %v10046 = vmax.bf16 %v9822, %v9955
      %v10047 = vmax.bf16 %v9823, %v9958
      %v10048 = vmax.bf16 %v9824, %v9962
      %v10049 = vmax.bf16 %v9825, %v9965
      %v10050 = vmax.bf16 %v9826, %v9969
      %v10051 = vmax.bf16 %v9827, %v9972
      %v10052 = vmax.bf16 %v9828, %v9976
      %v10053 = vmax.bf16 %v9829, %v9979
      %v10054 = vmax.bf16 %v9830, %v9983
      %v10055 = vmax.bf16 %v9831, %v9986
      %v10056 = vmax.bf16 %v9832, %v9990
      %v10057 = vmax.bf16 %v9833, %v9993
      %v10058 = vrot.slane %v9387, 5
      %v10059 = vrot.slane %v9390, 6
      %v10060 = vor.u32 %v10058, %v10059
      %v10061 = vrot.slane %v10060, 4
      %v10062 = vrot.slane %v9400, 5
      %v10063 = vrot.slane %v9396, 6
      %v10064 = vor.u32 %v10062, %v10063
      %v10065 = vsel %vm6404, %v10061, %v10064
      %v10066 = vrot.slane %v10064, 4
      %v10067 = vshrl.u32 %v9340, 16
      %v10069 = vrot.slane %v10067, 5
      %v10070 = vrot.slane %v9406, 6
      %v10071 = vor.u32 %v10069, %v10070
      %v10072 = vsel %vm6404, %v10066, %v10071
      %v10073 = vrot.slane %v9411, 5
      %v10074 = vrot.slane %v9414, 6
      %v10075 = vor.u32 %v10073, %v10074
      %v10076 = vrot.slane %v10075, 4
      %v10077 = vrot.slane %v9424, 5
      %v10078 = vrot.slane %v9420, 6
      %v10079 = vor.u32 %v10077, %v10078
      %v10080 = vsel %vm6404, %v10076, %v10079
      %v10081 = vrot.slane %v10079, 4
      %v10082 = vshrl.u32 %v9343, 16
      %v10084 = vrot.slane %v10082, 5
      %v10085 = vrot.slane %v9430, 6
      %v10086 = vor.u32 %v10084, %v10085
      %v10087 = vsel %vm6404, %v10081, %v10086
      %v10088 = vrot.slane %v9435, 5
      %v10089 = vrot.slane %v9438, 6
      %v10090 = vor.u32 %v10088, %v10089
      %v10091 = vrot.slane %v10090, 4
      %v10092 = vrot.slane %v9448, 5
      %v10093 = vrot.slane %v9444, 6
      %v10094 = vor.u32 %v10092, %v10093
      %v10095 = vsel %vm6404, %v10091, %v10094
      %v10096 = vrot.slane %v10094, 4
      %v10097 = vshrl.u32 %v9346, 16
      %v10099 = vrot.slane %v10097, 5
      %v10100 = vrot.slane %v9454, 6
      %v10101 = vor.u32 %v10099, %v10100
      %v10102 = vsel %vm6404, %v10096, %v10101
      %v10103 = vrot.slane %v9459, 5
      %v10104 = vrot.slane %v9462, 6
      %v10105 = vor.u32 %v10103, %v10104
      %v10106 = vrot.slane %v10105, 4
      %v10107 = vrot.slane %v9472, 5
      %v10108 = vrot.slane %v9468, 6
      %v10109 = vor.u32 %v10107, %v10108
      %v10110 = vsel %vm6404, %v10106, %v10109
      %v10111 = vrot.slane %v10109, 4
      %v10112 = vshrl.u32 %v9349, 16
      %v10114 = vrot.slane %v10112, 5
      %v10115 = vrot.slane %v9478, 6
      %v10116 = vor.u32 %v10114, %v10115
      %v10117 = vsel %vm6404, %v10111, %v10116
      %v10118 = vrot.slane %v9483, 5
      %v10119 = vrot.slane %v9486, 6
      %v10120 = vor.u32 %v10118, %v10119
      %v10121 = vrot.slane %v10120, 4
      %v10122 = vrot.slane %v9496, 5
      %v10123 = vrot.slane %v9492, 6
      %v10124 = vor.u32 %v10122, %v10123
      %v10125 = vsel %vm6404, %v10121, %v10124
      %v10126 = vrot.slane %v10124, 4
      %v10127 = vshrl.u32 %v9352, 16
      %v10129 = vrot.slane %v10127, 5
      %v10130 = vrot.slane %v9502, 6
      %v10131 = vor.u32 %v10129, %v10130
      %v10132 = vsel %vm6404, %v10126, %v10131
      %v10133 = vrot.slane %v9507, 5
      %v10134 = vrot.slane %v9510, 6
      %v10135 = vor.u32 %v10133, %v10134
      %v10136 = vrot.slane %v10135, 4
      %v10137 = vrot.slane %v9520, 5
      %v10138 = vrot.slane %v9516, 6
      %v10139 = vor.u32 %v10137, %v10138
      %v10140 = vsel %vm6404, %v10136, %v10139
      %v10141 = vrot.slane %v10139, 4
      %v10142 = vshrl.u32 %v9355, 16
      %v10144 = vrot.slane %v10142, 5
      %v10145 = vrot.slane %v9526, 6
      %v10146 = vor.u32 %v10144, %v10145
      %v10147 = vsel %vm6404, %v10141, %v10146
      %v10148 = vrot.slane %v9531, 5
      %v10149 = vrot.slane %v9534, 6
      %v10150 = vor.u32 %v10148, %v10149
      %v10151 = vrot.slane %v10150, 4
      %v10152 = vrot.slane %v9544, 5
      %v10153 = vrot.slane %v9540, 6
      %v10154 = vor.u32 %v10152, %v10153
      %v10155 = vsel %vm6404, %v10151, %v10154
      %v10156 = vrot.slane %v10154, 4
      %v10157 = vshrl.u32 %v9358, 16
      %v10159 = vrot.slane %v10157, 5
      %v10160 = vrot.slane %v9550, 6
      %v10161 = vor.u32 %v10159, %v10160
      %v10162 = vsel %vm6404, %v10156, %v10161
      %v10163 = vrot.slane %v9555, 5
      %v10164 = vrot.slane %v9558, 6
      %v10165 = vor.u32 %v10163, %v10164
      %v10166 = vrot.slane %v10165, 4
      %v10167 = vrot.slane %v9568, 5
      %v10168 = vrot.slane %v9564, 6
      %v10169 = vor.u32 %v10167, %v10168
      %v10170 = vsel %vm6404, %v10166, %v10169
      %v10171 = vrot.slane %v10169, 4
      %v10172 = vshrl.u32 %v9361, 16
      %v10174 = vrot.slane %v10172, 5
      %v10175 = vrot.slane %v9574, 6
      %v10176 = vor.u32 %v10174, %v10175
      %v10177 = vsel %vm6404, %v10171, %v10176
      %v10178 = vrot.slane %v9579, 5
      %v10179 = vrot.slane %v9582, 6
      %v10180 = vor.u32 %v10178, %v10179
      %v10181 = vrot.slane %v10180, 4
      %v10182 = vrot.slane %v9592, 5
      %v10183 = vrot.slane %v9588, 6
      %v10184 = vor.u32 %v10182, %v10183
      %v10185 = vsel %vm6404, %v10181, %v10184
      %v10186 = vrot.slane %v10184, 4
      %v10187 = vshrl.u32 %v9364, 16
      %v10189 = vrot.slane %v10187, 5
      %v10190 = vrot.slane %v9598, 6
      %v10191 = vor.u32 %v10189, %v10190
      %v10192 = vsel %vm6404, %v10186, %v10191
      %v10193 = vrot.slane %v9603, 5
      %v10194 = vrot.slane %v9606, 6
      %v10195 = vor.u32 %v10193, %v10194
      %v10196 = vrot.slane %v10195, 4
      %v10197 = vrot.slane %v9616, 5
      %v10198 = vrot.slane %v9612, 6
      %v10199 = vor.u32 %v10197, %v10198
      %v10200 = vsel %vm6404, %v10196, %v10199
      %v10201 = vrot.slane %v10199, 4
      %v10202 = vshrl.u32 %v9367, 16
      %v10204 = vrot.slane %v10202, 5
      %v10205 = vrot.slane %v9622, 6
      %v10206 = vor.u32 %v10204, %v10205
      %v10207 = vsel %vm6404, %v10201, %v10206
      %v10208 = vrot.slane %v9627, 5
      %v10209 = vrot.slane %v9630, 6
      %v10210 = vor.u32 %v10208, %v10209
      %v10211 = vrot.slane %v10210, 4
      %v10212 = vrot.slane %v9640, 5
      %v10213 = vrot.slane %v9636, 6
      %v10214 = vor.u32 %v10212, %v10213
      %v10215 = vsel %vm6404, %v10211, %v10214
      %v10216 = vrot.slane %v10214, 4
      %v10217 = vshrl.u32 %v9370, 16
      %v10219 = vrot.slane %v10217, 5
      %v10220 = vrot.slane %v9646, 6
      %v10221 = vor.u32 %v10219, %v10220
      %v10222 = vsel %vm6404, %v10216, %v10221
      %v10223 = vrot.slane %v9651, 5
      %v10224 = vrot.slane %v9654, 6
      %v10225 = vor.u32 %v10223, %v10224
      %v10226 = vrot.slane %v10225, 4
      %v10227 = vrot.slane %v9664, 5
      %v10228 = vrot.slane %v9660, 6
      %v10229 = vor.u32 %v10227, %v10228
      %v10230 = vsel %vm6404, %v10226, %v10229
      %v10231 = vrot.slane %v10229, 4
      %v10232 = vshrl.u32 %v9373, 16
      %v10234 = vrot.slane %v10232, 5
      %v10235 = vrot.slane %v9670, 6
      %v10236 = vor.u32 %v10234, %v10235
      %v10237 = vsel %vm6404, %v10231, %v10236
      %v10238 = vrot.slane %v9675, 5
      %v10239 = vrot.slane %v9678, 6
      %v10240 = vor.u32 %v10238, %v10239
      %v10241 = vrot.slane %v10240, 4
      %v10242 = vrot.slane %v9688, 5
      %v10243 = vrot.slane %v9684, 6
      %v10244 = vor.u32 %v10242, %v10243
      %v10245 = vsel %vm6404, %v10241, %v10244
      %v10246 = vrot.slane %v10244, 4
      %v10247 = vshrl.u32 %v9376, 16
      %v10249 = vrot.slane %v10247, 5
      %v10250 = vrot.slane %v9694, 6
      %v10251 = vor.u32 %v10249, %v10250
      %v10252 = vsel %vm6404, %v10246, %v10251
      %v10253 = vrot.slane %v9699, 5
      %v10254 = vrot.slane %v9702, 6
      %v10255 = vor.u32 %v10253, %v10254
      %v10256 = vrot.slane %v10255, 4
      %v10257 = vrot.slane %v9712, 5
      %v10258 = vrot.slane %v9708, 6
      %v10259 = vor.u32 %v10257, %v10258
      %v10260 = vsel %vm6404, %v10256, %v10259
      %v10261 = vrot.slane %v10259, 4
      %v10262 = vshrl.u32 %v9379, 16
      %v10264 = vrot.slane %v10262, 5
      %v10265 = vrot.slane %v9718, 6
      %v10266 = vor.u32 %v10264, %v10265
      %v10267 = vsel %vm6404, %v10261, %v10266
      %v10268 = vrot.slane %v9723, 5
      %v10269 = vrot.slane %v9726, 6
      %v10270 = vor.u32 %v10268, %v10269
      %v10271 = vrot.slane %v10270, 4
      %v10272 = vrot.slane %v9736, 5
      %v10273 = vrot.slane %v9732, 6
      %v10274 = vor.u32 %v10272, %v10273
      %v10275 = vsel %vm6404, %v10271, %v10274
      %v10276 = vrot.slane %v10274, 4
      %v10277 = vshrl.u32 %v9382, 16
      %v10279 = vrot.slane %v10277, 5
      %v10280 = vrot.slane %v9742, 6
      %v10281 = vor.u32 %v10279, %v10280
      %v10282 = vsel %vm6404, %v10276, %v10281
      %v10283 = vrot.slane %v9747, 5
      %v10284 = vrot.slane %v9750, 6
      %v10285 = vor.u32 %v10283, %v10284
      %v10286 = vrot.slane %v10285, 4
      %v10287 = vrot.slane %v9760, 5
      %v10288 = vrot.slane %v9756, 6
      %v10289 = vor.u32 %v10287, %v10288
      %v10290 = vsel %vm6404, %v10286, %v10289
      %v10291 = vrot.slane %v10289, 4
      %v10292 = vshrl.u32 %v9385, 16
      %v10294 = vrot.slane %v10292, 5
      %v10295 = vrot.slane %v9766, 6
      %v10296 = vor.u32 %v10294, %v10295
      %v10297 = vsel %vm6404, %v10291, %v10296
      %v10330 = vmax.bf16 %v10026, %v10065
      %v10331 = vmax.bf16 %v10027, %v10072
      %v10332 = vmax.bf16 %v10028, %v10080
      %v10333 = vmax.bf16 %v10029, %v10087
      %v10334 = vmax.bf16 %v10030, %v10095
      %v10335 = vmax.bf16 %v10031, %v10102
      %v10336 = vmax.bf16 %v10032, %v10110
      %v10337 = vmax.bf16 %v10033, %v10117
      %v10338 = vmax.bf16 %v10034, %v10125
      %v10339 = vmax.bf16 %v10035, %v10132
      %v10340 = vmax.bf16 %v10036, %v10140
      %v10341 = vmax.bf16 %v10037, %v10147
      %v10342 = vmax.bf16 %v10038, %v10155
      %v10343 = vmax.bf16 %v10039, %v10162
      %v10344 = vmax.bf16 %v10040, %v10170
      %v10345 = vmax.bf16 %v10041, %v10177
      %v10346 = vmax.bf16 %v10042, %v10185
      %v10347 = vmax.bf16 %v10043, %v10192
      %v10348 = vmax.bf16 %v10044, %v10200
      %v10349 = vmax.bf16 %v10045, %v10207
      %v10350 = vmax.bf16 %v10046, %v10215
      %v10351 = vmax.bf16 %v10047, %v10222
      %v10352 = vmax.bf16 %v10048, %v10230
      %v10353 = vmax.bf16 %v10049, %v10237
      %v10354 = vmax.bf16 %v10050, %v10245
      %v10355 = vmax.bf16 %v10051, %v10252
      %v10356 = vmax.bf16 %v10052, %v10260
      %v10357 = vmax.bf16 %v10053, %v10267
      %v10358 = vmax.bf16 %v10054, %v10275
      %v10359 = vmax.bf16 %v10055, %v10282
      %v10360 = vmax.bf16 %v10056, %v10290
      %v10361 = vmax.bf16 %v10057, %v10297
      %v10362 = vrot.slane %v9338, 6
      %v10363 = vrot.slane %v10362, 4
      %v10364 = vrot.slane %v9339, 6
      %v10365 = vsel %vm6711, %v10363, %v10364
      %v10366 = vrot.slane %v10364, 4
      %v10367 = vrot.slane %v9340, 6
      %v10368 = vsel %vm6711, %v10366, %v10367
      %v10369 = vrot.slane %v9341, 6
      %v10370 = vrot.slane %v10369, 4
      %v10371 = vrot.slane %v9342, 6
      %v10372 = vsel %vm6711, %v10370, %v10371
      %v10373 = vrot.slane %v10371, 4
      %v10374 = vrot.slane %v9343, 6
      %v10375 = vsel %vm6711, %v10373, %v10374
      %v10376 = vrot.slane %v9344, 6
      %v10377 = vrot.slane %v10376, 4
      %v10378 = vrot.slane %v9345, 6
      %v10379 = vsel %vm6711, %v10377, %v10378
      %v10380 = vrot.slane %v10378, 4
      %v10381 = vrot.slane %v9346, 6
      %v10382 = vsel %vm6711, %v10380, %v10381
      %v10383 = vrot.slane %v9347, 6
      %v10384 = vrot.slane %v10383, 4
      %v10385 = vrot.slane %v9348, 6
      %v10386 = vsel %vm6711, %v10384, %v10385
      %v10387 = vrot.slane %v10385, 4
      %v10388 = vrot.slane %v9349, 6
      %v10389 = vsel %vm6711, %v10387, %v10388
      %v10390 = vrot.slane %v9350, 6
      %v10391 = vrot.slane %v10390, 4
      %v10392 = vrot.slane %v9351, 6
      %v10393 = vsel %vm6711, %v10391, %v10392
      %v10394 = vrot.slane %v10392, 4
      %v10395 = vrot.slane %v9352, 6
      %v10396 = vsel %vm6711, %v10394, %v10395
      %v10397 = vrot.slane %v9353, 6
      %v10398 = vrot.slane %v10397, 4
      %v10399 = vrot.slane %v9354, 6
      %v10400 = vsel %vm6711, %v10398, %v10399
      %v10401 = vrot.slane %v10399, 4
      %v10402 = vrot.slane %v9355, 6
      %v10403 = vsel %vm6711, %v10401, %v10402
      %v10404 = vrot.slane %v9356, 6
      %v10405 = vrot.slane %v10404, 4
      %v10406 = vrot.slane %v9357, 6
      %v10407 = vsel %vm6711, %v10405, %v10406
      %v10408 = vrot.slane %v10406, 4
      %v10409 = vrot.slane %v9358, 6
      %v10410 = vsel %vm6711, %v10408, %v10409
      %v10411 = vrot.slane %v9359, 6
      %v10412 = vrot.slane %v10411, 4
      %v10413 = vrot.slane %v9360, 6
      %v10414 = vsel %vm6711, %v10412, %v10413
      %v10415 = vrot.slane %v10413, 4
      %v10416 = vrot.slane %v9361, 6
      %v10417 = vsel %vm6711, %v10415, %v10416
      %v10418 = vrot.slane %v9362, 6
      %v10419 = vrot.slane %v10418, 4
      %v10420 = vrot.slane %v9363, 6
      %v10421 = vsel %vm6711, %v10419, %v10420
      %v10422 = vrot.slane %v10420, 4
      %v10423 = vrot.slane %v9364, 6
      %v10424 = vsel %vm6711, %v10422, %v10423
      %v10425 = vrot.slane %v9365, 6
      %v10426 = vrot.slane %v10425, 4
      %v10427 = vrot.slane %v9366, 6
      %v10428 = vsel %vm6711, %v10426, %v10427
      %v10429 = vrot.slane %v10427, 4
      %v10430 = vrot.slane %v9367, 6
      %v10431 = vsel %vm6711, %v10429, %v10430
      %v10432 = vrot.slane %v9368, 6
      %v10433 = vrot.slane %v10432, 4
      %v10434 = vrot.slane %v9369, 6
      %v10435 = vsel %vm6711, %v10433, %v10434
      %v10436 = vrot.slane %v10434, 4
      %v10437 = vrot.slane %v9370, 6
      %v10438 = vsel %vm6711, %v10436, %v10437
      %v10439 = vrot.slane %v9371, 6
      %v10440 = vrot.slane %v10439, 4
      %v10441 = vrot.slane %v9372, 6
      %v10442 = vsel %vm6711, %v10440, %v10441
      %v10443 = vrot.slane %v10441, 4
      %v10444 = vrot.slane %v9373, 6
      %v10445 = vsel %vm6711, %v10443, %v10444
      %v10446 = vrot.slane %v9374, 6
      %v10447 = vrot.slane %v10446, 4
      %v10448 = vrot.slane %v9375, 6
      %v10449 = vsel %vm6711, %v10447, %v10448
      %v10450 = vrot.slane %v10448, 4
      %v10451 = vrot.slane %v9376, 6
      %v10452 = vsel %vm6711, %v10450, %v10451
      %v10453 = vrot.slane %v9377, 6
      %v10454 = vrot.slane %v10453, 4
      %v10455 = vrot.slane %v9378, 6
      %v10456 = vsel %vm6711, %v10454, %v10455
      %v10457 = vrot.slane %v10455, 4
      %v10458 = vrot.slane %v9379, 6
      %v10459 = vsel %vm6711, %v10457, %v10458
      %v10460 = vrot.slane %v9380, 6
      %v10461 = vrot.slane %v10460, 4
      %v10462 = vrot.slane %v9381, 6
      %v10463 = vsel %vm6711, %v10461, %v10462
      %v10464 = vrot.slane %v10462, 4
      %v10465 = vrot.slane %v9382, 6
      %v10466 = vsel %vm6711, %v10464, %v10465
      %v10467 = vrot.slane %v9383, 6
      %v10468 = vrot.slane %v10467, 4
      %v10469 = vrot.slane %v9384, 6
      %v10470 = vsel %vm6711, %v10468, %v10469
      %v10471 = vrot.slane %v10469, 4
      %v10472 = vrot.slane %v9385, 6
      %v10473 = vsel %vm6711, %v10471, %v10472
      %v10506 = vmax.bf16 %v10330, %v10365
      %v10507 = vmax.bf16 %v10331, %v10368
      %v10508 = vmax.bf16 %v10332, %v10372
      %v10509 = vmax.bf16 %v10333, %v10375
      %v10510 = vmax.bf16 %v10334, %v10379
      %v10511 = vmax.bf16 %v10335, %v10382
      %v10512 = vmax.bf16 %v10336, %v10386
      %v10513 = vmax.bf16 %v10337, %v10389
      %v10514 = vmax.bf16 %v10338, %v10393
      %v10515 = vmax.bf16 %v10339, %v10396
      %v10516 = vmax.bf16 %v10340, %v10400
      %v10517 = vmax.bf16 %v10341, %v10403
      %v10518 = vmax.bf16 %v10342, %v10407
      %v10519 = vmax.bf16 %v10343, %v10410
      %v10520 = vmax.bf16 %v10344, %v10414
      %v10521 = vmax.bf16 %v10345, %v10417
      %v10522 = vmax.bf16 %v10346, %v10421
      %v10523 = vmax.bf16 %v10347, %v10424
      %v10524 = vmax.bf16 %v10348, %v10428
      %v10525 = vmax.bf16 %v10349, %v10431
      %v10526 = vmax.bf16 %v10350, %v10435
      %v10527 = vmax.bf16 %v10351, %v10438
      %v10528 = vmax.bf16 %v10352, %v10442
      %v10529 = vmax.bf16 %v10353, %v10445
      %v10530 = vmax.bf16 %v10354, %v10449
      %v10531 = vmax.bf16 %v10355, %v10452
      %v10532 = vmax.bf16 %v10356, %v10456
      %v10533 = vmax.bf16 %v10357, %v10459
      %v10534 = vmax.bf16 %v10358, %v10463
      %v10535 = vmax.bf16 %v10359, %v10466
      %v10536 = vmax.bf16 %v10360, %v10470
      %v10537 = vmax.bf16 %v10361, %v10473
      %s10538 = scalar_lea.vmem %s280, 384
      %10539 = vst [vmem:[%s10538] sm:$0xf] %v10506
      %10540 = vst [vmem:[%s10538 + $0x4] sm:$0xf] %v10507
      %10541 = vst [vmem:[%s10538 + $0x8] sm:$0xf] %v10508
      %10542 = vst [vmem:[%s10538 + $0xc] sm:$0xf] %v10509
      %10543 = vst [vmem:[%s10538 + $0x10] sm:$0xf] %v10510
      %10544 = vst [vmem:[%s10538 + $0x14] sm:$0xf] %v10511
      %10545 = vst [vmem:[%s10538 + $0x18] sm:$0xf] %v10512
      %10546 = vst [vmem:[%s10538 + $0x1c] sm:$0xf] %v10513
      %10547 = vst [vmem:[%s10538 + $0x20] sm:$0xf] %v10514
      %10548 = vst [vmem:[%s10538 + $0x24] sm:$0xf] %v10515
      %10549 = vst [vmem:[%s10538 + $0x28] sm:$0xf] %v10516
      %10550 = vst [vmem:[%s10538 + $0x2c] sm:$0xf] %v10517
      %10551 = vst [vmem:[%s10538 + $0x30] sm:$0xf] %v10518
      %10552 = vst [vmem:[%s10538 + $0x34] sm:$0xf] %v10519
      %10553 = vst [vmem:[%s10538 + $0x38] sm:$0xf] %v10520
      %10554 = vst [vmem:[%s10538 + $0x3c] sm:$0xf] %v10521
      %10555 = vst [vmem:[%s10538 + $0x40] sm:$0xf] %v10522
      %10556 = vst [vmem:[%s10538 + $0x44] sm:$0xf] %v10523
      %10557 = vst [vmem:[%s10538 + $0x48] sm:$0xf] %v10524
      %10558 = vst [vmem:[%s10538 + $0x4c] sm:$0xf] %v10525
      %10559 = vst [vmem:[%s10538 + $0x50] sm:$0xf] %v10526
      %10560 = vst [vmem:[%s10538 + $0x54] sm:$0xf] %v10527
      %10561 = vst [vmem:[%s10538 + $0x58] sm:$0xf] %v10528
      %10562 = vst [vmem:[%s10538 + $0x5c] sm:$0xf] %v10529
      %10563 = vst [vmem:[%s10538 + $0x60] sm:$0xf] %v10530
      %10564 = vst [vmem:[%s10538 + $0x64] sm:$0xf] %v10531
      %10565 = vst [vmem:[%s10538 + $0x68] sm:$0xf] %v10532
      %10566 = vst [vmem:[%s10538 + $0x6c] sm:$0xf] %v10533
      %10567 = vst [vmem:[%s10538 + $0x70] sm:$0xf] %v10534
      %10568 = vst [vmem:[%s10538 + $0x74] sm:$0xf] %v10535
      %10569 = vst [vmem:[%s10538 + $0x78] sm:$0xf] %v10536
      %10570 = vst [vmem:[%s10538 + $0x7c] sm:$0xf] %v10537
      %s10571 = smul.u32 4, %s18
      %p10572 = scmp.lt.s32.totalorder %s10571, 7
      %s10573 = scalar_select %p10572, %s10571, 7
      %s10574 = smul.addr %s10573, 32
      %s10575 = smul.addr %s10574, 4
      %s10576 = scalar_lea.vmem %s7, %s10575
      // Predicated region
      $region49: #{spp_forward.1} parent=47 // pred_check
        %p10577 = pneg %p188
      $region50: #{spp_forward.1} parent=47 // pred_check_branch
        %10579 = sbr.rel (%p10577) target = $region52
      $region51: #{spp_forward.1} parent=47 // pred_region
        %s10580 = smul.u32 4, %s18
      $region52: #{spp_forward.1} parent=47 // pred_fallthru
        _
    $region48: #{spp_forward.1} parent=5 // pred_fallthru
      _
    %p10581 = scmp.le.s32.totalorder 2, %s13
    // Predicated region
    $region53: #{spp_forward.1} parent=5 // pred_check
      %p10582 = pneg %p10581
    $region54: #{spp_forward.1} parent=5 // pred_check_branch
      %10584 = sbr.rel (%p10582) target = $region56
    $region55: #{spp_forward.1} parent=5 // pred_region
      %s10585 = ssub.s32 %s13, 2
      // Predicated region
      $region57: #{spp_forward.1} parent=55 // pred_check
        %p10586 = pneg %p194
      $region58: #{spp_forward.1} parent=55 // pred_check_branch
        %10588 = sbr.rel (%p10586) target = $region60
      $region59: #{spp_forward.1} parent=55 // pred_region
        %s10589 = smul.u32 4, %s19
        %p10590 = scmp.lt.s32.totalorder %s10589, 7
        %s10591 = scalar_select %p10590, %s10589, 7
        %s10592 = smul.addr %s10591, 32
        %s10593 = smul.addr %s10592, 4
        %s10594 = scalar_lea.vmem %s7, %s10593
      $region60: #{spp_forward.1} parent=55 // pred_fallthru
        _
    $region56: #{spp_forward.1} parent=5 // pred_fallthru
      _
  $region6: #{spp_forward.1} parent=0 // loop_footer
    %s17 = sadd.s32 1, %s13
  $region7: #{spp_forward.1} parent=0 // loop_footer_branch
    %12 = sbr.rel target = $region3
  $region8: #{spp_forward.1} parent=0 // loop_exit
    _

</llo_original>
